<compile_context>
chip_gen: v7x
topology: tpu7x:2x2x1
jax: 0.10.0
libtpu: 0.0.40
codegen_flags: <defaults>
</compile_context>

<pallas_src>
import functools

import jax
import jax.numpy as jnp
from jax import lax
from jax.experimental import pallas as pl
from jax.experimental.pallas import tpu as pltpu

EPS = 1e-5


def _layer(w, col, h, S, ST, *, B, m_real):
    """conv1x1 + AdaIN + training-mode BatchNorm1d + ReLU, fused.

    h   : (Cin, B*Mp) f32 activations; batch b occupies columns [b*Mp,(b+1)*Mp)
    w   : (Cout, Cin) conv weight (bf16 or f32)
    col : (Cout, 3 + 2B) packed f32 column params:
          [:,0]=conv bias, [:,1]=bn gamma, [:,2]=bn beta,
          [:,3:3+B]=AdaIN weight, [:,3+B:3+2B]=AdaIN bias
    S   : (B*Mp, B) f32 block-diagonal ones (zeros on padded columns)
    ST  : (B, B*Mp) f32 = S.T (used to broadcast per-(c,b) affines to the slab)
    """
    bias = col[:, 0:1]
    gamma = col[:, 1:2]
    beta = col[:, 2:3]
    aw = col[:, 3:3 + B]            # (C, B)
    ab = col[:, 3 + B:3 + 2 * B]    # (C, B)

    # Single MXU matmul over the flattened slab (operands bf16 in fast mode).
    f = jnp.dot(w, h.astype(w.dtype), preferred_element_type=jnp.float32) + bias

    # Per-(b, c) instance stats via two MXU matmuls (f32 operands: stats stay
    # in f32, and this keeps the XLU free).  Padded columns are masked by S.
    inv_m = 1.0 / m_real
    s1 = jnp.dot(f, S, preferred_element_type=jnp.float32)        # (C, B)
    s2 = jnp.dot(f * f, S, preferred_element_type=jnp.float32)    # (C, B)
    mean = s1 * inv_m
    var = jnp.maximum(s2 * inv_m - mean * mean, 0.0)               # biased var
    rs = lax.rsqrt(var + EPS)

    # Analytic training-mode BatchNorm moments of the AdaIN output (exact for
    # biased variance, equal per-batch counts m_real, and matching eps):
    #   E_M[y] = ab,  E_M[y^2] = aw^2 * var/(var+eps) + ab^2
    inv_b = 1.0 / B
    bn_mean = jnp.sum(ab, axis=1, keepdims=True) * inv_b                       # (C,1)
    bn_sq = jnp.sum(aw * aw * (var * rs * rs) + ab * ab,
                    axis=1, keepdims=True) * inv_b                             # (C,1)
    bn_var = jnp.maximum(bn_sq - bn_mean * bn_mean, 0.0)
    g_rs = gamma * lax.rsqrt(bn_var + EPS)                                     # (C,1)

    # Fold AdaIN + BN into one per-(c, b) affine and broadcast it to the slab
    # with ONE tiny matmul each (no per-batch loop, no concatenate).
    scale_cb = rs * aw * g_rs                                                  # (C,B)
    shift_cb = (ab - mean * rs * aw - bn_mean) * g_rs + beta                   # (C,B)
    scale = jnp.dot(scale_cb, ST, preferred_element_type=jnp.float32)          # (C,B*Mp)
    shift = jnp.dot(shift_cb, ST, preferred_element_type=jnp.float32)          # (C,B*Mp)

    # One fused affine + ReLU pass over the whole slab (f32 elementwise math).
    return jnp.maximum(f * scale + shift, 0.0)


def _pointgencon_kernel(x_hbm, s_ref, st_ref,
                        w1_ref, col1_ref,
                        w2_ref, col2_ref,
                        w3_ref, col3_ref,
                        w4_ref, b4_ref,
                        out_ref,
                        slab_ref, sem_ref, *, B, Mp, m_real):
    # Gather the (B, Cin, Mp) HBM input into a lane-dense (Cin, B*Mp) VMEM slab.
    # Column offsets b*Mp are static multiples of 128, so the DMA windows are
    # tile-aligned.  (For production B, switch these static loops to pl.loop.)
    for b in range(B):
        pltpu.make_async_copy(x_hbm.at[b],
                              slab_ref.at[:, b * Mp:(b + 1) * Mp],
                              sem_ref.at[b]).start()
    for b in range(B):
        pltpu.make_async_copy(x_hbm.at[b],
                              slab_ref.at[:, b * Mp:(b + 1) * Mp],
                              sem_ref.at[b]).wait()

    S = s_ref[...]
    ST = st_ref[...]

    h = slab_ref[...]                                           # (Cin, B*Mp) f32
    h = _layer(w1_ref[...], col1_ref[...], h, S, ST, B=B, m_real=m_real)
    h = _layer(w2_ref[...], col2_ref[...], h, S, ST, B=B, m_real=m_real)
    h = _layer(w3_ref[...], col3_ref[...], h, S, ST, B=B, m_real=m_real)

    w4 = w4_ref[...]
    f4 = jnp.dot(w4, h.astype(w4.dtype),
                 preferred_element_type=jnp.float32) + b4_ref[...]
    y = jnp.tanh(f4)                                            # (out_pad, B*Mp)

    # Per-batch output stores (full 128-lane vreg stores, no wrapper transpose).
    for b in range(B):
        out_ref[b] = y[:, b * Mp:(b + 1) * Mp]


@functools.partial(jax.jit, static_argnames=("matmul_dtype",))
def pointgencon_forward(x, params, matmul_dtype=jnp.bfloat16):
    (w1, b1, aw1, ab1, g1, be1,
     w2, b2, aw2, ab2, g2, be2,
     w3, b3, aw3, ab3, g3, be3,
     w4, b4) = params

    B, cin, m_real = x.shape
    out_size, c4 = w4.shape
    out_pad = -(-out_size // 8) * 8           # sublane granule for last projection
    Mp = -(-m_real // 128) * 128              # lane-align M (128)
    if Mp != m_real:
        x = jnp.pad(x, ((0, 0), (0, 0), (0, Mp - m_real)))
    mm_dtype = jnp.dtype(matmul_dtype)

    def pack_cols(bias, gamma, beta, aw, ab, c):
        aw_r = aw.reshape(B, c).T             # (c, B)
        ab_r = ab.reshape(B, c).T             # (c, B)
        return jnp.concatenate(
            [bias[:, None], gamma[:, None], beta[:, None], aw_r, ab_r],
            axis=1).astype(jnp.float32)       # (c, 3 + 2B)

    col1 = pack_cols(b1, g1, be1, aw1, ab1, w1.shape[0])
    col2 = pack_cols(b2, g2, be2, aw2, ab2, w2.shape[0])
    col3 = pack_cols(b3, g3, be3, aw3, ab3, w3.shape[0])

    # Pre-cast matmul weights (halves weight DMA bytes in bf16 mode).
    w1c = w1.astype(mm_dtype)
    w2c = w2.astype(mm_dtype)
    w3c = w3.astype(mm_dtype)
    w4p = jnp.zeros((out_pad, c4), mm_dtype).at[:out_size].set(w4.astype(mm_dtype))
    b4p = jnp.zeros((out_pad, 1), jnp.float32).at[:out_size, 0].set(b4)

    # Block-diagonal ones matrix (zeros on padded columns) + its transpose;
    # constant-folded by XLA under jit.
    rows = jnp.arange(B * Mp)
    S = (((rows[:, None] // Mp) == jnp.arange(B)[None, :])
         & ((rows[:, None] % Mp) < m_real)).astype(jnp.float32)   # (B*Mp, B)
    ST = S.T                                                       # (B, B*Mp)

    # Generation-aware VMEM budget (64 MiB physical on v7x vs 128 on v5e/v6e).
    try:
        vmem_cap = int(pltpu.get_tpu_info().vmem_capacity_bytes)
    except Exception:
        vmem_cap = 64 * 1024 * 1024
    vmem_limit = max(16 * 1024 * 1024, min((vmem_cap * 3) // 4, 96 * 1024 * 1024))

    # Advisory cost estimate so XLA can overlap the wrapper-side param packing.
    c1, c2, c3 = w1.shape[0], w2.shape[0], w3.shape[0]
    n_cols = B * Mp
    conv_flops = 2 * n_cols * (c1 * cin + c2 * c1 + c3 * c2 + out_pad * c3)
    aux_flops = 8 * n_cols * B * (c1 + c2 + c3)          # stats + broadcast matmuls
    transcendentals = (B + 2) * (c1 + c2 + c3) + out_pad * n_cols
    bytes_accessed = ((x.size + S.size + ST.size + col1.size + col2.size
                       + col3.size + b4p.size + B * out_pad * Mp) * 4
                      + (w1c.size + w2c.size + w3c.size + w4p.size)
                      * mm_dtype.itemsize)

    kernel = functools.partial(_pointgencon_kernel, B=B, Mp=Mp, m_real=m_real)
    out = pl.pallas_call(
        kernel,
        out_shape=jax.ShapeDtypeStruct((B, out_pad, Mp), jnp.float32),
        in_specs=[pl.BlockSpec(memory_space=pl.ANY)]                       # x: HBM
                 + [pl.BlockSpec(memory_space=pltpu.MemorySpace.VMEM)] * 10,
        out_specs=pl.BlockSpec(memory_space=pltpu.MemorySpace.VMEM),
        scratch_shapes=[pltpu.VMEM((cin, B * Mp), jnp.float32),
                        pltpu.SemaphoreType.DMA((B,))],
        compiler_params=pltpu.CompilerParams(vmem_limit_bytes=vmem_limit),
        cost_estimate=pl.CostEstimate(flops=conv_flops + aux_flops,
                                      transcendentals=transcendentals,
                                      bytes_accessed=bytes_accessed),
    )(x, S, ST, w1c, col1, w2c, col2, w3c, col3, w4p, b4p)

    # (B, out_pad, Mp) -> (B, out_size, M): slices only, no transpose.
    return out[:, :out_size, :m_real]


def _reference_forward(x, params):
    # Pure-JAX mirror of the PyTorch module (data-pass BN stats, two-pass var).
    (w1, b1, aw1, ab1, g1, be1,
     w2, b2, aw2, ab2, g2, be2,
     w3, b3, aw3, ab3, g3, be3,
     w4, b4) = params
    B = x.shape[0]

    def conv(w, b, h):
        return jnp.einsum("oi,bim->bom", w, h) + b[None, :, None]

    def adain(h, aw, ab):
        c = h.shape[1]
        mean = jnp.mean(h, axis=2, keepdims=True)
        var = jnp.var(h, axis=2, keepdims=True)
        awr = aw.reshape(B, c, 1)
        abr = ab.reshape(B, c, 1)
        return (h - mean) / jnp.sqrt(var + EPS) * awr + abr

    def bn_relu(h, g, be):
        mean = jnp.mean(h, axis=(0, 2), keepdims=True)
        var = jnp.var(h, axis=(0, 2), keepdims=True)
        out = (h - mean) / jnp.sqrt(var + EPS) * g[None, :, None] + be[None, :, None]
        return jnp.maximum(out, 0.0)

    f1 = bn_relu(adain(conv(w1, b1, x), aw1, ab1), g1, be1)
    f2 = bn_relu(adain(conv(w2, b2, f1), aw2, ab2), g2, be2)
    f3 = bn_relu(adain(conv(w3, b3, f2), aw3, ab3), g3, be3)
    return jnp.tanh(conv(w4, b4, f3))


def init_params(key, B, bottleneck, output_size):
    C, C2, C4 = bottleneck, bottleneck // 2, bottleneck // 4
    ks = jax.random.split(key, 20)

    def w(k, o, i, scale=0.05):
        return jax.random.normal(k, (o, i), jnp.float32) * scale

    def vec(k, n, scale=0.1):
        return jax.random.normal(k, (n,), jnp.float32) * scale

    # Conv1d kernel_size=1 -> weight (Cout, Cin), bias (Cout,)
    w1, b1 = w(ks[0], C, C), vec(ks[1], C)
    w2, b2 = w(ks[2], C2, C), vec(ks[3], C2)
    w3, b3 = w(ks[4], C4, C2), vec(ks[5], C4)
    w4, b4 = w(ks[6], output_size, C4), vec(ks[7], output_size)

    # AdaIN affine params (assigned externally in PyTorch), shape (B*C,)
    def ada(kw, kb, c):
        return (1.0 + 0.1 * jax.random.normal(kw, (B * c,), jnp.float32),
                0.1 * jax.random.normal(kb, (B * c,), jnp.float32))

    aw1, ab1 = ada(ks[8], ks[9], C)
    aw2, ab2 = ada(ks[10], ks[11], C2)
    aw3, ab3 = ada(ks[12], ks[13], C4)

    # BatchNorm1d affine params, shape (C,)
    def bn(kg, kb, c):
        return (1.0 + 0.1 * jax.random.normal(kg, (c,), jnp.float32),
                0.1 * jax.random.normal(kb, (c,), jnp.float32))

    g1, be1 = bn(ks[14], ks[15], C)
    g2, be2 = bn(ks[16], ks[17], C2)
    g3, be3 = bn(ks[18], ks[19], C4)

    return (w1, b1, aw1, ab1, g1, be1,
            w2, b2, aw2, ab2, g2, be2,
            w3, b3, aw3, ab3, g3, be3,
            w4, b4)


if __name__ == "__main__":
    # Small shapes consistent with the module: (B, bottleneck, M) -> (B, 3, M)
    B, BOTTLENECK, OUT = 2, 256, 3

    key = jax.random.PRNGKey(0)
    kx, kp = jax.random.split(key)
    params = init_params(kp, B, BOTTLENECK, OUT)

    # M=128 exercises the lane-aligned path; M=120 exercises padding + masked stats.
    for M in (128, 120):
        x = jax.random.normal(jax.random.fold_in(kx, M),
                              (B, BOTTLENECK, M), jnp.float32)
        ref = _reference_forward(x, params)

        # f32 matmul mode: tight numerical verification of the fused math.
        out_f32 = jax.block_until_ready(
            pointgencon_forward(x, params, matmul_dtype=jnp.float32))
        assert out_f32.shape == (B, OUT, M), out_f32.shape
        err32 = float(jnp.max(jnp.abs(out_f32 - ref)))
        assert jnp.allclose(out_f32, ref, atol=2e-4, rtol=2e-4), (M, err32)

        # bf16 matmul mode (default / fast path): looser tolerance.
        out_bf16 = jax.block_until_ready(
            pointgencon_forward(x, params, matmul_dtype=jnp.bfloat16))
        assert out_bf16.shape == (B, OUT, M), out_bf16.shape
        errbf = float(jnp.max(jnp.abs(out_bf16 - ref)))
        assert jnp.allclose(out_bf16, ref, atol=5e-2, rtol=5e-2), (M, errbf)

    print("KERNEL_OK")
</pallas_src>

<mosaic_0001>
module attributes {stable_mosaic.version = 11 : i64} {
  func.func @_pointgencon_kernel(%arg0: memref<2x256x128xf32, #tpu.memory_space<any>>, %arg1: memref<256x2xf32, #tpu.memory_space<vmem>>, %arg2: memref<2x256xf32, #tpu.memory_space<vmem>>, %arg3: memref<256x256xf32, #tpu.memory_space<vmem>>, %arg4: memref<256x7xf32, #tpu.memory_space<vmem>>, %arg5: memref<128x256xf32, #tpu.memory_space<vmem>>, %arg6: memref<128x7xf32, #tpu.memory_space<vmem>>, %arg7: memref<64x128xf32, #tpu.memory_space<vmem>>, %arg8: memref<64x7xf32, #tpu.memory_space<vmem>>, %arg9: memref<8x64xf32, #tpu.memory_space<vmem>>, %arg10: memref<8x1xf32, #tpu.memory_space<vmem>>, %arg11: memref<2x8x128xf32, #tpu.memory_space<vmem>>, %arg12: memref<256x256xf32, #tpu.memory_space<vmem>>, %arg13: memref<2x!tpu.dma_semaphore, #tpu.memory_space<semaphore_mem>>) attributes {dimension_semantics = [], scalar_prefetch = 0 : i64, scratch_operands = 2 : i64, tpu.core_type = #tpu.core_type<tc>} {
    %c0_i32 = arith.constant 0 : i32
    %c0_i32_0 = arith.constant 0 : i32
    %c0_i32_1 = arith.constant 0 : i32
    %c0_i32_2 = arith.constant 0 : i32
    %0 = tpu.memref_slice %arg0[%c0_i32, %c0_i32_1, %c0_i32_2] : memref<2x256x128xf32, #tpu.memory_space<any>> -> memref<1x256x128xf32, #tpu.memory_space<any>>
    %1 = tpu.memref_squeeze %0 : memref<1x256x128xf32, #tpu.memory_space<any>> -> memref<256x128xf32, #tpu.memory_space<any>>
    %c0_i32_3 = arith.constant 0 : i32
    %c0_i32_4 = arith.constant 0 : i32
    %2 = tpu.memref_slice %arg12[%c0_i32_3, %c0_i32_4] : memref<256x256xf32, #tpu.memory_space<vmem>> -> memref<256x128xf32, #tpu.memory_space<vmem>>
    %3 = tpu.memref_slice %arg13[%c0_i32_0] : memref<2x!tpu.dma_semaphore, #tpu.memory_space<semaphore_mem>> -> memref<1x!tpu.dma_semaphore, #tpu.memory_space<semaphore_mem>>
    %4 = tpu.memref_squeeze %3 : memref<1x!tpu.dma_semaphore, #tpu.memory_space<semaphore_mem>> -> memref<!tpu.dma_semaphore, #tpu.memory_space<semaphore_mem>>
    tpu.enqueue_dma source(%1 : memref<256x128xf32, #tpu.memory_space<any>>) target(%2 : memref<256x128xf32, #tpu.memory_space<vmem>>) target_semaphore(%4 : memref<!tpu.dma_semaphore, #tpu.memory_space<semaphore_mem>>)
    %c1_i32 = arith.constant 1 : i32
    %c1_i32_5 = arith.constant 1 : i32
    %c0_i32_6 = arith.constant 0 : i32
    %c0_i32_7 = arith.constant 0 : i32
    %5 = tpu.memref_slice %arg0[%c1_i32, %c0_i32_6, %c0_i32_7] : memref<2x256x128xf32, #tpu.memory_space<any>> -> memref<1x256x128xf32, #tpu.memory_space<any>>
    %6 = tpu.memref_squeeze %5 : memref<1x256x128xf32, #tpu.memory_space<any>> -> memref<256x128xf32, #tpu.memory_space<any>>
    %c0_i32_8 = arith.constant 0 : i32
    %c128_i32 = arith.constant 128 : i32
    %7 = tpu.memref_slice %arg12[%c0_i32_8, %c128_i32] : memref<256x256xf32, #tpu.memory_space<vmem>> -> memref<256x128xf32, #tpu.memory_space<vmem>>
    %8 = tpu.memref_slice %arg13[%c1_i32_5] : memref<2x!tpu.dma_semaphore, #tpu.memory_space<semaphore_mem>> -> memref<1x!tpu.dma_semaphore, #tpu.memory_space<semaphore_mem>>
    %9 = tpu.memref_squeeze %8 : memref<1x!tpu.dma_semaphore, #tpu.memory_space<semaphore_mem>> -> memref<!tpu.dma_semaphore, #tpu.memory_space<semaphore_mem>>
    tpu.enqueue_dma source(%6 : memref<256x128xf32, #tpu.memory_space<any>>) target(%7 : memref<256x128xf32, #tpu.memory_space<vmem>>) target_semaphore(%9 : memref<!tpu.dma_semaphore, #tpu.memory_space<semaphore_mem>>)
    %c0_i32_9 = arith.constant 0 : i32
    %c0_i32_10 = arith.constant 0 : i32
    %c0_i32_11 = arith.constant 0 : i32
    %c0_i32_12 = arith.constant 0 : i32
    %10 = tpu.memref_slice %arg0[%c0_i32_9, %c0_i32_11, %c0_i32_12] : memref<2x256x128xf32, #tpu.memory_space<any>> -> memref<1x256x128xf32, #tpu.memory_space<any>>
    %11 = tpu.memref_squeeze %10 : memref<1x256x128xf32, #tpu.memory_space<any>> -> memref<256x128xf32, #tpu.memory_space<any>>
    %c0_i32_13 = arith.constant 0 : i32
    %c0_i32_14 = arith.constant 0 : i32
    %12 = tpu.memref_slice %arg12[%c0_i32_13, %c0_i32_14] : memref<256x256xf32, #tpu.memory_space<vmem>> -> memref<256x128xf32, #tpu.memory_space<vmem>>
    %13 = tpu.memref_slice %arg13[%c0_i32_10] : memref<2x!tpu.dma_semaphore, #tpu.memory_space<semaphore_mem>> -> memref<1x!tpu.dma_semaphore, #tpu.memory_space<semaphore_mem>>
    %14 = tpu.memref_squeeze %13 : memref<1x!tpu.dma_semaphore, #tpu.memory_space<semaphore_mem>> -> memref<!tpu.dma_semaphore, #tpu.memory_space<semaphore_mem>>
    tpu.wait_dma2 semaphore(%14 : memref<!tpu.dma_semaphore, #tpu.memory_space<semaphore_mem>>) src(%11 : memref<256x128xf32, #tpu.memory_space<any>>) dst(%12 : memref<256x128xf32, #tpu.memory_space<vmem>>)
    %c1_i32_15 = arith.constant 1 : i32
    %c1_i32_16 = arith.constant 1 : i32
    %c0_i32_17 = arith.constant 0 : i32
    %c0_i32_18 = arith.constant 0 : i32
    %15 = tpu.memref_slice %arg0[%c1_i32_15, %c0_i32_17, %c0_i32_18] : memref<2x256x128xf32, #tpu.memory_space<any>> -> memref<1x256x128xf32, #tpu.memory_space<any>>
    %16 = tpu.memref_squeeze %15 : memref<1x256x128xf32, #tpu.memory_space<any>> -> memref<256x128xf32, #tpu.memory_space<any>>
    %c0_i32_19 = arith.constant 0 : i32
    %c128_i32_20 = arith.constant 128 : i32
    %17 = tpu.memref_slice %arg12[%c0_i32_19, %c128_i32_20] : memref<256x256xf32, #tpu.memory_space<vmem>> -> memref<256x128xf32, #tpu.memory_space<vmem>>
    %18 = tpu.memref_slice %arg13[%c1_i32_16] : memref<2x!tpu.dma_semaphore, #tpu.memory_space<semaphore_mem>> -> memref<1x!tpu.dma_semaphore, #tpu.memory_space<semaphore_mem>>
    %19 = tpu.memref_squeeze %18 : memref<1x!tpu.dma_semaphore, #tpu.memory_space<semaphore_mem>> -> memref<!tpu.dma_semaphore, #tpu.memory_space<semaphore_mem>>
    tpu.wait_dma2 semaphore(%19 : memref<!tpu.dma_semaphore, #tpu.memory_space<semaphore_mem>>) src(%16 : memref<256x128xf32, #tpu.memory_space<any>>) dst(%17 : memref<256x128xf32, #tpu.memory_space<vmem>>)
    %c0 = arith.constant 0 : index
    %c0_21 = arith.constant 0 : index
    %20 = vector.load %arg1[%c0, %c0_21] : memref<256x2xf32, #tpu.memory_space<vmem>>, vector<256x2xf32>
    %c0_22 = arith.constant 0 : index
    %c0_23 = arith.constant 0 : index
    %21 = vector.load %arg2[%c0_22, %c0_23] : memref<2x256xf32, #tpu.memory_space<vmem>>, vector<2x256xf32>
    %c0_24 = arith.constant 0 : index
    %c0_25 = arith.constant 0 : index
    %22 = vector.load %arg12[%c0_24, %c0_25] : memref<256x256xf32, #tpu.memory_space<vmem>>, vector<256x256xf32>
    %c0_26 = arith.constant 0 : index
    %c0_27 = arith.constant 0 : index
    %23 = vector.load %arg3[%c0_26, %c0_27] : memref<256x256xf32, #tpu.memory_space<vmem>>, vector<256x256xf32>
    %c0_28 = arith.constant 0 : index
    %c0_29 = arith.constant 0 : index
    %24 = vector.load %arg4[%c0_28, %c0_29] : memref<256x7xf32, #tpu.memory_space<vmem>>, vector<256x7xf32>
    %25 = vector.extract_strided_slice %24 {offsets = [0, 0], sizes = [256, 1], strides = [1, 1]} : vector<256x7xf32> to vector<256x1xf32>
    %26 = vector.extract_strided_slice %24 {offsets = [0, 1], sizes = [256, 1], strides = [1, 1]} : vector<256x7xf32> to vector<256x1xf32>
    %27 = vector.extract_strided_slice %24 {offsets = [0, 2], sizes = [256, 1], strides = [1, 1]} : vector<256x7xf32> to vector<256x1xf32>
    %28 = vector.extract_strided_slice %24 {offsets = [0, 3], sizes = [256, 2], strides = [1, 1]} : vector<256x7xf32> to vector<256x2xf32>
    %29 = vector.extract_strided_slice %24 {offsets = [0, 5], sizes = [256, 2], strides = [1, 1]} : vector<256x7xf32> to vector<256x2xf32>
    %cst = arith.constant dense<0.000000e+00> : vector<256x256xf32>
    %30 = tpu.matmul %23, %22, %cst {dimension_numbers = #tpu.dot_dimension_numbers<[1], [0], [0], [1], [0, 0, 1, 1], [], []>} : vector<256x256xf32>, vector<256x256xf32>, vector<256x256xf32> -> vector<256x256xf32>
    %31 = vector.broadcast %25 : vector<256x1xf32> to vector<256x256xf32>
    %32 = arith.addf %30, %31 : vector<256x256xf32>
    %cst_30 = arith.constant dense<0.000000e+00> : vector<256x2xf32>
    %33 = tpu.matmul %32, %20, %cst_30 {dimension_numbers = #tpu.dot_dimension_numbers<[1], [0], [0], [1], [0, 0, 1, 1], [], []>} : vector<256x256xf32>, vector<256x2xf32>, vector<256x2xf32> -> vector<256x2xf32>
    %34 = arith.mulf %32, %32 : vector<256x256xf32>
    %cst_31 = arith.constant dense<0.000000e+00> : vector<256x2xf32>
    %35 = tpu.matmul %34, %20, %cst_31 {dimension_numbers = #tpu.dot_dimension_numbers<[1], [0], [0], [1], [0, 0, 1, 1], [], []>} : vector<256x256xf32>, vector<256x2xf32>, vector<256x2xf32> -> vector<256x2xf32>
    %cst_32 = arith.constant 7.812500e-03 : f32
    %36 = vector.broadcast %cst_32 : f32 to vector<256x2xf32>
    %37 = arith.mulf %33, %36 : vector<256x2xf32>
    %cst_33 = arith.constant 7.812500e-03 : f32
    %38 = vector.broadcast %cst_33 : f32 to vector<256x2xf32>
    %39 = arith.mulf %35, %38 : vector<256x2xf32>
    %40 = arith.mulf %37, %37 : vector<256x2xf32>
    %41 = arith.subf %39, %40 : vector<256x2xf32>
    %cst_34 = arith.constant 0.000000e+00 : f32
    %42 = vector.broadcast %cst_34 : f32 to vector<256x2xf32>
    %43 = arith.maximumf %41, %42 : vector<256x2xf32>
    %cst_35 = arith.constant 9.99999974E-6 : f32
    %44 = vector.broadcast %cst_35 : f32 to vector<256x2xf32>
    %45 = arith.addf %43, %44 : vector<256x2xf32>
    %46 = math.rsqrt %45 : vector<256x2xf32>
    %cst_36 = arith.constant dense<0.000000e+00> : vector<256xf32>
    %47 = vector.multi_reduction <add>, %29, %cst_36 [1] : vector<256x2xf32> to vector<256xf32>
    %48 = vector.shape_cast %47 : vector<256xf32> to vector<256x1xf32>
    %cst_37 = arith.constant 5.000000e-01 : f32
    %49 = vector.broadcast %cst_37 : f32 to vector<256x1xf32>
    %50 = arith.mulf %48, %49 : vector<256x1xf32>
    %51 = arith.mulf %28, %28 : vector<256x2xf32>
    %52 = arith.mulf %43, %46 : vector<256x2xf32>
    %53 = arith.mulf %52, %46 : vector<256x2xf32>
    %54 = arith.mulf %51, %53 : vector<256x2xf32>
    %55 = arith.mulf %29, %29 : vector<256x2xf32>
    %56 = arith.addf %54, %55 : vector<256x2xf32>
    %cst_38 = arith.constant dense<0.000000e+00> : vector<256xf32>
    %57 = vector.multi_reduction <add>, %56, %cst_38 [1] : vector<256x2xf32> to vector<256xf32>
    %58 = vector.shape_cast %57 : vector<256xf32> to vector<256x1xf32>
    %cst_39 = arith.constant 5.000000e-01 : f32
    %59 = vector.broadcast %cst_39 : f32 to vector<256x1xf32>
    %60 = arith.mulf %58, %59 : vector<256x1xf32>
    %61 = arith.mulf %50, %50 : vector<256x1xf32>
    %62 = arith.subf %60, %61 : vector<256x1xf32>
    %cst_40 = arith.constant 0.000000e+00 : f32
    %63 = vector.broadcast %cst_40 : f32 to vector<256x1xf32>
    %64 = arith.maximumf %62, %63 : vector<256x1xf32>
    %cst_41 = arith.constant 9.99999974E-6 : f32
    %65 = vector.broadcast %cst_41 : f32 to vector<256x1xf32>
    %66 = arith.addf %64, %65 : vector<256x1xf32>
    %67 = math.rsqrt %66 : vector<256x1xf32>
    %68 = arith.mulf %26, %67 : vector<256x1xf32>
    %69 = arith.mulf %46, %28 : vector<256x2xf32>
    %70 = vector.broadcast %68 : vector<256x1xf32> to vector<256x2xf32>
    %71 = arith.mulf %69, %70 : vector<256x2xf32>
    %72 = arith.mulf %37, %46 : vector<256x2xf32>
    %73 = arith.mulf %72, %28 : vector<256x2xf32>
    %74 = arith.subf %29, %73 : vector<256x2xf32>
    %75 = vector.broadcast %50 : vector<256x1xf32> to vector<256x2xf32>
    %76 = arith.subf %74, %75 : vector<256x2xf32>
    %77 = vector.broadcast %68 : vector<256x1xf32> to vector<256x2xf32>
    %78 = arith.mulf %76, %77 : vector<256x2xf32>
    %79 = vector.broadcast %27 : vector<256x1xf32> to vector<256x2xf32>
    %80 = arith.addf %78, %79 : vector<256x2xf32>
    %cst_42 = arith.constant dense<0.000000e+00> : vector<256x256xf32>
    %81 = tpu.matmul %71, %21, %cst_42 {dimension_numbers = #tpu.dot_dimension_numbers<[1], [0], [0], [1], [0, 0, 1, 1], [], []>} : vector<256x2xf32>, vector<2x256xf32>, vector<256x256xf32> -> vector<256x256xf32>
    %cst_43 = arith.constant dense<0.000000e+00> : vector<256x256xf32>
    %82 = tpu.matmul %80, %21, %cst_43 {dimension_numbers = #tpu.dot_dimension_numbers<[1], [0], [0], [1], [0, 0, 1, 1], [], []>} : vector<256x2xf32>, vector<2x256xf32>, vector<256x256xf32> -> vector<256x256xf32>
    %83 = arith.mulf %32, %81 : vector<256x256xf32>
    %84 = arith.addf %83, %82 : vector<256x256xf32>
    %cst_44 = arith.constant 0.000000e+00 : f32
    %85 = vector.broadcast %cst_44 : f32 to vector<256x256xf32>
    %86 = arith.maximumf %84, %85 : vector<256x256xf32>
    %c0_45 = arith.constant 0 : index
    %c0_46 = arith.constant 0 : index
    %87 = vector.load %arg5[%c0_45, %c0_46] : memref<128x256xf32, #tpu.memory_space<vmem>>, vector<128x256xf32>
    %c0_47 = arith.constant 0 : index
    %c0_48 = arith.constant 0 : index
    %88 = vector.load %arg6[%c0_47, %c0_48] : memref<128x7xf32, #tpu.memory_space<vmem>>, vector<128x7xf32>
    %89 = vector.extract_strided_slice %88 {offsets = [0, 0], sizes = [128, 1], strides = [1, 1]} : vector<128x7xf32> to vector<128x1xf32>
    %90 = vector.extract_strided_slice %88 {offsets = [0, 1], sizes = [128, 1], strides = [1, 1]} : vector<128x7xf32> to vector<128x1xf32>
    %91 = vector.extract_strided_slice %88 {offsets = [0, 2], sizes = [128, 1], strides = [1, 1]} : vector<128x7xf32> to vector<128x1xf32>
    %92 = vector.extract_strided_slice %88 {offsets = [0, 3], sizes = [128, 2], strides = [1, 1]} : vector<128x7xf32> to vector<128x2xf32>
    %93 = vector.extract_strided_slice %88 {offsets = [0, 5], sizes = [128, 2], strides = [1, 1]} : vector<128x7xf32> to vector<128x2xf32>
    %cst_49 = arith.constant dense<0.000000e+00> : vector<128x256xf32>
    %94 = tpu.matmul %87, %86, %cst_49 {dimension_numbers = #tpu.dot_dimension_numbers<[1], [0], [0], [1], [0, 0, 1, 1], [], []>} : vector<128x256xf32>, vector<256x256xf32>, vector<128x256xf32> -> vector<128x256xf32>
    %95 = vector.broadcast %89 : vector<128x1xf32> to vector<128x256xf32>
    %96 = arith.addf %94, %95 : vector<128x256xf32>
    %cst_50 = arith.constant dense<0.000000e+00> : vector<128x2xf32>
    %97 = tpu.matmul %96, %20, %cst_50 {dimension_numbers = #tpu.dot_dimension_numbers<[1], [0], [0], [1], [0, 0, 1, 1], [], []>} : vector<128x256xf32>, vector<256x2xf32>, vector<128x2xf32> -> vector<128x2xf32>
    %98 = arith.mulf %96, %96 : vector<128x256xf32>
    %cst_51 = arith.constant dense<0.000000e+00> : vector<128x2xf32>
    %99 = tpu.matmul %98, %20, %cst_51 {dimension_numbers = #tpu.dot_dimension_numbers<[1], [0], [0], [1], [0, 0, 1, 1], [], []>} : vector<128x256xf32>, vector<256x2xf32>, vector<128x2xf32> -> vector<128x2xf32>
    %cst_52 = arith.constant 7.812500e-03 : f32
    %100 = vector.broadcast %cst_52 : f32 to vector<128x2xf32>
    %101 = arith.mulf %97, %100 : vector<128x2xf32>
    %cst_53 = arith.constant 7.812500e-03 : f32
    %102 = vector.broadcast %cst_53 : f32 to vector<128x2xf32>
    %103 = arith.mulf %99, %102 : vector<128x2xf32>
    %104 = arith.mulf %101, %101 : vector<128x2xf32>
    %105 = arith.subf %103, %104 : vector<128x2xf32>
    %cst_54 = arith.constant 0.000000e+00 : f32
    %106 = vector.broadcast %cst_54 : f32 to vector<128x2xf32>
    %107 = arith.maximumf %105, %106 : vector<128x2xf32>
    %cst_55 = arith.constant 9.99999974E-6 : f32
    %108 = vector.broadcast %cst_55 : f32 to vector<128x2xf32>
    %109 = arith.addf %107, %108 : vector<128x2xf32>
    %110 = math.rsqrt %109 : vector<128x2xf32>
    %cst_56 = arith.constant dense<0.000000e+00> : vector<128xf32>
    %111 = vector.multi_reduction <add>, %93, %cst_56 [1] : vector<128x2xf32> to vector<128xf32>
    %112 = vector.shape_cast %111 : vector<128xf32> to vector<128x1xf32>
    %cst_57 = arith.constant 5.000000e-01 : f32
    %113 = vector.broadcast %cst_57 : f32 to vector<128x1xf32>
    %114 = arith.mulf %112, %113 : vector<128x1xf32>
    %115 = arith.mulf %92, %92 : vector<128x2xf32>
    %116 = arith.mulf %107, %110 : vector<128x2xf32>
    %117 = arith.mulf %116, %110 : vector<128x2xf32>
    %118 = arith.mulf %115, %117 : vector<128x2xf32>
    %119 = arith.mulf %93, %93 : vector<128x2xf32>
    %120 = arith.addf %118, %119 : vector<128x2xf32>
    %cst_58 = arith.constant dense<0.000000e+00> : vector<128xf32>
    %121 = vector.multi_reduction <add>, %120, %cst_58 [1] : vector<128x2xf32> to vector<128xf32>
    %122 = vector.shape_cast %121 : vector<128xf32> to vector<128x1xf32>
    %cst_59 = arith.constant 5.000000e-01 : f32
    %123 = vector.broadcast %cst_59 : f32 to vector<128x1xf32>
    %124 = arith.mulf %122, %123 : vector<128x1xf32>
    %125 = arith.mulf %114, %114 : vector<128x1xf32>
    %126 = arith.subf %124, %125 : vector<128x1xf32>
    %cst_60 = arith.constant 0.000000e+00 : f32
    %127 = vector.broadcast %cst_60 : f32 to vector<128x1xf32>
    %128 = arith.maximumf %126, %127 : vector<128x1xf32>
    %cst_61 = arith.constant 9.99999974E-6 : f32
    %129 = vector.broadcast %cst_61 : f32 to vector<128x1xf32>
    %130 = arith.addf %128, %129 : vector<128x1xf32>
    %131 = math.rsqrt %130 : vector<128x1xf32>
    %132 = arith.mulf %90, %131 : vector<128x1xf32>
    %133 = arith.mulf %110, %92 : vector<128x2xf32>
    %134 = vector.broadcast %132 : vector<128x1xf32> to vector<128x2xf32>
    %135 = arith.mulf %133, %134 : vector<128x2xf32>
    %136 = arith.mulf %101, %110 : vector<128x2xf32>
    %137 = arith.mulf %136, %92 : vector<128x2xf32>
    %138 = arith.subf %93, %137 : vector<128x2xf32>
    %139 = vector.broadcast %114 : vector<128x1xf32> to vector<128x2xf32>
    %140 = arith.subf %138, %139 : vector<128x2xf32>
    %141 = vector.broadcast %132 : vector<128x1xf32> to vector<128x2xf32>
    %142 = arith.mulf %140, %141 : vector<128x2xf32>
    %143 = vector.broadcast %91 : vector<128x1xf32> to vector<128x2xf32>
    %144 = arith.addf %142, %143 : vector<128x2xf32>
    %cst_62 = arith.constant dense<0.000000e+00> : vector<128x256xf32>
    %145 = tpu.matmul %135, %21, %cst_62 {dimension_numbers = #tpu.dot_dimension_numbers<[1], [0], [0], [1], [0, 0, 1, 1], [], []>} : vector<128x2xf32>, vector<2x256xf32>, vector<128x256xf32> -> vector<128x256xf32>
    %cst_63 = arith.constant dense<0.000000e+00> : vector<128x256xf32>
    %146 = tpu.matmul %144, %21, %cst_63 {dimension_numbers = #tpu.dot_dimension_numbers<[1], [0], [0], [1], [0, 0, 1, 1], [], []>} : vector<128x2xf32>, vector<2x256xf32>, vector<128x256xf32> -> vector<128x256xf32>
    %147 = arith.mulf %96, %145 : vector<128x256xf32>
    %148 = arith.addf %147, %146 : vector<128x256xf32>
    %cst_64 = arith.constant 0.000000e+00 : f32
    %149 = vector.broadcast %cst_64 : f32 to vector<128x256xf32>
    %150 = arith.maximumf %148, %149 : vector<128x256xf32>
    %c0_65 = arith.constant 0 : index
    %c0_66 = arith.constant 0 : index
    %151 = vector.load %arg7[%c0_65, %c0_66] : memref<64x128xf32, #tpu.memory_space<vmem>>, vector<64x128xf32>
    %c0_67 = arith.constant 0 : index
    %c0_68 = arith.constant 0 : index
    %152 = vector.load %arg8[%c0_67, %c0_68] : memref<64x7xf32, #tpu.memory_space<vmem>>, vector<64x7xf32>
    %153 = vector.extract_strided_slice %152 {offsets = [0, 0], sizes = [64, 1], strides = [1, 1]} : vector<64x7xf32> to vector<64x1xf32>
    %154 = vector.extract_strided_slice %152 {offsets = [0, 1], sizes = [64, 1], strides = [1, 1]} : vector<64x7xf32> to vector<64x1xf32>
    %155 = vector.extract_strided_slice %152 {offsets = [0, 2], sizes = [64, 1], strides = [1, 1]} : vector<64x7xf32> to vector<64x1xf32>
    %156 = vector.extract_strided_slice %152 {offsets = [0, 3], sizes = [64, 2], strides = [1, 1]} : vector<64x7xf32> to vector<64x2xf32>
    %157 = vector.extract_strided_slice %152 {offsets = [0, 5], sizes = [64, 2], strides = [1, 1]} : vector<64x7xf32> to vector<64x2xf32>
    %cst_69 = arith.constant dense<0.000000e+00> : vector<64x256xf32>
    %158 = tpu.matmul %151, %150, %cst_69 {dimension_numbers = #tpu.dot_dimension_numbers<[1], [0], [0], [1], [0, 0, 1, 1], [], []>} : vector<64x128xf32>, vector<128x256xf32>, vector<64x256xf32> -> vector<64x256xf32>
    %159 = vector.broadcast %153 : vector<64x1xf32> to vector<64x256xf32>
    %160 = arith.addf %158, %159 : vector<64x256xf32>
    %cst_70 = arith.constant dense<0.000000e+00> : vector<64x2xf32>
    %161 = tpu.matmul %160, %20, %cst_70 {dimension_numbers = #tpu.dot_dimension_numbers<[1], [0], [0], [1], [0, 0, 1, 1], [], []>} : vector<64x256xf32>, vector<256x2xf32>, vector<64x2xf32> -> vector<64x2xf32>
    %162 = arith.mulf %160, %160 : vector<64x256xf32>
    %cst_71 = arith.constant dense<0.000000e+00> : vector<64x2xf32>
    %163 = tpu.matmul %162, %20, %cst_71 {dimension_numbers = #tpu.dot_dimension_numbers<[1], [0], [0], [1], [0, 0, 1, 1], [], []>} : vector<64x256xf32>, vector<256x2xf32>, vector<64x2xf32> -> vector<64x2xf32>
    %cst_72 = arith.constant 7.812500e-03 : f32
    %164 = vector.broadcast %cst_72 : f32 to vector<64x2xf32>
    %165 = arith.mulf %161, %164 : vector<64x2xf32>
    %cst_73 = arith.constant 7.812500e-03 : f32
    %166 = vector.broadcast %cst_73 : f32 to vector<64x2xf32>
    %167 = arith.mulf %163, %166 : vector<64x2xf32>
    %168 = arith.mulf %165, %165 : vector<64x2xf32>
    %169 = arith.subf %167, %168 : vector<64x2xf32>
    %cst_74 = arith.constant 0.000000e+00 : f32
    %170 = vector.broadcast %cst_74 : f32 to vector<64x2xf32>
    %171 = arith.maximumf %169, %170 : vector<64x2xf32>
    %cst_75 = arith.constant 9.99999974E-6 : f32
    %172 = vector.broadcast %cst_75 : f32 to vector<64x2xf32>
    %173 = arith.addf %171, %172 : vector<64x2xf32>
    %174 = math.rsqrt %173 : vector<64x2xf32>
    %cst_76 = arith.constant dense<0.000000e+00> : vector<64xf32>
    %175 = vector.multi_reduction <add>, %157, %cst_76 [1] : vector<64x2xf32> to vector<64xf32>
    %176 = vector.shape_cast %175 : vector<64xf32> to vector<64x1xf32>
    %cst_77 = arith.constant 5.000000e-01 : f32
    %177 = vector.broadcast %cst_77 : f32 to vector<64x1xf32>
    %178 = arith.mulf %176, %177 : vector<64x1xf32>
    %179 = arith.mulf %156, %156 : vector<64x2xf32>
    %180 = arith.mulf %171, %174 : vector<64x2xf32>
    %181 = arith.mulf %180, %174 : vector<64x2xf32>
    %182 = arith.mulf %179, %181 : vector<64x2xf32>
    %183 = arith.mulf %157, %157 : vector<64x2xf32>
    %184 = arith.addf %182, %183 : vector<64x2xf32>
    %cst_78 = arith.constant dense<0.000000e+00> : vector<64xf32>
    %185 = vector.multi_reduction <add>, %184, %cst_78 [1] : vector<64x2xf32> to vector<64xf32>
    %186 = vector.shape_cast %185 : vector<64xf32> to vector<64x1xf32>
    %cst_79 = arith.constant 5.000000e-01 : f32
    %187 = vector.broadcast %cst_79 : f32 to vector<64x1xf32>
    %188 = arith.mulf %186, %187 : vector<64x1xf32>
    %189 = arith.mulf %178, %178 : vector<64x1xf32>
    %190 = arith.subf %188, %189 : vector<64x1xf32>
    %cst_80 = arith.constant 0.000000e+00 : f32
    %191 = vector.broadcast %cst_80 : f32 to vector<64x1xf32>
    %192 = arith.maximumf %190, %191 : vector<64x1xf32>
    %cst_81 = arith.constant 9.99999974E-6 : f32
    %193 = vector.broadcast %cst_81 : f32 to vector<64x1xf32>
    %194 = arith.addf %192, %193 : vector<64x1xf32>
    %195 = math.rsqrt %194 : vector<64x1xf32>
    %196 = arith.mulf %154, %195 : vector<64x1xf32>
    %197 = arith.mulf %174, %156 : vector<64x2xf32>
    %198 = vector.broadcast %196 : vector<64x1xf32> to vector<64x2xf32>
    %199 = arith.mulf %197, %198 : vector<64x2xf32>
    %200 = arith.mulf %165, %174 : vector<64x2xf32>
    %201 = arith.mulf %200, %156 : vector<64x2xf32>
    %202 = arith.subf %157, %201 : vector<64x2xf32>
    %203 = vector.broadcast %178 : vector<64x1xf32> to vector<64x2xf32>
    %204 = arith.subf %202, %203 : vector<64x2xf32>
    %205 = vector.broadcast %196 : vector<64x1xf32> to vector<64x2xf32>
    %206 = arith.mulf %204, %205 : vector<64x2xf32>
    %207 = vector.broadcast %155 : vector<64x1xf32> to vector<64x2xf32>
    %208 = arith.addf %206, %207 : vector<64x2xf32>
    %cst_82 = arith.constant dense<0.000000e+00> : vector<64x256xf32>
    %209 = tpu.matmul %199, %21, %cst_82 {dimension_numbers = #tpu.dot_dimension_numbers<[1], [0], [0], [1], [0, 0, 1, 1], [], []>} : vector<64x2xf32>, vector<2x256xf32>, vector<64x256xf32> -> vector<64x256xf32>
    %cst_83 = arith.constant dense<0.000000e+00> : vector<64x256xf32>
    %210 = tpu.matmul %208, %21, %cst_83 {dimension_numbers = #tpu.dot_dimension_numbers<[1], [0], [0], [1], [0, 0, 1, 1], [], []>} : vector<64x2xf32>, vector<2x256xf32>, vector<64x256xf32> -> vector<64x256xf32>
    %211 = arith.mulf %160, %209 : vector<64x256xf32>
    %212 = arith.addf %211, %210 : vector<64x256xf32>
    %cst_84 = arith.constant 0.000000e+00 : f32
    %213 = vector.broadcast %cst_84 : f32 to vector<64x256xf32>
    %214 = arith.maximumf %212, %213 : vector<64x256xf32>
    %c0_85 = arith.constant 0 : index
    %c0_86 = arith.constant 0 : index
    %215 = vector.load %arg9[%c0_85, %c0_86] : memref<8x64xf32, #tpu.memory_space<vmem>>, vector<8x64xf32>
    %cst_87 = arith.constant dense<0.000000e+00> : vector<8x256xf32>
    %216 = tpu.matmul %215, %214, %cst_87 {dimension_numbers = #tpu.dot_dimension_numbers<[1], [0], [0], [1], [0, 0, 1, 1], [], []>} : vector<8x64xf32>, vector<64x256xf32>, vector<8x256xf32> -> vector<8x256xf32>
    %c0_88 = arith.constant 0 : index
    %c0_89 = arith.constant 0 : index
    %217 = vector.load %arg10[%c0_88, %c0_89] : memref<8x1xf32, #tpu.memory_space<vmem>>, vector<8x1xf32>
    %218 = vector.broadcast %217 : vector<8x1xf32> to vector<8x256xf32>
    %219 = arith.addf %216, %218 : vector<8x256xf32>
    %220 = math.tanh %219 : vector<8x256xf32>
    %221 = vector.extract_strided_slice %220 {offsets = [0, 0], sizes = [8, 128], strides = [1, 1]} : vector<8x256xf32> to vector<8x128xf32>
    %c0_90 = arith.constant 0 : index
    %c0_91 = arith.constant 0 : index
    %c0_92 = arith.constant 0 : index
    %222 = vector.load %arg11[%c0_90, %c0_91, %c0_92] : memref<2x8x128xf32, #tpu.memory_space<vmem>>, vector<1x8x128xf32>
    %223 = vector.shape_cast %222 : vector<1x8x128xf32> to vector<8x128xf32>
    %224 = vector.shape_cast %221 : vector<8x128xf32> to vector<1x8x128xf32>
    tpu.vector_store %arg11[%c0_90, %c0_91, %c0_92], %224 {strides = array<i32>} : memref<2x8x128xf32, #tpu.memory_space<vmem>>, vector<1x8x128xf32>,
    %225 = vector.extract_strided_slice %220 {offsets = [0, 128], sizes = [8, 128], strides = [1, 1]} : vector<8x256xf32> to vector<8x128xf32>
    %c1 = arith.constant 1 : index
    %c0_93 = arith.constant 0 : index
    %c0_94 = arith.constant 0 : index
    %226 = vector.load %arg11[%c1, %c0_93, %c0_94] : memref<2x8x128xf32, #tpu.memory_space<vmem>>, vector<1x8x128xf32>
    %227 = vector.shape_cast %226 : vector<1x8x128xf32> to vector<8x128xf32>
    %228 = vector.shape_cast %225 : vector<8x128xf32> to vector<1x8x128xf32>
    tpu.vector_store %arg11[%c1, %c0_93, %c0_94], %228 {strides = array<i32>} : memref<2x8x128xf32, #tpu.memory_space<vmem>>, vector<1x8x128xf32>,
    return
  }
}

</mosaic_0001>

<llo_original>
// kernel: pointgencon_forward.1
$region0: #{pointgencon_forward.1}
  #allocation0 [shape = 'u32[]', space=smem, size = 0x4, offset = 0x4, fixed_abs, tag = 'smem constant byte address 0x4 - core index']
  #allocation1 [shape = 'u32[144,128]{1,0:T(1,128)}', space=vmem, size = 0x12000, scoped, tag = 'internal scratch']
  #allocation2 [shape = 'f32[256,256]{1,0:T(8,128)}', space=vmem, size = 0x40000, scoped, tag = 'scratch operand']
  #allocation3 [shape = 's32[2]{0}', space=sflag, size = 0x8, scoped, tag = 'scratch operand']
  #allocation6 [shape = 's32[]', space=sflag, size = 0x4, offset = 0, fixed_abs, tag = 'sflag constant byte address 0x0 - dummy sync flag']
  #allocation7 [shape = 's32[]', space=sflag, size = 0x4, offset = 0, fixed_abs, tag = 'sflag constant byte address 0x0 - dummy sync flag']
  %s0 = inlined_call_operand.vmem [shape: f32[2,256,128], index: 0, kind: input, shape index: {}]
  %s1 = inlined_call_operand.vmem [shape: f32[256,2], index: 1, kind: input, shape index: {}]
  %s2 = inlined_call_operand.vmem [shape: f32[2,256], index: 2, kind: input, shape index: {}]
  %s3 = inlined_call_operand.hbm [shape: f32[256,256], index: 3, kind: input, shape index: {}]
  %s4 = inlined_call_operand.vmem [shape: f32[256,7], index: 4, kind: input, shape index: {}]
  %s5 = inlined_call_operand.vmem [shape: f32[128,256], index: 5, kind: input, shape index: {}]
  %s6 = inlined_call_operand.vmem [shape: f32[128,7], index: 6, kind: input, shape index: {}]
  %s7 = inlined_call_operand.vmem [shape: f32[64,128], index: 7, kind: input, shape index: {}]
  %s8 = inlined_call_operand.vmem [shape: f32[64,7], index: 8, kind: input, shape index: {}]
  %s9 = inlined_call_operand.vmem [shape: f32[8,64], index: 9, kind: input, shape index: {}]
  %s10 = inlined_call_operand.vmem [shape: f32[8,1], index: 10, kind: input, shape index: {}]
  %s11 = inlined_call_operand.vmem [shape: f32[2,8,128], index: 11, kind: output, shape index: {}]
  %s12 = sld [smem:[#allocation0]]
  $region122: #{pointgencon_forward.1} parent=0
    _
  %s14 = ssub.s32 1, %s12
  %s15 = scalar_select 0, %s14, %s12
  $region1: #{pointgencon_forward.1} parent=0
    #allocation4 [shape = 'u8[262144]{0}', space=vmem, size = 0x40000, scoped, tag = 'input window, operand 3, single buffered']
    #allocation5 [shape = 's32[1]{0}', space=sflag, size = 0x4, scoped, tag = 'scoped memory for pointgencon_forward.1']
    %16 = vsyncpa [#allocation5], 0
    // Predicated region
    $region2: #{pointgencon_forward.1} parent=1 // pred_check
      _
    $region3: #{pointgencon_forward.1} parent=1 // pred_check_branch
      %18 = sbr.rel (0) target = $region5
    $region4: #{pointgencon_forward.1} parent=1 // pred_region
      _
    $region5: #{pointgencon_forward.1} parent=1 // pred_fallthru
      _
    // Predicated region
    $region6: #{pointgencon_forward.1} parent=1 // pred_check
      _
    $region7: #{pointgencon_forward.1} parent=1 // pred_check_branch
      %20 = sbr.rel (0) target = $region9
    $region8: #{pointgencon_forward.1} parent=1 // pred_region
      _
    $region9: #{pointgencon_forward.1} parent=1 // pred_fallthru
      _
    // Predicated region
    $region10: #{pointgencon_forward.1} parent=1 // pred_check
      _
    $region11: #{pointgencon_forward.1} parent=1 // pred_check_branch
      %22 = sbr.rel (0) target = $region13
    $region12: #{pointgencon_forward.1} parent=1 // pred_region
      %s24 = ssub.s32 8192, 8192
      %25 = vsyncadd [#allocation5], %s24
      %s26 = sshll.u32 [#allocation4], 4
      %s27 = int_to_ptr.vmem [resolvable:$true] %s26
      %32 = dma.hbm_to_vmem [thread:$0]  %s3, 8192, %s27, [#allocation5], 256, 256, 16
    $region13: #{pointgencon_forward.1} parent=1 // pred_fallthru
      _
    // Predicated region
    $region14: #{pointgencon_forward.1} parent=1 // pred_check
      _
    $region15: #{pointgencon_forward.1} parent=1 // pred_check_branch
      %34 = sbr.rel (0) target = $region17
    $region16: #{pointgencon_forward.1} parent=1 // pred_region
      _
    $region17: #{pointgencon_forward.1} parent=1 // pred_fallthru
      _
    // Predicated region
    $region18: #{pointgencon_forward.1} parent=1 // pred_check
      _
    $region19: #{pointgencon_forward.1} parent=1 // pred_check_branch
      %36 = sbr.rel (0) target = $region21
    $region20: #{pointgencon_forward.1} parent=1 // pred_region
      _
    $region21: #{pointgencon_forward.1} parent=1 // pred_fallthru
      _
    // Predicated region
    $region22: #{pointgencon_forward.1} parent=1 // pred_check
      _
    $region23: #{pointgencon_forward.1} parent=1 // pred_check_branch
      %38 = sbr.rel (0) target = $region25
    $region24: #{pointgencon_forward.1} parent=1 // pred_region
      _
    $region25: #{pointgencon_forward.1} parent=1 // pred_fallthru
      _
    // Predicated region
    $region26: #{pointgencon_forward.1} parent=1 // pred_check
      _
    $region27: #{pointgencon_forward.1} parent=1 // pred_check_branch
      %40 = sbr.rel (0) target = $region29
    $region28: #{pointgencon_forward.1} parent=1 // pred_region
      _
    $region29: #{pointgencon_forward.1} parent=1 // pred_fallthru
      _
    // Predicated region
    $region30: #{pointgencon_forward.1} parent=1 // pred_check
      _
    $region31: #{pointgencon_forward.1} parent=1 // pred_check_branch
      %42 = sbr.rel (0) target = $region33
    $region32: #{pointgencon_forward.1} parent=1 // pred_region
      _
    $region33: #{pointgencon_forward.1} parent=1 // pred_fallthru
      _
    // Predicated region
    $region34: #{pointgencon_forward.1} parent=1 // pred_check
      _
    $region35: #{pointgencon_forward.1} parent=1 // pred_check_branch
      %44 = sbr.rel (0) target = $region37
    $region36: #{pointgencon_forward.1} parent=1 // pred_region
      _
    $region37: #{pointgencon_forward.1} parent=1 // pred_fallthru
      _
    // Predicated region
    $region38: #{pointgencon_forward.1} parent=1 // pred_check
      _
    $region39: #{pointgencon_forward.1} parent=1 // pred_check_branch
      %46 = sbr.rel (0) target = $region41
    $region40: #{pointgencon_forward.1} parent=1 // pred_region
      _
    $region41: #{pointgencon_forward.1} parent=1 // pred_fallthru
      _
    // Predicated region
    $region42: #{pointgencon_forward.1} parent=1 // pred_check
      _
    $region43: #{pointgencon_forward.1} parent=1 // pred_check_branch
      %48 = sbr.rel (0) target = $region45
    $region44: #{pointgencon_forward.1} parent=1 // pred_region
      %49 = dma.done [#allocation5], 8192
    $region45: #{pointgencon_forward.1} parent=1 // pred_fallthru
      _
    %p51 = scmp.lt.u32.totalorder 8, 8
    %p52 = pneg %p51
    // Predicated region
    $region46: #{pointgencon_forward.1} parent=1 // pred_check
      _
    $region47: #{pointgencon_forward.1} parent=1 // pred_check_branch
      %54 = sbr.rel (%p51) target = $region49
    $region48: #{pointgencon_forward.1} parent=1 // pred_region
      %s131 = sand.u32 8, 7
      %p132 = scmp.eq.s32.totalorder %s131, 0
      // Predicated region
      $region61: #{pointgencon_forward.1} parent=48 // pred_check
        %p133 = pneg %p132
      $region62: #{pointgencon_forward.1} parent=48 // pred_check_branch
        %135 = sbr.rel (%p133) target = $region64
      $region63: #{pointgencon_forward.1} parent=48 // pred_region
        loop: start=0, step=1, limit=1
        $region65: #{pointgencon_forward.1} parent=63 // loop_pre_header
          _
        $region66: #{pointgencon_forward.1} parent=63 // loop_header
          %s137 = sphi 0, %s141
          %p138 = scmp.ge.s32.totalorder %s137, 1
          %s142 = sphi %s0, %s0
          %s143 = sphi [#allocation2], [#allocation2]
        $region67: #{pointgencon_forward.1} parent=63 // loop_header_branch
          %140 = sbr.rel (%p138) target = $region71
        $region68: #{pointgencon_forward.1} parent=63 // loop_body
          %v144 = vld [vmem:[%s142] sm:$0xff]
          %145 = vst [vmem:[%s143] sm:$0xff] %v144
          %v146 = vld [vmem:[%s142 + $0x8] sm:$0xff]
          %147 = vst [vmem:[%s143 + $0x10] sm:$0xff] %v146
          %v148 = vld [vmem:[%s142 + $0x10] sm:$0xff]
          %149 = vst [vmem:[%s143 + $0x20] sm:$0xff] %v148
          %v150 = vld [vmem:[%s142 + $0x18] sm:$0xff]
          %151 = vst [vmem:[%s143 + $0x30] sm:$0xff] %v150
          %v152 = vld [vmem:[%s142 + $0x20] sm:$0xff]
          %153 = vst [vmem:[%s143 + $0x40] sm:$0xff] %v152
          %v154 = vld [vmem:[%s142 + $0x28] sm:$0xff]
          %155 = vst [vmem:[%s143 + $0x50] sm:$0xff] %v154
          %v156 = vld [vmem:[%s142 + $0x30] sm:$0xff]
          %157 = vst [vmem:[%s143 + $0x60] sm:$0xff] %v156
          %v158 = vld [vmem:[%s142 + $0x38] sm:$0xff]
          %159 = vst [vmem:[%s143 + $0x70] sm:$0xff] %v158
          %v160 = vld [vmem:[%s142 + $0x40] sm:$0xff]
          %161 = vst [vmem:[%s143 + $0x80] sm:$0xff] %v160
          %v162 = vld [vmem:[%s142 + $0x48] sm:$0xff]
          %163 = vst [vmem:[%s143 + $0x90] sm:$0xff] %v162
          %v164 = vld [vmem:[%s142 + $0x50] sm:$0xff]
          %165 = vst [vmem:[%s143 + $0xa0] sm:$0xff] %v164
          %v166 = vld [vmem:[%s142 + $0x58] sm:$0xff]
          %167 = vst [vmem:[%s143 + $0xb0] sm:$0xff] %v166
          %v168 = vld [vmem:[%s142 + $0x60] sm:$0xff]
          %169 = vst [vmem:[%s143 + $0xc0] sm:$0xff] %v168
          %v170 = vld [vmem:[%s142 + $0x68] sm:$0xff]
          %171 = vst [vmem:[%s143 + $0xd0] sm:$0xff] %v170
          %v172 = vld [vmem:[%s142 + $0x70] sm:$0xff]
          %173 = vst [vmem:[%s143 + $0xe0] sm:$0xff] %v172
          %v174 = vld [vmem:[%s142 + $0x78] sm:$0xff]
          %175 = vst [vmem:[%s143 + $0xf0] sm:$0xff] %v174
          %v176 = vld [vmem:[%s142 + $0x80] sm:$0xff]
          %177 = vst [vmem:[%s143 + $0x100] sm:$0xff] %v176
          %v178 = vld [vmem:[%s142 + $0x88] sm:$0xff]
          %179 = vst [vmem:[%s143 + $0x110] sm:$0xff] %v178
          %v180 = vld [vmem:[%s142 + $0x90] sm:$0xff]
          %181 = vst [vmem:[%s143 + $0x120] sm:$0xff] %v180
          %v182 = vld [vmem:[%s142 + $0x98] sm:$0xff]
          %183 = vst [vmem:[%s143 + $0x130] sm:$0xff] %v182
          %v184 = vld [vmem:[%s142 + $0xa0] sm:$0xff]
          %185 = vst [vmem:[%s143 + $0x140] sm:$0xff] %v184
          %v186 = vld [vmem:[%s142 + $0xa8] sm:$0xff]
          %187 = vst [vmem:[%s143 + $0x150] sm:$0xff] %v186
          %v188 = vld [vmem:[%s142 + $0xb0] sm:$0xff]
          %189 = vst [vmem:[%s143 + $0x160] sm:$0xff] %v188
          %v190 = vld [vmem:[%s142 + $0xb8] sm:$0xff]
          %191 = vst [vmem:[%s143 + $0x170] sm:$0xff] %v190
          %v192 = vld [vmem:[%s142 + $0xc0] sm:$0xff]
          %193 = vst [vmem:[%s143 + $0x180] sm:$0xff] %v192
          %v194 = vld [vmem:[%s142 + $0xc8] sm:$0xff]
          %195 = vst [vmem:[%s143 + $0x190] sm:$0xff] %v194
          %v196 = vld [vmem:[%s142 + $0xd0] sm:$0xff]
          %197 = vst [vmem:[%s143 + $0x1a0] sm:$0xff] %v196
          %v198 = vld [vmem:[%s142 + $0xd8] sm:$0xff]
          %199 = vst [vmem:[%s143 + $0x1b0] sm:$0xff] %v198
          %v200 = vld [vmem:[%s142 + $0xe0] sm:$0xff]
          %201 = vst [vmem:[%s143 + $0x1c0] sm:$0xff] %v200
          %v202 = vld [vmem:[%s142 + $0xe8] sm:$0xff]
          %203 = vst [vmem:[%s143 + $0x1d0] sm:$0xff] %v202
          %v204 = vld [vmem:[%s142 + $0xf0] sm:$0xff]
          %205 = vst [vmem:[%s143 + $0x1e0] sm:$0xff] %v204
          %v206 = vld [vmem:[%s142 + $0xf8] sm:$0xff]
          %207 = vst [vmem:[%s143 + $0x1f0] sm:$0xff] %v206
        $region69: #{pointgencon_forward.1} parent=63 // loop_footer
          %s141 = sadd.s32 1, %s137
        $region70: #{pointgencon_forward.1} parent=63 // loop_footer_branch
          %136 = sbr.rel target = $region66
        $region71: #{pointgencon_forward.1} parent=63 // loop_exit
          _
      $region64: #{pointgencon_forward.1} parent=48 // pred_fallthru
        _
      %p208 = pneg %p132
      // Predicated region
      $region72: #{pointgencon_forward.1} parent=48 // pred_check
        _
      $region73: #{pointgencon_forward.1} parent=48 // pred_check_branch
        %210 = sbr.rel (%p132) target = $region75
      $region74: #{pointgencon_forward.1} parent=48 // pred_region
        %s211 = sand.u32 8, 7
      $region75: #{pointgencon_forward.1} parent=48 // pred_fallthru
        _
    $region49: #{pointgencon_forward.1} parent=1 // pred_fallthru
      _
    // Predicated region
    $region50: #{pointgencon_forward.1} parent=1 // pred_check
      %p55 = pneg %p51
    $region51: #{pointgencon_forward.1} parent=1 // pred_check_branch
      %57 = sbr.rel (%p55) target = $region53
    $region52: #{pointgencon_forward.1} parent=1 // pred_region
      %s58 = sshllo.u32 0, 8
      loop: start=0, step=1, limit=1
      $region54: #{pointgencon_forward.1} parent=52 // loop_pre_header
        _
      $region55: #{pointgencon_forward.1} parent=52 // loop_header
        %s60 = sphi 0, %s64
        %p61 = scmp.ge.s32.totalorder %s60, 1
        %s65 = sphi %s0, %s0
        %s66 = sphi [#allocation2], [#allocation2]
      $region56: #{pointgencon_forward.1} parent=52 // loop_header_branch
        %63 = sbr.rel (%p61) target = $region60
      $region57: #{pointgencon_forward.1} parent=52 // loop_body
        %v67 = vld [vmem:[%s65] sm:%s58]
        %68 = vst [vmem:[%s66] sm:%s58] %v67
        %v69 = vld [vmem:[%s65 + $0x8] sm:%s58]
        %70 = vst [vmem:[%s66 + $0x10] sm:%s58] %v69
        %v71 = vld [vmem:[%s65 + $0x10] sm:%s58]
        %72 = vst [vmem:[%s66 + $0x20] sm:%s58] %v71
        %v73 = vld [vmem:[%s65 + $0x18] sm:%s58]
        %74 = vst [vmem:[%s66 + $0x30] sm:%s58] %v73
        %v75 = vld [vmem:[%s65 + $0x20] sm:%s58]
        %76 = vst [vmem:[%s66 + $0x40] sm:%s58] %v75
        %v77 = vld [vmem:[%s65 + $0x28] sm:%s58]
        %78 = vst [vmem:[%s66 + $0x50] sm:%s58] %v77
        %v79 = vld [vmem:[%s65 + $0x30] sm:%s58]
        %80 = vst [vmem:[%s66 + $0x60] sm:%s58] %v79
        %v81 = vld [vmem:[%s65 + $0x38] sm:%s58]
        %82 = vst [vmem:[%s66 + $0x70] sm:%s58] %v81
        %v83 = vld [vmem:[%s65 + $0x40] sm:%s58]
        %84 = vst [vmem:[%s66 + $0x80] sm:%s58] %v83
        %v85 = vld [vmem:[%s65 + $0x48] sm:%s58]
        %86 = vst [vmem:[%s66 + $0x90] sm:%s58] %v85
        %v87 = vld [vmem:[%s65 + $0x50] sm:%s58]
        %88 = vst [vmem:[%s66 + $0xa0] sm:%s58] %v87
        %v89 = vld [vmem:[%s65 + $0x58] sm:%s58]
        %90 = vst [vmem:[%s66 + $0xb0] sm:%s58] %v89
        %v91 = vld [vmem:[%s65 + $0x60] sm:%s58]
        %92 = vst [vmem:[%s66 + $0xc0] sm:%s58] %v91
        %v93 = vld [vmem:[%s65 + $0x68] sm:%s58]
        %94 = vst [vmem:[%s66 + $0xd0] sm:%s58] %v93
        %v95 = vld [vmem:[%s65 + $0x70] sm:%s58]
        %96 = vst [vmem:[%s66 + $0xe0] sm:%s58] %v95
        %v97 = vld [vmem:[%s65 + $0x78] sm:%s58]
        %98 = vst [vmem:[%s66 + $0xf0] sm:%s58] %v97
        %v99 = vld [vmem:[%s65 + $0x80] sm:%s58]
        %100 = vst [vmem:[%s66 + $0x100] sm:%s58] %v99
        %v101 = vld [vmem:[%s65 + $0x88] sm:%s58]
        %102 = vst [vmem:[%s66 + $0x110] sm:%s58] %v101
        %v103 = vld [vmem:[%s65 + $0x90] sm:%s58]
        %104 = vst [vmem:[%s66 + $0x120] sm:%s58] %v103
        %v105 = vld [vmem:[%s65 + $0x98] sm:%s58]
        %106 = vst [vmem:[%s66 + $0x130] sm:%s58] %v105
        %v107 = vld [vmem:[%s65 + $0xa0] sm:%s58]
        %108 = vst [vmem:[%s66 + $0x140] sm:%s58] %v107
        %v109 = vld [vmem:[%s65 + $0xa8] sm:%s58]
        %110 = vst [vmem:[%s66 + $0x150] sm:%s58] %v109
        %v111 = vld [vmem:[%s65 + $0xb0] sm:%s58]
        %112 = vst [vmem:[%s66 + $0x160] sm:%s58] %v111
        %v113 = vld [vmem:[%s65 + $0xb8] sm:%s58]
        %114 = vst [vmem:[%s66 + $0x170] sm:%s58] %v113
        %v115 = vld [vmem:[%s65 + $0xc0] sm:%s58]
        %116 = vst [vmem:[%s66 + $0x180] sm:%s58] %v115
        %v117 = vld [vmem:[%s65 + $0xc8] sm:%s58]
        %118 = vst [vmem:[%s66 + $0x190] sm:%s58] %v117
        %v119 = vld [vmem:[%s65 + $0xd0] sm:%s58]
        %120 = vst [vmem:[%s66 + $0x1a0] sm:%s58] %v119
        %v121 = vld [vmem:[%s65 + $0xd8] sm:%s58]
        %122 = vst [vmem:[%s66 + $0x1b0] sm:%s58] %v121
        %v123 = vld [vmem:[%s65 + $0xe0] sm:%s58]
        %124 = vst [vmem:[%s66 + $0x1c0] sm:%s58] %v123
        %v125 = vld [vmem:[%s65 + $0xe8] sm:%s58]
        %126 = vst [vmem:[%s66 + $0x1d0] sm:%s58] %v125
        %v127 = vld [vmem:[%s65 + $0xf0] sm:%s58]
        %128 = vst [vmem:[%s66 + $0x1e0] sm:%s58] %v127
        %v129 = vld [vmem:[%s65 + $0xf8] sm:%s58]
        %130 = vst [vmem:[%s66 + $0x1f0] sm:%s58] %v129
      $region58: #{pointgencon_forward.1} parent=52 // loop_footer
        %s64 = sadd.s32 1, %s60
      $region59: #{pointgencon_forward.1} parent=52 // loop_footer_branch
        %59 = sbr.rel target = $region55
      $region60: #{pointgencon_forward.1} parent=52 // loop_exit
        _
    $region53: #{pointgencon_forward.1} parent=1 // pred_fallthru
      _
    // Predicated region
    $region76: #{pointgencon_forward.1} parent=1 // pred_check
      _
    $region77: #{pointgencon_forward.1} parent=1 // pred_check_branch
      %214 = sbr.rel (0) target = $region79
    $region78: #{pointgencon_forward.1} parent=1 // pred_region
      %215 = vsyncadd [#allocation3], 4096
    $region79: #{pointgencon_forward.1} parent=1 // pred_fallthru
      _
    %s216 = scalar_lea.vmem %s0, 256
    %s217 = scalar_lea.vmem [#allocation2], 8
    %s218 = scalar_lea.sflag [#allocation3], 1
    %p220 = scmp.lt.u32.totalorder 8, 8
    %p221 = pneg %p220
    // Predicated region
    $region80: #{pointgencon_forward.1} parent=1 // pred_check
      _
    $region81: #{pointgencon_forward.1} parent=1 // pred_check_branch
      %223 = sbr.rel (%p220) target = $region83
    $region82: #{pointgencon_forward.1} parent=1 // pred_region
      %s300 = sand.u32 8, 7
      %p301 = scmp.eq.s32.totalorder %s300, 0
      // Predicated region
      $region95: #{pointgencon_forward.1} parent=82 // pred_check
        %p302 = pneg %p301
      $region96: #{pointgencon_forward.1} parent=82 // pred_check_branch
        %304 = sbr.rel (%p302) target = $region98
      $region97: #{pointgencon_forward.1} parent=82 // pred_region
        loop: start=0, step=1, limit=1
        $region99: #{pointgencon_forward.1} parent=97 // loop_pre_header
          _
        $region100: #{pointgencon_forward.1} parent=97 // loop_header
          %s306 = sphi 0, %s310
          %p307 = scmp.ge.s32.totalorder %s306, 1
          %s311 = sphi %s216, %s216
          %s312 = sphi %s217, %s217
        $region101: #{pointgencon_forward.1} parent=97 // loop_header_branch
          %309 = sbr.rel (%p307) target = $region105
        $region102: #{pointgencon_forward.1} parent=97 // loop_body
          %v313 = vld [vmem:[%s311] sm:$0xff]
          %314 = vst [vmem:[%s312] sm:$0xff] %v313
          %v315 = vld [vmem:[%s311 + $0x8] sm:$0xff]
          %316 = vst [vmem:[%s312 + $0x10] sm:$0xff] %v315
          %v317 = vld [vmem:[%s311 + $0x10] sm:$0xff]
          %318 = vst [vmem:[%s312 + $0x20] sm:$0xff] %v317
          %v319 = vld [vmem:[%s311 + $0x18] sm:$0xff]
          %320 = vst [vmem:[%s312 + $0x30] sm:$0xff] %v319
          %v321 = vld [vmem:[%s311 + $0x20] sm:$0xff]
          %322 = vst [vmem:[%s312 + $0x40] sm:$0xff] %v321
          %v323 = vld [vmem:[%s311 + $0x28] sm:$0xff]
          %324 = vst [vmem:[%s312 + $0x50] sm:$0xff] %v323
          %v325 = vld [vmem:[%s311 + $0x30] sm:$0xff]
          %326 = vst [vmem:[%s312 + $0x60] sm:$0xff] %v325
          %v327 = vld [vmem:[%s311 + $0x38] sm:$0xff]
          %328 = vst [vmem:[%s312 + $0x70] sm:$0xff] %v327
          %v329 = vld [vmem:[%s311 + $0x40] sm:$0xff]
          %330 = vst [vmem:[%s312 + $0x80] sm:$0xff] %v329
          %v331 = vld [vmem:[%s311 + $0x48] sm:$0xff]
          %332 = vst [vmem:[%s312 + $0x90] sm:$0xff] %v331
          %v333 = vld [vmem:[%s311 + $0x50] sm:$0xff]
          %334 = vst [vmem:[%s312 + $0xa0] sm:$0xff] %v333
          %v335 = vld [vmem:[%s311 + $0x58] sm:$0xff]
          %336 = vst [vmem:[%s312 + $0xb0] sm:$0xff] %v335
          %v337 = vld [vmem:[%s311 + $0x60] sm:$0xff]
          %338 = vst [vmem:[%s312 + $0xc0] sm:$0xff] %v337
          %v339 = vld [vmem:[%s311 + $0x68] sm:$0xff]
          %340 = vst [vmem:[%s312 + $0xd0] sm:$0xff] %v339
          %v341 = vld [vmem:[%s311 + $0x70] sm:$0xff]
          %342 = vst [vmem:[%s312 + $0xe0] sm:$0xff] %v341
          %v343 = vld [vmem:[%s311 + $0x78] sm:$0xff]
          %344 = vst [vmem:[%s312 + $0xf0] sm:$0xff] %v343
          %v345 = vld [vmem:[%s311 + $0x80] sm:$0xff]
          %346 = vst [vmem:[%s312 + $0x100] sm:$0xff] %v345
          %v347 = vld [vmem:[%s311 + $0x88] sm:$0xff]
          %348 = vst [vmem:[%s312 + $0x110] sm:$0xff] %v347
          %v349 = vld [vmem:[%s311 + $0x90] sm:$0xff]
          %350 = vst [vmem:[%s312 + $0x120] sm:$0xff] %v349
          %v351 = vld [vmem:[%s311 + $0x98] sm:$0xff]
          %352 = vst [vmem:[%s312 + $0x130] sm:$0xff] %v351
          %v353 = vld [vmem:[%s311 + $0xa0] sm:$0xff]
          %354 = vst [vmem:[%s312 + $0x140] sm:$0xff] %v353
          %v355 = vld [vmem:[%s311 + $0xa8] sm:$0xff]
          %356 = vst [vmem:[%s312 + $0x150] sm:$0xff] %v355
          %v357 = vld [vmem:[%s311 + $0xb0] sm:$0xff]
          %358 = vst [vmem:[%s312 + $0x160] sm:$0xff] %v357
          %v359 = vld [vmem:[%s311 + $0xb8] sm:$0xff]
          %360 = vst [vmem:[%s312 + $0x170] sm:$0xff] %v359
          %v361 = vld [vmem:[%s311 + $0xc0] sm:$0xff]
          %362 = vst [vmem:[%s312 + $0x180] sm:$0xff] %v361
          %v363 = vld [vmem:[%s311 + $0xc8] sm:$0xff]
          %364 = vst [vmem:[%s312 + $0x190] sm:$0xff] %v363
          %v365 = vld [vmem:[%s311 + $0xd0] sm:$0xff]
          %366 = vst [vmem:[%s312 + $0x1a0] sm:$0xff] %v365
          %v367 = vld [vmem:[%s311 + $0xd8] sm:$0xff]
          %368 = vst [vmem:[%s312 + $0x1b0] sm:$0xff] %v367
          %v369 = vld [vmem:[%s311 + $0xe0] sm:$0xff]
          %370 = vst [vmem:[%s312 + $0x1c0] sm:$0xff] %v369
          %v371 = vld [vmem:[%s311 + $0xe8] sm:$0xff]
          %372 = vst [vmem:[%s312 + $0x1d0] sm:$0xff] %v371
          %v373 = vld [vmem:[%s311 + $0xf0] sm:$0xff]
          %374 = vst [vmem:[%s312 + $0x1e0] sm:$0xff] %v373
          %v375 = vld [vmem:[%s311 + $0xf8] sm:$0xff]
          %376 = vst [vmem:[%s312 + $0x1f0] sm:$0xff] %v375
        $region103: #{pointgencon_forward.1} parent=97 // loop_footer
          %s310 = sadd.s32 1, %s306
        $region104: #{pointgencon_forward.1} parent=97 // loop_footer_branch
          %305 = sbr.rel target = $region100
        $region105: #{pointgencon_forward.1} parent=97 // loop_exit
          _
      $region98: #{pointgencon_forward.1} parent=82 // pred_fallthru
        _
      %p377 = pneg %p301
      // Predicated region
      $region106: #{pointgencon_forward.1} parent=82 // pred_check
        _
      $region107: #{pointgencon_forward.1} parent=82 // pred_check_branch
        %379 = sbr.rel (%p301) target = $region109
      $region108: #{pointgencon_forward.1} parent=82 // pred_region
        %s380 = sand.u32 8, 7
      $region109: #{pointgencon_forward.1} parent=82 // pred_fallthru
        _
    $region83: #{pointgencon_forward.1} parent=1 // pred_fallthru
      _
    // Predicated region
    $region84: #{pointgencon_forward.1} parent=1 // pred_check
      %p224 = pneg %p220
    $region85: #{pointgencon_forward.1} parent=1 // pred_check_branch
      %226 = sbr.rel (%p224) target = $region87
    $region86: #{pointgencon_forward.1} parent=1 // pred_region
      %s227 = sshllo.u32 0, 8
      loop: start=0, step=1, limit=1
      $region88: #{pointgencon_forward.1} parent=86 // loop_pre_header
        _
      $region89: #{pointgencon_forward.1} parent=86 // loop_header
        %s229 = sphi 0, %s233
        %p230 = scmp.ge.s32.totalorder %s229, 1
        %s234 = sphi %s216, %s216
        %s235 = sphi %s217, %s217
      $region90: #{pointgencon_forward.1} parent=86 // loop_header_branch
        %232 = sbr.rel (%p230) target = $region94
      $region91: #{pointgencon_forward.1} parent=86 // loop_body
        %v236 = vld [vmem:[%s234] sm:%s227]
        %237 = vst [vmem:[%s235] sm:%s227] %v236
        %v238 = vld [vmem:[%s234 + $0x8] sm:%s227]
        %239 = vst [vmem:[%s235 + $0x10] sm:%s227] %v238
        %v240 = vld [vmem:[%s234 + $0x10] sm:%s227]
        %241 = vst [vmem:[%s235 + $0x20] sm:%s227] %v240
        %v242 = vld [vmem:[%s234 + $0x18] sm:%s227]
        %243 = vst [vmem:[%s235 + $0x30] sm:%s227] %v242
        %v244 = vld [vmem:[%s234 + $0x20] sm:%s227]
        %245 = vst [vmem:[%s235 + $0x40] sm:%s227] %v244
        %v246 = vld [vmem:[%s234 + $0x28] sm:%s227]
        %247 = vst [vmem:[%s235 + $0x50] sm:%s227] %v246
        %v248 = vld [vmem:[%s234 + $0x30] sm:%s227]
        %249 = vst [vmem:[%s235 + $0x60] sm:%s227] %v248
        %v250 = vld [vmem:[%s234 + $0x38] sm:%s227]
        %251 = vst [vmem:[%s235 + $0x70] sm:%s227] %v250
        %v252 = vld [vmem:[%s234 + $0x40] sm:%s227]
        %253 = vst [vmem:[%s235 + $0x80] sm:%s227] %v252
        %v254 = vld [vmem:[%s234 + $0x48] sm:%s227]
        %255 = vst [vmem:[%s235 + $0x90] sm:%s227] %v254
        %v256 = vld [vmem:[%s234 + $0x50] sm:%s227]
        %257 = vst [vmem:[%s235 + $0xa0] sm:%s227] %v256
        %v258 = vld [vmem:[%s234 + $0x58] sm:%s227]
        %259 = vst [vmem:[%s235 + $0xb0] sm:%s227] %v258
        %v260 = vld [vmem:[%s234 + $0x60] sm:%s227]
        %261 = vst [vmem:[%s235 + $0xc0] sm:%s227] %v260
        %v262 = vld [vmem:[%s234 + $0x68] sm:%s227]
        %263 = vst [vmem:[%s235 + $0xd0] sm:%s227] %v262
        %v264 = vld [vmem:[%s234 + $0x70] sm:%s227]
        %265 = vst [vmem:[%s235 + $0xe0] sm:%s227] %v264
        %v266 = vld [vmem:[%s234 + $0x78] sm:%s227]
        %267 = vst [vmem:[%s235 + $0xf0] sm:%s227] %v266
        %v268 = vld [vmem:[%s234 + $0x80] sm:%s227]
        %269 = vst [vmem:[%s235 + $0x100] sm:%s227] %v268
        %v270 = vld [vmem:[%s234 + $0x88] sm:%s227]
        %271 = vst [vmem:[%s235 + $0x110] sm:%s227] %v270
        %v272 = vld [vmem:[%s234 + $0x90] sm:%s227]
        %273 = vst [vmem:[%s235 + $0x120] sm:%s227] %v272
        %v274 = vld [vmem:[%s234 + $0x98] sm:%s227]
        %275 = vst [vmem:[%s235 + $0x130] sm:%s227] %v274
        %v276 = vld [vmem:[%s234 + $0xa0] sm:%s227]
        %277 = vst [vmem:[%s235 + $0x140] sm:%s227] %v276
        %v278 = vld [vmem:[%s234 + $0xa8] sm:%s227]
        %279 = vst [vmem:[%s235 + $0x150] sm:%s227] %v278
        %v280 = vld [vmem:[%s234 + $0xb0] sm:%s227]
        %281 = vst [vmem:[%s235 + $0x160] sm:%s227] %v280
        %v282 = vld [vmem:[%s234 + $0xb8] sm:%s227]
        %283 = vst [vmem:[%s235 + $0x170] sm:%s227] %v282
        %v284 = vld [vmem:[%s234 + $0xc0] sm:%s227]
        %285 = vst [vmem:[%s235 + $0x180] sm:%s227] %v284
        %v286 = vld [vmem:[%s234 + $0xc8] sm:%s227]
        %287 = vst [vmem:[%s235 + $0x190] sm:%s227] %v286
        %v288 = vld [vmem:[%s234 + $0xd0] sm:%s227]
        %289 = vst [vmem:[%s235 + $0x1a0] sm:%s227] %v288
        %v290 = vld [vmem:[%s234 + $0xd8] sm:%s227]
        %291 = vst [vmem:[%s235 + $0x1b0] sm:%s227] %v290
        %v292 = vld [vmem:[%s234 + $0xe0] sm:%s227]
        %293 = vst [vmem:[%s235 + $0x1c0] sm:%s227] %v292
        %v294 = vld [vmem:[%s234 + $0xe8] sm:%s227]
        %295 = vst [vmem:[%s235 + $0x1d0] sm:%s227] %v294
        %v296 = vld [vmem:[%s234 + $0xf0] sm:%s227]
        %297 = vst [vmem:[%s235 + $0x1e0] sm:%s227] %v296
        %v298 = vld [vmem:[%s234 + $0xf8] sm:%s227]
        %299 = vst [vmem:[%s235 + $0x1f0] sm:%s227] %v298
      $region92: #{pointgencon_forward.1} parent=86 // loop_footer
        %s233 = sadd.s32 1, %s229
      $region93: #{pointgencon_forward.1} parent=86 // loop_footer_branch
        %228 = sbr.rel target = $region89
      $region94: #{pointgencon_forward.1} parent=86 // loop_exit
        _
    $region87: #{pointgencon_forward.1} parent=1 // pred_fallthru
      _
    // Predicated region
    $region110: #{pointgencon_forward.1} parent=1 // pred_check
      _
    $region111: #{pointgencon_forward.1} parent=1 // pred_check_branch
      %383 = sbr.rel (0) target = $region113
    $region112: #{pointgencon_forward.1} parent=1 // pred_region
      %384 = vsyncadd %s218, 4096
    $region113: #{pointgencon_forward.1} parent=1 // pred_fallthru
      _
    %s385 = smul.u32 8, 32
    %s386 = smul.u32 %s385, 1
    %s387 = sshll.u32 %s386, 4
    %388 = dma.done [#allocation3], %s387
    %s389 = sshll.u32 %s386, 4
    %390 = dma.done %s218, %s389
    %v391 = vld [vmem:[%s1] sm:$0xff]
    %v392 = vld [vmem:[%s1 + $0x8] sm:$0xff]
    %v393 = vld [vmem:[%s1 + $0x10] sm:$0xff]
    %v394 = vld [vmem:[%s1 + $0x18] sm:$0xff]
    %v395 = vld [vmem:[%s1 + $0x20] sm:$0xff]
    %v396 = vld [vmem:[%s1 + $0x28] sm:$0xff]
    %v397 = vld [vmem:[%s1 + $0x30] sm:$0xff]
    %v398 = vld [vmem:[%s1 + $0x38] sm:$0xff]
    %v399 = vld [vmem:[%s1 + $0x40] sm:$0xff]
    %v400 = vld [vmem:[%s1 + $0x48] sm:$0xff]
    %v401 = vld [vmem:[%s1 + $0x50] sm:$0xff]
    %v402 = vld [vmem:[%s1 + $0x58] sm:$0xff]
    %v403 = vld [vmem:[%s1 + $0x60] sm:$0xff]
    %v404 = vld [vmem:[%s1 + $0x68] sm:$0xff]
    %v405 = vld [vmem:[%s1 + $0x70] sm:$0xff]
    %v406 = vld [vmem:[%s1 + $0x78] sm:$0xff]
    %v407 = vld [vmem:[%s1 + $0x80] sm:$0xff]
    %v408 = vld [vmem:[%s1 + $0x88] sm:$0xff]
    %v409 = vld [vmem:[%s1 + $0x90] sm:$0xff]
    %v410 = vld [vmem:[%s1 + $0x98] sm:$0xff]
    %v411 = vld [vmem:[%s1 + $0xa0] sm:$0xff]
    %v412 = vld [vmem:[%s1 + $0xa8] sm:$0xff]
    %v413 = vld [vmem:[%s1 + $0xb0] sm:$0xff]
    %v414 = vld [vmem:[%s1 + $0xb8] sm:$0xff]
    %v415 = vld [vmem:[%s1 + $0xc0] sm:$0xff]
    %v416 = vld [vmem:[%s1 + $0xc8] sm:$0xff]
    %v417 = vld [vmem:[%s1 + $0xd0] sm:$0xff]
    %v418 = vld [vmem:[%s1 + $0xd8] sm:$0xff]
    %v419 = vld [vmem:[%s1 + $0xe0] sm:$0xff]
    %v420 = vld [vmem:[%s1 + $0xe8] sm:$0xff]
    %v421 = vld [vmem:[%s1 + $0xf0] sm:$0xff]
    %v422 = vld [vmem:[%s1 + $0xf8] sm:$0xff]
    %v423 = vld [vmem:[%s2] sm:$0xf]
    %v424 = vld [vmem:[#allocation2] sm:$0xff]
    %v425 = vld [vmem:[#allocation2 + $0x8] sm:$0xff]
    %v426 = vld [vmem:[#allocation2 + $0x10] sm:$0xff]
    %v427 = vld [vmem:[#allocation2 + $0x18] sm:$0xff]
    %v428 = vld [vmem:[#allocation2 + $0x20] sm:$0xff]
    %v429 = vld [vmem:[#allocation2 + $0x28] sm:$0xff]
    %v430 = vld [vmem:[#allocation2 + $0x30] sm:$0xff]
    %v431 = vld [vmem:[#allocation2 + $0x38] sm:$0xff]
    %v432 = vld [vmem:[#allocation2 + $0x40] sm:$0xff]
    %v433 = vld [vmem:[#allocation2 + $0x48] sm:$0xff]
    %v434 = vld [vmem:[#allocation2 + $0x50] sm:$0xff]
    %v435 = vld [vmem:[#allocation2 + $0x58] sm:$0xff]
    %v436 = vld [vmem:[#allocation2 + $0x60] sm:$0xff]
    %v437 = vld [vmem:[#allocation2 + $0x68] sm:$0xff]
    %v438 = vld [vmem:[#allocation2 + $0x70] sm:$0xff]
    %v439 = vld [vmem:[#allocation2 + $0x78] sm:$0xff]
    %v440 = vld [vmem:[#allocation2 + $0x80] sm:$0xff]
    %v441 = vld [vmem:[#allocation2 + $0x88] sm:$0xff]
    %v442 = vld [vmem:[#allocation2 + $0x90] sm:$0xff]
    %v443 = vld [vmem:[#allocation2 + $0x98] sm:$0xff]
    %v444 = vld [vmem:[#allocation2 + $0xa0] sm:$0xff]
    %v445 = vld [vmem:[#allocation2 + $0xa8] sm:$0xff]
    %v446 = vld [vmem:[#allocation2 + $0xb0] sm:$0xff]
    %v447 = vld [vmem:[#allocation2 + $0xb8] sm:$0xff]
    %v448 = vld [vmem:[#allocation2 + $0xc0] sm:$0xff]
    %v449 = vld [vmem:[#allocation2 + $0xc8] sm:$0xff]
    %v450 = vld [vmem:[#allocation2 + $0xd0] sm:$0xff]
    %v451 = vld [vmem:[#allocation2 + $0xd8] sm:$0xff]
    %v452 = vld [vmem:[#allocation2 + $0xe0] sm:$0xff]
    %v453 = vld [vmem:[#allocation2 + $0xe8] sm:$0xff]
    %v454 = vld [vmem:[#allocation2 + $0xf0] sm:$0xff]
    %v455 = vld [vmem:[#allocation2 + $0xf8] sm:$0xff]
    %v456 = vld [vmem:[#allocation2 + $0x100] sm:$0xff]
    %v457 = vld [vmem:[#allocation2 + $0x108] sm:$0xff]
    %v458 = vld [vmem:[#allocation2 + $0x110] sm:$0xff]
    %v459 = vld [vmem:[#allocation2 + $0x118] sm:$0xff]
    %v460 = vld [vmem:[#allocation2 + $0x120] sm:$0xff]
    %v461 = vld [vmem:[#allocation2 + $0x128] sm:$0xff]
    %v462 = vld [vmem:[#allocation2 + $0x130] sm:$0xff]
    %v463 = vld [vmem:[#allocation2 + $0x138] sm:$0xff]
    %v464 = vld [vmem:[#allocation2 + $0x140] sm:$0xff]
    %v465 = vld [vmem:[#allocation2 + $0x148] sm:$0xff]
    %v466 = vld [vmem:[#allocation2 + $0x150] sm:$0xff]
    %v467 = vld [vmem:[#allocation2 + $0x158] sm:$0xff]
    %v468 = vld [vmem:[#allocation2 + $0x160] sm:$0xff]
    %v469 = vld [vmem:[#allocation2 + $0x168] sm:$0xff]
    %v470 = vld [vmem:[#allocation2 + $0x170] sm:$0xff]
    %v471 = vld [vmem:[#allocation2 + $0x178] sm:$0xff]
    %v472 = vld [vmem:[#allocation2 + $0x180] sm:$0xff]
    %v473 = vld [vmem:[#allocation2 + $0x188] sm:$0xff]
    %v474 = vld [vmem:[#allocation2 + $0x190] sm:$0xff]
    %v475 = vld [vmem:[#allocation2 + $0x198] sm:$0xff]
    %v476 = vld [vmem:[#allocation2 + $0x1a0] sm:$0xff]
    %v477 = vld [vmem:[#allocation2 + $0x1a8] sm:$0xff]
    %v478 = vld [vmem:[#allocation2 + $0x1b0] sm:$0xff]
    %v479 = vld [vmem:[#allocation2 + $0x1b8] sm:$0xff]
    %v480 = vld [vmem:[#allocation2 + $0x1c0] sm:$0xff]
    %v481 = vld [vmem:[#allocation2 + $0x1c8] sm:$0xff]
    %v482 = vld [vmem:[#allocation2 + $0x1d0] sm:$0xff]
    %v483 = vld [vmem:[#allocation2 + $0x1d8] sm:$0xff]
    %v484 = vld [vmem:[#allocation2 + $0x1e0] sm:$0xff]
    %v485 = vld [vmem:[#allocation2 + $0x1e8] sm:$0xff]
    %v486 = vld [vmem:[#allocation2 + $0x1f0] sm:$0xff]
    %v487 = vld [vmem:[#allocation2 + $0x1f8] sm:$0xff]
    %v488 = vld [vmem:[#allocation4] sm:$0xff]
    %v489 = vld [vmem:[#allocation4 + $0x8] sm:$0xff]
    %v490 = vld [vmem:[#allocation4 + $0x10] sm:$0xff]
    %v491 = vld [vmem:[#allocation4 + $0x18] sm:$0xff]
    %v492 = vld [vmem:[#allocation4 + $0x20] sm:$0xff]
    %v493 = vld [vmem:[#allocation4 + $0x28] sm:$0xff]
    %v494 = vld [vmem:[#allocation4 + $0x30] sm:$0xff]
    %v495 = vld [vmem:[#allocation4 + $0x38] sm:$0xff]
    %v496 = vld [vmem:[#allocation4 + $0x40] sm:$0xff]
    %v497 = vld [vmem:[#allocation4 + $0x48] sm:$0xff]
    %v498 = vld [vmem:[#allocation4 + $0x50] sm:$0xff]
    %v499 = vld [vmem:[#allocation4 + $0x58] sm:$0xff]
    %v500 = vld [vmem:[#allocation4 + $0x60] sm:$0xff]
    %v501 = vld [vmem:[#allocation4 + $0x68] sm:$0xff]
    %v502 = vld [vmem:[#allocation4 + $0x70] sm:$0xff]
    %v503 = vld [vmem:[#allocation4 + $0x78] sm:$0xff]
    %v504 = vld [vmem:[#allocation4 + $0x80] sm:$0xff]
    %v505 = vld [vmem:[#allocation4 + $0x88] sm:$0xff]
    %v506 = vld [vmem:[#allocation4 + $0x90] sm:$0xff]
    %v507 = vld [vmem:[#allocation4 + $0x98] sm:$0xff]
    %v508 = vld [vmem:[#allocation4 + $0xa0] sm:$0xff]
    %v509 = vld [vmem:[#allocation4 + $0xa8] sm:$0xff]
    %v510 = vld [vmem:[#allocation4 + $0xb0] sm:$0xff]
    %v511 = vld [vmem:[#allocation4 + $0xb8] sm:$0xff]
    %v512 = vld [vmem:[#allocation4 + $0xc0] sm:$0xff]
    %v513 = vld [vmem:[#allocation4 + $0xc8] sm:$0xff]
    %v514 = vld [vmem:[#allocation4 + $0xd0] sm:$0xff]
    %v515 = vld [vmem:[#allocation4 + $0xd8] sm:$0xff]
    %v516 = vld [vmem:[#allocation4 + $0xe0] sm:$0xff]
    %v517 = vld [vmem:[#allocation4 + $0xe8] sm:$0xff]
    %v518 = vld [vmem:[#allocation4 + $0xf0] sm:$0xff]
    %v519 = vld [vmem:[#allocation4 + $0xf8] sm:$0xff]
    %v520 = vld [vmem:[#allocation4 + $0x100] sm:$0xff]
    %v521 = vld [vmem:[#allocation4 + $0x108] sm:$0xff]
    %v522 = vld [vmem:[#allocation4 + $0x110] sm:$0xff]
    %v523 = vld [vmem:[#allocation4 + $0x118] sm:$0xff]
    %v524 = vld [vmem:[#allocation4 + $0x120] sm:$0xff]
    %v525 = vld [vmem:[#allocation4 + $0x128] sm:$0xff]
    %v526 = vld [vmem:[#allocation4 + $0x130] sm:$0xff]
    %v527 = vld [vmem:[#allocation4 + $0x138] sm:$0xff]
    %v528 = vld [vmem:[#allocation4 + $0x140] sm:$0xff]
    %v529 = vld [vmem:[#allocation4 + $0x148] sm:$0xff]
    %v530 = vld [vmem:[#allocation4 + $0x150] sm:$0xff]
    %v531 = vld [vmem:[#allocation4 + $0x158] sm:$0xff]
    %v532 = vld [vmem:[#allocation4 + $0x160] sm:$0xff]
    %v533 = vld [vmem:[#allocation4 + $0x168] sm:$0xff]
    %v534 = vld [vmem:[#allocation4 + $0x170] sm:$0xff]
    %v535 = vld [vmem:[#allocation4 + $0x178] sm:$0xff]
    %v536 = vld [vmem:[#allocation4 + $0x180] sm:$0xff]
    %v537 = vld [vmem:[#allocation4 + $0x188] sm:$0xff]
    %v538 = vld [vmem:[#allocation4 + $0x190] sm:$0xff]
    %v539 = vld [vmem:[#allocation4 + $0x198] sm:$0xff]
    %v540 = vld [vmem:[#allocation4 + $0x1a0] sm:$0xff]
    %v541 = vld [vmem:[#allocation4 + $0x1a8] sm:$0xff]
    %v542 = vld [vmem:[#allocation4 + $0x1b0] sm:$0xff]
    %v543 = vld [vmem:[#allocation4 + $0x1b8] sm:$0xff]
    %v544 = vld [vmem:[#allocation4 + $0x1c0] sm:$0xff]
    %v545 = vld [vmem:[#allocation4 + $0x1c8] sm:$0xff]
    %v546 = vld [vmem:[#allocation4 + $0x1d0] sm:$0xff]
    %v547 = vld [vmem:[#allocation4 + $0x1d8] sm:$0xff]
    %v548 = vld [vmem:[#allocation4 + $0x1e0] sm:$0xff]
    %v549 = vld [vmem:[#allocation4 + $0x1e8] sm:$0xff]
    %v550 = vld [vmem:[#allocation4 + $0x1f0] sm:$0xff]
    %v551 = vld [vmem:[#allocation4 + $0x1f8] sm:$0xff]
    %v552 = vld [vmem:[%s4] sm:$0xff]
    %v553 = vld [vmem:[%s4 + $0x8] sm:$0xff]
    %v554 = vld [vmem:[%s4 + $0x10] sm:$0xff]
    %v555 = vld [vmem:[%s4 + $0x18] sm:$0xff]
    %v556 = vld [vmem:[%s4 + $0x20] sm:$0xff]
    %v557 = vld [vmem:[%s4 + $0x28] sm:$0xff]
    %v558 = vld [vmem:[%s4 + $0x30] sm:$0xff]
    %v559 = vld [vmem:[%s4 + $0x38] sm:$0xff]
    %v560 = vld [vmem:[%s4 + $0x40] sm:$0xff]
    %v561 = vld [vmem:[%s4 + $0x48] sm:$0xff]
    %v562 = vld [vmem:[%s4 + $0x50] sm:$0xff]
    %v563 = vld [vmem:[%s4 + $0x58] sm:$0xff]
    %v564 = vld [vmem:[%s4 + $0x60] sm:$0xff]
    %v565 = vld [vmem:[%s4 + $0x68] sm:$0xff]
    %v566 = vld [vmem:[%s4 + $0x70] sm:$0xff]
    %v567 = vld [vmem:[%s4 + $0x78] sm:$0xff]
    %v568 = vld [vmem:[%s4 + $0x80] sm:$0xff]
    %v569 = vld [vmem:[%s4 + $0x88] sm:$0xff]
    %v570 = vld [vmem:[%s4 + $0x90] sm:$0xff]
    %v571 = vld [vmem:[%s4 + $0x98] sm:$0xff]
    %v572 = vld [vmem:[%s4 + $0xa0] sm:$0xff]
    %v573 = vld [vmem:[%s4 + $0xa8] sm:$0xff]
    %v574 = vld [vmem:[%s4 + $0xb0] sm:$0xff]
    %v575 = vld [vmem:[%s4 + $0xb8] sm:$0xff]
    %v576 = vld [vmem:[%s4 + $0xc0] sm:$0xff]
    %v577 = vld [vmem:[%s4 + $0xc8] sm:$0xff]
    %v578 = vld [vmem:[%s4 + $0xd0] sm:$0xff]
    %v579 = vld [vmem:[%s4 + $0xd8] sm:$0xff]
    %v580 = vld [vmem:[%s4 + $0xe0] sm:$0xff]
    %v581 = vld [vmem:[%s4 + $0xe8] sm:$0xff]
    %v582 = vld [vmem:[%s4 + $0xf0] sm:$0xff]
    %v583 = vld [vmem:[%s4 + $0xf8] sm:$0xff]
    %585 = vset.pattern.permute.xlu0 0
    %586 = vperm.xlu0 %585, %v552
    %v587 = vpop.permute.xlu0 %586
    %590 = vset.pattern.permute.xlu0 0
    %591 = vperm.xlu0 %590, %v553
    %v592 = vpop.permute.xlu0 %591
    %595 = vset.pattern.permute.xlu0 0
    %596 = vperm.xlu0 %595, %v554
    %v597 = vpop.permute.xlu0 %596
    %600 = vset.pattern.permute.xlu0 0
    %601 = vperm.xlu0 %600, %v555
    %v602 = vpop.permute.xlu0 %601
    %605 = vset.pattern.permute.xlu0 0
    %606 = vperm.xlu0 %605, %v556
    %v607 = vpop.permute.xlu0 %606
    %610 = vset.pattern.permute.xlu0 0
    %611 = vperm.xlu0 %610, %v557
    %v612 = vpop.permute.xlu0 %611
    %615 = vset.pattern.permute.xlu0 0
    %616 = vperm.xlu0 %615, %v558
    %v617 = vpop.permute.xlu0 %616
    %620 = vset.pattern.permute.xlu0 0
    %621 = vperm.xlu0 %620, %v559
    %v622 = vpop.permute.xlu0 %621
    %625 = vset.pattern.permute.xlu0 0
    %626 = vperm.xlu0 %625, %v560
    %v627 = vpop.permute.xlu0 %626
    %630 = vset.pattern.permute.xlu0 0
    %631 = vperm.xlu0 %630, %v561
    %v632 = vpop.permute.xlu0 %631
    %635 = vset.pattern.permute.xlu0 0
    %636 = vperm.xlu0 %635, %v562
    %v637 = vpop.permute.xlu0 %636
    %640 = vset.pattern.permute.xlu0 0
    %641 = vperm.xlu0 %640, %v563
    %v642 = vpop.permute.xlu0 %641
    %645 = vset.pattern.permute.xlu0 0
    %646 = vperm.xlu0 %645, %v564
    %v647 = vpop.permute.xlu0 %646
    %650 = vset.pattern.permute.xlu0 0
    %651 = vperm.xlu0 %650, %v565
    %v652 = vpop.permute.xlu0 %651
    %655 = vset.pattern.permute.xlu0 0
    %656 = vperm.xlu0 %655, %v566
    %v657 = vpop.permute.xlu0 %656
    %660 = vset.pattern.permute.xlu0 0
    %661 = vperm.xlu0 %660, %v567
    %v662 = vpop.permute.xlu0 %661
    %665 = vset.pattern.permute.xlu0 0
    %666 = vperm.xlu0 %665, %v568
    %v667 = vpop.permute.xlu0 %666
    %670 = vset.pattern.permute.xlu0 0
    %671 = vperm.xlu0 %670, %v569
    %v672 = vpop.permute.xlu0 %671
    %675 = vset.pattern.permute.xlu0 0
    %676 = vperm.xlu0 %675, %v570
    %v677 = vpop.permute.xlu0 %676
    %680 = vset.pattern.permute.xlu0 0
    %681 = vperm.xlu0 %680, %v571
    %v682 = vpop.permute.xlu0 %681
    %685 = vset.pattern.permute.xlu0 0
    %686 = vperm.xlu0 %685, %v572
    %v687 = vpop.permute.xlu0 %686
    %690 = vset.pattern.permute.xlu0 0
    %691 = vperm.xlu0 %690, %v573
    %v692 = vpop.permute.xlu0 %691
    %695 = vset.pattern.permute.xlu0 0
    %696 = vperm.xlu0 %695, %v574
    %v697 = vpop.permute.xlu0 %696
    %700 = vset.pattern.permute.xlu0 0
    %701 = vperm.xlu0 %700, %v575
    %v702 = vpop.permute.xlu0 %701
    %705 = vset.pattern.permute.xlu0 0
    %706 = vperm.xlu0 %705, %v576
    %v707 = vpop.permute.xlu0 %706
    %710 = vset.pattern.permute.xlu0 0
    %711 = vperm.xlu0 %710, %v577
    %v712 = vpop.permute.xlu0 %711
    %715 = vset.pattern.permute.xlu0 0
    %716 = vperm.xlu0 %715, %v578
    %v717 = vpop.permute.xlu0 %716
    %720 = vset.pattern.permute.xlu0 0
    %721 = vperm.xlu0 %720, %v579
    %v722 = vpop.permute.xlu0 %721
    %725 = vset.pattern.permute.xlu0 0
    %726 = vperm.xlu0 %725, %v580
    %v727 = vpop.permute.xlu0 %726
    %730 = vset.pattern.permute.xlu0 0
    %731 = vperm.xlu0 %730, %v581
    %v732 = vpop.permute.xlu0 %731
    %735 = vset.pattern.permute.xlu0 0
    %736 = vperm.xlu0 %735, %v582
    %v737 = vpop.permute.xlu0 %736
    %740 = vset.pattern.permute.xlu0 0
    %741 = vperm.xlu0 %740, %v583
    %v742 = vpop.permute.xlu0 %741
    %744 = vmatprep.subr.mxu0 %v425
    %745 = vmatpush1.msra.mxu0 %v424
    %746 = vmatprep.subr.mxu0 %v427
    %747 = vmatpush1.msra.mxu0 %v426
    %748 = vmatprep.subr.mxu0 %v429
    %749 = vmatpush1.msra.mxu0 %v428
    %750 = vmatprep.subr.mxu0 %v431
    %751 = vmatpush1.msra.mxu0 %v430
    %752 = vmatprep.subr.mxu0 %v433
    %753 = vmatpush1.msra.mxu0 %v432
    %754 = vmatprep.subr.mxu0 %v435
    %755 = vmatpush1.msra.mxu0 %v434
    %756 = vmatprep.subr.mxu0 %v437
    %757 = vmatpush1.msra.mxu0 %v436
    %758 = vmatprep.subr.mxu0 %v439
    %759 = vmatpush1.msra.mxu0 %v438
    %760 = vmatprep.subr.mxu0 %v441
    %761 = vmatpush1.msra.mxu0 %v440
    %762 = vmatprep.subr.mxu0 %v443
    %763 = vmatpush1.msra.mxu0 %v442
    %764 = vmatprep.subr.mxu0 %v445
    %765 = vmatpush1.msra.mxu0 %v444
    %766 = vmatprep.subr.mxu0 %v447
    %767 = vmatpush1.msra.mxu0 %v446
    %768 = vmatprep.subr.mxu0 %v449
    %769 = vmatpush1.msra.mxu0 %v448
    %770 = vmatprep.subr.mxu0 %v451
    %771 = vmatpush1.msra.mxu0 %v450
    %772 = vmatprep.subr.mxu0 %v453
    %773 = vmatpush1.msra.mxu0 %v452
    %774 = vmatprep.subr.mxu0 %v455
    %775 = vmatpush1.msra.mxu0 %v454
    %776 = vmatprep.subr.mxu0 %v457
    %777 = vmatpush1.msra.mxu0 %v456
    %778 = vmatprep.subr.mxu0 %v459
    %779 = vmatpush1.msra.mxu0 %v458
    %780 = vmatprep.subr.mxu0 %v461
    %781 = vmatpush1.msra.mxu0 %v460
    %782 = vmatprep.subr.mxu0 %v463
    %783 = vmatpush1.msra.mxu0 %v462
    %784 = vmatprep.subr.mxu0 %v465
    %785 = vmatpush1.msra.mxu0 %v464
    %786 = vmatprep.subr.mxu0 %v467
    %787 = vmatpush1.msra.mxu0 %v466
    %788 = vmatprep.subr.mxu0 %v469
    %789 = vmatpush1.msra.mxu0 %v468
    %790 = vmatprep.subr.mxu0 %v471
    %791 = vmatpush1.msra.mxu0 %v470
    %792 = vmatprep.subr.mxu0 %v473
    %793 = vmatpush1.msra.mxu0 %v472
    %794 = vmatprep.subr.mxu0 %v475
    %795 = vmatpush1.msra.mxu0 %v474
    %796 = vmatprep.subr.mxu0 %v477
    %797 = vmatpush1.msra.mxu0 %v476
    %798 = vmatprep.subr.mxu0 %v479
    %799 = vmatpush1.msra.mxu0 %v478
    %800 = vmatprep.subr.mxu0 %v481
    %801 = vmatpush1.msra.mxu0 %v480
    %802 = vmatprep.subr.mxu0 %v483
    %803 = vmatpush1.msra.mxu0 %v482
    %804 = vmatprep.subr.mxu0 %v485
    %805 = vmatpush1.msra.mxu0 %v484
    %806 = vmatprep.subr.mxu0 %v487
    %807 = vmatpush1.msra.mxu0 %v486
    %808 = vmatprep.mubr.f32.mxu0 %v489
    %809 = vmatmul.mubr.f32.gmra.mrb[0].mxu0 %v488
    %v810 = vpop.f32.mrb[0].mxu0
    %v811 = vadd.f32 %v587, %v810
    %v812 = vpop.f32.mrb[0].mxu0
    %v813 = vadd.f32 %v587, %v812
    %814 = vmatprep.mubr.f32.mxu0 %v491
    %815 = vmatmul.mubr.f32.gmra.mrb[0].mxu0 %v490
    %v816 = vpop.f32.mrb[0].mxu0
    %v817 = vadd.f32 %v592, %v816
    %v818 = vpop.f32.mrb[0].mxu0
    %v819 = vadd.f32 %v592, %v818
    %820 = vmatprep.mubr.f32.mxu0 %v493
    %821 = vmatmul.mubr.f32.gmra.mrb[0].mxu0 %v492
    %v822 = vpop.f32.mrb[0].mxu0
    %v823 = vadd.f32 %v597, %v822
    %v824 = vpop.f32.mrb[0].mxu0
    %v825 = vadd.f32 %v597, %v824
    %826 = vmatprep.mubr.f32.mxu0 %v495
    %827 = vmatmul.mubr.f32.gmra.mrb[0].mxu0 %v494
    %v828 = vpop.f32.mrb[0].mxu0
    %v829 = vadd.f32 %v602, %v828
    %v830 = vpop.f32.mrb[0].mxu0
    %v831 = vadd.f32 %v602, %v830
    %832 = vmatprep.mubr.f32.mxu0 %v497
    %833 = vmatmul.mubr.f32.gmra.mrb[0].mxu0 %v496
    %v834 = vpop.f32.mrb[0].mxu0
    %v835 = vadd.f32 %v607, %v834
    %v836 = vpop.f32.mrb[0].mxu0
    %v837 = vadd.f32 %v607, %v836
    %838 = vmatprep.mubr.f32.mxu0 %v499
    %839 = vmatmul.mubr.f32.gmra.mrb[0].mxu0 %v498
    %v840 = vpop.f32.mrb[0].mxu0
    %v841 = vadd.f32 %v612, %v840
    %v842 = vpop.f32.mrb[0].mxu0
    %v843 = vadd.f32 %v612, %v842
    %844 = vmatprep.mubr.f32.mxu0 %v501
    %845 = vmatmul.mubr.f32.gmra.mrb[0].mxu0 %v500
    %v846 = vpop.f32.mrb[0].mxu0
    %v847 = vadd.f32 %v617, %v846
    %v848 = vpop.f32.mrb[0].mxu0
    %v849 = vadd.f32 %v617, %v848
    %850 = vmatprep.mubr.f32.mxu0 %v503
    %851 = vmatmul.mubr.f32.gmra.mrb[0].mxu0 %v502
    %v852 = vpop.f32.mrb[0].mxu0
    %v853 = vadd.f32 %v622, %v852
    %v854 = vpop.f32.mrb[0].mxu0
    %v855 = vadd.f32 %v622, %v854
    %856 = vmatprep.mubr.f32.mxu0 %v505
    %857 = vmatmul.mubr.f32.gmra.mrb[0].mxu0 %v504
    %v858 = vpop.f32.mrb[0].mxu0
    %v859 = vadd.f32 %v627, %v858
    %v860 = vpop.f32.mrb[0].mxu0
    %v861 = vadd.f32 %v627, %v860
    %862 = vmatprep.mubr.f32.mxu0 %v507
    %863 = vmatmul.mubr.f32.gmra.mrb[0].mxu0 %v506
    %v864 = vpop.f32.mrb[0].mxu0
    %v865 = vadd.f32 %v632, %v864
    %v866 = vpop.f32.mrb[0].mxu0
    %v867 = vadd.f32 %v632, %v866
    %868 = vmatprep.mubr.f32.mxu0 %v509
    %869 = vmatmul.mubr.f32.gmra.mrb[0].mxu0 %v508
    %v870 = vpop.f32.mrb[0].mxu0
    %v871 = vadd.f32 %v637, %v870
    %v872 = vpop.f32.mrb[0].mxu0
    %v873 = vadd.f32 %v637, %v872
    %874 = vmatprep.mubr.f32.mxu0 %v511
    %875 = vmatmul.mubr.f32.gmra.mrb[0].mxu0 %v510
    %v876 = vpop.f32.mrb[0].mxu0
    %v877 = vadd.f32 %v642, %v876
    %v878 = vpop.f32.mrb[0].mxu0
    %v879 = vadd.f32 %v642, %v878
    %880 = vmatprep.mubr.f32.mxu0 %v513
    %881 = vmatmul.mubr.f32.gmra.mrb[0].mxu0 %v512
    %v882 = vpop.f32.mrb[0].mxu0
    %v883 = vadd.f32 %v647, %v882
    %v884 = vpop.f32.mrb[0].mxu0
    %v885 = vadd.f32 %v647, %v884
    %886 = vmatprep.mubr.f32.mxu0 %v515
    %887 = vmatmul.mubr.f32.gmra.mrb[0].mxu0 %v514
    %v888 = vpop.f32.mrb[0].mxu0
    %v889 = vadd.f32 %v652, %v888
    %v890 = vpop.f32.mrb[0].mxu0
    %v891 = vadd.f32 %v652, %v890
    %892 = vmatprep.mubr.f32.mxu0 %v517
    %893 = vmatmul.mubr.f32.gmra.mrb[0].mxu0 %v516
    %v894 = vpop.f32.mrb[0].mxu0
    %v895 = vadd.f32 %v657, %v894
    %v896 = vpop.f32.mrb[0].mxu0
    %v897 = vadd.f32 %v657, %v896
    %898 = vmatprep.mubr.f32.mxu0 %v519
    %899 = vmatmul.mubr.f32.gmra.mrb[0].mxu0 %v518
    %v900 = vpop.f32.mrb[0].mxu0
    %v901 = vadd.f32 %v662, %v900
    %v902 = vpop.f32.mrb[0].mxu0
    %v903 = vadd.f32 %v662, %v902
    %904 = vmatprep.mubr.f32.mxu0 %v521
    %905 = vmatmul.mubr.f32.gmra.mrb[0].mxu0 %v520
    %v906 = vpop.f32.mrb[0].mxu0
    %v907 = vadd.f32 %v667, %v906
    %v908 = vpop.f32.mrb[0].mxu0
    %v909 = vadd.f32 %v667, %v908
    %910 = vmatprep.mubr.f32.mxu0 %v523
    %911 = vmatmul.mubr.f32.gmra.mrb[0].mxu0 %v522
    %v912 = vpop.f32.mrb[0].mxu0
    %v913 = vadd.f32 %v672, %v912
    %v914 = vpop.f32.mrb[0].mxu0
    %v915 = vadd.f32 %v672, %v914
    %916 = vmatprep.mubr.f32.mxu0 %v525
    %917 = vmatmul.mubr.f32.gmra.mrb[0].mxu0 %v524
    %v918 = vpop.f32.mrb[0].mxu0
    %v919 = vadd.f32 %v677, %v918
    %v920 = vpop.f32.mrb[0].mxu0
    %v921 = vadd.f32 %v677, %v920
    %922 = vmatprep.mubr.f32.mxu0 %v527
    %923 = vmatmul.mubr.f32.gmra.mrb[0].mxu0 %v526
    %v924 = vpop.f32.mrb[0].mxu0
    %v925 = vadd.f32 %v682, %v924
    %v926 = vpop.f32.mrb[0].mxu0
    %v927 = vadd.f32 %v682, %v926
    %928 = vmatprep.mubr.f32.mxu0 %v529
    %929 = vmatmul.mubr.f32.gmra.mrb[0].mxu0 %v528
    %v930 = vpop.f32.mrb[0].mxu0
    %v931 = vadd.f32 %v687, %v930
    %v932 = vpop.f32.mrb[0].mxu0
    %v933 = vadd.f32 %v687, %v932
    %934 = vmatprep.mubr.f32.mxu0 %v531
    %935 = vmatmul.mubr.f32.gmra.mrb[0].mxu0 %v530
    %v936 = vpop.f32.mrb[0].mxu0
    %v937 = vadd.f32 %v692, %v936
    %v938 = vpop.f32.mrb[0].mxu0
    %v939 = vadd.f32 %v692, %v938
    %940 = vmatprep.mubr.f32.mxu0 %v533
    %941 = vmatmul.mubr.f32.gmra.mrb[0].mxu0 %v532
    %v942 = vpop.f32.mrb[0].mxu0
    %v943 = vadd.f32 %v697, %v942
    %v944 = vpop.f32.mrb[0].mxu0
    %v945 = vadd.f32 %v697, %v944
    %946 = vmatprep.mubr.f32.mxu0 %v535
    %947 = vmatmul.mubr.f32.gmra.mrb[0].mxu0 %v534
    %v948 = vpop.f32.mrb[0].mxu0
    %v949 = vadd.f32 %v702, %v948
    %v950 = vpop.f32.mrb[0].mxu0
    %v951 = vadd.f32 %v702, %v950
    %952 = vmatprep.mubr.f32.mxu0 %v537
    %953 = vmatmul.mubr.f32.gmra.mrb[0].mxu0 %v536
    %v954 = vpop.f32.mrb[0].mxu0
    %v955 = vadd.f32 %v707, %v954
    %v956 = vpop.f32.mrb[0].mxu0
    %v957 = vadd.f32 %v707, %v956
    %958 = vmatprep.mubr.f32.mxu0 %v539
    %959 = vmatmul.mubr.f32.gmra.mrb[0].mxu0 %v538
    %v960 = vpop.f32.mrb[0].mxu0
    %v961 = vadd.f32 %v712, %v960
    %v962 = vpop.f32.mrb[0].mxu0
    %v963 = vadd.f32 %v712, %v962
    %964 = vmatprep.mubr.f32.mxu0 %v541
    %965 = vmatmul.mubr.f32.gmra.mrb[0].mxu0 %v540
    %v966 = vpop.f32.mrb[0].mxu0
    %v967 = vadd.f32 %v717, %v966
    %v968 = vpop.f32.mrb[0].mxu0
    %v969 = vadd.f32 %v717, %v968
    %970 = vmatprep.mubr.f32.mxu0 %v543
    %971 = vmatmul.mubr.f32.gmra.mrb[0].mxu0 %v542
    %v972 = vpop.f32.mrb[0].mxu0
    %v973 = vadd.f32 %v722, %v972
    %v974 = vpop.f32.mrb[0].mxu0
    %v975 = vadd.f32 %v722, %v974
    %976 = vmatprep.mubr.f32.mxu0 %v545
    %977 = vmatmul.mubr.f32.gmra.mrb[0].mxu0 %v544
    %v978 = vpop.f32.mrb[0].mxu0
    %v979 = vadd.f32 %v727, %v978
    %v980 = vpop.f32.mrb[0].mxu0
    %v981 = vadd.f32 %v727, %v980
    %982 = vmatprep.mubr.f32.mxu0 %v547
    %983 = vmatmul.mubr.f32.gmra.mrb[0].mxu0 %v546
    %v984 = vpop.f32.mrb[0].mxu0
    %v985 = vadd.f32 %v732, %v984
    %v986 = vpop.f32.mrb[0].mxu0
    %v987 = vadd.f32 %v732, %v986
    %988 = vmatprep.mubr.f32.mxu0 %v549
    %989 = vmatmul.mubr.f32.gmra.mrb[0].mxu0 %v548
    %v990 = vpop.f32.mrb[0].mxu0
    %v991 = vadd.f32 %v737, %v990
    %v992 = vpop.f32.mrb[0].mxu0
    %v993 = vadd.f32 %v737, %v992
    %994 = vmatprep.mubr.f32.mxu0 %v551
    %995 = vmatmul.mubr.f32.gmra.mrb[0].mxu0 %v550
    %v996 = vpop.f32.mrb[0].mxu0
    %v997 = vadd.f32 %v742, %v996
    %v998 = vpop.f32.mrb[0].mxu0
    %v999 = vadd.f32 %v742, %v998
    %1000 = vdwg.mxu0
    %1001 = vmatprep.subr.mxu0 0.0
    %1002 = vmatpush1.msra.mxu0 %v391
    %1003 = vmatprep.subr.mxu0 0.0
    %1004 = vmatpush1.msra.mxu0 %v392
    %1005 = vmatprep.subr.mxu0 0.0
    %1006 = vmatpush1.msra.mxu0 %v393
    %1007 = vmatprep.subr.mxu0 0.0
    %1008 = vmatpush1.msra.mxu0 %v394
    %1009 = vmatprep.subr.mxu0 0.0
    %1010 = vmatpush1.msra.mxu0 %v395
    %1011 = vmatprep.subr.mxu0 0.0
    %1012 = vmatpush1.msra.mxu0 %v396
    %1013 = vmatprep.subr.mxu0 0.0
    %1014 = vmatpush1.msra.mxu0 %v397
    %1015 = vmatprep.subr.mxu0 0.0
    %1016 = vmatpush1.msra.mxu0 %v398
    %1017 = vmatprep.subr.mxu0 0.0
    %1018 = vmatpush1.msra.mxu0 %v399
    %1019 = vmatprep.subr.mxu0 0.0
    %1020 = vmatpush1.msra.mxu0 %v400
    %1021 = vmatprep.subr.mxu0 0.0
    %1022 = vmatpush1.msra.mxu0 %v401
    %1023 = vmatprep.subr.mxu0 0.0
    %1024 = vmatpush1.msra.mxu0 %v402
    %1025 = vmatprep.subr.mxu0 0.0
    %1026 = vmatpush1.msra.mxu0 %v403
    %1027 = vmatprep.subr.mxu0 0.0
    %1028 = vmatpush1.msra.mxu0 %v404
    %1029 = vmatprep.subr.mxu0 0.0
    %1030 = vmatpush1.msra.mxu0 %v405
    %1031 = vmatprep.subr.mxu0 0.0
    %1032 = vmatpush1.msra.mxu0 %v406
    %1033 = vmatprep.subr.mxu0 0.0
    %1034 = vmatpush1.msra.mxu0 %v407
    %1035 = vmatprep.subr.mxu0 0.0
    %1036 = vmatpush1.msra.mxu0 %v408
    %1037 = vmatprep.subr.mxu0 0.0
    %1038 = vmatpush1.msra.mxu0 %v409
    %1039 = vmatprep.subr.mxu0 0.0
    %1040 = vmatpush1.msra.mxu0 %v410
    %1041 = vmatprep.subr.mxu0 0.0
    %1042 = vmatpush1.msra.mxu0 %v411
    %1043 = vmatprep.subr.mxu0 0.0
    %1044 = vmatpush1.msra.mxu0 %v412
    %1045 = vmatprep.subr.mxu0 0.0
    %1046 = vmatpush1.msra.mxu0 %v413
    %1047 = vmatprep.subr.mxu0 0.0
    %1048 = vmatpush1.msra.mxu0 %v414
    %1049 = vmatprep.subr.mxu0 0.0
    %1050 = vmatpush1.msra.mxu0 %v415
    %1051 = vmatprep.subr.mxu0 0.0
    %1052 = vmatpush1.msra.mxu0 %v416
    %1053 = vmatprep.subr.mxu0 0.0
    %1054 = vmatpush1.msra.mxu0 %v417
    %1055 = vmatprep.subr.mxu0 0.0
    %1056 = vmatpush1.msra.mxu0 %v418
    %1057 = vmatprep.subr.mxu0 0.0
    %1058 = vmatpush1.msra.mxu0 %v419
    %1059 = vmatprep.subr.mxu0 0.0
    %1060 = vmatpush1.msra.mxu0 %v420
    %1061 = vmatprep.subr.mxu0 0.0
    %1062 = vmatpush1.msra.mxu0 %v421
    %1063 = vmatprep.subr.mxu0 0.0
    %1064 = vmatpush1.msra.mxu0 %v422
    %1065 = vmatprep.mubr.f32.mxu0 %v813
    %1066 = vmatmul.mubr.f32.gmra.mrb[0].mxu0 %v811
    %v1067 = vpop.f32.mrb[0].mxu0
    %v1068 = vadd.f32 0.0, %v1067
    %v1069 = vpop.f32.mrb[0].mxu0
    %1070 = vmatprep.mubr.f32.mxu0 %v819
    %1071 = vmatmul.mubr.f32.gmra.mrb[0].mxu0 %v817
    %v1072 = vpop.f32.mrb[0].mxu0
    %v1073 = vadd.f32 0.0, %v1072
    %v1074 = vpop.f32.mrb[0].mxu0
    %1075 = vmatprep.mubr.f32.mxu0 %v825
    %1076 = vmatmul.mubr.f32.gmra.mrb[0].mxu0 %v823
    %v1077 = vpop.f32.mrb[0].mxu0
    %v1078 = vadd.f32 0.0, %v1077
    %v1079 = vpop.f32.mrb[0].mxu0
    %1080 = vmatprep.mubr.f32.mxu0 %v831
    %1081 = vmatmul.mubr.f32.gmra.mrb[0].mxu0 %v829
    %v1082 = vpop.f32.mrb[0].mxu0
    %v1083 = vadd.f32 0.0, %v1082
    %v1084 = vpop.f32.mrb[0].mxu0
    %1085 = vmatprep.mubr.f32.mxu0 %v837
    %1086 = vmatmul.mubr.f32.gmra.mrb[0].mxu0 %v835
    %v1087 = vpop.f32.mrb[0].mxu0
    %v1088 = vadd.f32 0.0, %v1087
    %v1089 = vpop.f32.mrb[0].mxu0
    %1090 = vmatprep.mubr.f32.mxu0 %v843
    %1091 = vmatmul.mubr.f32.gmra.mrb[0].mxu0 %v841
    %v1092 = vpop.f32.mrb[0].mxu0
    %v1093 = vadd.f32 0.0, %v1092
    %v1094 = vpop.f32.mrb[0].mxu0
    %1095 = vmatprep.mubr.f32.mxu0 %v849
    %1096 = vmatmul.mubr.f32.gmra.mrb[0].mxu0 %v847
    %v1097 = vpop.f32.mrb[0].mxu0
    %v1098 = vadd.f32 0.0, %v1097
    %v1099 = vpop.f32.mrb[0].mxu0
    %1100 = vmatprep.mubr.f32.mxu0 %v855
    %1101 = vmatmul.mubr.f32.gmra.mrb[0].mxu0 %v853
    %v1102 = vpop.f32.mrb[0].mxu0
    %v1103 = vadd.f32 0.0, %v1102
    %v1104 = vpop.f32.mrb[0].mxu0
    %1105 = vmatprep.mubr.f32.mxu0 %v861
    %1106 = vmatmul.mubr.f32.gmra.mrb[0].mxu0 %v859
    %v1107 = vpop.f32.mrb[0].mxu0
    %v1108 = vadd.f32 0.0, %v1107
    %v1109 = vpop.f32.mrb[0].mxu0
    %1110 = vmatprep.mubr.f32.mxu0 %v867
    %1111 = vmatmul.mubr.f32.gmra.mrb[0].mxu0 %v865
    %v1112 = vpop.f32.mrb[0].mxu0
    %v1113 = vadd.f32 0.0, %v1112
    %v1114 = vpop.f32.mrb[0].mxu0
    %1115 = vmatprep.mubr.f32.mxu0 %v873
    %1116 = vmatmul.mubr.f32.gmra.mrb[0].mxu0 %v871
    %v1117 = vpop.f32.mrb[0].mxu0
    %v1118 = vadd.f32 0.0, %v1117
    %v1119 = vpop.f32.mrb[0].mxu0
    %1120 = vmatprep.mubr.f32.mxu0 %v879
    %1121 = vmatmul.mubr.f32.gmra.mrb[0].mxu0 %v877
    %v1122 = vpop.f32.mrb[0].mxu0
    %v1123 = vadd.f32 0.0, %v1122
    %v1124 = vpop.f32.mrb[0].mxu0
    %1125 = vmatprep.mubr.f32.mxu0 %v885
    %1126 = vmatmul.mubr.f32.gmra.mrb[0].mxu0 %v883
    %v1127 = vpop.f32.mrb[0].mxu0
    %v1128 = vadd.f32 0.0, %v1127
    %v1129 = vpop.f32.mrb[0].mxu0
    %1130 = vmatprep.mubr.f32.mxu0 %v891
    %1131 = vmatmul.mubr.f32.gmra.mrb[0].mxu0 %v889
    %v1132 = vpop.f32.mrb[0].mxu0
    %v1133 = vadd.f32 0.0, %v1132
    %v1134 = vpop.f32.mrb[0].mxu0
    %1135 = vmatprep.mubr.f32.mxu0 %v897
    %1136 = vmatmul.mubr.f32.gmra.mrb[0].mxu0 %v895
    %v1137 = vpop.f32.mrb[0].mxu0
    %v1138 = vadd.f32 0.0, %v1137
    %v1139 = vpop.f32.mrb[0].mxu0
    %1140 = vmatprep.mubr.f32.mxu0 %v903
    %1141 = vmatmul.mubr.f32.gmra.mrb[0].mxu0 %v901
    %v1142 = vpop.f32.mrb[0].mxu0
    %v1143 = vadd.f32 0.0, %v1142
    %v1144 = vpop.f32.mrb[0].mxu0
    %1145 = vmatprep.mubr.f32.mxu0 %v909
    %1146 = vmatmul.mubr.f32.gmra.mrb[0].mxu0 %v907
    %v1147 = vpop.f32.mrb[0].mxu0
    %v1148 = vadd.f32 0.0, %v1147
    %v1149 = vpop.f32.mrb[0].mxu0
    %1150 = vmatprep.mubr.f32.mxu0 %v915
    %1151 = vmatmul.mubr.f32.gmra.mrb[0].mxu0 %v913
    %v1152 = vpop.f32.mrb[0].mxu0
    %v1153 = vadd.f32 0.0, %v1152
    %v1154 = vpop.f32.mrb[0].mxu0
    %1155 = vmatprep.mubr.f32.mxu0 %v921
    %1156 = vmatmul.mubr.f32.gmra.mrb[0].mxu0 %v919
    %v1157 = vpop.f32.mrb[0].mxu0
    %v1158 = vadd.f32 0.0, %v1157
    %v1159 = vpop.f32.mrb[0].mxu0
    %1160 = vmatprep.mubr.f32.mxu0 %v927
    %1161 = vmatmul.mubr.f32.gmra.mrb[0].mxu0 %v925
    %v1162 = vpop.f32.mrb[0].mxu0
    %v1163 = vadd.f32 0.0, %v1162
    %v1164 = vpop.f32.mrb[0].mxu0
    %1165 = vmatprep.mubr.f32.mxu0 %v933
    %1166 = vmatmul.mubr.f32.gmra.mrb[0].mxu0 %v931
    %v1167 = vpop.f32.mrb[0].mxu0
    %v1168 = vadd.f32 0.0, %v1167
    %v1169 = vpop.f32.mrb[0].mxu0
    %1170 = vmatprep.mubr.f32.mxu0 %v939
    %1171 = vmatmul.mubr.f32.gmra.mrb[0].mxu0 %v937
    %v1172 = vpop.f32.mrb[0].mxu0
    %v1173 = vadd.f32 0.0, %v1172
    %v1174 = vpop.f32.mrb[0].mxu0
    %1175 = vmatprep.mubr.f32.mxu0 %v945
    %1176 = vmatmul.mubr.f32.gmra.mrb[0].mxu0 %v943
    %v1177 = vpop.f32.mrb[0].mxu0
    %v1178 = vadd.f32 0.0, %v1177
    %v1179 = vpop.f32.mrb[0].mxu0
    %1180 = vmatprep.mubr.f32.mxu0 %v951
    %1181 = vmatmul.mubr.f32.gmra.mrb[0].mxu0 %v949
    %v1182 = vpop.f32.mrb[0].mxu0
    %v1183 = vadd.f32 0.0, %v1182
    %v1184 = vpop.f32.mrb[0].mxu0
    %1185 = vmatprep.mubr.f32.mxu0 %v957
    %1186 = vmatmul.mubr.f32.gmra.mrb[0].mxu0 %v955
    %v1187 = vpop.f32.mrb[0].mxu0
    %v1188 = vadd.f32 0.0, %v1187
    %v1189 = vpop.f32.mrb[0].mxu0
    %1190 = vmatprep.mubr.f32.mxu0 %v963
    %1191 = vmatmul.mubr.f32.gmra.mrb[0].mxu0 %v961
    %v1192 = vpop.f32.mrb[0].mxu0
    %v1193 = vadd.f32 0.0, %v1192
    %v1194 = vpop.f32.mrb[0].mxu0
    %1195 = vmatprep.mubr.f32.mxu0 %v969
    %1196 = vmatmul.mubr.f32.gmra.mrb[0].mxu0 %v967
    %v1197 = vpop.f32.mrb[0].mxu0
    %v1198 = vadd.f32 0.0, %v1197
    %v1199 = vpop.f32.mrb[0].mxu0
    %1200 = vmatprep.mubr.f32.mxu0 %v975
    %1201 = vmatmul.mubr.f32.gmra.mrb[0].mxu0 %v973
    %v1202 = vpop.f32.mrb[0].mxu0
    %v1203 = vadd.f32 0.0, %v1202
    %v1204 = vpop.f32.mrb[0].mxu0
    %1205 = vmatprep.mubr.f32.mxu0 %v981
    %1206 = vmatmul.mubr.f32.gmra.mrb[0].mxu0 %v979
    %v1207 = vpop.f32.mrb[0].mxu0
    %v1208 = vadd.f32 0.0, %v1207
    %v1209 = vpop.f32.mrb[0].mxu0
    %1210 = vmatprep.mubr.f32.mxu0 %v987
    %1211 = vmatmul.mubr.f32.gmra.mrb[0].mxu0 %v985
    %v1212 = vpop.f32.mrb[0].mxu0
    %v1213 = vadd.f32 0.0, %v1212
    %v1214 = vpop.f32.mrb[0].mxu0
    %1215 = vmatprep.mubr.f32.mxu0 %v993
    %1216 = vmatmul.mubr.f32.gmra.mrb[0].mxu0 %v991
    %v1217 = vpop.f32.mrb[0].mxu0
    %v1218 = vadd.f32 0.0, %v1217
    %v1219 = vpop.f32.mrb[0].mxu0
    %1220 = vmatprep.mubr.f32.mxu0 %v999
    %1221 = vmatmul.mubr.f32.gmra.mrb[0].mxu0 %v997
    %v1222 = vpop.f32.mrb[0].mxu0
    %v1223 = vadd.f32 0.0, %v1222
    %v1224 = vpop.f32.mrb[0].mxu0
    %1225 = vdwg.mxu0
    %v1226 = vmul.f32 %v811, %v811
    %v1227 = vmul.f32 %v813, %v813
    %v1228 = vmul.f32 %v817, %v817
    %v1229 = vmul.f32 %v819, %v819
    %v1230 = vmul.f32 %v823, %v823
    %v1231 = vmul.f32 %v825, %v825
    %v1232 = vmul.f32 %v829, %v829
    %v1233 = vmul.f32 %v831, %v831
    %v1234 = vmul.f32 %v835, %v835
    %v1235 = vmul.f32 %v837, %v837
    %v1236 = vmul.f32 %v841, %v841
    %v1237 = vmul.f32 %v843, %v843
    %v1238 = vmul.f32 %v847, %v847
    %v1239 = vmul.f32 %v849, %v849
    %v1240 = vmul.f32 %v853, %v853
    %v1241 = vmul.f32 %v855, %v855
    %v1242 = vmul.f32 %v859, %v859
    %v1243 = vmul.f32 %v861, %v861
    %v1244 = vmul.f32 %v865, %v865
    %v1245 = vmul.f32 %v867, %v867
    %v1246 = vmul.f32 %v871, %v871
    %v1247 = vmul.f32 %v873, %v873
    %v1248 = vmul.f32 %v877, %v877
    %v1249 = vmul.f32 %v879, %v879
    %v1250 = vmul.f32 %v883, %v883
    %v1251 = vmul.f32 %v885, %v885
    %v1252 = vmul.f32 %v889, %v889
    %v1253 = vmul.f32 %v891, %v891
    %v1254 = vmul.f32 %v895, %v895
    %v1255 = vmul.f32 %v897, %v897
    %v1256 = vmul.f32 %v901, %v901
    %v1257 = vmul.f32 %v903, %v903
    %v1258 = vmul.f32 %v907, %v907
    %v1259 = vmul.f32 %v909, %v909
    %v1260 = vmul.f32 %v913, %v913
    %v1261 = vmul.f32 %v915, %v915
    %v1262 = vmul.f32 %v919, %v919
    %v1263 = vmul.f32 %v921, %v921
    %v1264 = vmul.f32 %v925, %v925
    %v1265 = vmul.f32 %v927, %v927
    %v1266 = vmul.f32 %v931, %v931
    %v1267 = vmul.f32 %v933, %v933
    %v1268 = vmul.f32 %v937, %v937
    %v1269 = vmul.f32 %v939, %v939
    %v1270 = vmul.f32 %v943, %v943
    %v1271 = vmul.f32 %v945, %v945
    %v1272 = vmul.f32 %v949, %v949
    %v1273 = vmul.f32 %v951, %v951
    %v1274 = vmul.f32 %v955, %v955
    %v1275 = vmul.f32 %v957, %v957
    %v1276 = vmul.f32 %v961, %v961
    %v1277 = vmul.f32 %v963, %v963
    %v1278 = vmul.f32 %v967, %v967
    %v1279 = vmul.f32 %v969, %v969
    %v1280 = vmul.f32 %v973, %v973
    %v1281 = vmul.f32 %v975, %v975
    %v1282 = vmul.f32 %v979, %v979
    %v1283 = vmul.f32 %v981, %v981
    %v1284 = vmul.f32 %v985, %v985
    %v1285 = vmul.f32 %v987, %v987
    %v1286 = vmul.f32 %v991, %v991
    %v1287 = vmul.f32 %v993, %v993
    %v1288 = vmul.f32 %v997, %v997
    %v1289 = vmul.f32 %v999, %v999
    %1290 = vmatprep.subr.mxu0 0.0
    %1291 = vmatpush1.msra.mxu0 %v391
    %1292 = vmatprep.subr.mxu0 0.0
    %1293 = vmatpush1.msra.mxu0 %v392
    %1294 = vmatprep.subr.mxu0 0.0
    %1295 = vmatpush1.msra.mxu0 %v393
    %1296 = vmatprep.subr.mxu0 0.0
    %1297 = vmatpush1.msra.mxu0 %v394
    %1298 = vmatprep.subr.mxu0 0.0
    %1299 = vmatpush1.msra.mxu0 %v395
    %1300 = vmatprep.subr.mxu0 0.0
    %1301 = vmatpush1.msra.mxu0 %v396
    %1302 = vmatprep.subr.mxu0 0.0
    %1303 = vmatpush1.msra.mxu0 %v397
    %1304 = vmatprep.subr.mxu0 0.0
    %1305 = vmatpush1.msra.mxu0 %v398
    %1306 = vmatprep.subr.mxu0 0.0
    %1307 = vmatpush1.msra.mxu0 %v399
    %1308 = vmatprep.subr.mxu0 0.0
    %1309 = vmatpush1.msra.mxu0 %v400
    %1310 = vmatprep.subr.mxu0 0.0
    %1311 = vmatpush1.msra.mxu0 %v401
    %1312 = vmatprep.subr.mxu0 0.0
    %1313 = vmatpush1.msra.mxu0 %v402
    %1314 = vmatprep.subr.mxu0 0.0
    %1315 = vmatpush1.msra.mxu0 %v403
    %1316 = vmatprep.subr.mxu0 0.0
    %1317 = vmatpush1.msra.mxu0 %v404
    %1318 = vmatprep.subr.mxu0 0.0
    %1319 = vmatpush1.msra.mxu0 %v405
    %1320 = vmatprep.subr.mxu0 0.0
    %1321 = vmatpush1.msra.mxu0 %v406
    %1322 = vmatprep.subr.mxu0 0.0
    %1323 = vmatpush1.msra.mxu0 %v407
    %1324 = vmatprep.subr.mxu0 0.0
    %1325 = vmatpush1.msra.mxu0 %v408
    %1326 = vmatprep.subr.mxu0 0.0
    %1327 = vmatpush1.msra.mxu0 %v409
    %1328 = vmatprep.subr.mxu0 0.0
    %1329 = vmatpush1.msra.mxu0 %v410
    %1330 = vmatprep.subr.mxu0 0.0
    %1331 = vmatpush1.msra.mxu0 %v411
    %1332 = vmatprep.subr.mxu0 0.0
    %1333 = vmatpush1.msra.mxu0 %v412
    %1334 = vmatprep.subr.mxu0 0.0
    %1335 = vmatpush1.msra.mxu0 %v413
    %1336 = vmatprep.subr.mxu0 0.0
    %1337 = vmatpush1.msra.mxu0 %v414
    %1338 = vmatprep.subr.mxu0 0.0
    %1339 = vmatpush1.msra.mxu0 %v415
    %1340 = vmatprep.subr.mxu0 0.0
    %1341 = vmatpush1.msra.mxu0 %v416
    %1342 = vmatprep.subr.mxu0 0.0
    %1343 = vmatpush1.msra.mxu0 %v417
    %1344 = vmatprep.subr.mxu0 0.0
    %1345 = vmatpush1.msra.mxu0 %v418
    %1346 = vmatprep.subr.mxu0 0.0
    %1347 = vmatpush1.msra.mxu0 %v419
    %1348 = vmatprep.subr.mxu0 0.0
    %1349 = vmatpush1.msra.mxu0 %v420
    %1350 = vmatprep.subr.mxu0 0.0
    %1351 = vmatpush1.msra.mxu0 %v421
    %1352 = vmatprep.subr.mxu0 0.0
    %1353 = vmatpush1.msra.mxu0 %v422
    %1354 = vmatprep.mubr.f32.mxu0 %v1227
    %1355 = vmatmul.mubr.f32.gmra.mrb[0].mxu0 %v1226
    %v1356 = vpop.f32.mrb[0].mxu0
    %v1357 = vadd.f32 0.0, %v1356
    %v1358 = vpop.f32.mrb[0].mxu0
    %1359 = vmatprep.mubr.f32.mxu0 %v1229
    %1360 = vmatmul.mubr.f32.gmra.mrb[0].mxu0 %v1228
    %v1361 = vpop.f32.mrb[0].mxu0
    %v1362 = vadd.f32 0.0, %v1361
    %v1363 = vpop.f32.mrb[0].mxu0
    %1364 = vmatprep.mubr.f32.mxu0 %v1231
    %1365 = vmatmul.mubr.f32.gmra.mrb[0].mxu0 %v1230
    %v1366 = vpop.f32.mrb[0].mxu0
    %v1367 = vadd.f32 0.0, %v1366
    %v1368 = vpop.f32.mrb[0].mxu0
    %1369 = vmatprep.mubr.f32.mxu0 %v1233
    %1370 = vmatmul.mubr.f32.gmra.mrb[0].mxu0 %v1232
    %v1371 = vpop.f32.mrb[0].mxu0
    %v1372 = vadd.f32 0.0, %v1371
    %v1373 = vpop.f32.mrb[0].mxu0
    %1374 = vmatprep.mubr.f32.mxu0 %v1235
    %1375 = vmatmul.mubr.f32.gmra.mrb[0].mxu0 %v1234
    %v1376 = vpop.f32.mrb[0].mxu0
    %v1377 = vadd.f32 0.0, %v1376
    %v1378 = vpop.f32.mrb[0].mxu0
    %1379 = vmatprep.mubr.f32.mxu0 %v1237
    %1380 = vmatmul.mubr.f32.gmra.mrb[0].mxu0 %v1236
    %v1381 = vpop.f32.mrb[0].mxu0
    %v1382 = vadd.f32 0.0, %v1381
    %v1383 = vpop.f32.mrb[0].mxu0
    %1384 = vmatprep.mubr.f32.mxu0 %v1239
    %1385 = vmatmul.mubr.f32.gmra.mrb[0].mxu0 %v1238
    %v1386 = vpop.f32.mrb[0].mxu0
    %v1387 = vadd.f32 0.0, %v1386
    %v1388 = vpop.f32.mrb[0].mxu0
    %1389 = vmatprep.mubr.f32.mxu0 %v1241
    %1390 = vmatmul.mubr.f32.gmra.mrb[0].mxu0 %v1240
    %v1391 = vpop.f32.mrb[0].mxu0
    %v1392 = vadd.f32 0.0, %v1391
    %v1393 = vpop.f32.mrb[0].mxu0
    %1394 = vmatprep.mubr.f32.mxu0 %v1243
    %1395 = vmatmul.mubr.f32.gmra.mrb[0].mxu0 %v1242
    %v1396 = vpop.f32.mrb[0].mxu0
    %v1397 = vadd.f32 0.0, %v1396
    %v1398 = vpop.f32.mrb[0].mxu0
    %1399 = vmatprep.mubr.f32.mxu0 %v1245
    %1400 = vmatmul.mubr.f32.gmra.mrb[0].mxu0 %v1244
    %v1401 = vpop.f32.mrb[0].mxu0
    %v1402 = vadd.f32 0.0, %v1401
    %v1403 = vpop.f32.mrb[0].mxu0
    %1404 = vmatprep.mubr.f32.mxu0 %v1247
    %1405 = vmatmul.mubr.f32.gmra.mrb[0].mxu0 %v1246
    %v1406 = vpop.f32.mrb[0].mxu0
    %v1407 = vadd.f32 0.0, %v1406
    %v1408 = vpop.f32.mrb[0].mxu0
    %1409 = vmatprep.mubr.f32.mxu0 %v1249
    %1410 = vmatmul.mubr.f32.gmra.mrb[0].mxu0 %v1248
    %v1411 = vpop.f32.mrb[0].mxu0
    %v1412 = vadd.f32 0.0, %v1411
    %v1413 = vpop.f32.mrb[0].mxu0
    %1414 = vmatprep.mubr.f32.mxu0 %v1251
    %1415 = vmatmul.mubr.f32.gmra.mrb[0].mxu0 %v1250
    %v1416 = vpop.f32.mrb[0].mxu0
    %v1417 = vadd.f32 0.0, %v1416
    %v1418 = vpop.f32.mrb[0].mxu0
    %1419 = vmatprep.mubr.f32.mxu0 %v1253
    %1420 = vmatmul.mubr.f32.gmra.mrb[0].mxu0 %v1252
    %v1421 = vpop.f32.mrb[0].mxu0
    %v1422 = vadd.f32 0.0, %v1421
    %v1423 = vpop.f32.mrb[0].mxu0
    %1424 = vmatprep.mubr.f32.mxu0 %v1255
    %1425 = vmatmul.mubr.f32.gmra.mrb[0].mxu0 %v1254
    %v1426 = vpop.f32.mrb[0].mxu0
    %v1427 = vadd.f32 0.0, %v1426
    %v1428 = vpop.f32.mrb[0].mxu0
    %1429 = vmatprep.mubr.f32.mxu0 %v1257
    %1430 = vmatmul.mubr.f32.gmra.mrb[0].mxu0 %v1256
    %v1431 = vpop.f32.mrb[0].mxu0
    %v1432 = vadd.f32 0.0, %v1431
    %v1433 = vpop.f32.mrb[0].mxu0
    %1434 = vmatprep.mubr.f32.mxu0 %v1259
    %1435 = vmatmul.mubr.f32.gmra.mrb[0].mxu0 %v1258
    %v1436 = vpop.f32.mrb[0].mxu0
    %v1437 = vadd.f32 0.0, %v1436
    %v1438 = vpop.f32.mrb[0].mxu0
    %1439 = vmatprep.mubr.f32.mxu0 %v1261
    %1440 = vmatmul.mubr.f32.gmra.mrb[0].mxu0 %v1260
    %v1441 = vpop.f32.mrb[0].mxu0
    %v1442 = vadd.f32 0.0, %v1441
    %v1443 = vpop.f32.mrb[0].mxu0
    %1444 = vmatprep.mubr.f32.mxu0 %v1263
    %1445 = vmatmul.mubr.f32.gmra.mrb[0].mxu0 %v1262
    %v1446 = vpop.f32.mrb[0].mxu0
    %v1447 = vadd.f32 0.0, %v1446
    %v1448 = vpop.f32.mrb[0].mxu0
    %1449 = vmatprep.mubr.f32.mxu0 %v1265
    %1450 = vmatmul.mubr.f32.gmra.mrb[0].mxu0 %v1264
    %v1451 = vpop.f32.mrb[0].mxu0
    %v1452 = vadd.f32 0.0, %v1451
    %v1453 = vpop.f32.mrb[0].mxu0
    %1454 = vmatprep.mubr.f32.mxu0 %v1267
    %1455 = vmatmul.mubr.f32.gmra.mrb[0].mxu0 %v1266
    %v1456 = vpop.f32.mrb[0].mxu0
    %v1457 = vadd.f32 0.0, %v1456
    %v1458 = vpop.f32.mrb[0].mxu0
    %1459 = vmatprep.mubr.f32.mxu0 %v1269
    %1460 = vmatmul.mubr.f32.gmra.mrb[0].mxu0 %v1268
    %v1461 = vpop.f32.mrb[0].mxu0
    %v1462 = vadd.f32 0.0, %v1461
    %v1463 = vpop.f32.mrb[0].mxu0
    %1464 = vmatprep.mubr.f32.mxu0 %v1271
    %1465 = vmatmul.mubr.f32.gmra.mrb[0].mxu0 %v1270
    %v1466 = vpop.f32.mrb[0].mxu0
    %v1467 = vadd.f32 0.0, %v1466
    %v1468 = vpop.f32.mrb[0].mxu0
    %1469 = vmatprep.mubr.f32.mxu0 %v1273
    %1470 = vmatmul.mubr.f32.gmra.mrb[0].mxu0 %v1272
    %v1471 = vpop.f32.mrb[0].mxu0
    %v1472 = vadd.f32 0.0, %v1471
    %v1473 = vpop.f32.mrb[0].mxu0
    %1474 = vmatprep.mubr.f32.mxu0 %v1275
    %1475 = vmatmul.mubr.f32.gmra.mrb[0].mxu0 %v1274
    %v1476 = vpop.f32.mrb[0].mxu0
    %v1477 = vadd.f32 0.0, %v1476
    %v1478 = vpop.f32.mrb[0].mxu0
    %1479 = vmatprep.mubr.f32.mxu0 %v1277
    %1480 = vmatmul.mubr.f32.gmra.mrb[0].mxu0 %v1276
    %v1481 = vpop.f32.mrb[0].mxu0
    %v1482 = vadd.f32 0.0, %v1481
    %v1483 = vpop.f32.mrb[0].mxu0
    %1484 = vmatprep.mubr.f32.mxu0 %v1279
    %1485 = vmatmul.mubr.f32.gmra.mrb[0].mxu0 %v1278
    %v1486 = vpop.f32.mrb[0].mxu0
    %v1487 = vadd.f32 0.0, %v1486
    %v1488 = vpop.f32.mrb[0].mxu0
    %1489 = vmatprep.mubr.f32.mxu0 %v1281
    %1490 = vmatmul.mubr.f32.gmra.mrb[0].mxu0 %v1280
    %v1491 = vpop.f32.mrb[0].mxu0
    %v1492 = vadd.f32 0.0, %v1491
    %v1493 = vpop.f32.mrb[0].mxu0
    %1494 = vmatprep.mubr.f32.mxu0 %v1283
    %1495 = vmatmul.mubr.f32.gmra.mrb[0].mxu0 %v1282
    %v1496 = vpop.f32.mrb[0].mxu0
    %v1497 = vadd.f32 0.0, %v1496
    %v1498 = vpop.f32.mrb[0].mxu0
    %1499 = vmatprep.mubr.f32.mxu0 %v1285
    %1500 = vmatmul.mubr.f32.gmra.mrb[0].mxu0 %v1284
    %v1501 = vpop.f32.mrb[0].mxu0
    %v1502 = vadd.f32 0.0, %v1501
    %v1503 = vpop.f32.mrb[0].mxu0
    %1504 = vmatprep.mubr.f32.mxu0 %v1287
    %1505 = vmatmul.mubr.f32.gmra.mrb[0].mxu0 %v1286
    %v1506 = vpop.f32.mrb[0].mxu0
    %v1507 = vadd.f32 0.0, %v1506
    %v1508 = vpop.f32.mrb[0].mxu0
    %1509 = vmatprep.mubr.f32.mxu0 %v1289
    %1510 = vmatmul.mubr.f32.gmra.mrb[0].mxu0 %v1288
    %v1511 = vpop.f32.mrb[0].mxu0
    %v1512 = vadd.f32 0.0, %v1511
    %v1513 = vpop.f32.mrb[0].mxu0
    %1514 = vdwg.mxu0
    %v1515 = vmul.f32 %v1068, 0.0078125
    %v1516 = vmul.f32 %v1073, 0.0078125
    %v1517 = vmul.f32 %v1078, 0.0078125
    %v1518 = vmul.f32 %v1083, 0.0078125
    %v1519 = vmul.f32 %v1088, 0.0078125
    %v1520 = vmul.f32 %v1093, 0.0078125
    %v1521 = vmul.f32 %v1098, 0.0078125
    %v1522 = vmul.f32 %v1103, 0.0078125
    %v1523 = vmul.f32 %v1108, 0.0078125
    %v1524 = vmul.f32 %v1113, 0.0078125
    %v1525 = vmul.f32 %v1118, 0.0078125
    %v1526 = vmul.f32 %v1123, 0.0078125
    %v1527 = vmul.f32 %v1128, 0.0078125
    %v1528 = vmul.f32 %v1133, 0.0078125
    %v1529 = vmul.f32 %v1138, 0.0078125
    %v1530 = vmul.f32 %v1143, 0.0078125
    %v1531 = vmul.f32 %v1148, 0.0078125
    %v1532 = vmul.f32 %v1153, 0.0078125
    %v1533 = vmul.f32 %v1158, 0.0078125
    %v1534 = vmul.f32 %v1163, 0.0078125
    %v1535 = vmul.f32 %v1168, 0.0078125
    %v1536 = vmul.f32 %v1173, 0.0078125
    %v1537 = vmul.f32 %v1178, 0.0078125
    %v1538 = vmul.f32 %v1183, 0.0078125
    %v1539 = vmul.f32 %v1188, 0.0078125
    %v1540 = vmul.f32 %v1193, 0.0078125
    %v1541 = vmul.f32 %v1198, 0.0078125
    %v1542 = vmul.f32 %v1203, 0.0078125
    %v1543 = vmul.f32 %v1208, 0.0078125
    %v1544 = vmul.f32 %v1213, 0.0078125
    %v1545 = vmul.f32 %v1218, 0.0078125
    %v1546 = vmul.f32 %v1223, 0.0078125
    %v1547 = vmul.f32 %v1357, 0.0078125
    %v1548 = vmul.f32 %v1362, 0.0078125
    %v1549 = vmul.f32 %v1367, 0.0078125
    %v1550 = vmul.f32 %v1372, 0.0078125
    %v1551 = vmul.f32 %v1377, 0.0078125
    %v1552 = vmul.f32 %v1382, 0.0078125
    %v1553 = vmul.f32 %v1387, 0.0078125
    %v1554 = vmul.f32 %v1392, 0.0078125
    %v1555 = vmul.f32 %v1397, 0.0078125
    %v1556 = vmul.f32 %v1402, 0.0078125
    %v1557 = vmul.f32 %v1407, 0.0078125
    %v1558 = vmul.f32 %v1412, 0.0078125
    %v1559 = vmul.f32 %v1417, 0.0078125
    %v1560 = vmul.f32 %v1422, 0.0078125
    %v1561 = vmul.f32 %v1427, 0.0078125
    %v1562 = vmul.f32 %v1432, 0.0078125
    %v1563 = vmul.f32 %v1437, 0.0078125
    %v1564 = vmul.f32 %v1442, 0.0078125
    %v1565 = vmul.f32 %v1447, 0.0078125
    %v1566 = vmul.f32 %v1452, 0.0078125
    %v1567 = vmul.f32 %v1457, 0.0078125
    %v1568 = vmul.f32 %v1462, 0.0078125
    %v1569 = vmul.f32 %v1467, 0.0078125
    %v1570 = vmul.f32 %v1472, 0.0078125
    %v1571 = vmul.f32 %v1477, 0.0078125
    %v1572 = vmul.f32 %v1482, 0.0078125
    %v1573 = vmul.f32 %v1487, 0.0078125
    %v1574 = vmul.f32 %v1492, 0.0078125
    %v1575 = vmul.f32 %v1497, 0.0078125
    %v1576 = vmul.f32 %v1502, 0.0078125
    %v1577 = vmul.f32 %v1507, 0.0078125
    %v1578 = vmul.f32 %v1512, 0.0078125
    %v1579 = vmul.f32 %v1515, %v1515
    %v1580 = vmul.f32 %v1516, %v1516
    %v1581 = vmul.f32 %v1517, %v1517
    %v1582 = vmul.f32 %v1518, %v1518
    %v1583 = vmul.f32 %v1519, %v1519
    %v1584 = vmul.f32 %v1520, %v1520
    %v1585 = vmul.f32 %v1521, %v1521
    %v1586 = vmul.f32 %v1522, %v1522
    %v1587 = vmul.f32 %v1523, %v1523
    %v1588 = vmul.f32 %v1524, %v1524
    %v1589 = vmul.f32 %v1525, %v1525
    %v1590 = vmul.f32 %v1526, %v1526
    %v1591 = vmul.f32 %v1527, %v1527
    %v1592 = vmul.f32 %v1528, %v1528
    %v1593 = vmul.f32 %v1529, %v1529
    %v1594 = vmul.f32 %v1530, %v1530
    %v1595 = vmul.f32 %v1531, %v1531
    %v1596 = vmul.f32 %v1532, %v1532
    %v1597 = vmul.f32 %v1533, %v1533
    %v1598 = vmul.f32 %v1534, %v1534
    %v1599 = vmul.f32 %v1535, %v1535
    %v1600 = vmul.f32 %v1536, %v1536
    %v1601 = vmul.f32 %v1537, %v1537
    %v1602 = vmul.f32 %v1538, %v1538
    %v1603 = vmul.f32 %v1539, %v1539
    %v1604 = vmul.f32 %v1540, %v1540
    %v1605 = vmul.f32 %v1541, %v1541
    %v1606 = vmul.f32 %v1542, %v1542
    %v1607 = vmul.f32 %v1543, %v1543
    %v1608 = vmul.f32 %v1544, %v1544
    %v1609 = vmul.f32 %v1545, %v1545
    %v1610 = vmul.f32 %v1546, %v1546
    %v1611 = vsub.f32 %v1547, %v1579
    %v1612 = vsub.f32 %v1548, %v1580
    %v1613 = vsub.f32 %v1549, %v1581
    %v1614 = vsub.f32 %v1550, %v1582
    %v1615 = vsub.f32 %v1551, %v1583
    %v1616 = vsub.f32 %v1552, %v1584
    %v1617 = vsub.f32 %v1553, %v1585
    %v1618 = vsub.f32 %v1554, %v1586
    %v1619 = vsub.f32 %v1555, %v1587
    %v1620 = vsub.f32 %v1556, %v1588
    %v1621 = vsub.f32 %v1557, %v1589
    %v1622 = vsub.f32 %v1558, %v1590
    %v1623 = vsub.f32 %v1559, %v1591
    %v1624 = vsub.f32 %v1560, %v1592
    %v1625 = vsub.f32 %v1561, %v1593
    %v1626 = vsub.f32 %v1562, %v1594
    %v1627 = vsub.f32 %v1563, %v1595
    %v1628 = vsub.f32 %v1564, %v1596
    %v1629 = vsub.f32 %v1565, %v1597
    %v1630 = vsub.f32 %v1566, %v1598
    %v1631 = vsub.f32 %v1567, %v1599
    %v1632 = vsub.f32 %v1568, %v1600
    %v1633 = vsub.f32 %v1569, %v1601
    %v1634 = vsub.f32 %v1570, %v1602
    %v1635 = vsub.f32 %v1571, %v1603
    %v1636 = vsub.f32 %v1572, %v1604
    %v1637 = vsub.f32 %v1573, %v1605
    %v1638 = vsub.f32 %v1574, %v1606
    %v1639 = vsub.f32 %v1575, %v1607
    %v1640 = vsub.f32 %v1576, %v1608
    %v1641 = vsub.f32 %v1577, %v1609
    %v1642 = vsub.f32 %v1578, %v1610
    %v1643 = vmax.f32 %v1611, 0.0
    %v1644 = vmax.f32 %v1612, 0.0
    %v1645 = vmax.f32 %v1613, 0.0
    %v1646 = vmax.f32 %v1614, 0.0
    %v1647 = vmax.f32 %v1615, 0.0
    %v1648 = vmax.f32 %v1616, 0.0
    %v1649 = vmax.f32 %v1617, 0.0
    %v1650 = vmax.f32 %v1618, 0.0
    %v1651 = vmax.f32 %v1619, 0.0
    %v1652 = vmax.f32 %v1620, 0.0
    %v1653 = vmax.f32 %v1621, 0.0
    %v1654 = vmax.f32 %v1622, 0.0
    %v1655 = vmax.f32 %v1623, 0.0
    %v1656 = vmax.f32 %v1624, 0.0
    %v1657 = vmax.f32 %v1625, 0.0
    %v1658 = vmax.f32 %v1626, 0.0
    %v1659 = vmax.f32 %v1627, 0.0
    %v1660 = vmax.f32 %v1628, 0.0
    %v1661 = vmax.f32 %v1629, 0.0
    %v1662 = vmax.f32 %v1630, 0.0
    %v1663 = vmax.f32 %v1631, 0.0
    %v1664 = vmax.f32 %v1632, 0.0
    %v1665 = vmax.f32 %v1633, 0.0
    %v1666 = vmax.f32 %v1634, 0.0
    %v1667 = vmax.f32 %v1635, 0.0
    %v1668 = vmax.f32 %v1636, 0.0
    %v1669 = vmax.f32 %v1637, 0.0
    %v1670 = vmax.f32 %v1638, 0.0
    %v1671 = vmax.f32 %v1639, 0.0
    %v1672 = vmax.f32 %v1640, 0.0
    %v1673 = vmax.f32 %v1641, 0.0
    %v1674 = vmax.f32 %v1642, 0.0
    %v1675 = vadd.f32 %v1643, 1e-05
    %v1676 = vadd.f32 %v1644, 1e-05
    %v1677 = vadd.f32 %v1645, 1e-05
    %v1678 = vadd.f32 %v1646, 1e-05
    %v1679 = vadd.f32 %v1647, 1e-05
    %v1680 = vadd.f32 %v1648, 1e-05
    %v1681 = vadd.f32 %v1649, 1e-05
    %v1682 = vadd.f32 %v1650, 1e-05
    %v1683 = vadd.f32 %v1651, 1e-05
    %v1684 = vadd.f32 %v1652, 1e-05
    %v1685 = vadd.f32 %v1653, 1e-05
    %v1686 = vadd.f32 %v1654, 1e-05
    %v1687 = vadd.f32 %v1655, 1e-05
    %v1688 = vadd.f32 %v1656, 1e-05
    %v1689 = vadd.f32 %v1657, 1e-05
    %v1690 = vadd.f32 %v1658, 1e-05
    %v1691 = vadd.f32 %v1659, 1e-05
    %v1692 = vadd.f32 %v1660, 1e-05
    %v1693 = vadd.f32 %v1661, 1e-05
    %v1694 = vadd.f32 %v1662, 1e-05
    %v1695 = vadd.f32 %v1663, 1e-05
    %v1696 = vadd.f32 %v1664, 1e-05
    %v1697 = vadd.f32 %v1665, 1e-05
    %v1698 = vadd.f32 %v1666, 1e-05
    %v1699 = vadd.f32 %v1667, 1e-05
    %v1700 = vadd.f32 %v1668, 1e-05
    %v1701 = vadd.f32 %v1669, 1e-05
    %v1702 = vadd.f32 %v1670, 1e-05
    %v1703 = vadd.f32 %v1671, 1e-05
    %v1704 = vadd.f32 %v1672, 1e-05
    %v1705 = vadd.f32 %v1673, 1e-05
    %v1706 = vadd.f32 %v1674, 1e-05
    %v1707 = vrsqrt.pop %v1675
    %v1708 = vrsqrt.pop %v1676
    %v1709 = vrsqrt.pop %v1677
    %v1710 = vrsqrt.pop %v1678
    %v1711 = vrsqrt.pop %v1679
    %v1712 = vrsqrt.pop %v1680
    %v1713 = vrsqrt.pop %v1681
    %v1714 = vrsqrt.pop %v1682
    %v1715 = vrsqrt.pop %v1683
    %v1716 = vrsqrt.pop %v1684
    %v1717 = vrsqrt.pop %v1685
    %v1718 = vrsqrt.pop %v1686
    %v1719 = vrsqrt.pop %v1687
    %v1720 = vrsqrt.pop %v1688
    %v1721 = vrsqrt.pop %v1689
    %v1722 = vrsqrt.pop %v1690
    %v1723 = vrsqrt.pop %v1691
    %v1724 = vrsqrt.pop %v1692
    %v1725 = vrsqrt.pop %v1693
    %v1726 = vrsqrt.pop %v1694
    %v1727 = vrsqrt.pop %v1695
    %v1728 = vrsqrt.pop %v1696
    %v1729 = vrsqrt.pop %v1697
    %v1730 = vrsqrt.pop %v1698
    %v1731 = vrsqrt.pop %v1699
    %v1732 = vrsqrt.pop %v1700
    %v1733 = vrsqrt.pop %v1701
    %v1734 = vrsqrt.pop %v1702
    %v1735 = vrsqrt.pop %v1703
    %v1736 = vrsqrt.pop %v1704
    %v1737 = vrsqrt.pop %v1705
    %v1738 = vrsqrt.pop %v1706
    %1739 = vrot.lane.b32.xlu0 %v552, 123
    %v1740 = vpop.permute.xlu0 %1739
    %1741 = vrot.lane.b32.xlu0 %v553, 123
    %v1742 = vpop.permute.xlu0 %1741
    %1743 = vrot.lane.b32.xlu0 %v554, 123
    %v1744 = vpop.permute.xlu0 %1743
    %1745 = vrot.lane.b32.xlu0 %v555, 123
    %v1746 = vpop.permute.xlu0 %1745
    %1747 = vrot.lane.b32.xlu0 %v556, 123
    %v1748 = vpop.permute.xlu0 %1747
    %1749 = vrot.lane.b32.xlu0 %v557, 123
    %v1750 = vpop.permute.xlu0 %1749
    %1751 = vrot.lane.b32.xlu0 %v558, 123
    %v1752 = vpop.permute.xlu0 %1751
    %1753 = vrot.lane.b32.xlu0 %v559, 123
    %v1754 = vpop.permute.xlu0 %1753
    %1755 = vrot.lane.b32.xlu0 %v560, 123
    %v1756 = vpop.permute.xlu0 %1755
    %1757 = vrot.lane.b32.xlu0 %v561, 123
    %v1758 = vpop.permute.xlu0 %1757
    %1759 = vrot.lane.b32.xlu0 %v562, 123
    %v1760 = vpop.permute.xlu0 %1759
    %1761 = vrot.lane.b32.xlu0 %v563, 123
    %v1762 = vpop.permute.xlu0 %1761
    %1763 = vrot.lane.b32.xlu0 %v564, 123
    %v1764 = vpop.permute.xlu0 %1763
    %1765 = vrot.lane.b32.xlu0 %v565, 123
    %v1766 = vpop.permute.xlu0 %1765
    %1767 = vrot.lane.b32.xlu0 %v566, 123
    %v1768 = vpop.permute.xlu0 %1767
    %1769 = vrot.lane.b32.xlu0 %v567, 123
    %v1770 = vpop.permute.xlu0 %1769
    %1771 = vrot.lane.b32.xlu0 %v568, 123
    %v1772 = vpop.permute.xlu0 %1771
    %1773 = vrot.lane.b32.xlu0 %v569, 123
    %v1774 = vpop.permute.xlu0 %1773
    %1775 = vrot.lane.b32.xlu0 %v570, 123
    %v1776 = vpop.permute.xlu0 %1775
    %1777 = vrot.lane.b32.xlu0 %v571, 123
    %v1778 = vpop.permute.xlu0 %1777
    %1779 = vrot.lane.b32.xlu0 %v572, 123
    %v1780 = vpop.permute.xlu0 %1779
    %1781 = vrot.lane.b32.xlu0 %v573, 123
    %v1782 = vpop.permute.xlu0 %1781
    %1783 = vrot.lane.b32.xlu0 %v574, 123
    %v1784 = vpop.permute.xlu0 %1783
    %1785 = vrot.lane.b32.xlu0 %v575, 123
    %v1786 = vpop.permute.xlu0 %1785
    %1787 = vrot.lane.b32.xlu0 %v576, 123
    %v1788 = vpop.permute.xlu0 %1787
    %1789 = vrot.lane.b32.xlu0 %v577, 123
    %v1790 = vpop.permute.xlu0 %1789
    %1791 = vrot.lane.b32.xlu0 %v578, 123
    %v1792 = vpop.permute.xlu0 %1791
    %1793 = vrot.lane.b32.xlu0 %v579, 123
    %v1794 = vpop.permute.xlu0 %1793
    %1795 = vrot.lane.b32.xlu0 %v580, 123
    %v1796 = vpop.permute.xlu0 %1795
    %1797 = vrot.lane.b32.xlu0 %v581, 123
    %v1798 = vpop.permute.xlu0 %1797
    %1799 = vrot.lane.b32.xlu0 %v582, 123
    %v1800 = vpop.permute.xlu0 %1799
    %1801 = vrot.lane.b32.xlu0 %v583, 123
    %v1802 = vpop.permute.xlu0 %1801
    %vm1835 = vcmask 15360
    %v1836 = vsel %vm1835, %v1740, 0.0
    %1837 = vadd.xlane.f32.xlu0 %v1836
    %v1838 = vpop.xlane.xlu0 %1837
    %v1839 = vsel %vm1835, %v1742, 0.0
    %1840 = vadd.xlane.f32.xlu0 %v1839
    %v1841 = vpop.xlane.xlu0 %1840
    %v1842 = vsel %vm1835, %v1744, 0.0
    %1843 = vadd.xlane.f32.xlu0 %v1842
    %v1844 = vpop.xlane.xlu0 %1843
    %v1845 = vsel %vm1835, %v1746, 0.0
    %1846 = vadd.xlane.f32.xlu0 %v1845
    %v1847 = vpop.xlane.xlu0 %1846
    %v1848 = vsel %vm1835, %v1748, 0.0
    %1849 = vadd.xlane.f32.xlu0 %v1848
    %v1850 = vpop.xlane.xlu0 %1849
    %v1851 = vsel %vm1835, %v1750, 0.0
    %1852 = vadd.xlane.f32.xlu0 %v1851
    %v1853 = vpop.xlane.xlu0 %1852
    %v1854 = vsel %vm1835, %v1752, 0.0
    %1855 = vadd.xlane.f32.xlu0 %v1854
    %v1856 = vpop.xlane.xlu0 %1855
    %v1857 = vsel %vm1835, %v1754, 0.0
    %1858 = vadd.xlane.f32.xlu0 %v1857
    %v1859 = vpop.xlane.xlu0 %1858
    %v1860 = vsel %vm1835, %v1756, 0.0
    %1861 = vadd.xlane.f32.xlu0 %v1860
    %v1862 = vpop.xlane.xlu0 %1861
    %v1863 = vsel %vm1835, %v1758, 0.0
    %1864 = vadd.xlane.f32.xlu0 %v1863
    %v1865 = vpop.xlane.xlu0 %1864
    %v1866 = vsel %vm1835, %v1760, 0.0
    %1867 = vadd.xlane.f32.xlu0 %v1866
    %v1868 = vpop.xlane.xlu0 %1867
    %v1869 = vsel %vm1835, %v1762, 0.0
    %1870 = vadd.xlane.f32.xlu0 %v1869
    %v1871 = vpop.xlane.xlu0 %1870
    %v1872 = vsel %vm1835, %v1764, 0.0
    %1873 = vadd.xlane.f32.xlu0 %v1872
    %v1874 = vpop.xlane.xlu0 %1873
    %v1875 = vsel %vm1835, %v1766, 0.0
    %1876 = vadd.xlane.f32.xlu0 %v1875
    %v1877 = vpop.xlane.xlu0 %1876
    %v1878 = vsel %vm1835, %v1768, 0.0
    %1879 = vadd.xlane.f32.xlu0 %v1878
    %v1880 = vpop.xlane.xlu0 %1879
    %v1881 = vsel %vm1835, %v1770, 0.0
    %1882 = vadd.xlane.f32.xlu0 %v1881
    %v1883 = vpop.xlane.xlu0 %1882
    %v1884 = vsel %vm1835, %v1772, 0.0
    %1885 = vadd.xlane.f32.xlu0 %v1884
    %v1886 = vpop.xlane.xlu0 %1885
    %v1887 = vsel %vm1835, %v1774, 0.0
    %1888 = vadd.xlane.f32.xlu0 %v1887
    %v1889 = vpop.xlane.xlu0 %1888
    %v1890 = vsel %vm1835, %v1776, 0.0
    %1891 = vadd.xlane.f32.xlu0 %v1890
    %v1892 = vpop.xlane.xlu0 %1891
    %v1893 = vsel %vm1835, %v1778, 0.0
    %1894 = vadd.xlane.f32.xlu0 %v1893
    %v1895 = vpop.xlane.xlu0 %1894
    %v1896 = vsel %vm1835, %v1780, 0.0
    %1897 = vadd.xlane.f32.xlu0 %v1896
    %v1898 = vpop.xlane.xlu0 %1897
    %v1899 = vsel %vm1835, %v1782, 0.0
    %1900 = vadd.xlane.f32.xlu0 %v1899
    %v1901 = vpop.xlane.xlu0 %1900
    %v1902 = vsel %vm1835, %v1784, 0.0
    %1903 = vadd.xlane.f32.xlu0 %v1902
    %v1904 = vpop.xlane.xlu0 %1903
    %v1905 = vsel %vm1835, %v1786, 0.0
    %1906 = vadd.xlane.f32.xlu0 %v1905
    %v1907 = vpop.xlane.xlu0 %1906
    %v1908 = vsel %vm1835, %v1788, 0.0
    %1909 = vadd.xlane.f32.xlu0 %v1908
    %v1910 = vpop.xlane.xlu0 %1909
    %v1911 = vsel %vm1835, %v1790, 0.0
    %1912 = vadd.xlane.f32.xlu0 %v1911
    %v1913 = vpop.xlane.xlu0 %1912
    %v1914 = vsel %vm1835, %v1792, 0.0
    %1915 = vadd.xlane.f32.xlu0 %v1914
    %v1916 = vpop.xlane.xlu0 %1915
    %v1917 = vsel %vm1835, %v1794, 0.0
    %1918 = vadd.xlane.f32.xlu0 %v1917
    %v1919 = vpop.xlane.xlu0 %1918
    %v1920 = vsel %vm1835, %v1796, 0.0
    %1921 = vadd.xlane.f32.xlu0 %v1920
    %v1922 = vpop.xlane.xlu0 %1921
    %v1923 = vsel %vm1835, %v1798, 0.0
    %1924 = vadd.xlane.f32.xlu0 %v1923
    %v1925 = vpop.xlane.xlu0 %1924
    %v1926 = vsel %vm1835, %v1800, 0.0
    %1927 = vadd.xlane.f32.xlu0 %v1926
    %v1928 = vpop.xlane.xlu0 %1927
    %v1929 = vsel %vm1835, %v1802, 0.0
    %1930 = vadd.xlane.f32.xlu0 %v1929
    %v1931 = vpop.xlane.xlu0 %1930
    %v1932 = vmul.f32 %v1838, 0.5
    %v1933 = vmul.f32 %v1841, 0.5
    %v1934 = vmul.f32 %v1844, 0.5
    %v1935 = vmul.f32 %v1847, 0.5
    %v1936 = vmul.f32 %v1850, 0.5
    %v1937 = vmul.f32 %v1853, 0.5
    %v1938 = vmul.f32 %v1856, 0.5
    %v1939 = vmul.f32 %v1859, 0.5
    %v1940 = vmul.f32 %v1862, 0.5
    %v1941 = vmul.f32 %v1865, 0.5
    %v1942 = vmul.f32 %v1868, 0.5
    %v1943 = vmul.f32 %v1871, 0.5
    %v1944 = vmul.f32 %v1874, 0.5
    %v1945 = vmul.f32 %v1877, 0.5
    %v1946 = vmul.f32 %v1880, 0.5
    %v1947 = vmul.f32 %v1883, 0.5
    %v1948 = vmul.f32 %v1886, 0.5
    %v1949 = vmul.f32 %v1889, 0.5
    %v1950 = vmul.f32 %v1892, 0.5
    %v1951 = vmul.f32 %v1895, 0.5
    %v1952 = vmul.f32 %v1898, 0.5
    %v1953 = vmul.f32 %v1901, 0.5
    %v1954 = vmul.f32 %v1904, 0.5
    %v1955 = vmul.f32 %v1907, 0.5
    %v1956 = vmul.f32 %v1910, 0.5
    %v1957 = vmul.f32 %v1913, 0.5
    %v1958 = vmul.f32 %v1916, 0.5
    %v1959 = vmul.f32 %v1919, 0.5
    %v1960 = vmul.f32 %v1922, 0.5
    %v1961 = vmul.f32 %v1925, 0.5
    %v1962 = vmul.f32 %v1928, 0.5
    %v1963 = vmul.f32 %v1931, 0.5
    %v1964 = vmul.f32 %v552, %v552
    %v1965 = vmul.f32 %v553, %v553
    %v1966 = vmul.f32 %v554, %v554
    %v1967 = vmul.f32 %v555, %v555
    %v1968 = vmul.f32 %v556, %v556
    %v1969 = vmul.f32 %v557, %v557
    %v1970 = vmul.f32 %v558, %v558
    %v1971 = vmul.f32 %v559, %v559
    %v1972 = vmul.f32 %v560, %v560
    %v1973 = vmul.f32 %v561, %v561
    %v1974 = vmul.f32 %v562, %v562
    %v1975 = vmul.f32 %v563, %v563
    %v1976 = vmul.f32 %v564, %v564
    %v1977 = vmul.f32 %v565, %v565
    %v1978 = vmul.f32 %v566, %v566
    %v1979 = vmul.f32 %v567, %v567
    %v1980 = vmul.f32 %v568, %v568
    %v1981 = vmul.f32 %v569, %v569
    %v1982 = vmul.f32 %v570, %v570
    %v1983 = vmul.f32 %v571, %v571
    %v1984 = vmul.f32 %v572, %v572
    %v1985 = vmul.f32 %v573, %v573
    %v1986 = vmul.f32 %v574, %v574
    %v1987 = vmul.f32 %v575, %v575
    %v1988 = vmul.f32 %v576, %v576
    %v1989 = vmul.f32 %v577, %v577
    %v1990 = vmul.f32 %v578, %v578
    %v1991 = vmul.f32 %v579, %v579
    %v1992 = vmul.f32 %v580, %v580
    %v1993 = vmul.f32 %v581, %v581
    %v1994 = vmul.f32 %v582, %v582
    %v1995 = vmul.f32 %v583, %v583
    %v1996 = vmul.f32 %v1643, %v1707
    %v1997 = vmul.f32 %v1644, %v1708
    %v1998 = vmul.f32 %v1645, %v1709
    %v1999 = vmul.f32 %v1646, %v1710
    %v2000 = vmul.f32 %v1647, %v1711
    %v2001 = vmul.f32 %v1648, %v1712
    %v2002 = vmul.f32 %v1649, %v1713
    %v2003 = vmul.f32 %v1650, %v1714
    %v2004 = vmul.f32 %v1651, %v1715
    %v2005 = vmul.f32 %v1652, %v1716
    %v2006 = vmul.f32 %v1653, %v1717
    %v2007 = vmul.f32 %v1654, %v1718
    %v2008 = vmul.f32 %v1655, %v1719
    %v2009 = vmul.f32 %v1656, %v1720
    %v2010 = vmul.f32 %v1657, %v1721
    %v2011 = vmul.f32 %v1658, %v1722
    %v2012 = vmul.f32 %v1659, %v1723
    %v2013 = vmul.f32 %v1660, %v1724
    %v2014 = vmul.f32 %v1661, %v1725
    %v2015 = vmul.f32 %v1662, %v1726
    %v2016 = vmul.f32 %v1663, %v1727
    %v2017 = vmul.f32 %v1664, %v1728
    %v2018 = vmul.f32 %v1665, %v1729
    %v2019 = vmul.f32 %v1666, %v1730
    %v2020 = vmul.f32 %v1667, %v1731
    %v2021 = vmul.f32 %v1668, %v1732
    %v2022 = vmul.f32 %v1669, %v1733
    %v2023 = vmul.f32 %v1670, %v1734
    %v2024 = vmul.f32 %v1671, %v1735
    %v2025 = vmul.f32 %v1672, %v1736
    %v2026 = vmul.f32 %v1673, %v1737
    %v2027 = vmul.f32 %v1674, %v1738
    %v2028 = vmul.f32 %v1996, %v1707
    %v2029 = vmul.f32 %v1997, %v1708
    %v2030 = vmul.f32 %v1998, %v1709
    %v2031 = vmul.f32 %v1999, %v1710
    %v2032 = vmul.f32 %v2000, %v1711
    %v2033 = vmul.f32 %v2001, %v1712
    %v2034 = vmul.f32 %v2002, %v1713
    %v2035 = vmul.f32 %v2003, %v1714
    %v2036 = vmul.f32 %v2004, %v1715
    %v2037 = vmul.f32 %v2005, %v1716
    %v2038 = vmul.f32 %v2006, %v1717
    %v2039 = vmul.f32 %v2007, %v1718
    %v2040 = vmul.f32 %v2008, %v1719
    %v2041 = vmul.f32 %v2009, %v1720
    %v2042 = vmul.f32 %v2010, %v1721
    %v2043 = vmul.f32 %v2011, %v1722
    %v2044 = vmul.f32 %v2012, %v1723
    %v2045 = vmul.f32 %v2013, %v1724
    %v2046 = vmul.f32 %v2014, %v1725
    %v2047 = vmul.f32 %v2015, %v1726
    %v2048 = vmul.f32 %v2016, %v1727
    %v2049 = vmul.f32 %v2017, %v1728
    %v2050 = vmul.f32 %v2018, %v1729
    %v2051 = vmul.f32 %v2019, %v1730
    %v2052 = vmul.f32 %v2020, %v1731
    %v2053 = vmul.f32 %v2021, %v1732
    %v2054 = vmul.f32 %v2022, %v1733
    %v2055 = vmul.f32 %v2023, %v1734
    %v2056 = vmul.f32 %v2024, %v1735
    %v2057 = vmul.f32 %v2025, %v1736
    %v2058 = vmul.f32 %v2026, %v1737
    %v2059 = vmul.f32 %v2027, %v1738
    %2092 = vrot.lane.b32.xlu0 %v2028, 3
    %v2093 = vpop.permute.xlu0 %2092
    %2094 = vrot.lane.b32.xlu0 %v2029, 3
    %v2095 = vpop.permute.xlu0 %2094
    %2096 = vrot.lane.b32.xlu0 %v2030, 3
    %v2097 = vpop.permute.xlu0 %2096
    %2098 = vrot.lane.b32.xlu0 %v2031, 3
    %v2099 = vpop.permute.xlu0 %2098
    %2100 = vrot.lane.b32.xlu0 %v2032, 3
    %v2101 = vpop.permute.xlu0 %2100
    %2102 = vrot.lane.b32.xlu0 %v2033, 3
    %v2103 = vpop.permute.xlu0 %2102
    %2104 = vrot.lane.b32.xlu0 %v2034, 3
    %v2105 = vpop.permute.xlu0 %2104
    %2106 = vrot.lane.b32.xlu0 %v2035, 3
    %v2107 = vpop.permute.xlu0 %2106
    %2108 = vrot.lane.b32.xlu0 %v2036, 3
    %v2109 = vpop.permute.xlu0 %2108
    %2110 = vrot.lane.b32.xlu0 %v2037, 3
    %v2111 = vpop.permute.xlu0 %2110
    %2112 = vrot.lane.b32.xlu0 %v2038, 3
    %v2113 = vpop.permute.xlu0 %2112
    %2114 = vrot.lane.b32.xlu0 %v2039, 3
    %v2115 = vpop.permute.xlu0 %2114
    %2116 = vrot.lane.b32.xlu0 %v2040, 3
    %v2117 = vpop.permute.xlu0 %2116
    %2118 = vrot.lane.b32.xlu0 %v2041, 3
    %v2119 = vpop.permute.xlu0 %2118
    %2120 = vrot.lane.b32.xlu0 %v2042, 3
    %v2121 = vpop.permute.xlu0 %2120
    %2122 = vrot.lane.b32.xlu0 %v2043, 3
    %v2123 = vpop.permute.xlu0 %2122
    %2124 = vrot.lane.b32.xlu0 %v2044, 3
    %v2125 = vpop.permute.xlu0 %2124
    %2126 = vrot.lane.b32.xlu0 %v2045, 3
    %v2127 = vpop.permute.xlu0 %2126
    %2128 = vrot.lane.b32.xlu0 %v2046, 3
    %v2129 = vpop.permute.xlu0 %2128
    %2130 = vrot.lane.b32.xlu0 %v2047, 3
    %v2131 = vpop.permute.xlu0 %2130
    %2132 = vrot.lane.b32.xlu0 %v2048, 3
    %v2133 = vpop.permute.xlu0 %2132
    %2134 = vrot.lane.b32.xlu0 %v2049, 3
    %v2135 = vpop.permute.xlu0 %2134
    %2136 = vrot.lane.b32.xlu0 %v2050, 3
    %v2137 = vpop.permute.xlu0 %2136
    %2138 = vrot.lane.b32.xlu0 %v2051, 3
    %v2139 = vpop.permute.xlu0 %2138
    %2140 = vrot.lane.b32.xlu0 %v2052, 3
    %v2141 = vpop.permute.xlu0 %2140
    %2142 = vrot.lane.b32.xlu0 %v2053, 3
    %v2143 = vpop.permute.xlu0 %2142
    %2144 = vrot.lane.b32.xlu0 %v2054, 3
    %v2145 = vpop.permute.xlu0 %2144
    %2146 = vrot.lane.b32.xlu0 %v2055, 3
    %v2147 = vpop.permute.xlu0 %2146
    %2148 = vrot.lane.b32.xlu0 %v2056, 3
    %v2149 = vpop.permute.xlu0 %2148
    %2150 = vrot.lane.b32.xlu0 %v2057, 3
    %v2151 = vpop.permute.xlu0 %2150
    %2152 = vrot.lane.b32.xlu0 %v2058, 3
    %v2153 = vpop.permute.xlu0 %2152
    %2154 = vrot.lane.b32.xlu0 %v2059, 3
    %v2155 = vpop.permute.xlu0 %2154
    %v2188 = vmul.f32 %v1964, %v2093
    %v2189 = vmul.f32 %v1965, %v2095
    %v2190 = vmul.f32 %v1966, %v2097
    %v2191 = vmul.f32 %v1967, %v2099
    %v2192 = vmul.f32 %v1968, %v2101
    %v2193 = vmul.f32 %v1969, %v2103
    %v2194 = vmul.f32 %v1970, %v2105
    %v2195 = vmul.f32 %v1971, %v2107
    %v2196 = vmul.f32 %v1972, %v2109
    %v2197 = vmul.f32 %v1973, %v2111
    %v2198 = vmul.f32 %v1974, %v2113
    %v2199 = vmul.f32 %v1975, %v2115
    %v2200 = vmul.f32 %v1976, %v2117
    %v2201 = vmul.f32 %v1977, %v2119
    %v2202 = vmul.f32 %v1978, %v2121
    %v2203 = vmul.f32 %v1979, %v2123
    %v2204 = vmul.f32 %v1980, %v2125
    %v2205 = vmul.f32 %v1981, %v2127
    %v2206 = vmul.f32 %v1982, %v2129
    %v2207 = vmul.f32 %v1983, %v2131
    %v2208 = vmul.f32 %v1984, %v2133
    %v2209 = vmul.f32 %v1985, %v2135
    %v2210 = vmul.f32 %v1986, %v2137
    %v2211 = vmul.f32 %v1987, %v2139
    %v2212 = vmul.f32 %v1988, %v2141
    %v2213 = vmul.f32 %v1989, %v2143
    %v2214 = vmul.f32 %v1990, %v2145
    %v2215 = vmul.f32 %v1991, %v2147
    %v2216 = vmul.f32 %v1992, %v2149
    %v2217 = vmul.f32 %v1993, %v2151
    %v2218 = vmul.f32 %v1994, %v2153
    %v2219 = vmul.f32 %v1995, %v2155
    %2252 = vrot.lane.b32.xlu0 %v1964, 126
    %v2253 = vpop.permute.xlu0 %2252
    %2254 = vrot.lane.b32.xlu0 %v1965, 126
    %v2255 = vpop.permute.xlu0 %2254
    %2256 = vrot.lane.b32.xlu0 %v1966, 126
    %v2257 = vpop.permute.xlu0 %2256
    %2258 = vrot.lane.b32.xlu0 %v1967, 126
    %v2259 = vpop.permute.xlu0 %2258
    %2260 = vrot.lane.b32.xlu0 %v1968, 126
    %v2261 = vpop.permute.xlu0 %2260
    %2262 = vrot.lane.b32.xlu0 %v1969, 126
    %v2263 = vpop.permute.xlu0 %2262
    %2264 = vrot.lane.b32.xlu0 %v1970, 126
    %v2265 = vpop.permute.xlu0 %2264
    %2266 = vrot.lane.b32.xlu0 %v1971, 126
    %v2267 = vpop.permute.xlu0 %2266
    %2268 = vrot.lane.b32.xlu0 %v1972, 126
    %v2269 = vpop.permute.xlu0 %2268
    %2270 = vrot.lane.b32.xlu0 %v1973, 126
    %v2271 = vpop.permute.xlu0 %2270
    %2272 = vrot.lane.b32.xlu0 %v1974, 126
    %v2273 = vpop.permute.xlu0 %2272
    %2274 = vrot.lane.b32.xlu0 %v1975, 126
    %v2275 = vpop.permute.xlu0 %2274
    %2276 = vrot.lane.b32.xlu0 %v1976, 126
    %v2277 = vpop.permute.xlu0 %2276
    %2278 = vrot.lane.b32.xlu0 %v1977, 126
    %v2279 = vpop.permute.xlu0 %2278
    %2280 = vrot.lane.b32.xlu0 %v1978, 126
    %v2281 = vpop.permute.xlu0 %2280
    %2282 = vrot.lane.b32.xlu0 %v1979, 126
    %v2283 = vpop.permute.xlu0 %2282
    %2284 = vrot.lane.b32.xlu0 %v1980, 126
    %v2285 = vpop.permute.xlu0 %2284
    %2286 = vrot.lane.b32.xlu0 %v1981, 126
    %v2287 = vpop.permute.xlu0 %2286
    %2288 = vrot.lane.b32.xlu0 %v1982, 126
    %v2289 = vpop.permute.xlu0 %2288
    %2290 = vrot.lane.b32.xlu0 %v1983, 126
    %v2291 = vpop.permute.xlu0 %2290
    %2292 = vrot.lane.b32.xlu0 %v1984, 126
    %v2293 = vpop.permute.xlu0 %2292
    %2294 = vrot.lane.b32.xlu0 %v1985, 126
    %v2295 = vpop.permute.xlu0 %2294
    %2296 = vrot.lane.b32.xlu0 %v1986, 126
    %v2297 = vpop.permute.xlu0 %2296
    %2298 = vrot.lane.b32.xlu0 %v1987, 126
    %v2299 = vpop.permute.xlu0 %2298
    %2300 = vrot.lane.b32.xlu0 %v1988, 126
    %v2301 = vpop.permute.xlu0 %2300
    %2302 = vrot.lane.b32.xlu0 %v1989, 126
    %v2303 = vpop.permute.xlu0 %2302
    %2304 = vrot.lane.b32.xlu0 %v1990, 126
    %v2305 = vpop.permute.xlu0 %2304
    %2306 = vrot.lane.b32.xlu0 %v1991, 126
    %v2307 = vpop.permute.xlu0 %2306
    %2308 = vrot.lane.b32.xlu0 %v1992, 126
    %v2309 = vpop.permute.xlu0 %2308
    %2310 = vrot.lane.b32.xlu0 %v1993, 126
    %v2311 = vpop.permute.xlu0 %2310
    %2312 = vrot.lane.b32.xlu0 %v1994, 126
    %v2313 = vpop.permute.xlu0 %2312
    %2314 = vrot.lane.b32.xlu0 %v1995, 126
    %v2315 = vpop.permute.xlu0 %2314
    %v2348 = vadd.f32 %v2188, %v2253
    %v2349 = vadd.f32 %v2189, %v2255
    %v2350 = vadd.f32 %v2190, %v2257
    %v2351 = vadd.f32 %v2191, %v2259
    %v2352 = vadd.f32 %v2192, %v2261
    %v2353 = vadd.f32 %v2193, %v2263
    %v2354 = vadd.f32 %v2194, %v2265
    %v2355 = vadd.f32 %v2195, %v2267
    %v2356 = vadd.f32 %v2196, %v2269
    %v2357 = vadd.f32 %v2197, %v2271
    %v2358 = vadd.f32 %v2198, %v2273
    %v2359 = vadd.f32 %v2199, %v2275
    %v2360 = vadd.f32 %v2200, %v2277
    %v2361 = vadd.f32 %v2201, %v2279
    %v2362 = vadd.f32 %v2202, %v2281
    %v2363 = vadd.f32 %v2203, %v2283
    %v2364 = vadd.f32 %v2204, %v2285
    %v2365 = vadd.f32 %v2205, %v2287
    %v2366 = vadd.f32 %v2206, %v2289
    %v2367 = vadd.f32 %v2207, %v2291
    %v2368 = vadd.f32 %v2208, %v2293
    %v2369 = vadd.f32 %v2209, %v2295
    %v2370 = vadd.f32 %v2210, %v2297
    %v2371 = vadd.f32 %v2211, %v2299
    %v2372 = vadd.f32 %v2212, %v2301
    %v2373 = vadd.f32 %v2213, %v2303
    %v2374 = vadd.f32 %v2214, %v2305
    %v2375 = vadd.f32 %v2215, %v2307
    %v2376 = vadd.f32 %v2216, %v2309
    %v2377 = vadd.f32 %v2217, %v2311
    %v2378 = vadd.f32 %v2218, %v2313
    %v2379 = vadd.f32 %v2219, %v2315
    %2412 = vrot.lane.b32.xlu0 %v2348, 125
    %v2413 = vpop.permute.xlu0 %2412
    %2414 = vrot.lane.b32.xlu0 %v2349, 125
    %v2415 = vpop.permute.xlu0 %2414
    %2416 = vrot.lane.b32.xlu0 %v2350, 125
    %v2417 = vpop.permute.xlu0 %2416
    %2418 = vrot.lane.b32.xlu0 %v2351, 125
    %v2419 = vpop.permute.xlu0 %2418
    %2420 = vrot.lane.b32.xlu0 %v2352, 125
    %v2421 = vpop.permute.xlu0 %2420
    %2422 = vrot.lane.b32.xlu0 %v2353, 125
    %v2423 = vpop.permute.xlu0 %2422
    %2424 = vrot.lane.b32.xlu0 %v2354, 125
    %v2425 = vpop.permute.xlu0 %2424
    %2426 = vrot.lane.b32.xlu0 %v2355, 125
    %v2427 = vpop.permute.xlu0 %2426
    %2428 = vrot.lane.b32.xlu0 %v2356, 125
    %v2429 = vpop.permute.xlu0 %2428
    %2430 = vrot.lane.b32.xlu0 %v2357, 125
    %v2431 = vpop.permute.xlu0 %2430
    %2432 = vrot.lane.b32.xlu0 %v2358, 125
    %v2433 = vpop.permute.xlu0 %2432
    %2434 = vrot.lane.b32.xlu0 %v2359, 125
    %v2435 = vpop.permute.xlu0 %2434
    %2436 = vrot.lane.b32.xlu0 %v2360, 125
    %v2437 = vpop.permute.xlu0 %2436
    %2438 = vrot.lane.b32.xlu0 %v2361, 125
    %v2439 = vpop.permute.xlu0 %2438
    %2440 = vrot.lane.b32.xlu0 %v2362, 125
    %v2441 = vpop.permute.xlu0 %2440
    %2442 = vrot.lane.b32.xlu0 %v2363, 125
    %v2443 = vpop.permute.xlu0 %2442
    %2444 = vrot.lane.b32.xlu0 %v2364, 125
    %v2445 = vpop.permute.xlu0 %2444
    %2446 = vrot.lane.b32.xlu0 %v2365, 125
    %v2447 = vpop.permute.xlu0 %2446
    %2448 = vrot.lane.b32.xlu0 %v2366, 125
    %v2449 = vpop.permute.xlu0 %2448
    %2450 = vrot.lane.b32.xlu0 %v2367, 125
    %v2451 = vpop.permute.xlu0 %2450
    %2452 = vrot.lane.b32.xlu0 %v2368, 125
    %v2453 = vpop.permute.xlu0 %2452
    %2454 = vrot.lane.b32.xlu0 %v2369, 125
    %v2455 = vpop.permute.xlu0 %2454
    %2456 = vrot.lane.b32.xlu0 %v2370, 125
    %v2457 = vpop.permute.xlu0 %2456
    %2458 = vrot.lane.b32.xlu0 %v2371, 125
    %v2459 = vpop.permute.xlu0 %2458
    %2460 = vrot.lane.b32.xlu0 %v2372, 125
    %v2461 = vpop.permute.xlu0 %2460
    %2462 = vrot.lane.b32.xlu0 %v2373, 125
    %v2463 = vpop.permute.xlu0 %2462
    %2464 = vrot.lane.b32.xlu0 %v2374, 125
    %v2465 = vpop.permute.xlu0 %2464
    %2466 = vrot.lane.b32.xlu0 %v2375, 125
    %v2467 = vpop.permute.xlu0 %2466
    %2468 = vrot.lane.b32.xlu0 %v2376, 125
    %v2469 = vpop.permute.xlu0 %2468
    %2470 = vrot.lane.b32.xlu0 %v2377, 125
    %v2471 = vpop.permute.xlu0 %2470
    %2472 = vrot.lane.b32.xlu0 %v2378, 125
    %v2473 = vpop.permute.xlu0 %2472
    %2474 = vrot.lane.b32.xlu0 %v2379, 125
    %v2475 = vpop.permute.xlu0 %2474
    %v2508 = vsel %vm1835, %v2413, 0.0
    %2509 = vadd.xlane.f32.xlu0 %v2508
    %v2510 = vpop.xlane.xlu0 %2509
    %v2511 = vsel %vm1835, %v2415, 0.0
    %2512 = vadd.xlane.f32.xlu0 %v2511
    %v2513 = vpop.xlane.xlu0 %2512
    %v2514 = vsel %vm1835, %v2417, 0.0
    %2515 = vadd.xlane.f32.xlu0 %v2514
    %v2516 = vpop.xlane.xlu0 %2515
    %v2517 = vsel %vm1835, %v2419, 0.0
    %2518 = vadd.xlane.f32.xlu0 %v2517
    %v2519 = vpop.xlane.xlu0 %2518
    %v2520 = vsel %vm1835, %v2421, 0.0
    %2521 = vadd.xlane.f32.xlu0 %v2520
    %v2522 = vpop.xlane.xlu0 %2521
    %v2523 = vsel %vm1835, %v2423, 0.0
    %2524 = vadd.xlane.f32.xlu0 %v2523
    %v2525 = vpop.xlane.xlu0 %2524
    %v2526 = vsel %vm1835, %v2425, 0.0
    %2527 = vadd.xlane.f32.xlu0 %v2526
    %v2528 = vpop.xlane.xlu0 %2527
    %v2529 = vsel %vm1835, %v2427, 0.0
    %2530 = vadd.xlane.f32.xlu0 %v2529
    %v2531 = vpop.xlane.xlu0 %2530
    %v2532 = vsel %vm1835, %v2429, 0.0
    %2533 = vadd.xlane.f32.xlu0 %v2532
    %v2534 = vpop.xlane.xlu0 %2533
    %v2535 = vsel %vm1835, %v2431, 0.0
    %2536 = vadd.xlane.f32.xlu0 %v2535
    %v2537 = vpop.xlane.xlu0 %2536
    %v2538 = vsel %vm1835, %v2433, 0.0
    %2539 = vadd.xlane.f32.xlu0 %v2538
    %v2540 = vpop.xlane.xlu0 %2539
    %v2541 = vsel %vm1835, %v2435, 0.0
    %2542 = vadd.xlane.f32.xlu0 %v2541
    %v2543 = vpop.xlane.xlu0 %2542
    %v2544 = vsel %vm1835, %v2437, 0.0
    %2545 = vadd.xlane.f32.xlu0 %v2544
    %v2546 = vpop.xlane.xlu0 %2545
    %v2547 = vsel %vm1835, %v2439, 0.0
    %2548 = vadd.xlane.f32.xlu0 %v2547
    %v2549 = vpop.xlane.xlu0 %2548
    %v2550 = vsel %vm1835, %v2441, 0.0
    %2551 = vadd.xlane.f32.xlu0 %v2550
    %v2552 = vpop.xlane.xlu0 %2551
    %v2553 = vsel %vm1835, %v2443, 0.0
    %2554 = vadd.xlane.f32.xlu0 %v2553
    %v2555 = vpop.xlane.xlu0 %2554
    %v2556 = vsel %vm1835, %v2445, 0.0
    %2557 = vadd.xlane.f32.xlu0 %v2556
    %v2558 = vpop.xlane.xlu0 %2557
    %v2559 = vsel %vm1835, %v2447, 0.0
    %2560 = vadd.xlane.f32.xlu0 %v2559
    %v2561 = vpop.xlane.xlu0 %2560
    %v2562 = vsel %vm1835, %v2449, 0.0
    %2563 = vadd.xlane.f32.xlu0 %v2562
    %v2564 = vpop.xlane.xlu0 %2563
    %v2565 = vsel %vm1835, %v2451, 0.0
    %2566 = vadd.xlane.f32.xlu0 %v2565
    %v2567 = vpop.xlane.xlu0 %2566
    %v2568 = vsel %vm1835, %v2453, 0.0
    %2569 = vadd.xlane.f32.xlu0 %v2568
    %v2570 = vpop.xlane.xlu0 %2569
    %v2571 = vsel %vm1835, %v2455, 0.0
    %2572 = vadd.xlane.f32.xlu0 %v2571
    %v2573 = vpop.xlane.xlu0 %2572
    %v2574 = vsel %vm1835, %v2457, 0.0
    %2575 = vadd.xlane.f32.xlu0 %v2574
    %v2576 = vpop.xlane.xlu0 %2575
    %v2577 = vsel %vm1835, %v2459, 0.0
    %2578 = vadd.xlane.f32.xlu0 %v2577
    %v2579 = vpop.xlane.xlu0 %2578
    %v2580 = vsel %vm1835, %v2461, 0.0
    %2581 = vadd.xlane.f32.xlu0 %v2580
    %v2582 = vpop.xlane.xlu0 %2581
    %v2583 = vsel %vm1835, %v2463, 0.0
    %2584 = vadd.xlane.f32.xlu0 %v2583
    %v2585 = vpop.xlane.xlu0 %2584
    %v2586 = vsel %vm1835, %v2465, 0.0
    %2587 = vadd.xlane.f32.xlu0 %v2586
    %v2588 = vpop.xlane.xlu0 %2587
    %v2589 = vsel %vm1835, %v2467, 0.0
    %2590 = vadd.xlane.f32.xlu0 %v2589
    %v2591 = vpop.xlane.xlu0 %2590
    %v2592 = vsel %vm1835, %v2469, 0.0
    %2593 = vadd.xlane.f32.xlu0 %v2592
    %v2594 = vpop.xlane.xlu0 %2593
    %v2595 = vsel %vm1835, %v2471, 0.0
    %2596 = vadd.xlane.f32.xlu0 %v2595
    %v2597 = vpop.xlane.xlu0 %2596
    %v2598 = vsel %vm1835, %v2473, 0.0
    %2599 = vadd.xlane.f32.xlu0 %v2598
    %v2600 = vpop.xlane.xlu0 %2599
    %v2601 = vsel %vm1835, %v2475, 0.0
    %2602 = vadd.xlane.f32.xlu0 %v2601
    %v2603 = vpop.xlane.xlu0 %2602
    %v2604 = vmul.f32 %v2510, 0.5
    %v2605 = vmul.f32 %v2513, 0.5
    %v2606 = vmul.f32 %v2516, 0.5
    %v2607 = vmul.f32 %v2519, 0.5
    %v2608 = vmul.f32 %v2522, 0.5
    %v2609 = vmul.f32 %v2525, 0.5
    %v2610 = vmul.f32 %v2528, 0.5
    %v2611 = vmul.f32 %v2531, 0.5
    %v2612 = vmul.f32 %v2534, 0.5
    %v2613 = vmul.f32 %v2537, 0.5
    %v2614 = vmul.f32 %v2540, 0.5
    %v2615 = vmul.f32 %v2543, 0.5
    %v2616 = vmul.f32 %v2546, 0.5
    %v2617 = vmul.f32 %v2549, 0.5
    %v2618 = vmul.f32 %v2552, 0.5
    %v2619 = vmul.f32 %v2555, 0.5
    %v2620 = vmul.f32 %v2558, 0.5
    %v2621 = vmul.f32 %v2561, 0.5
    %v2622 = vmul.f32 %v2564, 0.5
    %v2623 = vmul.f32 %v2567, 0.5
    %v2624 = vmul.f32 %v2570, 0.5
    %v2625 = vmul.f32 %v2573, 0.5
    %v2626 = vmul.f32 %v2576, 0.5
    %v2627 = vmul.f32 %v2579, 0.5
    %v2628 = vmul.f32 %v2582, 0.5
    %v2629 = vmul.f32 %v2585, 0.5
    %v2630 = vmul.f32 %v2588, 0.5
    %v2631 = vmul.f32 %v2591, 0.5
    %v2632 = vmul.f32 %v2594, 0.5
    %v2633 = vmul.f32 %v2597, 0.5
    %v2634 = vmul.f32 %v2600, 0.5
    %v2635 = vmul.f32 %v2603, 0.5
    %v2636 = vmul.f32 %v1932, %v1932
    %v2637 = vmul.f32 %v1933, %v1933
    %v2638 = vmul.f32 %v1934, %v1934
    %v2639 = vmul.f32 %v1935, %v1935
    %v2640 = vmul.f32 %v1936, %v1936
    %v2641 = vmul.f32 %v1937, %v1937
    %v2642 = vmul.f32 %v1938, %v1938
    %v2643 = vmul.f32 %v1939, %v1939
    %v2644 = vmul.f32 %v1940, %v1940
    %v2645 = vmul.f32 %v1941, %v1941
    %v2646 = vmul.f32 %v1942, %v1942
    %v2647 = vmul.f32 %v1943, %v1943
    %v2648 = vmul.f32 %v1944, %v1944
    %v2649 = vmul.f32 %v1945, %v1945
    %v2650 = vmul.f32 %v1946, %v1946
    %v2651 = vmul.f32 %v1947, %v1947
    %v2652 = vmul.f32 %v1948, %v1948
    %v2653 = vmul.f32 %v1949, %v1949
    %v2654 = vmul.f32 %v1950, %v1950
    %v2655 = vmul.f32 %v1951, %v1951
    %v2656 = vmul.f32 %v1952, %v1952
    %v2657 = vmul.f32 %v1953, %v1953
    %v2658 = vmul.f32 %v1954, %v1954
    %v2659 = vmul.f32 %v1955, %v1955
    %v2660 = vmul.f32 %v1956, %v1956
    %v2661 = vmul.f32 %v1957, %v1957
    %v2662 = vmul.f32 %v1958, %v1958
    %v2663 = vmul.f32 %v1959, %v1959
    %v2664 = vmul.f32 %v1960, %v1960
    %v2665 = vmul.f32 %v1961, %v1961
    %v2666 = vmul.f32 %v1962, %v1962
    %v2667 = vmul.f32 %v1963, %v1963
    %v2668 = vsub.f32 %v2604, %v2636
    %v2669 = vsub.f32 %v2605, %v2637
    %v2670 = vsub.f32 %v2606, %v2638
    %v2671 = vsub.f32 %v2607, %v2639
    %v2672 = vsub.f32 %v2608, %v2640
    %v2673 = vsub.f32 %v2609, %v2641
    %v2674 = vsub.f32 %v2610, %v2642
    %v2675 = vsub.f32 %v2611, %v2643
    %v2676 = vsub.f32 %v2612, %v2644
    %v2677 = vsub.f32 %v2613, %v2645
    %v2678 = vsub.f32 %v2614, %v2646
    %v2679 = vsub.f32 %v2615, %v2647
    %v2680 = vsub.f32 %v2616, %v2648
    %v2681 = vsub.f32 %v2617, %v2649
    %v2682 = vsub.f32 %v2618, %v2650
    %v2683 = vsub.f32 %v2619, %v2651
    %v2684 = vsub.f32 %v2620, %v2652
    %v2685 = vsub.f32 %v2621, %v2653
    %v2686 = vsub.f32 %v2622, %v2654
    %v2687 = vsub.f32 %v2623, %v2655
    %v2688 = vsub.f32 %v2624, %v2656
    %v2689 = vsub.f32 %v2625, %v2657
    %v2690 = vsub.f32 %v2626, %v2658
    %v2691 = vsub.f32 %v2627, %v2659
    %v2692 = vsub.f32 %v2628, %v2660
    %v2693 = vsub.f32 %v2629, %v2661
    %v2694 = vsub.f32 %v2630, %v2662
    %v2695 = vsub.f32 %v2631, %v2663
    %v2696 = vsub.f32 %v2632, %v2664
    %v2697 = vsub.f32 %v2633, %v2665
    %v2698 = vsub.f32 %v2634, %v2666
    %v2699 = vsub.f32 %v2635, %v2667
    %v2700 = vmax.f32 %v2668, 0.0
    %v2701 = vmax.f32 %v2669, 0.0
    %v2702 = vmax.f32 %v2670, 0.0
    %v2703 = vmax.f32 %v2671, 0.0
    %v2704 = vmax.f32 %v2672, 0.0
    %v2705 = vmax.f32 %v2673, 0.0
    %v2706 = vmax.f32 %v2674, 0.0
    %v2707 = vmax.f32 %v2675, 0.0
    %v2708 = vmax.f32 %v2676, 0.0
    %v2709 = vmax.f32 %v2677, 0.0
    %v2710 = vmax.f32 %v2678, 0.0
    %v2711 = vmax.f32 %v2679, 0.0
    %v2712 = vmax.f32 %v2680, 0.0
    %v2713 = vmax.f32 %v2681, 0.0
    %v2714 = vmax.f32 %v2682, 0.0
    %v2715 = vmax.f32 %v2683, 0.0
    %v2716 = vmax.f32 %v2684, 0.0
    %v2717 = vmax.f32 %v2685, 0.0
    %v2718 = vmax.f32 %v2686, 0.0
    %v2719 = vmax.f32 %v2687, 0.0
    %v2720 = vmax.f32 %v2688, 0.0
    %v2721 = vmax.f32 %v2689, 0.0
    %v2722 = vmax.f32 %v2690, 0.0
    %v2723 = vmax.f32 %v2691, 0.0
    %v2724 = vmax.f32 %v2692, 0.0
    %v2725 = vmax.f32 %v2693, 0.0
    %v2726 = vmax.f32 %v2694, 0.0
    %v2727 = vmax.f32 %v2695, 0.0
    %v2728 = vmax.f32 %v2696, 0.0
    %v2729 = vmax.f32 %v2697, 0.0
    %v2730 = vmax.f32 %v2698, 0.0
    %v2731 = vmax.f32 %v2699, 0.0
    %v2732 = vadd.f32 %v2700, 1e-05
    %v2733 = vadd.f32 %v2701, 1e-05
    %v2734 = vadd.f32 %v2702, 1e-05
    %v2735 = vadd.f32 %v2703, 1e-05
    %v2736 = vadd.f32 %v2704, 1e-05
    %v2737 = vadd.f32 %v2705, 1e-05
    %v2738 = vadd.f32 %v2706, 1e-05
    %v2739 = vadd.f32 %v2707, 1e-05
    %v2740 = vadd.f32 %v2708, 1e-05
    %v2741 = vadd.f32 %v2709, 1e-05
    %v2742 = vadd.f32 %v2710, 1e-05
    %v2743 = vadd.f32 %v2711, 1e-05
    %v2744 = vadd.f32 %v2712, 1e-05
    %v2745 = vadd.f32 %v2713, 1e-05
    %v2746 = vadd.f32 %v2714, 1e-05
    %v2747 = vadd.f32 %v2715, 1e-05
    %v2748 = vadd.f32 %v2716, 1e-05
    %v2749 = vadd.f32 %v2717, 1e-05
    %v2750 = vadd.f32 %v2718, 1e-05
    %v2751 = vadd.f32 %v2719, 1e-05
    %v2752 = vadd.f32 %v2720, 1e-05
    %v2753 = vadd.f32 %v2721, 1e-05
    %v2754 = vadd.f32 %v2722, 1e-05
    %v2755 = vadd.f32 %v2723, 1e-05
    %v2756 = vadd.f32 %v2724, 1e-05
    %v2757 = vadd.f32 %v2725, 1e-05
    %v2758 = vadd.f32 %v2726, 1e-05
    %v2759 = vadd.f32 %v2727, 1e-05
    %v2760 = vadd.f32 %v2728, 1e-05
    %v2761 = vadd.f32 %v2729, 1e-05
    %v2762 = vadd.f32 %v2730, 1e-05
    %v2763 = vadd.f32 %v2731, 1e-05
    %v2764 = vrsqrt.pop %v2732
    %v2765 = vrsqrt.pop %v2733
    %v2766 = vrsqrt.pop %v2734
    %v2767 = vrsqrt.pop %v2735
    %v2768 = vrsqrt.pop %v2736
    %v2769 = vrsqrt.pop %v2737
    %v2770 = vrsqrt.pop %v2738
    %v2771 = vrsqrt.pop %v2739
    %v2772 = vrsqrt.pop %v2740
    %v2773 = vrsqrt.pop %v2741
    %v2774 = vrsqrt.pop %v2742
    %v2775 = vrsqrt.pop %v2743
    %v2776 = vrsqrt.pop %v2744
    %v2777 = vrsqrt.pop %v2745
    %v2778 = vrsqrt.pop %v2746
    %v2779 = vrsqrt.pop %v2747
    %v2780 = vrsqrt.pop %v2748
    %v2781 = vrsqrt.pop %v2749
    %v2782 = vrsqrt.pop %v2750
    %v2783 = vrsqrt.pop %v2751
    %v2784 = vrsqrt.pop %v2752
    %v2785 = vrsqrt.pop %v2753
    %v2786 = vrsqrt.pop %v2754
    %v2787 = vrsqrt.pop %v2755
    %v2788 = vrsqrt.pop %v2756
    %v2789 = vrsqrt.pop %v2757
    %v2790 = vrsqrt.pop %v2758
    %v2791 = vrsqrt.pop %v2759
    %v2792 = vrsqrt.pop %v2760
    %v2793 = vrsqrt.pop %v2761
    %v2794 = vrsqrt.pop %v2762
    %v2795 = vrsqrt.pop %v2763
    %v2796 = vmul.f32 %v552, %v2764
    %v2797 = vmul.f32 %v553, %v2765
    %v2798 = vmul.f32 %v554, %v2766
    %v2799 = vmul.f32 %v555, %v2767
    %v2800 = vmul.f32 %v556, %v2768
    %v2801 = vmul.f32 %v557, %v2769
    %v2802 = vmul.f32 %v558, %v2770
    %v2803 = vmul.f32 %v559, %v2771
    %v2804 = vmul.f32 %v560, %v2772
    %v2805 = vmul.f32 %v561, %v2773
    %v2806 = vmul.f32 %v562, %v2774
    %v2807 = vmul.f32 %v563, %v2775
    %v2808 = vmul.f32 %v564, %v2776
    %v2809 = vmul.f32 %v565, %v2777
    %v2810 = vmul.f32 %v566, %v2778
    %v2811 = vmul.f32 %v567, %v2779
    %v2812 = vmul.f32 %v568, %v2780
    %v2813 = vmul.f32 %v569, %v2781
    %v2814 = vmul.f32 %v570, %v2782
    %v2815 = vmul.f32 %v571, %v2783
    %v2816 = vmul.f32 %v572, %v2784
    %v2817 = vmul.f32 %v573, %v2785
    %v2818 = vmul.f32 %v574, %v2786
    %v2819 = vmul.f32 %v575, %v2787
    %v2820 = vmul.f32 %v576, %v2788
    %v2821 = vmul.f32 %v577, %v2789
    %v2822 = vmul.f32 %v578, %v2790
    %v2823 = vmul.f32 %v579, %v2791
    %v2824 = vmul.f32 %v580, %v2792
    %v2825 = vmul.f32 %v581, %v2793
    %v2826 = vmul.f32 %v582, %v2794
    %v2827 = vmul.f32 %v583, %v2795
    %2828 = vrot.lane.b32.xlu0 %v552, 125
    %v2829 = vpop.permute.xlu0 %2828
    %2830 = vrot.lane.b32.xlu0 %v553, 125
    %v2831 = vpop.permute.xlu0 %2830
    %2832 = vrot.lane.b32.xlu0 %v554, 125
    %v2833 = vpop.permute.xlu0 %2832
    %2834 = vrot.lane.b32.xlu0 %v555, 125
    %v2835 = vpop.permute.xlu0 %2834
    %2836 = vrot.lane.b32.xlu0 %v556, 125
    %v2837 = vpop.permute.xlu0 %2836
    %2838 = vrot.lane.b32.xlu0 %v557, 125
    %v2839 = vpop.permute.xlu0 %2838
    %2840 = vrot.lane.b32.xlu0 %v558, 125
    %v2841 = vpop.permute.xlu0 %2840
    %2842 = vrot.lane.b32.xlu0 %v559, 125
    %v2843 = vpop.permute.xlu0 %2842
    %2844 = vrot.lane.b32.xlu0 %v560, 125
    %v2845 = vpop.permute.xlu0 %2844
    %2846 = vrot.lane.b32.xlu0 %v561, 125
    %v2847 = vpop.permute.xlu0 %2846
    %2848 = vrot.lane.b32.xlu0 %v562, 125
    %v2849 = vpop.permute.xlu0 %2848
    %2850 = vrot.lane.b32.xlu0 %v563, 125
    %v2851 = vpop.permute.xlu0 %2850
    %2852 = vrot.lane.b32.xlu0 %v564, 125
    %v2853 = vpop.permute.xlu0 %2852
    %2854 = vrot.lane.b32.xlu0 %v565, 125
    %v2855 = vpop.permute.xlu0 %2854
    %2856 = vrot.lane.b32.xlu0 %v566, 125
    %v2857 = vpop.permute.xlu0 %2856
    %2858 = vrot.lane.b32.xlu0 %v567, 125
    %v2859 = vpop.permute.xlu0 %2858
    %2860 = vrot.lane.b32.xlu0 %v568, 125
    %v2861 = vpop.permute.xlu0 %2860
    %2862 = vrot.lane.b32.xlu0 %v569, 125
    %v2863 = vpop.permute.xlu0 %2862
    %2864 = vrot.lane.b32.xlu0 %v570, 125
    %v2865 = vpop.permute.xlu0 %2864
    %2866 = vrot.lane.b32.xlu0 %v571, 125
    %v2867 = vpop.permute.xlu0 %2866
    %2868 = vrot.lane.b32.xlu0 %v572, 125
    %v2869 = vpop.permute.xlu0 %2868
    %2870 = vrot.lane.b32.xlu0 %v573, 125
    %v2871 = vpop.permute.xlu0 %2870
    %2872 = vrot.lane.b32.xlu0 %v574, 125
    %v2873 = vpop.permute.xlu0 %2872
    %2874 = vrot.lane.b32.xlu0 %v575, 125
    %v2875 = vpop.permute.xlu0 %2874
    %2876 = vrot.lane.b32.xlu0 %v576, 125
    %v2877 = vpop.permute.xlu0 %2876
    %2878 = vrot.lane.b32.xlu0 %v577, 125
    %v2879 = vpop.permute.xlu0 %2878
    %2880 = vrot.lane.b32.xlu0 %v578, 125
    %v2881 = vpop.permute.xlu0 %2880
    %2882 = vrot.lane.b32.xlu0 %v579, 125
    %v2883 = vpop.permute.xlu0 %2882
    %2884 = vrot.lane.b32.xlu0 %v580, 125
    %v2885 = vpop.permute.xlu0 %2884
    %2886 = vrot.lane.b32.xlu0 %v581, 125
    %v2887 = vpop.permute.xlu0 %2886
    %2888 = vrot.lane.b32.xlu0 %v582, 125
    %v2889 = vpop.permute.xlu0 %2888
    %2890 = vrot.lane.b32.xlu0 %v583, 125
    %v2891 = vpop.permute.xlu0 %2890
    %v2924 = vmul.f32 %v1707, %v2829
    %v2925 = vmul.f32 %v1708, %v2831
    %v2926 = vmul.f32 %v1709, %v2833
    %v2927 = vmul.f32 %v1710, %v2835
    %v2928 = vmul.f32 %v1711, %v2837
    %v2929 = vmul.f32 %v1712, %v2839
    %v2930 = vmul.f32 %v1713, %v2841
    %v2931 = vmul.f32 %v1714, %v2843
    %v2932 = vmul.f32 %v1715, %v2845
    %v2933 = vmul.f32 %v1716, %v2847
    %v2934 = vmul.f32 %v1717, %v2849
    %v2935 = vmul.f32 %v1718, %v2851
    %v2936 = vmul.f32 %v1719, %v2853
    %v2937 = vmul.f32 %v1720, %v2855
    %v2938 = vmul.f32 %v1721, %v2857
    %v2939 = vmul.f32 %v1722, %v2859
    %v2940 = vmul.f32 %v1723, %v2861
    %v2941 = vmul.f32 %v1724, %v2863
    %v2942 = vmul.f32 %v1725, %v2865
    %v2943 = vmul.f32 %v1726, %v2867
    %v2944 = vmul.f32 %v1727, %v2869
    %v2945 = vmul.f32 %v1728, %v2871
    %v2946 = vmul.f32 %v1729, %v2873
    %v2947 = vmul.f32 %v1730, %v2875
    %v2948 = vmul.f32 %v1731, %v2877
    %v2949 = vmul.f32 %v1732, %v2879
    %v2950 = vmul.f32 %v1733, %v2881
    %v2951 = vmul.f32 %v1734, %v2883
    %v2952 = vmul.f32 %v1735, %v2885
    %v2953 = vmul.f32 %v1736, %v2887
    %v2954 = vmul.f32 %v1737, %v2889
    %v2955 = vmul.f32 %v1738, %v2891
    %2957 = vset.pattern.permute.xlu0 1
    %2958 = vperm.xlu0 %2957, %v2796
    %v2959 = vpop.permute.xlu0 %2958
    %2962 = vset.pattern.permute.xlu0 1
    %2963 = vperm.xlu0 %2962, %v2797
    %v2964 = vpop.permute.xlu0 %2963
    %2967 = vset.pattern.permute.xlu0 1
    %2968 = vperm.xlu0 %2967, %v2798
    %v2969 = vpop.permute.xlu0 %2968
    %2972 = vset.pattern.permute.xlu0 1
    %2973 = vperm.xlu0 %2972, %v2799
    %v2974 = vpop.permute.xlu0 %2973
    %2977 = vset.pattern.permute.xlu0 1
    %2978 = vperm.xlu0 %2977, %v2800
    %v2979 = vpop.permute.xlu0 %2978
    %2982 = vset.pattern.permute.xlu0 1
    %2983 = vperm.xlu0 %2982, %v2801
    %v2984 = vpop.permute.xlu0 %2983
    %2987 = vset.pattern.permute.xlu0 1
    %2988 = vperm.xlu0 %2987, %v2802
    %v2989 = vpop.permute.xlu0 %2988
    %2992 = vset.pattern.permute.xlu0 1
    %2993 = vperm.xlu0 %2992, %v2803
    %v2994 = vpop.permute.xlu0 %2993
    %2997 = vset.pattern.permute.xlu0 1
    %2998 = vperm.xlu0 %2997, %v2804
    %v2999 = vpop.permute.xlu0 %2998
    %3002 = vset.pattern.permute.xlu0 1
    %3003 = vperm.xlu0 %3002, %v2805
    %v3004 = vpop.permute.xlu0 %3003
    %3007 = vset.pattern.permute.xlu0 1
    %3008 = vperm.xlu0 %3007, %v2806
    %v3009 = vpop.permute.xlu0 %3008
    %3012 = vset.pattern.permute.xlu0 1
    %3013 = vperm.xlu0 %3012, %v2807
    %v3014 = vpop.permute.xlu0 %3013
    %3017 = vset.pattern.permute.xlu0 1
    %3018 = vperm.xlu0 %3017, %v2808
    %v3019 = vpop.permute.xlu0 %3018
    %3022 = vset.pattern.permute.xlu0 1
    %3023 = vperm.xlu0 %3022, %v2809
    %v3024 = vpop.permute.xlu0 %3023
    %3027 = vset.pattern.permute.xlu0 1
    %3028 = vperm.xlu0 %3027, %v2810
    %v3029 = vpop.permute.xlu0 %3028
    %3032 = vset.pattern.permute.xlu0 1
    %3033 = vperm.xlu0 %3032, %v2811
    %v3034 = vpop.permute.xlu0 %3033
    %3037 = vset.pattern.permute.xlu0 1
    %3038 = vperm.xlu0 %3037, %v2812
    %v3039 = vpop.permute.xlu0 %3038
    %3042 = vset.pattern.permute.xlu0 1
    %3043 = vperm.xlu0 %3042, %v2813
    %v3044 = vpop.permute.xlu0 %3043
    %3047 = vset.pattern.permute.xlu0 1
    %3048 = vperm.xlu0 %3047, %v2814
    %v3049 = vpop.permute.xlu0 %3048
    %3052 = vset.pattern.permute.xlu0 1
    %3053 = vperm.xlu0 %3052, %v2815
    %v3054 = vpop.permute.xlu0 %3053
    %3057 = vset.pattern.permute.xlu0 1
    %3058 = vperm.xlu0 %3057, %v2816
    %v3059 = vpop.permute.xlu0 %3058
    %3062 = vset.pattern.permute.xlu0 1
    %3063 = vperm.xlu0 %3062, %v2817
    %v3064 = vpop.permute.xlu0 %3063
    %3067 = vset.pattern.permute.xlu0 1
    %3068 = vperm.xlu0 %3067, %v2818
    %v3069 = vpop.permute.xlu0 %3068
    %3072 = vset.pattern.permute.xlu0 1
    %3073 = vperm.xlu0 %3072, %v2819
    %v3074 = vpop.permute.xlu0 %3073
    %3077 = vset.pattern.permute.xlu0 1
    %3078 = vperm.xlu0 %3077, %v2820
    %v3079 = vpop.permute.xlu0 %3078
    %3082 = vset.pattern.permute.xlu0 1
    %3083 = vperm.xlu0 %3082, %v2821
    %v3084 = vpop.permute.xlu0 %3083
    %3087 = vset.pattern.permute.xlu0 1
    %3088 = vperm.xlu0 %3087, %v2822
    %v3089 = vpop.permute.xlu0 %3088
    %3092 = vset.pattern.permute.xlu0 1
    %3093 = vperm.xlu0 %3092, %v2823
    %v3094 = vpop.permute.xlu0 %3093
    %3097 = vset.pattern.permute.xlu0 1
    %3098 = vperm.xlu0 %3097, %v2824
    %v3099 = vpop.permute.xlu0 %3098
    %3102 = vset.pattern.permute.xlu0 1
    %3103 = vperm.xlu0 %3102, %v2825
    %v3104 = vpop.permute.xlu0 %3103
    %3107 = vset.pattern.permute.xlu0 1
    %3108 = vperm.xlu0 %3107, %v2826
    %v3109 = vpop.permute.xlu0 %3108
    %3112 = vset.pattern.permute.xlu0 1
    %3113 = vperm.xlu0 %3112, %v2827
    %v3114 = vpop.permute.xlu0 %3113
    %v3116 = vmul.f32 %v2924, %v2959
    %v3117 = vmul.f32 %v2925, %v2964
    %v3118 = vmul.f32 %v2926, %v2969
    %v3119 = vmul.f32 %v2927, %v2974
    %v3120 = vmul.f32 %v2928, %v2979
    %v3121 = vmul.f32 %v2929, %v2984
    %v3122 = vmul.f32 %v2930, %v2989
    %v3123 = vmul.f32 %v2931, %v2994
    %v3124 = vmul.f32 %v2932, %v2999
    %v3125 = vmul.f32 %v2933, %v3004
    %v3126 = vmul.f32 %v2934, %v3009
    %v3127 = vmul.f32 %v2935, %v3014
    %v3128 = vmul.f32 %v2936, %v3019
    %v3129 = vmul.f32 %v2937, %v3024
    %v3130 = vmul.f32 %v2938, %v3029
    %v3131 = vmul.f32 %v2939, %v3034
    %v3132 = vmul.f32 %v2940, %v3039
    %v3133 = vmul.f32 %v2941, %v3044
    %v3134 = vmul.f32 %v2942, %v3049
    %v3135 = vmul.f32 %v2943, %v3054
    %v3136 = vmul.f32 %v2944, %v3059
    %v3137 = vmul.f32 %v2945, %v3064
    %v3138 = vmul.f32 %v2946, %v3069
    %v3139 = vmul.f32 %v2947, %v3074
    %v3140 = vmul.f32 %v2948, %v3079
    %v3141 = vmul.f32 %v2949, %v3084
    %v3142 = vmul.f32 %v2950, %v3089
    %v3143 = vmul.f32 %v2951, %v3094
    %v3144 = vmul.f32 %v2952, %v3099
    %v3145 = vmul.f32 %v2953, %v3104
    %v3146 = vmul.f32 %v2954, %v3109
    %v3147 = vmul.f32 %v2955, %v3114
    %v3148 = vmul.f32 %v1515, %v1707
    %v3149 = vmul.f32 %v1516, %v1708
    %v3150 = vmul.f32 %v1517, %v1709
    %v3151 = vmul.f32 %v1518, %v1710
    %v3152 = vmul.f32 %v1519, %v1711
    %v3153 = vmul.f32 %v1520, %v1712
    %v3154 = vmul.f32 %v1521, %v1713
    %v3155 = vmul.f32 %v1522, %v1714
    %v3156 = vmul.f32 %v1523, %v1715
    %v3157 = vmul.f32 %v1524, %v1716
    %v3158 = vmul.f32 %v1525, %v1717
    %v3159 = vmul.f32 %v1526, %v1718
    %v3160 = vmul.f32 %v1527, %v1719
    %v3161 = vmul.f32 %v1528, %v1720
    %v3162 = vmul.f32 %v1529, %v1721
    %v3163 = vmul.f32 %v1530, %v1722
    %v3164 = vmul.f32 %v1531, %v1723
    %v3165 = vmul.f32 %v1532, %v1724
    %v3166 = vmul.f32 %v1533, %v1725
    %v3167 = vmul.f32 %v1534, %v1726
    %v3168 = vmul.f32 %v1535, %v1727
    %v3169 = vmul.f32 %v1536, %v1728
    %v3170 = vmul.f32 %v1537, %v1729
    %v3171 = vmul.f32 %v1538, %v1730
    %v3172 = vmul.f32 %v1539, %v1731
    %v3173 = vmul.f32 %v1540, %v1732
    %v3174 = vmul.f32 %v1541, %v1733
    %v3175 = vmul.f32 %v1542, %v1734
    %v3176 = vmul.f32 %v1543, %v1735
    %v3177 = vmul.f32 %v1544, %v1736
    %v3178 = vmul.f32 %v1545, %v1737
    %v3179 = vmul.f32 %v1546, %v1738
    %v3180 = vmul.f32 %v3148, %v2829
    %v3181 = vmul.f32 %v3149, %v2831
    %v3182 = vmul.f32 %v3150, %v2833
    %v3183 = vmul.f32 %v3151, %v2835
    %v3184 = vmul.f32 %v3152, %v2837
    %v3185 = vmul.f32 %v3153, %v2839
    %v3186 = vmul.f32 %v3154, %v2841
    %v3187 = vmul.f32 %v3155, %v2843
    %v3188 = vmul.f32 %v3156, %v2845
    %v3189 = vmul.f32 %v3157, %v2847
    %v3190 = vmul.f32 %v3158, %v2849
    %v3191 = vmul.f32 %v3159, %v2851
    %v3192 = vmul.f32 %v3160, %v2853
    %v3193 = vmul.f32 %v3161, %v2855
    %v3194 = vmul.f32 %v3162, %v2857
    %v3195 = vmul.f32 %v3163, %v2859
    %v3196 = vmul.f32 %v3164, %v2861
    %v3197 = vmul.f32 %v3165, %v2863
    %v3198 = vmul.f32 %v3166, %v2865
    %v3199 = vmul.f32 %v3167, %v2867
    %v3200 = vmul.f32 %v3168, %v2869
    %v3201 = vmul.f32 %v3169, %v2871
    %v3202 = vmul.f32 %v3170, %v2873
    %v3203 = vmul.f32 %v3171, %v2875
    %v3204 = vmul.f32 %v3172, %v2877
    %v3205 = vmul.f32 %v3173, %v2879
    %v3206 = vmul.f32 %v3174, %v2881
    %v3207 = vmul.f32 %v3175, %v2883
    %v3208 = vmul.f32 %v3176, %v2885
    %v3209 = vmul.f32 %v3177, %v2887
    %v3210 = vmul.f32 %v3178, %v2889
    %v3211 = vmul.f32 %v3179, %v2891
    %3244 = vrot.lane.b32.xlu0 %v3180, 5
    %v3245 = vpop.permute.xlu0 %3244
    %3246 = vrot.lane.b32.xlu0 %v3181, 5
    %v3247 = vpop.permute.xlu0 %3246
    %3248 = vrot.lane.b32.xlu0 %v3182, 5
    %v3249 = vpop.permute.xlu0 %3248
    %3250 = vrot.lane.b32.xlu0 %v3183, 5
    %v3251 = vpop.permute.xlu0 %3250
    %3252 = vrot.lane.b32.xlu0 %v3184, 5
    %v3253 = vpop.permute.xlu0 %3252
    %3254 = vrot.lane.b32.xlu0 %v3185, 5
    %v3255 = vpop.permute.xlu0 %3254
    %3256 = vrot.lane.b32.xlu0 %v3186, 5
    %v3257 = vpop.permute.xlu0 %3256
    %3258 = vrot.lane.b32.xlu0 %v3187, 5
    %v3259 = vpop.permute.xlu0 %3258
    %3260 = vrot.lane.b32.xlu0 %v3188, 5
    %v3261 = vpop.permute.xlu0 %3260
    %3262 = vrot.lane.b32.xlu0 %v3189, 5
    %v3263 = vpop.permute.xlu0 %3262
    %3264 = vrot.lane.b32.xlu0 %v3190, 5
    %v3265 = vpop.permute.xlu0 %3264
    %3266 = vrot.lane.b32.xlu0 %v3191, 5
    %v3267 = vpop.permute.xlu0 %3266
    %3268 = vrot.lane.b32.xlu0 %v3192, 5
    %v3269 = vpop.permute.xlu0 %3268
    %3270 = vrot.lane.b32.xlu0 %v3193, 5
    %v3271 = vpop.permute.xlu0 %3270
    %3272 = vrot.lane.b32.xlu0 %v3194, 5
    %v3273 = vpop.permute.xlu0 %3272
    %3274 = vrot.lane.b32.xlu0 %v3195, 5
    %v3275 = vpop.permute.xlu0 %3274
    %3276 = vrot.lane.b32.xlu0 %v3196, 5
    %v3277 = vpop.permute.xlu0 %3276
    %3278 = vrot.lane.b32.xlu0 %v3197, 5
    %v3279 = vpop.permute.xlu0 %3278
    %3280 = vrot.lane.b32.xlu0 %v3198, 5
    %v3281 = vpop.permute.xlu0 %3280
    %3282 = vrot.lane.b32.xlu0 %v3199, 5
    %v3283 = vpop.permute.xlu0 %3282
    %3284 = vrot.lane.b32.xlu0 %v3200, 5
    %v3285 = vpop.permute.xlu0 %3284
    %3286 = vrot.lane.b32.xlu0 %v3201, 5
    %v3287 = vpop.permute.xlu0 %3286
    %3288 = vrot.lane.b32.xlu0 %v3202, 5
    %v3289 = vpop.permute.xlu0 %3288
    %3290 = vrot.lane.b32.xlu0 %v3203, 5
    %v3291 = vpop.permute.xlu0 %3290
    %3292 = vrot.lane.b32.xlu0 %v3204, 5
    %v3293 = vpop.permute.xlu0 %3292
    %3294 = vrot.lane.b32.xlu0 %v3205, 5
    %v3295 = vpop.permute.xlu0 %3294
    %3296 = vrot.lane.b32.xlu0 %v3206, 5
    %v3297 = vpop.permute.xlu0 %3296
    %3298 = vrot.lane.b32.xlu0 %v3207, 5
    %v3299 = vpop.permute.xlu0 %3298
    %3300 = vrot.lane.b32.xlu0 %v3208, 5
    %v3301 = vpop.permute.xlu0 %3300
    %3302 = vrot.lane.b32.xlu0 %v3209, 5
    %v3303 = vpop.permute.xlu0 %3302
    %3304 = vrot.lane.b32.xlu0 %v3210, 5
    %v3305 = vpop.permute.xlu0 %3304
    %3306 = vrot.lane.b32.xlu0 %v3211, 5
    %v3307 = vpop.permute.xlu0 %3306
    %v3340 = vsub.f32 %v552, %v3245
    %v3341 = vsub.f32 %v553, %v3247
    %v3342 = vsub.f32 %v554, %v3249
    %v3343 = vsub.f32 %v555, %v3251
    %v3344 = vsub.f32 %v556, %v3253
    %v3345 = vsub.f32 %v557, %v3255
    %v3346 = vsub.f32 %v558, %v3257
    %v3347 = vsub.f32 %v559, %v3259
    %v3348 = vsub.f32 %v560, %v3261
    %v3349 = vsub.f32 %v561, %v3263
    %v3350 = vsub.f32 %v562, %v3265
    %v3351 = vsub.f32 %v563, %v3267
    %v3352 = vsub.f32 %v564, %v3269
    %v3353 = vsub.f32 %v565, %v3271
    %v3354 = vsub.f32 %v566, %v3273
    %v3355 = vsub.f32 %v567, %v3275
    %v3356 = vsub.f32 %v568, %v3277
    %v3357 = vsub.f32 %v569, %v3279
    %v3358 = vsub.f32 %v570, %v3281
    %v3359 = vsub.f32 %v571, %v3283
    %v3360 = vsub.f32 %v572, %v3285
    %v3361 = vsub.f32 %v573, %v3287
    %v3362 = vsub.f32 %v574, %v3289
    %v3363 = vsub.f32 %v575, %v3291
    %v3364 = vsub.f32 %v576, %v3293
    %v3365 = vsub.f32 %v577, %v3295
    %v3366 = vsub.f32 %v578, %v3297
    %v3367 = vsub.f32 %v579, %v3299
    %v3368 = vsub.f32 %v580, %v3301
    %v3369 = vsub.f32 %v581, %v3303
    %v3370 = vsub.f32 %v582, %v3305
    %v3371 = vsub.f32 %v583, %v3307
    %v3372 = vsub.f32 %v3340, %v1932
    %v3373 = vsub.f32 %v3341, %v1933
    %v3374 = vsub.f32 %v3342, %v1934
    %v3375 = vsub.f32 %v3343, %v1935
    %v3376 = vsub.f32 %v3344, %v1936
    %v3377 = vsub.f32 %v3345, %v1937
    %v3378 = vsub.f32 %v3346, %v1938
    %v3379 = vsub.f32 %v3347, %v1939
    %v3380 = vsub.f32 %v3348, %v1940
    %v3381 = vsub.f32 %v3349, %v1941
    %v3382 = vsub.f32 %v3350, %v1942
    %v3383 = vsub.f32 %v3351, %v1943
    %v3384 = vsub.f32 %v3352, %v1944
    %v3385 = vsub.f32 %v3353, %v1945
    %v3386 = vsub.f32 %v3354, %v1946
    %v3387 = vsub.f32 %v3355, %v1947
    %v3388 = vsub.f32 %v3356, %v1948
    %v3389 = vsub.f32 %v3357, %v1949
    %v3390 = vsub.f32 %v3358, %v1950
    %v3391 = vsub.f32 %v3359, %v1951
    %v3392 = vsub.f32 %v3360, %v1952
    %v3393 = vsub.f32 %v3361, %v1953
    %v3394 = vsub.f32 %v3362, %v1954
    %v3395 = vsub.f32 %v3363, %v1955
    %v3396 = vsub.f32 %v3364, %v1956
    %v3397 = vsub.f32 %v3365, %v1957
    %v3398 = vsub.f32 %v3366, %v1958
    %v3399 = vsub.f32 %v3367, %v1959
    %v3400 = vsub.f32 %v3368, %v1960
    %v3401 = vsub.f32 %v3369, %v1961
    %v3402 = vsub.f32 %v3370, %v1962
    %v3403 = vsub.f32 %v3371, %v1963
    %v3404 = vmul.f32 %v3372, %v2959
    %v3405 = vmul.f32 %v3373, %v2964
    %v3406 = vmul.f32 %v3374, %v2969
    %v3407 = vmul.f32 %v3375, %v2974
    %v3408 = vmul.f32 %v3376, %v2979
    %v3409 = vmul.f32 %v3377, %v2984
    %v3410 = vmul.f32 %v3378, %v2989
    %v3411 = vmul.f32 %v3379, %v2994
    %v3412 = vmul.f32 %v3380, %v2999
    %v3413 = vmul.f32 %v3381, %v3004
    %v3414 = vmul.f32 %v3382, %v3009
    %v3415 = vmul.f32 %v3383, %v3014
    %v3416 = vmul.f32 %v3384, %v3019
    %v3417 = vmul.f32 %v3385, %v3024
    %v3418 = vmul.f32 %v3386, %v3029
    %v3419 = vmul.f32 %v3387, %v3034
    %v3420 = vmul.f32 %v3388, %v3039
    %v3421 = vmul.f32 %v3389, %v3044
    %v3422 = vmul.f32 %v3390, %v3049
    %v3423 = vmul.f32 %v3391, %v3054
    %v3424 = vmul.f32 %v3392, %v3059
    %v3425 = vmul.f32 %v3393, %v3064
    %v3426 = vmul.f32 %v3394, %v3069
    %v3427 = vmul.f32 %v3395, %v3074
    %v3428 = vmul.f32 %v3396, %v3079
    %v3429 = vmul.f32 %v3397, %v3084
    %v3430 = vmul.f32 %v3398, %v3089
    %v3431 = vmul.f32 %v3399, %v3094
    %v3432 = vmul.f32 %v3400, %v3099
    %v3433 = vmul.f32 %v3401, %v3104
    %v3434 = vmul.f32 %v3402, %v3109
    %v3435 = vmul.f32 %v3403, %v3114
    %3436 = vset.pattern.permute.xlu0 2
    %3437 = vperm.xlu0 %3436, %v552
    %v3438 = vpop.permute.xlu0 %3437
    %3440 = vset.pattern.permute.xlu0 2
    %3441 = vperm.xlu0 %3440, %v553
    %v3442 = vpop.permute.xlu0 %3441
    %3444 = vset.pattern.permute.xlu0 2
    %3445 = vperm.xlu0 %3444, %v554
    %v3446 = vpop.permute.xlu0 %3445
    %3448 = vset.pattern.permute.xlu0 2
    %3449 = vperm.xlu0 %3448, %v555
    %v3450 = vpop.permute.xlu0 %3449
    %3452 = vset.pattern.permute.xlu0 2
    %3453 = vperm.xlu0 %3452, %v556
    %v3454 = vpop.permute.xlu0 %3453
    %3456 = vset.pattern.permute.xlu0 2
    %3457 = vperm.xlu0 %3456, %v557
    %v3458 = vpop.permute.xlu0 %3457
    %3460 = vset.pattern.permute.xlu0 2
    %3461 = vperm.xlu0 %3460, %v558
    %v3462 = vpop.permute.xlu0 %3461
    %3464 = vset.pattern.permute.xlu0 2
    %3465 = vperm.xlu0 %3464, %v559
    %v3466 = vpop.permute.xlu0 %3465
    %3468 = vset.pattern.permute.xlu0 2
    %3469 = vperm.xlu0 %3468, %v560
    %v3470 = vpop.permute.xlu0 %3469
    %3472 = vset.pattern.permute.xlu0 2
    %3473 = vperm.xlu0 %3472, %v561
    %v3474 = vpop.permute.xlu0 %3473
    %3476 = vset.pattern.permute.xlu0 2
    %3477 = vperm.xlu0 %3476, %v562
    %v3478 = vpop.permute.xlu0 %3477
    %3480 = vset.pattern.permute.xlu0 2
    %3481 = vperm.xlu0 %3480, %v563
    %v3482 = vpop.permute.xlu0 %3481
    %3484 = vset.pattern.permute.xlu0 2
    %3485 = vperm.xlu0 %3484, %v564
    %v3486 = vpop.permute.xlu0 %3485
    %3488 = vset.pattern.permute.xlu0 2
    %3489 = vperm.xlu0 %3488, %v565
    %v3490 = vpop.permute.xlu0 %3489
    %3492 = vset.pattern.permute.xlu0 2
    %3493 = vperm.xlu0 %3492, %v566
    %v3494 = vpop.permute.xlu0 %3493
    %3496 = vset.pattern.permute.xlu0 2
    %3497 = vperm.xlu0 %3496, %v567
    %v3498 = vpop.permute.xlu0 %3497
    %3500 = vset.pattern.permute.xlu0 2
    %3501 = vperm.xlu0 %3500, %v568
    %v3502 = vpop.permute.xlu0 %3501
    %3504 = vset.pattern.permute.xlu0 2
    %3505 = vperm.xlu0 %3504, %v569
    %v3506 = vpop.permute.xlu0 %3505
    %3508 = vset.pattern.permute.xlu0 2
    %3509 = vperm.xlu0 %3508, %v570
    %v3510 = vpop.permute.xlu0 %3509
    %3512 = vset.pattern.permute.xlu0 2
    %3513 = vperm.xlu0 %3512, %v571
    %v3514 = vpop.permute.xlu0 %3513
    %3516 = vset.pattern.permute.xlu0 2
    %3517 = vperm.xlu0 %3516, %v572
    %v3518 = vpop.permute.xlu0 %3517
    %3520 = vset.pattern.permute.xlu0 2
    %3521 = vperm.xlu0 %3520, %v573
    %v3522 = vpop.permute.xlu0 %3521
    %3524 = vset.pattern.permute.xlu0 2
    %3525 = vperm.xlu0 %3524, %v574
    %v3526 = vpop.permute.xlu0 %3525
    %3528 = vset.pattern.permute.xlu0 2
    %3529 = vperm.xlu0 %3528, %v575
    %v3530 = vpop.permute.xlu0 %3529
    %3532 = vset.pattern.permute.xlu0 2
    %3533 = vperm.xlu0 %3532, %v576
    %v3534 = vpop.permute.xlu0 %3533
    %3536 = vset.pattern.permute.xlu0 2
    %3537 = vperm.xlu0 %3536, %v577
    %v3538 = vpop.permute.xlu0 %3537
    %3540 = vset.pattern.permute.xlu0 2
    %3541 = vperm.xlu0 %3540, %v578
    %v3542 = vpop.permute.xlu0 %3541
    %3544 = vset.pattern.permute.xlu0 2
    %3545 = vperm.xlu0 %3544, %v579
    %v3546 = vpop.permute.xlu0 %3545
    %3548 = vset.pattern.permute.xlu0 2
    %3549 = vperm.xlu0 %3548, %v580
    %v3550 = vpop.permute.xlu0 %3549
    %3552 = vset.pattern.permute.xlu0 2
    %3553 = vperm.xlu0 %3552, %v581
    %v3554 = vpop.permute.xlu0 %3553
    %3556 = vset.pattern.permute.xlu0 2
    %3557 = vperm.xlu0 %3556, %v582
    %v3558 = vpop.permute.xlu0 %3557
    %3560 = vset.pattern.permute.xlu0 2
    %3561 = vperm.xlu0 %3560, %v583
    %v3562 = vpop.permute.xlu0 %3561
    %v3564 = vadd.f32 %v3404, %v3438
    %v3565 = vadd.f32 %v3405, %v3442
    %v3566 = vadd.f32 %v3406, %v3446
    %v3567 = vadd.f32 %v3407, %v3450
    %v3568 = vadd.f32 %v3408, %v3454
    %v3569 = vadd.f32 %v3409, %v3458
    %v3570 = vadd.f32 %v3410, %v3462
    %v3571 = vadd.f32 %v3411, %v3466
    %v3572 = vadd.f32 %v3412, %v3470
    %v3573 = vadd.f32 %v3413, %v3474
    %v3574 = vadd.f32 %v3414, %v3478
    %v3575 = vadd.f32 %v3415, %v3482
    %v3576 = vadd.f32 %v3416, %v3486
    %v3577 = vadd.f32 %v3417, %v3490
    %v3578 = vadd.f32 %v3418, %v3494
    %v3579 = vadd.f32 %v3419, %v3498
    %v3580 = vadd.f32 %v3420, %v3502
    %v3581 = vadd.f32 %v3421, %v3506
    %v3582 = vadd.f32 %v3422, %v3510
    %v3583 = vadd.f32 %v3423, %v3514
    %v3584 = vadd.f32 %v3424, %v3518
    %v3585 = vadd.f32 %v3425, %v3522
    %v3586 = vadd.f32 %v3426, %v3526
    %v3587 = vadd.f32 %v3427, %v3530
    %v3588 = vadd.f32 %v3428, %v3534
    %v3589 = vadd.f32 %v3429, %v3538
    %v3590 = vadd.f32 %v3430, %v3542
    %v3591 = vadd.f32 %v3431, %v3546
    %v3592 = vadd.f32 %v3432, %v3550
    %v3593 = vadd.f32 %v3433, %v3554
    %v3594 = vadd.f32 %v3434, %v3558
    %v3595 = vadd.f32 %v3435, %v3562
    %v3598 = vunpack.c.l.s4 1983009808
    %v3599 = vunpack.c.0.s8 %v3598
    %v3600 = vlaneseq
    %v3601 = vshrl.u32 %v3600, 7
    %v3602 = vsub.s32 %v3599, %v3601
    %v3603 = vrot.slane %v423, %v3602
    %v3604 = vcombine.high %v3603, %v3603
    %v3606 = vsel %vm1835, %v3116, 0
    %v3609 = vsel %vm1835, %v3117, 0
    %v3612 = vsel %vm1835, %v3118, 0
    %v3615 = vsel %vm1835, %v3119, 0
    %v3618 = vsel %vm1835, %v3120, 0
    %v3621 = vsel %vm1835, %v3121, 0
    %v3624 = vsel %vm1835, %v3122, 0
    %v3627 = vsel %vm1835, %v3123, 0
    %v3630 = vsel %vm1835, %v3124, 0
    %v3633 = vsel %vm1835, %v3125, 0
    %v3636 = vsel %vm1835, %v3126, 0
    %v3639 = vsel %vm1835, %v3127, 0
    %v3642 = vsel %vm1835, %v3128, 0
    %v3645 = vsel %vm1835, %v3129, 0
    %v3648 = vsel %vm1835, %v3130, 0
    %v3651 = vsel %vm1835, %v3131, 0
    %v3654 = vsel %vm1835, %v3132, 0
    %v3657 = vsel %vm1835, %v3133, 0
    %v3660 = vsel %vm1835, %v3134, 0
    %v3663 = vsel %vm1835, %v3135, 0
    %v3666 = vsel %vm1835, %v3136, 0
    %v3669 = vsel %vm1835, %v3137, 0
    %v3672 = vsel %vm1835, %v3138, 0
    %v3675 = vsel %vm1835, %v3139, 0
    %v3678 = vsel %vm1835, %v3140, 0
    %v3681 = vsel %vm1835, %v3141, 0
    %v3684 = vsel %vm1835, %v3142, 0
    %v3687 = vsel %vm1835, %v3143, 0
    %v3690 = vsel %vm1835, %v3144, 0
    %v3693 = vsel %vm1835, %v3145, 0
    %v3696 = vsel %vm1835, %v3146, 0
    %v3699 = vsel %vm1835, %v3147, 0
    %vm3701 = vcmask 1041408
    %v3702 = vsel %vm3701, %v3603, 0
    %v3704 = vsel %vm3701, %v3604, 0
    %3706 = vmatprep.subr.mxu0 %v3704
    %3707 = vmatpush1.msra.mxu0 %v3702
    %3708 = vmatprep.subr.mxu0 0.0
    %3709 = vmatpush1.msra.mxu0 0.0
    %3710 = vmatprep.subr.mxu0 0.0
    %3711 = vmatpush1.msra.mxu0 0.0
    %3712 = vmatprep.subr.mxu0 0.0
    %3713 = vmatpush1.msra.mxu0 0.0
    %3714 = vmatprep.subr.mxu0 0.0
    %3715 = vmatpush1.msra.mxu0 0.0
    %3716 = vmatprep.subr.mxu0 0.0
    %3717 = vmatpush1.msra.mxu0 0.0
    %3718 = vmatprep.subr.mxu0 0.0
    %3719 = vmatpush1.msra.mxu0 0.0
    %3720 = vmatprep.subr.mxu0 0.0
    %3721 = vmatpush1.msra.mxu0 0.0
    %3722 = vmatprep.subr.mxu0 0.0
    %3723 = vmatpush1.msra.mxu0 0.0
    %3724 = vmatprep.subr.mxu0 0.0
    %3725 = vmatpush1.msra.mxu0 0.0
    %3726 = vmatprep.subr.mxu0 0.0
    %3727 = vmatpush1.msra.mxu0 0.0
    %3728 = vmatprep.subr.mxu0 0.0
    %3729 = vmatpush1.msra.mxu0 0.0
    %3730 = vmatprep.subr.mxu0 0.0
    %3731 = vmatpush1.msra.mxu0 0.0
    %3732 = vmatprep.subr.mxu0 0.0
    %3733 = vmatpush1.msra.mxu0 0.0
    %3734 = vmatprep.subr.mxu0 0.0
    %3735 = vmatpush1.msra.mxu0 0.0
    %3736 = vmatprep.subr.mxu0 0.0
    %3737 = vmatpush1.msra.mxu0 0.0
    %3738 = vmatprep.subr.mxu0 0.0
    %3739 = vmatpush1.msra.mxu0 0.0
    %3740 = vmatprep.subr.mxu0 0.0
    %3741 = vmatpush1.msra.mxu0 0.0
    %3742 = vmatprep.subr.mxu0 0.0
    %3743 = vmatpush1.msra.mxu0 0.0
    %3744 = vmatprep.subr.mxu0 0.0
    %3745 = vmatpush1.msra.mxu0 0.0
    %3746 = vmatprep.subr.mxu0 0.0
    %3747 = vmatpush1.msra.mxu0 0.0
    %3748 = vmatprep.subr.mxu0 0.0
    %3749 = vmatpush1.msra.mxu0 0.0
    %3750 = vmatprep.subr.mxu0 0.0
    %3751 = vmatpush1.msra.mxu0 0.0
    %3752 = vmatprep.subr.mxu0 0.0
    %3753 = vmatpush1.msra.mxu0 0.0
    %3754 = vmatprep.subr.mxu0 0.0
    %3755 = vmatpush1.msra.mxu0 0.0
    %3756 = vmatprep.subr.mxu0 0.0
    %3757 = vmatpush1.msra.mxu0 0.0
    %3758 = vmatprep.subr.mxu0 0.0
    %3759 = vmatpush1.msra.mxu0 0.0
    %3760 = vmatprep.subr.mxu0 0.0
    %3761 = vmatpush1.msra.mxu0 0.0
    %3762 = vmatprep.subr.mxu0 0.0
    %3763 = vmatpush1.msra.mxu0 0.0
    %3764 = vmatprep.subr.mxu0 0.0
    %3765 = vmatpush1.msra.mxu0 0.0
    %3766 = vmatprep.subr.mxu0 0.0
    %3767 = vmatpush1.msra.mxu0 0.0
    %3768 = vmatprep.subr.mxu0 0.0
    %3769 = vmatpush1.msra.mxu0 0.0
    %3770 = vmatprep.mubr.f32.mxu0 0.0
    %3771 = vmatmul.mubr.f32.gmra.mrb[0].mxu0 %v3606
    %v3772 = vpop.f32.mrb[0].mxu0
    %v3773 = vadd.f32 0.0, %v3772
    %v3774 = vpop.f32.mrb[0].mxu0
    %v3775 = vadd.f32 0.0, %v3774
    %3776 = vmatprep.mubr.f32.mxu0 0.0
    %3777 = vmatmul.mubr.f32.gmra.mrb[0].mxu0 %v3609
    %v3778 = vpop.f32.mrb[0].mxu0
    %v3779 = vadd.f32 0.0, %v3778
    %v3780 = vpop.f32.mrb[0].mxu0
    %v3781 = vadd.f32 0.0, %v3780
    %3782 = vmatprep.mubr.f32.mxu0 0.0
    %3783 = vmatmul.mubr.f32.gmra.mrb[0].mxu0 %v3612
    %v3784 = vpop.f32.mrb[0].mxu0
    %v3785 = vadd.f32 0.0, %v3784
    %v3786 = vpop.f32.mrb[0].mxu0
    %v3787 = vadd.f32 0.0, %v3786
    %3788 = vmatprep.mubr.f32.mxu0 0.0
    %3789 = vmatmul.mubr.f32.gmra.mrb[0].mxu0 %v3615
    %v3790 = vpop.f32.mrb[0].mxu0
    %v3791 = vadd.f32 0.0, %v3790
    %v3792 = vpop.f32.mrb[0].mxu0
    %v3793 = vadd.f32 0.0, %v3792
    %3794 = vmatprep.mubr.f32.mxu0 0.0
    %3795 = vmatmul.mubr.f32.gmra.mrb[0].mxu0 %v3618
    %v3796 = vpop.f32.mrb[0].mxu0
    %v3797 = vadd.f32 0.0, %v3796
    %v3798 = vpop.f32.mrb[0].mxu0
    %v3799 = vadd.f32 0.0, %v3798
    %3800 = vmatprep.mubr.f32.mxu0 0.0
    %3801 = vmatmul.mubr.f32.gmra.mrb[0].mxu0 %v3621
    %v3802 = vpop.f32.mrb[0].mxu0
    %v3803 = vadd.f32 0.0, %v3802
    %v3804 = vpop.f32.mrb[0].mxu0
    %v3805 = vadd.f32 0.0, %v3804
    %3806 = vmatprep.mubr.f32.mxu0 0.0
    %3807 = vmatmul.mubr.f32.gmra.mrb[0].mxu0 %v3624
    %v3808 = vpop.f32.mrb[0].mxu0
    %v3809 = vadd.f32 0.0, %v3808
    %v3810 = vpop.f32.mrb[0].mxu0
    %v3811 = vadd.f32 0.0, %v3810
    %3812 = vmatprep.mubr.f32.mxu0 0.0
    %3813 = vmatmul.mubr.f32.gmra.mrb[0].mxu0 %v3627
    %v3814 = vpop.f32.mrb[0].mxu0
    %v3815 = vadd.f32 0.0, %v3814
    %v3816 = vpop.f32.mrb[0].mxu0
    %v3817 = vadd.f32 0.0, %v3816
    %3818 = vmatprep.mubr.f32.mxu0 0.0
    %3819 = vmatmul.mubr.f32.gmra.mrb[0].mxu0 %v3630
    %v3820 = vpop.f32.mrb[0].mxu0
    %v3821 = vadd.f32 0.0, %v3820
    %v3822 = vpop.f32.mrb[0].mxu0
    %v3823 = vadd.f32 0.0, %v3822
    %3824 = vmatprep.mubr.f32.mxu0 0.0
    %3825 = vmatmul.mubr.f32.gmra.mrb[0].mxu0 %v3633
    %v3826 = vpop.f32.mrb[0].mxu0
    %v3827 = vadd.f32 0.0, %v3826
    %v3828 = vpop.f32.mrb[0].mxu0
    %v3829 = vadd.f32 0.0, %v3828
    %3830 = vmatprep.mubr.f32.mxu0 0.0
    %3831 = vmatmul.mubr.f32.gmra.mrb[0].mxu0 %v3636
    %v3832 = vpop.f32.mrb[0].mxu0
    %v3833 = vadd.f32 0.0, %v3832
    %v3834 = vpop.f32.mrb[0].mxu0
    %v3835 = vadd.f32 0.0, %v3834
    %3836 = vmatprep.mubr.f32.mxu0 0.0
    %3837 = vmatmul.mubr.f32.gmra.mrb[0].mxu0 %v3639
    %v3838 = vpop.f32.mrb[0].mxu0
    %v3839 = vadd.f32 0.0, %v3838
    %v3840 = vpop.f32.mrb[0].mxu0
    %v3841 = vadd.f32 0.0, %v3840
    %3842 = vmatprep.mubr.f32.mxu0 0.0
    %3843 = vmatmul.mubr.f32.gmra.mrb[0].mxu0 %v3642
    %v3844 = vpop.f32.mrb[0].mxu0
    %v3845 = vadd.f32 0.0, %v3844
    %v3846 = vpop.f32.mrb[0].mxu0
    %v3847 = vadd.f32 0.0, %v3846
    %3848 = vmatprep.mubr.f32.mxu0 0.0
    %3849 = vmatmul.mubr.f32.gmra.mrb[0].mxu0 %v3645
    %v3850 = vpop.f32.mrb[0].mxu0
    %v3851 = vadd.f32 0.0, %v3850
    %v3852 = vpop.f32.mrb[0].mxu0
    %v3853 = vadd.f32 0.0, %v3852
    %3854 = vmatprep.mubr.f32.mxu0 0.0
    %3855 = vmatmul.mubr.f32.gmra.mrb[0].mxu0 %v3648
    %v3856 = vpop.f32.mrb[0].mxu0
    %v3857 = vadd.f32 0.0, %v3856
    %v3858 = vpop.f32.mrb[0].mxu0
    %v3859 = vadd.f32 0.0, %v3858
    %3860 = vmatprep.mubr.f32.mxu0 0.0
    %3861 = vmatmul.mubr.f32.gmra.mrb[0].mxu0 %v3651
    %v3862 = vpop.f32.mrb[0].mxu0
    %v3863 = vadd.f32 0.0, %v3862
    %v3864 = vpop.f32.mrb[0].mxu0
    %v3865 = vadd.f32 0.0, %v3864
    %3866 = vmatprep.mubr.f32.mxu0 0.0
    %3867 = vmatmul.mubr.f32.gmra.mrb[0].mxu0 %v3654
    %v3868 = vpop.f32.mrb[0].mxu0
    %v3869 = vadd.f32 0.0, %v3868
    %v3870 = vpop.f32.mrb[0].mxu0
    %v3871 = vadd.f32 0.0, %v3870
    %3872 = vmatprep.mubr.f32.mxu0 0.0
    %3873 = vmatmul.mubr.f32.gmra.mrb[0].mxu0 %v3657
    %v3874 = vpop.f32.mrb[0].mxu0
    %v3875 = vadd.f32 0.0, %v3874
    %v3876 = vpop.f32.mrb[0].mxu0
    %v3877 = vadd.f32 0.0, %v3876
    %3878 = vmatprep.mubr.f32.mxu0 0.0
    %3879 = vmatmul.mubr.f32.gmra.mrb[0].mxu0 %v3660
    %v3880 = vpop.f32.mrb[0].mxu0
    %v3881 = vadd.f32 0.0, %v3880
    %v3882 = vpop.f32.mrb[0].mxu0
    %v3883 = vadd.f32 0.0, %v3882
    %3884 = vmatprep.mubr.f32.mxu0 0.0
    %3885 = vmatmul.mubr.f32.gmra.mrb[0].mxu0 %v3663
    %v3886 = vpop.f32.mrb[0].mxu0
    %v3887 = vadd.f32 0.0, %v3886
    %v3888 = vpop.f32.mrb[0].mxu0
    %v3889 = vadd.f32 0.0, %v3888
    %3890 = vmatprep.mubr.f32.mxu0 0.0
    %3891 = vmatmul.mubr.f32.gmra.mrb[0].mxu0 %v3666
    %v3892 = vpop.f32.mrb[0].mxu0
    %v3893 = vadd.f32 0.0, %v3892
    %v3894 = vpop.f32.mrb[0].mxu0
    %v3895 = vadd.f32 0.0, %v3894
    %3896 = vmatprep.mubr.f32.mxu0 0.0
    %3897 = vmatmul.mubr.f32.gmra.mrb[0].mxu0 %v3669
    %v3898 = vpop.f32.mrb[0].mxu0
    %v3899 = vadd.f32 0.0, %v3898
    %v3900 = vpop.f32.mrb[0].mxu0
    %v3901 = vadd.f32 0.0, %v3900
    %3902 = vmatprep.mubr.f32.mxu0 0.0
    %3903 = vmatmul.mubr.f32.gmra.mrb[0].mxu0 %v3672
    %v3904 = vpop.f32.mrb[0].mxu0
    %v3905 = vadd.f32 0.0, %v3904
    %v3906 = vpop.f32.mrb[0].mxu0
    %v3907 = vadd.f32 0.0, %v3906
    %3908 = vmatprep.mubr.f32.mxu0 0.0
    %3909 = vmatmul.mubr.f32.gmra.mrb[0].mxu0 %v3675
    %v3910 = vpop.f32.mrb[0].mxu0
    %v3911 = vadd.f32 0.0, %v3910
    %v3912 = vpop.f32.mrb[0].mxu0
    %v3913 = vadd.f32 0.0, %v3912
    %3914 = vmatprep.mubr.f32.mxu0 0.0
    %3915 = vmatmul.mubr.f32.gmra.mrb[0].mxu0 %v3678
    %v3916 = vpop.f32.mrb[0].mxu0
    %v3917 = vadd.f32 0.0, %v3916
    %v3918 = vpop.f32.mrb[0].mxu0
    %v3919 = vadd.f32 0.0, %v3918
    %3920 = vmatprep.mubr.f32.mxu0 0.0
    %3921 = vmatmul.mubr.f32.gmra.mrb[0].mxu0 %v3681
    %v3922 = vpop.f32.mrb[0].mxu0
    %v3923 = vadd.f32 0.0, %v3922
    %v3924 = vpop.f32.mrb[0].mxu0
    %v3925 = vadd.f32 0.0, %v3924
    %3926 = vmatprep.mubr.f32.mxu0 0.0
    %3927 = vmatmul.mubr.f32.gmra.mrb[0].mxu0 %v3684
    %v3928 = vpop.f32.mrb[0].mxu0
    %v3929 = vadd.f32 0.0, %v3928
    %v3930 = vpop.f32.mrb[0].mxu0
    %v3931 = vadd.f32 0.0, %v3930
    %3932 = vmatprep.mubr.f32.mxu0 0.0
    %3933 = vmatmul.mubr.f32.gmra.mrb[0].mxu0 %v3687
    %v3934 = vpop.f32.mrb[0].mxu0
    %v3935 = vadd.f32 0.0, %v3934
    %v3936 = vpop.f32.mrb[0].mxu0
    %v3937 = vadd.f32 0.0, %v3936
    %3938 = vmatprep.mubr.f32.mxu0 0.0
    %3939 = vmatmul.mubr.f32.gmra.mrb[0].mxu0 %v3690
    %v3940 = vpop.f32.mrb[0].mxu0
    %v3941 = vadd.f32 0.0, %v3940
    %v3942 = vpop.f32.mrb[0].mxu0
    %v3943 = vadd.f32 0.0, %v3942
    %3944 = vmatprep.mubr.f32.mxu0 0.0
    %3945 = vmatmul.mubr.f32.gmra.mrb[0].mxu0 %v3693
    %v3946 = vpop.f32.mrb[0].mxu0
    %v3947 = vadd.f32 0.0, %v3946
    %v3948 = vpop.f32.mrb[0].mxu0
    %v3949 = vadd.f32 0.0, %v3948
    %3950 = vmatprep.mubr.f32.mxu0 0.0
    %3951 = vmatmul.mubr.f32.gmra.mrb[0].mxu0 %v3696
    %v3952 = vpop.f32.mrb[0].mxu0
    %v3953 = vadd.f32 0.0, %v3952
    %v3954 = vpop.f32.mrb[0].mxu0
    %v3955 = vadd.f32 0.0, %v3954
    %3956 = vmatprep.mubr.f32.mxu0 0.0
    %3957 = vmatmul.mubr.f32.gmra.mrb[0].mxu0 %v3699
    %v3958 = vpop.f32.mrb[0].mxu0
    %v3959 = vadd.f32 0.0, %v3958
    %v3960 = vpop.f32.mrb[0].mxu0
    %v3961 = vadd.f32 0.0, %v3960
    %3962 = vdwg.mxu0
    %3995 = vrot.lane.b32.xlu0 %v3564, 123
    %v3996 = vpop.permute.xlu0 %3995
    %3997 = vrot.lane.b32.xlu0 %v3565, 123
    %v3998 = vpop.permute.xlu0 %3997
    %3999 = vrot.lane.b32.xlu0 %v3566, 123
    %v4000 = vpop.permute.xlu0 %3999
    %4001 = vrot.lane.b32.xlu0 %v3567, 123
    %v4002 = vpop.permute.xlu0 %4001
    %4003 = vrot.lane.b32.xlu0 %v3568, 123
    %v4004 = vpop.permute.xlu0 %4003
    %4005 = vrot.lane.b32.xlu0 %v3569, 123
    %v4006 = vpop.permute.xlu0 %4005
    %4007 = vrot.lane.b32.xlu0 %v3570, 123
    %v4008 = vpop.permute.xlu0 %4007
    %4009 = vrot.lane.b32.xlu0 %v3571, 123
    %v4010 = vpop.permute.xlu0 %4009
    %4011 = vrot.lane.b32.xlu0 %v3572, 123
    %v4012 = vpop.permute.xlu0 %4011
    %4013 = vrot.lane.b32.xlu0 %v3573, 123
    %v4014 = vpop.permute.xlu0 %4013
    %4015 = vrot.lane.b32.xlu0 %v3574, 123
    %v4016 = vpop.permute.xlu0 %4015
    %4017 = vrot.lane.b32.xlu0 %v3575, 123
    %v4018 = vpop.permute.xlu0 %4017
    %4019 = vrot.lane.b32.xlu0 %v3576, 123
    %v4020 = vpop.permute.xlu0 %4019
    %4021 = vrot.lane.b32.xlu0 %v3577, 123
    %v4022 = vpop.permute.xlu0 %4021
    %4023 = vrot.lane.b32.xlu0 %v3578, 123
    %v4024 = vpop.permute.xlu0 %4023
    %4025 = vrot.lane.b32.xlu0 %v3579, 123
    %v4026 = vpop.permute.xlu0 %4025
    %4027 = vrot.lane.b32.xlu0 %v3580, 123
    %v4028 = vpop.permute.xlu0 %4027
    %4029 = vrot.lane.b32.xlu0 %v3581, 123
    %v4030 = vpop.permute.xlu0 %4029
    %4031 = vrot.lane.b32.xlu0 %v3582, 123
    %v4032 = vpop.permute.xlu0 %4031
    %4033 = vrot.lane.b32.xlu0 %v3583, 123
    %v4034 = vpop.permute.xlu0 %4033
    %4035 = vrot.lane.b32.xlu0 %v3584, 123
    %v4036 = vpop.permute.xlu0 %4035
    %4037 = vrot.lane.b32.xlu0 %v3585, 123
    %v4038 = vpop.permute.xlu0 %4037
    %4039 = vrot.lane.b32.xlu0 %v3586, 123
    %v4040 = vpop.permute.xlu0 %4039
    %4041 = vrot.lane.b32.xlu0 %v3587, 123
    %v4042 = vpop.permute.xlu0 %4041
    %4043 = vrot.lane.b32.xlu0 %v3588, 123
    %v4044 = vpop.permute.xlu0 %4043
    %4045 = vrot.lane.b32.xlu0 %v3589, 123
    %v4046 = vpop.permute.xlu0 %4045
    %4047 = vrot.lane.b32.xlu0 %v3590, 123
    %v4048 = vpop.permute.xlu0 %4047
    %4049 = vrot.lane.b32.xlu0 %v3591, 123
    %v4050 = vpop.permute.xlu0 %4049
    %4051 = vrot.lane.b32.xlu0 %v3592, 123
    %v4052 = vpop.permute.xlu0 %4051
    %4053 = vrot.lane.b32.xlu0 %v3593, 123
    %v4054 = vpop.permute.xlu0 %4053
    %4055 = vrot.lane.b32.xlu0 %v3594, 123
    %v4056 = vpop.permute.xlu0 %4055
    %4057 = vrot.lane.b32.xlu0 %v3595, 123
    %v4058 = vpop.permute.xlu0 %4057
    %v4059 = vsel %vm1835, %v3996, 0
    %v4061 = vsel %vm1835, %v3998, 0
    %v4063 = vsel %vm1835, %v4000, 0
    %v4065 = vsel %vm1835, %v4002, 0
    %v4067 = vsel %vm1835, %v4004, 0
    %v4069 = vsel %vm1835, %v4006, 0
    %v4071 = vsel %vm1835, %v4008, 0
    %v4073 = vsel %vm1835, %v4010, 0
    %v4075 = vsel %vm1835, %v4012, 0
    %v4077 = vsel %vm1835, %v4014, 0
    %v4079 = vsel %vm1835, %v4016, 0
    %v4081 = vsel %vm1835, %v4018, 0
    %v4083 = vsel %vm1835, %v4020, 0
    %v4085 = vsel %vm1835, %v4022, 0
    %v4087 = vsel %vm1835, %v4024, 0
    %v4089 = vsel %vm1835, %v4026, 0
    %v4091 = vsel %vm1835, %v4028, 0
    %v4093 = vsel %vm1835, %v4030, 0
    %v4095 = vsel %vm1835, %v4032, 0
    %v4097 = vsel %vm1835, %v4034, 0
    %v4099 = vsel %vm1835, %v4036, 0
    %v4101 = vsel %vm1835, %v4038, 0
    %v4103 = vsel %vm1835, %v4040, 0
    %v4105 = vsel %vm1835, %v4042, 0
    %v4107 = vsel %vm1835, %v4044, 0
    %v4109 = vsel %vm1835, %v4046, 0
    %v4111 = vsel %vm1835, %v4048, 0
    %v4113 = vsel %vm1835, %v4050, 0
    %v4115 = vsel %vm1835, %v4052, 0
    %v4117 = vsel %vm1835, %v4054, 0
    %v4119 = vsel %vm1835, %v4056, 0
    %v4121 = vsel %vm1835, %v4058, 0
    %4123 = vmatprep.subr.mxu0 %v3704
    %4124 = vmatpush1.msra.mxu0 %v3702
    %4125 = vmatprep.subr.mxu0 0.0
    %4126 = vmatpush1.msra.mxu0 0.0
    %4127 = vmatprep.subr.mxu0 0.0
    %4128 = vmatpush1.msra.mxu0 0.0
    %4129 = vmatprep.subr.mxu0 0.0
    %4130 = vmatpush1.msra.mxu0 0.0
    %4131 = vmatprep.subr.mxu0 0.0
    %4132 = vmatpush1.msra.mxu0 0.0
    %4133 = vmatprep.subr.mxu0 0.0
    %4134 = vmatpush1.msra.mxu0 0.0
    %4135 = vmatprep.subr.mxu0 0.0
    %4136 = vmatpush1.msra.mxu0 0.0
    %4137 = vmatprep.subr.mxu0 0.0
    %4138 = vmatpush1.msra.mxu0 0.0
    %4139 = vmatprep.subr.mxu0 0.0
    %4140 = vmatpush1.msra.mxu0 0.0
    %4141 = vmatprep.subr.mxu0 0.0
    %4142 = vmatpush1.msra.mxu0 0.0
    %4143 = vmatprep.subr.mxu0 0.0
    %4144 = vmatpush1.msra.mxu0 0.0
    %4145 = vmatprep.subr.mxu0 0.0
    %4146 = vmatpush1.msra.mxu0 0.0
    %4147 = vmatprep.subr.mxu0 0.0
    %4148 = vmatpush1.msra.mxu0 0.0
    %4149 = vmatprep.subr.mxu0 0.0
    %4150 = vmatpush1.msra.mxu0 0.0
    %4151 = vmatprep.subr.mxu0 0.0
    %4152 = vmatpush1.msra.mxu0 0.0
    %4153 = vmatprep.subr.mxu0 0.0
    %4154 = vmatpush1.msra.mxu0 0.0
    %4155 = vmatprep.subr.mxu0 0.0
    %4156 = vmatpush1.msra.mxu0 0.0
    %4157 = vmatprep.subr.mxu0 0.0
    %4158 = vmatpush1.msra.mxu0 0.0
    %4159 = vmatprep.subr.mxu0 0.0
    %4160 = vmatpush1.msra.mxu0 0.0
    %4161 = vmatprep.subr.mxu0 0.0
    %4162 = vmatpush1.msra.mxu0 0.0
    %4163 = vmatprep.subr.mxu0 0.0
    %4164 = vmatpush1.msra.mxu0 0.0
    %4165 = vmatprep.subr.mxu0 0.0
    %4166 = vmatpush1.msra.mxu0 0.0
    %4167 = vmatprep.subr.mxu0 0.0
    %4168 = vmatpush1.msra.mxu0 0.0
    %4169 = vmatprep.subr.mxu0 0.0
    %4170 = vmatpush1.msra.mxu0 0.0
    %4171 = vmatprep.subr.mxu0 0.0
    %4172 = vmatpush1.msra.mxu0 0.0
    %4173 = vmatprep.subr.mxu0 0.0
    %4174 = vmatpush1.msra.mxu0 0.0
    %4175 = vmatprep.subr.mxu0 0.0
    %4176 = vmatpush1.msra.mxu0 0.0
    %4177 = vmatprep.subr.mxu0 0.0
    %4178 = vmatpush1.msra.mxu0 0.0
    %4179 = vmatprep.subr.mxu0 0.0
    %4180 = vmatpush1.msra.mxu0 0.0
    %4181 = vmatprep.subr.mxu0 0.0
    %4182 = vmatpush1.msra.mxu0 0.0
    %4183 = vmatprep.subr.mxu0 0.0
    %4184 = vmatpush1.msra.mxu0 0.0
    %4185 = vmatprep.subr.mxu0 0.0
    %4186 = vmatpush1.msra.mxu0 0.0
    %4187 = vmatprep.mubr.f32.mxu0 0.0
    %4188 = vmatmul.mubr.f32.gmra.mrb[0].mxu0 %v4059
    %v4189 = vpop.f32.mrb[0].mxu0
    %v4190 = vadd.f32 0.0, %v4189
    %v4191 = vpop.f32.mrb[0].mxu0
    %v4192 = vadd.f32 0.0, %v4191
    %4193 = vmatprep.mubr.f32.mxu0 0.0
    %4194 = vmatmul.mubr.f32.gmra.mrb[0].mxu0 %v4061
    %v4195 = vpop.f32.mrb[0].mxu0
    %v4196 = vadd.f32 0.0, %v4195
    %v4197 = vpop.f32.mrb[0].mxu0
    %v4198 = vadd.f32 0.0, %v4197
    %4199 = vmatprep.mubr.f32.mxu0 0.0
    %4200 = vmatmul.mubr.f32.gmra.mrb[0].mxu0 %v4063
    %v4201 = vpop.f32.mrb[0].mxu0
    %v4202 = vadd.f32 0.0, %v4201
    %v4203 = vpop.f32.mrb[0].mxu0
    %v4204 = vadd.f32 0.0, %v4203
    %4205 = vmatprep.mubr.f32.mxu0 0.0
    %4206 = vmatmul.mubr.f32.gmra.mrb[0].mxu0 %v4065
    %v4207 = vpop.f32.mrb[0].mxu0
    %v4208 = vadd.f32 0.0, %v4207
    %v4209 = vpop.f32.mrb[0].mxu0
    %v4210 = vadd.f32 0.0, %v4209
    %4211 = vmatprep.mubr.f32.mxu0 0.0
    %4212 = vmatmul.mubr.f32.gmra.mrb[0].mxu0 %v4067
    %v4213 = vpop.f32.mrb[0].mxu0
    %v4214 = vadd.f32 0.0, %v4213
    %v4215 = vpop.f32.mrb[0].mxu0
    %v4216 = vadd.f32 0.0, %v4215
    %4217 = vmatprep.mubr.f32.mxu0 0.0
    %4218 = vmatmul.mubr.f32.gmra.mrb[0].mxu0 %v4069
    %v4219 = vpop.f32.mrb[0].mxu0
    %v4220 = vadd.f32 0.0, %v4219
    %v4221 = vpop.f32.mrb[0].mxu0
    %v4222 = vadd.f32 0.0, %v4221
    %4223 = vmatprep.mubr.f32.mxu0 0.0
    %4224 = vmatmul.mubr.f32.gmra.mrb[0].mxu0 %v4071
    %v4225 = vpop.f32.mrb[0].mxu0
    %v4226 = vadd.f32 0.0, %v4225
    %v4227 = vpop.f32.mrb[0].mxu0
    %v4228 = vadd.f32 0.0, %v4227
    %4229 = vmatprep.mubr.f32.mxu0 0.0
    %4230 = vmatmul.mubr.f32.gmra.mrb[0].mxu0 %v4073
    %v4231 = vpop.f32.mrb[0].mxu0
    %v4232 = vadd.f32 0.0, %v4231
    %v4233 = vpop.f32.mrb[0].mxu0
    %v4234 = vadd.f32 0.0, %v4233
    %4235 = vmatprep.mubr.f32.mxu0 0.0
    %4236 = vmatmul.mubr.f32.gmra.mrb[0].mxu0 %v4075
    %v4237 = vpop.f32.mrb[0].mxu0
    %v4238 = vadd.f32 0.0, %v4237
    %v4239 = vpop.f32.mrb[0].mxu0
    %v4240 = vadd.f32 0.0, %v4239
    %4241 = vmatprep.mubr.f32.mxu0 0.0
    %4242 = vmatmul.mubr.f32.gmra.mrb[0].mxu0 %v4077
    %v4243 = vpop.f32.mrb[0].mxu0
    %v4244 = vadd.f32 0.0, %v4243
    %v4245 = vpop.f32.mrb[0].mxu0
    %v4246 = vadd.f32 0.0, %v4245
    %4247 = vmatprep.mubr.f32.mxu0 0.0
    %4248 = vmatmul.mubr.f32.gmra.mrb[0].mxu0 %v4079
    %v4249 = vpop.f32.mrb[0].mxu0
    %v4250 = vadd.f32 0.0, %v4249
    %v4251 = vpop.f32.mrb[0].mxu0
    %v4252 = vadd.f32 0.0, %v4251
    %4253 = vmatprep.mubr.f32.mxu0 0.0
    %4254 = vmatmul.mubr.f32.gmra.mrb[0].mxu0 %v4081
    %v4255 = vpop.f32.mrb[0].mxu0
    %v4256 = vadd.f32 0.0, %v4255
    %v4257 = vpop.f32.mrb[0].mxu0
    %v4258 = vadd.f32 0.0, %v4257
    %4259 = vmatprep.mubr.f32.mxu0 0.0
    %4260 = vmatmul.mubr.f32.gmra.mrb[0].mxu0 %v4083
    %v4261 = vpop.f32.mrb[0].mxu0
    %v4262 = vadd.f32 0.0, %v4261
    %v4263 = vpop.f32.mrb[0].mxu0
    %v4264 = vadd.f32 0.0, %v4263
    %4265 = vmatprep.mubr.f32.mxu0 0.0
    %4266 = vmatmul.mubr.f32.gmra.mrb[0].mxu0 %v4085
    %v4267 = vpop.f32.mrb[0].mxu0
    %v4268 = vadd.f32 0.0, %v4267
    %v4269 = vpop.f32.mrb[0].mxu0
    %v4270 = vadd.f32 0.0, %v4269
    %4271 = vmatprep.mubr.f32.mxu0 0.0
    %4272 = vmatmul.mubr.f32.gmra.mrb[0].mxu0 %v4087
    %v4273 = vpop.f32.mrb[0].mxu0
    %v4274 = vadd.f32 0.0, %v4273
    %v4275 = vpop.f32.mrb[0].mxu0
    %v4276 = vadd.f32 0.0, %v4275
    %4277 = vmatprep.mubr.f32.mxu0 0.0
    %4278 = vmatmul.mubr.f32.gmra.mrb[0].mxu0 %v4089
    %v4279 = vpop.f32.mrb[0].mxu0
    %v4280 = vadd.f32 0.0, %v4279
    %v4281 = vpop.f32.mrb[0].mxu0
    %v4282 = vadd.f32 0.0, %v4281
    %4283 = vmatprep.mubr.f32.mxu0 0.0
    %4284 = vmatmul.mubr.f32.gmra.mrb[0].mxu0 %v4091
    %v4285 = vpop.f32.mrb[0].mxu0
    %v4286 = vadd.f32 0.0, %v4285
    %v4287 = vpop.f32.mrb[0].mxu0
    %v4288 = vadd.f32 0.0, %v4287
    %4289 = vmatprep.mubr.f32.mxu0 0.0
    %4290 = vmatmul.mubr.f32.gmra.mrb[0].mxu0 %v4093
    %v4291 = vpop.f32.mrb[0].mxu0
    %v4292 = vadd.f32 0.0, %v4291
    %v4293 = vpop.f32.mrb[0].mxu0
    %v4294 = vadd.f32 0.0, %v4293
    %4295 = vmatprep.mubr.f32.mxu0 0.0
    %4296 = vmatmul.mubr.f32.gmra.mrb[0].mxu0 %v4095
    %v4297 = vpop.f32.mrb[0].mxu0
    %v4298 = vadd.f32 0.0, %v4297
    %v4299 = vpop.f32.mrb[0].mxu0
    %v4300 = vadd.f32 0.0, %v4299
    %4301 = vmatprep.mubr.f32.mxu0 0.0
    %4302 = vmatmul.mubr.f32.gmra.mrb[0].mxu0 %v4097
    %v4303 = vpop.f32.mrb[0].mxu0
    %v4304 = vadd.f32 0.0, %v4303
    %v4305 = vpop.f32.mrb[0].mxu0
    %v4306 = vadd.f32 0.0, %v4305
    %4307 = vmatprep.mubr.f32.mxu0 0.0
    %4308 = vmatmul.mubr.f32.gmra.mrb[0].mxu0 %v4099
    %v4309 = vpop.f32.mrb[0].mxu0
    %v4310 = vadd.f32 0.0, %v4309
    %v4311 = vpop.f32.mrb[0].mxu0
    %v4312 = vadd.f32 0.0, %v4311
    %4313 = vmatprep.mubr.f32.mxu0 0.0
    %4314 = vmatmul.mubr.f32.gmra.mrb[0].mxu0 %v4101
    %v4315 = vpop.f32.mrb[0].mxu0
    %v4316 = vadd.f32 0.0, %v4315
    %v4317 = vpop.f32.mrb[0].mxu0
    %v4318 = vadd.f32 0.0, %v4317
    %4319 = vmatprep.mubr.f32.mxu0 0.0
    %4320 = vmatmul.mubr.f32.gmra.mrb[0].mxu0 %v4103
    %v4321 = vpop.f32.mrb[0].mxu0
    %v4322 = vadd.f32 0.0, %v4321
    %v4323 = vpop.f32.mrb[0].mxu0
    %v4324 = vadd.f32 0.0, %v4323
    %4325 = vmatprep.mubr.f32.mxu0 0.0
    %4326 = vmatmul.mubr.f32.gmra.mrb[0].mxu0 %v4105
    %v4327 = vpop.f32.mrb[0].mxu0
    %v4328 = vadd.f32 0.0, %v4327
    %v4329 = vpop.f32.mrb[0].mxu0
    %v4330 = vadd.f32 0.0, %v4329
    %4331 = vmatprep.mubr.f32.mxu0 0.0
    %4332 = vmatmul.mubr.f32.gmra.mrb[0].mxu0 %v4107
    %v4333 = vpop.f32.mrb[0].mxu0
    %v4334 = vadd.f32 0.0, %v4333
    %v4335 = vpop.f32.mrb[0].mxu0
    %v4336 = vadd.f32 0.0, %v4335
    %4337 = vmatprep.mubr.f32.mxu0 0.0
    %4338 = vmatmul.mubr.f32.gmra.mrb[0].mxu0 %v4109
    %v4339 = vpop.f32.mrb[0].mxu0
    %v4340 = vadd.f32 0.0, %v4339
    %v4341 = vpop.f32.mrb[0].mxu0
    %v4342 = vadd.f32 0.0, %v4341
    %4343 = vmatprep.mubr.f32.mxu0 0.0
    %4344 = vmatmul.mubr.f32.gmra.mrb[0].mxu0 %v4111
    %v4345 = vpop.f32.mrb[0].mxu0
    %v4346 = vadd.f32 0.0, %v4345
    %v4347 = vpop.f32.mrb[0].mxu0
    %v4348 = vadd.f32 0.0, %v4347
    %4349 = vmatprep.mubr.f32.mxu0 0.0
    %4350 = vmatmul.mubr.f32.gmra.mrb[0].mxu0 %v4113
    %v4351 = vpop.f32.mrb[0].mxu0
    %v4352 = vadd.f32 0.0, %v4351
    %v4353 = vpop.f32.mrb[0].mxu0
    %v4354 = vadd.f32 0.0, %v4353
    %4355 = vmatprep.mubr.f32.mxu0 0.0
    %4356 = vmatmul.mubr.f32.gmra.mrb[0].mxu0 %v4115
    %v4357 = vpop.f32.mrb[0].mxu0
    %v4358 = vadd.f32 0.0, %v4357
    %v4359 = vpop.f32.mrb[0].mxu0
    %v4360 = vadd.f32 0.0, %v4359
    %4361 = vmatprep.mubr.f32.mxu0 0.0
    %4362 = vmatmul.mubr.f32.gmra.mrb[0].mxu0 %v4117
    %v4363 = vpop.f32.mrb[0].mxu0
    %v4364 = vadd.f32 0.0, %v4363
    %v4365 = vpop.f32.mrb[0].mxu0
    %v4366 = vadd.f32 0.0, %v4365
    %4367 = vmatprep.mubr.f32.mxu0 0.0
    %4368 = vmatmul.mubr.f32.gmra.mrb[0].mxu0 %v4119
    %v4369 = vpop.f32.mrb[0].mxu0
    %v4370 = vadd.f32 0.0, %v4369
    %v4371 = vpop.f32.mrb[0].mxu0
    %v4372 = vadd.f32 0.0, %v4371
    %4373 = vmatprep.mubr.f32.mxu0 0.0
    %4374 = vmatmul.mubr.f32.gmra.mrb[0].mxu0 %v4121
    %v4375 = vpop.f32.mrb[0].mxu0
    %v4376 = vadd.f32 0.0, %v4375
    %v4377 = vpop.f32.mrb[0].mxu0
    %v4378 = vadd.f32 0.0, %v4377
    %4379 = vdwg.mxu0
    %v4380 = vmul.f32 %v811, %v3773
    %v4381 = vmul.f32 %v813, %v3775
    %v4382 = vmul.f32 %v817, %v3779
    %v4383 = vmul.f32 %v819, %v3781
    %v4384 = vmul.f32 %v823, %v3785
    %v4385 = vmul.f32 %v825, %v3787
    %v4386 = vmul.f32 %v829, %v3791
    %v4387 = vmul.f32 %v831, %v3793
    %v4388 = vmul.f32 %v835, %v3797
    %v4389 = vmul.f32 %v837, %v3799
    %v4390 = vmul.f32 %v841, %v3803
    %v4391 = vmul.f32 %v843, %v3805
    %v4392 = vmul.f32 %v847, %v3809
    %v4393 = vmul.f32 %v849, %v3811
    %v4394 = vmul.f32 %v853, %v3815
    %v4395 = vmul.f32 %v855, %v3817
    %v4396 = vmul.f32 %v859, %v3821
    %v4397 = vmul.f32 %v861, %v3823
    %v4398 = vmul.f32 %v865, %v3827
    %v4399 = vmul.f32 %v867, %v3829
    %v4400 = vmul.f32 %v871, %v3833
    %v4401 = vmul.f32 %v873, %v3835
    %v4402 = vmul.f32 %v877, %v3839
    %v4403 = vmul.f32 %v879, %v3841
    %v4404 = vmul.f32 %v883, %v3845
    %v4405 = vmul.f32 %v885, %v3847
    %v4406 = vmul.f32 %v889, %v3851
    %v4407 = vmul.f32 %v891, %v3853
    %v4408 = vmul.f32 %v895, %v3857
    %v4409 = vmul.f32 %v897, %v3859
    %v4410 = vmul.f32 %v901, %v3863
    %v4411 = vmul.f32 %v903, %v3865
    %v4412 = vmul.f32 %v907, %v3869
    %v4413 = vmul.f32 %v909, %v3871
    %v4414 = vmul.f32 %v913, %v3875
    %v4415 = vmul.f32 %v915, %v3877
    %v4416 = vmul.f32 %v919, %v3881
    %v4417 = vmul.f32 %v921, %v3883
    %v4418 = vmul.f32 %v925, %v3887
    %v4419 = vmul.f32 %v927, %v3889
    %v4420 = vmul.f32 %v931, %v3893
    %v4421 = vmul.f32 %v933, %v3895
    %v4422 = vmul.f32 %v937, %v3899
    %v4423 = vmul.f32 %v939, %v3901
    %v4424 = vmul.f32 %v943, %v3905
    %v4425 = vmul.f32 %v945, %v3907
    %v4426 = vmul.f32 %v949, %v3911
    %v4427 = vmul.f32 %v951, %v3913
    %v4428 = vmul.f32 %v955, %v3917
    %v4429 = vmul.f32 %v957, %v3919
    %v4430 = vmul.f32 %v961, %v3923
    %v4431 = vmul.f32 %v963, %v3925
    %v4432 = vmul.f32 %v967, %v3929
    %v4433 = vmul.f32 %v969, %v3931
    %v4434 = vmul.f32 %v973, %v3935
    %v4435 = vmul.f32 %v975, %v3937
    %v4436 = vmul.f32 %v979, %v3941
    %v4437 = vmul.f32 %v981, %v3943
    %v4438 = vmul.f32 %v985, %v3947
    %v4439 = vmul.f32 %v987, %v3949
    %v4440 = vmul.f32 %v991, %v3953
    %v4441 = vmul.f32 %v993, %v3955
    %v4442 = vmul.f32 %v997, %v3959
    %v4443 = vmul.f32 %v999, %v3961
    %v4444 = vadd.f32 %v4380, %v4190
    %v4445 = vadd.f32 %v4381, %v4192
    %v4446 = vadd.f32 %v4382, %v4196
    %v4447 = vadd.f32 %v4383, %v4198
    %v4448 = vadd.f32 %v4384, %v4202
    %v4449 = vadd.f32 %v4385, %v4204
    %v4450 = vadd.f32 %v4386, %v4208
    %v4451 = vadd.f32 %v4387, %v4210
    %v4452 = vadd.f32 %v4388, %v4214
    %v4453 = vadd.f32 %v4389, %v4216
    %v4454 = vadd.f32 %v4390, %v4220
    %v4455 = vadd.f32 %v4391, %v4222
    %v4456 = vadd.f32 %v4392, %v4226
    %v4457 = vadd.f32 %v4393, %v4228
    %v4458 = vadd.f32 %v4394, %v4232
    %v4459 = vadd.f32 %v4395, %v4234
    %v4460 = vadd.f32 %v4396, %v4238
    %v4461 = vadd.f32 %v4397, %v4240
    %v4462 = vadd.f32 %v4398, %v4244
    %v4463 = vadd.f32 %v4399, %v4246
    %v4464 = vadd.f32 %v4400, %v4250
    %v4465 = vadd.f32 %v4401, %v4252
    %v4466 = vadd.f32 %v4402, %v4256
    %v4467 = vadd.f32 %v4403, %v4258
    %v4468 = vadd.f32 %v4404, %v4262
    %v4469 = vadd.f32 %v4405, %v4264
    %v4470 = vadd.f32 %v4406, %v4268
    %v4471 = vadd.f32 %v4407, %v4270
    %v4472 = vadd.f32 %v4408, %v4274
    %v4473 = vadd.f32 %v4409, %v4276
    %v4474 = vadd.f32 %v4410, %v4280
    %v4475 = vadd.f32 %v4411, %v4282
    %v4476 = vadd.f32 %v4412, %v4286
    %v4477 = vadd.f32 %v4413, %v4288
    %v4478 = vadd.f32 %v4414, %v4292
    %v4479 = vadd.f32 %v4415, %v4294
    %v4480 = vadd.f32 %v4416, %v4298
    %v4481 = vadd.f32 %v4417, %v4300
    %v4482 = vadd.f32 %v4418, %v4304
    %v4483 = vadd.f32 %v4419, %v4306
    %v4484 = vadd.f32 %v4420, %v4310
    %v4485 = vadd.f32 %v4421, %v4312
    %v4486 = vadd.f32 %v4422, %v4316
    %v4487 = vadd.f32 %v4423, %v4318
    %v4488 = vadd.f32 %v4424, %v4322
    %v4489 = vadd.f32 %v4425, %v4324
    %v4490 = vadd.f32 %v4426, %v4328
    %v4491 = vadd.f32 %v4427, %v4330
    %v4492 = vadd.f32 %v4428, %v4334
    %v4493 = vadd.f32 %v4429, %v4336
    %v4494 = vadd.f32 %v4430, %v4340
    %v4495 = vadd.f32 %v4431, %v4342
    %v4496 = vadd.f32 %v4432, %v4346
    %v4497 = vadd.f32 %v4433, %v4348
    %v4498 = vadd.f32 %v4434, %v4352
    %v4499 = vadd.f32 %v4435, %v4354
    %v4500 = vadd.f32 %v4436, %v4358
    %v4501 = vadd.f32 %v4437, %v4360
    %v4502 = vadd.f32 %v4438, %v4364
    %v4503 = vadd.f32 %v4439, %v4366
    %v4504 = vadd.f32 %v4440, %v4370
    %v4505 = vadd.f32 %v4441, %v4372
    %v4506 = vadd.f32 %v4442, %v4376
    %v4507 = vadd.f32 %v4443, %v4378
    %v4508 = vmax.f32 %v4444, 0.0
    %v4509 = vmax.f32 %v4445, 0.0
    %v4510 = vmax.f32 %v4446, 0.0
    %v4511 = vmax.f32 %v4447, 0.0
    %v4512 = vmax.f32 %v4448, 0.0
    %v4513 = vmax.f32 %v4449, 0.0
    %v4514 = vmax.f32 %v4450, 0.0
    %v4515 = vmax.f32 %v4451, 0.0
    %v4516 = vmax.f32 %v4452, 0.0
    %v4517 = vmax.f32 %v4453, 0.0
    %v4518 = vmax.f32 %v4454, 0.0
    %v4519 = vmax.f32 %v4455, 0.0
    %v4520 = vmax.f32 %v4456, 0.0
    %v4521 = vmax.f32 %v4457, 0.0
    %v4522 = vmax.f32 %v4458, 0.0
    %v4523 = vmax.f32 %v4459, 0.0
    %v4524 = vmax.f32 %v4460, 0.0
    %v4525 = vmax.f32 %v4461, 0.0
    %v4526 = vmax.f32 %v4462, 0.0
    %v4527 = vmax.f32 %v4463, 0.0
    %v4528 = vmax.f32 %v4464, 0.0
    %v4529 = vmax.f32 %v4465, 0.0
    %v4530 = vmax.f32 %v4466, 0.0
    %v4531 = vmax.f32 %v4467, 0.0
    %v4532 = vmax.f32 %v4468, 0.0
    %v4533 = vmax.f32 %v4469, 0.0
    %v4534 = vmax.f32 %v4470, 0.0
    %v4535 = vmax.f32 %v4471, 0.0
    %v4536 = vmax.f32 %v4472, 0.0
    %v4537 = vmax.f32 %v4473, 0.0
    %v4538 = vmax.f32 %v4474, 0.0
    %v4539 = vmax.f32 %v4475, 0.0
    %v4540 = vmax.f32 %v4476, 0.0
    %v4541 = vmax.f32 %v4477, 0.0
    %v4542 = vmax.f32 %v4478, 0.0
    %v4543 = vmax.f32 %v4479, 0.0
    %v4544 = vmax.f32 %v4480, 0.0
    %v4545 = vmax.f32 %v4481, 0.0
    %v4546 = vmax.f32 %v4482, 0.0
    %v4547 = vmax.f32 %v4483, 0.0
    %v4548 = vmax.f32 %v4484, 0.0
    %v4549 = vmax.f32 %v4485, 0.0
    %v4550 = vmax.f32 %v4486, 0.0
    %v4551 = vmax.f32 %v4487, 0.0
    %v4552 = vmax.f32 %v4488, 0.0
    %v4553 = vmax.f32 %v4489, 0.0
    %v4554 = vmax.f32 %v4490, 0.0
    %v4555 = vmax.f32 %v4491, 0.0
    %v4556 = vmax.f32 %v4492, 0.0
    %v4557 = vmax.f32 %v4493, 0.0
    %v4558 = vmax.f32 %v4494, 0.0
    %v4559 = vmax.f32 %v4495, 0.0
    %v4560 = vmax.f32 %v4496, 0.0
    %v4561 = vmax.f32 %v4497, 0.0
    %v4562 = vmax.f32 %v4498, 0.0
    %v4563 = vmax.f32 %v4499, 0.0
    %v4564 = vmax.f32 %v4500, 0.0
    %v4565 = vmax.f32 %v4501, 0.0
    %v4566 = vmax.f32 %v4502, 0.0
    %v4567 = vmax.f32 %v4503, 0.0
    %v4568 = vmax.f32 %v4504, 0.0
    %v4569 = vmax.f32 %v4505, 0.0
    %v4570 = vmax.f32 %v4506, 0.0
    %v4571 = vmax.f32 %v4507, 0.0
    %v4572 = vld [vmem:[%s5] sm:$0xff]
    %v4573 = vld [vmem:[%s5 + $0x8] sm:$0xff]
    %v4574 = vld [vmem:[%s5 + $0x10] sm:$0xff]
    %v4575 = vld [vmem:[%s5 + $0x18] sm:$0xff]
    %v4576 = vld [vmem:[%s5 + $0x20] sm:$0xff]
    %v4577 = vld [vmem:[%s5 + $0x28] sm:$0xff]
    %v4578 = vld [vmem:[%s5 + $0x30] sm:$0xff]
    %v4579 = vld [vmem:[%s5 + $0x38] sm:$0xff]
    %v4580 = vld [vmem:[%s5 + $0x40] sm:$0xff]
    %v4581 = vld [vmem:[%s5 + $0x48] sm:$0xff]
    %v4582 = vld [vmem:[%s5 + $0x50] sm:$0xff]
    %v4583 = vld [vmem:[%s5 + $0x58] sm:$0xff]
    %v4584 = vld [vmem:[%s5 + $0x60] sm:$0xff]
    %v4585 = vld [vmem:[%s5 + $0x68] sm:$0xff]
    %v4586 = vld [vmem:[%s5 + $0x70] sm:$0xff]
    %v4587 = vld [vmem:[%s5 + $0x78] sm:$0xff]
    %v4588 = vld [vmem:[%s5 + $0x80] sm:$0xff]
    %v4589 = vld [vmem:[%s5 + $0x88] sm:$0xff]
    %v4590 = vld [vmem:[%s5 + $0x90] sm:$0xff]
    %v4591 = vld [vmem:[%s5 + $0x98] sm:$0xff]
    %v4592 = vld [vmem:[%s5 + $0xa0] sm:$0xff]
    %v4593 = vld [vmem:[%s5 + $0xa8] sm:$0xff]
    %v4594 = vld [vmem:[%s5 + $0xb0] sm:$0xff]
    %v4595 = vld [vmem:[%s5 + $0xb8] sm:$0xff]
    %v4596 = vld [vmem:[%s5 + $0xc0] sm:$0xff]
    %v4597 = vld [vmem:[%s5 + $0xc8] sm:$0xff]
    %v4598 = vld [vmem:[%s5 + $0xd0] sm:$0xff]
    %v4599 = vld [vmem:[%s5 + $0xd8] sm:$0xff]
    %v4600 = vld [vmem:[%s5 + $0xe0] sm:$0xff]
    %v4601 = vld [vmem:[%s5 + $0xe8] sm:$0xff]
    %v4602 = vld [vmem:[%s5 + $0xf0] sm:$0xff]
    %v4603 = vld [vmem:[%s5 + $0xf8] sm:$0xff]
    %v4604 = vld [vmem:[%s6] sm:$0xff]
    %v4605 = vld [vmem:[%s6 + $0x8] sm:$0xff]
    %v4606 = vld [vmem:[%s6 + $0x10] sm:$0xff]
    %v4607 = vld [vmem:[%s6 + $0x18] sm:$0xff]
    %v4608 = vld [vmem:[%s6 + $0x20] sm:$0xff]
    %v4609 = vld [vmem:[%s6 + $0x28] sm:$0xff]
    %v4610 = vld [vmem:[%s6 + $0x30] sm:$0xff]
    %v4611 = vld [vmem:[%s6 + $0x38] sm:$0xff]
    %v4612 = vld [vmem:[%s6 + $0x40] sm:$0xff]
    %v4613 = vld [vmem:[%s6 + $0x48] sm:$0xff]
    %v4614 = vld [vmem:[%s6 + $0x50] sm:$0xff]
    %v4615 = vld [vmem:[%s6 + $0x58] sm:$0xff]
    %v4616 = vld [vmem:[%s6 + $0x60] sm:$0xff]
    %v4617 = vld [vmem:[%s6 + $0x68] sm:$0xff]
    %v4618 = vld [vmem:[%s6 + $0x70] sm:$0xff]
    %v4619 = vld [vmem:[%s6 + $0x78] sm:$0xff]
    %4621 = vset.pattern.permute.xlu0 0
    %4622 = vperm.xlu0 %4621, %v4604
    %v4623 = vpop.permute.xlu0 %4622
    %4626 = vset.pattern.permute.xlu0 0
    %4627 = vperm.xlu0 %4626, %v4605
    %v4628 = vpop.permute.xlu0 %4627
    %4631 = vset.pattern.permute.xlu0 0
    %4632 = vperm.xlu0 %4631, %v4606
    %v4633 = vpop.permute.xlu0 %4632
    %4636 = vset.pattern.permute.xlu0 0
    %4637 = vperm.xlu0 %4636, %v4607
    %v4638 = vpop.permute.xlu0 %4637
    %4641 = vset.pattern.permute.xlu0 0
    %4642 = vperm.xlu0 %4641, %v4608
    %v4643 = vpop.permute.xlu0 %4642
    %4646 = vset.pattern.permute.xlu0 0
    %4647 = vperm.xlu0 %4646, %v4609
    %v4648 = vpop.permute.xlu0 %4647
    %4651 = vset.pattern.permute.xlu0 0
    %4652 = vperm.xlu0 %4651, %v4610
    %v4653 = vpop.permute.xlu0 %4652
    %4656 = vset.pattern.permute.xlu0 0
    %4657 = vperm.xlu0 %4656, %v4611
    %v4658 = vpop.permute.xlu0 %4657
    %4661 = vset.pattern.permute.xlu0 0
    %4662 = vperm.xlu0 %4661, %v4612
    %v4663 = vpop.permute.xlu0 %4662
    %4666 = vset.pattern.permute.xlu0 0
    %4667 = vperm.xlu0 %4666, %v4613
    %v4668 = vpop.permute.xlu0 %4667
    %4671 = vset.pattern.permute.xlu0 0
    %4672 = vperm.xlu0 %4671, %v4614
    %v4673 = vpop.permute.xlu0 %4672
    %4676 = vset.pattern.permute.xlu0 0
    %4677 = vperm.xlu0 %4676, %v4615
    %v4678 = vpop.permute.xlu0 %4677
    %4681 = vset.pattern.permute.xlu0 0
    %4682 = vperm.xlu0 %4681, %v4616
    %v4683 = vpop.permute.xlu0 %4682
    %4686 = vset.pattern.permute.xlu0 0
    %4687 = vperm.xlu0 %4686, %v4617
    %v4688 = vpop.permute.xlu0 %4687
    %4691 = vset.pattern.permute.xlu0 0
    %4692 = vperm.xlu0 %4691, %v4618
    %v4693 = vpop.permute.xlu0 %4692
    %4696 = vset.pattern.permute.xlu0 0
    %4697 = vperm.xlu0 %4696, %v4619
    %v4698 = vpop.permute.xlu0 %4697
    %4700 = vmatprep.subr.mxu0 %v4509
    %4701 = vmatpush1.msra.mxu0 %v4508
    %4702 = vmatprep.subr.mxu0 %v4511
    %4703 = vmatpush1.msra.mxu0 %v4510
    %4704 = vmatprep.subr.mxu0 %v4513
    %4705 = vmatpush1.msra.mxu0 %v4512
    %4706 = vmatprep.subr.mxu0 %v4515
    %4707 = vmatpush1.msra.mxu0 %v4514
    %4708 = vmatprep.subr.mxu0 %v4517
    %4709 = vmatpush1.msra.mxu0 %v4516
    %4710 = vmatprep.subr.mxu0 %v4519
    %4711 = vmatpush1.msra.mxu0 %v4518
    %4712 = vmatprep.subr.mxu0 %v4521
    %4713 = vmatpush1.msra.mxu0 %v4520
    %4714 = vmatprep.subr.mxu0 %v4523
    %4715 = vmatpush1.msra.mxu0 %v4522
    %4716 = vmatprep.subr.mxu0 %v4525
    %4717 = vmatpush1.msra.mxu0 %v4524
    %4718 = vmatprep.subr.mxu0 %v4527
    %4719 = vmatpush1.msra.mxu0 %v4526
    %4720 = vmatprep.subr.mxu0 %v4529
    %4721 = vmatpush1.msra.mxu0 %v4528
    %4722 = vmatprep.subr.mxu0 %v4531
    %4723 = vmatpush1.msra.mxu0 %v4530
    %4724 = vmatprep.subr.mxu0 %v4533
    %4725 = vmatpush1.msra.mxu0 %v4532
    %4726 = vmatprep.subr.mxu0 %v4535
    %4727 = vmatpush1.msra.mxu0 %v4534
    %4728 = vmatprep.subr.mxu0 %v4537
    %4729 = vmatpush1.msra.mxu0 %v4536
    %4730 = vmatprep.subr.mxu0 %v4539
    %4731 = vmatpush1.msra.mxu0 %v4538
    %4732 = vmatprep.subr.mxu0 %v4541
    %4733 = vmatpush1.msra.mxu0 %v4540
    %4734 = vmatprep.subr.mxu0 %v4543
    %4735 = vmatpush1.msra.mxu0 %v4542
    %4736 = vmatprep.subr.mxu0 %v4545
    %4737 = vmatpush1.msra.mxu0 %v4544
    %4738 = vmatprep.subr.mxu0 %v4547
    %4739 = vmatpush1.msra.mxu0 %v4546
    %4740 = vmatprep.subr.mxu0 %v4549
    %4741 = vmatpush1.msra.mxu0 %v4548
    %4742 = vmatprep.subr.mxu0 %v4551
    %4743 = vmatpush1.msra.mxu0 %v4550
    %4744 = vmatprep.subr.mxu0 %v4553
    %4745 = vmatpush1.msra.mxu0 %v4552
    %4746 = vmatprep.subr.mxu0 %v4555
    %4747 = vmatpush1.msra.mxu0 %v4554
    %4748 = vmatprep.subr.mxu0 %v4557
    %4749 = vmatpush1.msra.mxu0 %v4556
    %4750 = vmatprep.subr.mxu0 %v4559
    %4751 = vmatpush1.msra.mxu0 %v4558
    %4752 = vmatprep.subr.mxu0 %v4561
    %4753 = vmatpush1.msra.mxu0 %v4560
    %4754 = vmatprep.subr.mxu0 %v4563
    %4755 = vmatpush1.msra.mxu0 %v4562
    %4756 = vmatprep.subr.mxu0 %v4565
    %4757 = vmatpush1.msra.mxu0 %v4564
    %4758 = vmatprep.subr.mxu0 %v4567
    %4759 = vmatpush1.msra.mxu0 %v4566
    %4760 = vmatprep.subr.mxu0 %v4569
    %4761 = vmatpush1.msra.mxu0 %v4568
    %4762 = vmatprep.subr.mxu0 %v4571
    %4763 = vmatpush1.msra.mxu0 %v4570
    %4764 = vmatprep.mubr.f32.mxu0 %v4573
    %4765 = vmatmul.mubr.f32.gmra.mrb[0].mxu0 %v4572
    %v4766 = vpop.f32.mrb[0].mxu0
    %v4767 = vadd.f32 %v4623, %v4766
    %v4768 = vpop.f32.mrb[0].mxu0
    %v4769 = vadd.f32 %v4623, %v4768
    %4770 = vmatprep.mubr.f32.mxu0 %v4575
    %4771 = vmatmul.mubr.f32.gmra.mrb[0].mxu0 %v4574
    %v4772 = vpop.f32.mrb[0].mxu0
    %v4773 = vadd.f32 %v4628, %v4772
    %v4774 = vpop.f32.mrb[0].mxu0
    %v4775 = vadd.f32 %v4628, %v4774
    %4776 = vmatprep.mubr.f32.mxu0 %v4577
    %4777 = vmatmul.mubr.f32.gmra.mrb[0].mxu0 %v4576
    %v4778 = vpop.f32.mrb[0].mxu0
    %v4779 = vadd.f32 %v4633, %v4778
    %v4780 = vpop.f32.mrb[0].mxu0
    %v4781 = vadd.f32 %v4633, %v4780
    %4782 = vmatprep.mubr.f32.mxu0 %v4579
    %4783 = vmatmul.mubr.f32.gmra.mrb[0].mxu0 %v4578
    %v4784 = vpop.f32.mrb[0].mxu0
    %v4785 = vadd.f32 %v4638, %v4784
    %v4786 = vpop.f32.mrb[0].mxu0
    %v4787 = vadd.f32 %v4638, %v4786
    %4788 = vmatprep.mubr.f32.mxu0 %v4581
    %4789 = vmatmul.mubr.f32.gmra.mrb[0].mxu0 %v4580
    %v4790 = vpop.f32.mrb[0].mxu0
    %v4791 = vadd.f32 %v4643, %v4790
    %v4792 = vpop.f32.mrb[0].mxu0
    %v4793 = vadd.f32 %v4643, %v4792
    %4794 = vmatprep.mubr.f32.mxu0 %v4583
    %4795 = vmatmul.mubr.f32.gmra.mrb[0].mxu0 %v4582
    %v4796 = vpop.f32.mrb[0].mxu0
    %v4797 = vadd.f32 %v4648, %v4796
    %v4798 = vpop.f32.mrb[0].mxu0
    %v4799 = vadd.f32 %v4648, %v4798
    %4800 = vmatprep.mubr.f32.mxu0 %v4585
    %4801 = vmatmul.mubr.f32.gmra.mrb[0].mxu0 %v4584
    %v4802 = vpop.f32.mrb[0].mxu0
    %v4803 = vadd.f32 %v4653, %v4802
    %v4804 = vpop.f32.mrb[0].mxu0
    %v4805 = vadd.f32 %v4653, %v4804
    %4806 = vmatprep.mubr.f32.mxu0 %v4587
    %4807 = vmatmul.mubr.f32.gmra.mrb[0].mxu0 %v4586
    %v4808 = vpop.f32.mrb[0].mxu0
    %v4809 = vadd.f32 %v4658, %v4808
    %v4810 = vpop.f32.mrb[0].mxu0
    %v4811 = vadd.f32 %v4658, %v4810
    %4812 = vmatprep.mubr.f32.mxu0 %v4589
    %4813 = vmatmul.mubr.f32.gmra.mrb[0].mxu0 %v4588
    %v4814 = vpop.f32.mrb[0].mxu0
    %v4815 = vadd.f32 %v4663, %v4814
    %v4816 = vpop.f32.mrb[0].mxu0
    %v4817 = vadd.f32 %v4663, %v4816
    %4818 = vmatprep.mubr.f32.mxu0 %v4591
    %4819 = vmatmul.mubr.f32.gmra.mrb[0].mxu0 %v4590
    %v4820 = vpop.f32.mrb[0].mxu0
    %v4821 = vadd.f32 %v4668, %v4820
    %v4822 = vpop.f32.mrb[0].mxu0
    %v4823 = vadd.f32 %v4668, %v4822
    %4824 = vmatprep.mubr.f32.mxu0 %v4593
    %4825 = vmatmul.mubr.f32.gmra.mrb[0].mxu0 %v4592
    %v4826 = vpop.f32.mrb[0].mxu0
    %v4827 = vadd.f32 %v4673, %v4826
    %v4828 = vpop.f32.mrb[0].mxu0
    %v4829 = vadd.f32 %v4673, %v4828
    %4830 = vmatprep.mubr.f32.mxu0 %v4595
    %4831 = vmatmul.mubr.f32.gmra.mrb[0].mxu0 %v4594
    %v4832 = vpop.f32.mrb[0].mxu0
    %v4833 = vadd.f32 %v4678, %v4832
    %v4834 = vpop.f32.mrb[0].mxu0
    %v4835 = vadd.f32 %v4678, %v4834
    %4836 = vmatprep.mubr.f32.mxu0 %v4597
    %4837 = vmatmul.mubr.f32.gmra.mrb[0].mxu0 %v4596
    %v4838 = vpop.f32.mrb[0].mxu0
    %v4839 = vadd.f32 %v4683, %v4838
    %v4840 = vpop.f32.mrb[0].mxu0
    %v4841 = vadd.f32 %v4683, %v4840
    %4842 = vmatprep.mubr.f32.mxu0 %v4599
    %4843 = vmatmul.mubr.f32.gmra.mrb[0].mxu0 %v4598
    %v4844 = vpop.f32.mrb[0].mxu0
    %v4845 = vadd.f32 %v4688, %v4844
    %v4846 = vpop.f32.mrb[0].mxu0
    %v4847 = vadd.f32 %v4688, %v4846
    %4848 = vmatprep.mubr.f32.mxu0 %v4601
    %4849 = vmatmul.mubr.f32.gmra.mrb[0].mxu0 %v4600
    %v4850 = vpop.f32.mrb[0].mxu0
    %v4851 = vadd.f32 %v4693, %v4850
    %v4852 = vpop.f32.mrb[0].mxu0
    %v4853 = vadd.f32 %v4693, %v4852
    %4854 = vmatprep.mubr.f32.mxu0 %v4603
    %4855 = vmatmul.mubr.f32.gmra.mrb[0].mxu0 %v4602
    %v4856 = vpop.f32.mrb[0].mxu0
    %v4857 = vadd.f32 %v4698, %v4856
    %v4858 = vpop.f32.mrb[0].mxu0
    %v4859 = vadd.f32 %v4698, %v4858
    %4860 = vdwg.mxu0
    %4861 = vmatprep.subr.mxu0 0.0
    %4862 = vmatpush1.msra.mxu0 %v391
    %4863 = vmatprep.subr.mxu0 0.0
    %4864 = vmatpush1.msra.mxu0 %v392
    %4865 = vmatprep.subr.mxu0 0.0
    %4866 = vmatpush1.msra.mxu0 %v393
    %4867 = vmatprep.subr.mxu0 0.0
    %4868 = vmatpush1.msra.mxu0 %v394
    %4869 = vmatprep.subr.mxu0 0.0
    %4870 = vmatpush1.msra.mxu0 %v395
    %4871 = vmatprep.subr.mxu0 0.0
    %4872 = vmatpush1.msra.mxu0 %v396
    %4873 = vmatprep.subr.mxu0 0.0
    %4874 = vmatpush1.msra.mxu0 %v397
    %4875 = vmatprep.subr.mxu0 0.0
    %4876 = vmatpush1.msra.mxu0 %v398
    %4877 = vmatprep.subr.mxu0 0.0
    %4878 = vmatpush1.msra.mxu0 %v399
    %4879 = vmatprep.subr.mxu0 0.0
    %4880 = vmatpush1.msra.mxu0 %v400
    %4881 = vmatprep.subr.mxu0 0.0
    %4882 = vmatpush1.msra.mxu0 %v401
    %4883 = vmatprep.subr.mxu0 0.0
    %4884 = vmatpush1.msra.mxu0 %v402
    %4885 = vmatprep.subr.mxu0 0.0
    %4886 = vmatpush1.msra.mxu0 %v403
    %4887 = vmatprep.subr.mxu0 0.0
    %4888 = vmatpush1.msra.mxu0 %v404
    %4889 = vmatprep.subr.mxu0 0.0
    %4890 = vmatpush1.msra.mxu0 %v405
    %4891 = vmatprep.subr.mxu0 0.0
    %4892 = vmatpush1.msra.mxu0 %v406
    %4893 = vmatprep.subr.mxu0 0.0
    %4894 = vmatpush1.msra.mxu0 %v407
    %4895 = vmatprep.subr.mxu0 0.0
    %4896 = vmatpush1.msra.mxu0 %v408
    %4897 = vmatprep.subr.mxu0 0.0
    %4898 = vmatpush1.msra.mxu0 %v409
    %4899 = vmatprep.subr.mxu0 0.0
    %4900 = vmatpush1.msra.mxu0 %v410
    %4901 = vmatprep.subr.mxu0 0.0
    %4902 = vmatpush1.msra.mxu0 %v411
    %4903 = vmatprep.subr.mxu0 0.0
    %4904 = vmatpush1.msra.mxu0 %v412
    %4905 = vmatprep.subr.mxu0 0.0
    %4906 = vmatpush1.msra.mxu0 %v413
    %4907 = vmatprep.subr.mxu0 0.0
    %4908 = vmatpush1.msra.mxu0 %v414
    %4909 = vmatprep.subr.mxu0 0.0
    %4910 = vmatpush1.msra.mxu0 %v415
    %4911 = vmatprep.subr.mxu0 0.0
    %4912 = vmatpush1.msra.mxu0 %v416
    %4913 = vmatprep.subr.mxu0 0.0
    %4914 = vmatpush1.msra.mxu0 %v417
    %4915 = vmatprep.subr.mxu0 0.0
    %4916 = vmatpush1.msra.mxu0 %v418
    %4917 = vmatprep.subr.mxu0 0.0
    %4918 = vmatpush1.msra.mxu0 %v419
    %4919 = vmatprep.subr.mxu0 0.0
    %4920 = vmatpush1.msra.mxu0 %v420
    %4921 = vmatprep.subr.mxu0 0.0
    %4922 = vmatpush1.msra.mxu0 %v421
    %4923 = vmatprep.subr.mxu0 0.0
    %4924 = vmatpush1.msra.mxu0 %v422
    %4925 = vmatprep.mubr.f32.mxu0 %v4769
    %4926 = vmatmul.mubr.f32.gmra.mrb[0].mxu0 %v4767
    %v4927 = vpop.f32.mrb[0].mxu0
    %v4928 = vadd.f32 0.0, %v4927
    %v4929 = vpop.f32.mrb[0].mxu0
    %4930 = vmatprep.mubr.f32.mxu0 %v4775
    %4931 = vmatmul.mubr.f32.gmra.mrb[0].mxu0 %v4773
    %v4932 = vpop.f32.mrb[0].mxu0
    %v4933 = vadd.f32 0.0, %v4932
    %v4934 = vpop.f32.mrb[0].mxu0
    %4935 = vmatprep.mubr.f32.mxu0 %v4781
    %4936 = vmatmul.mubr.f32.gmra.mrb[0].mxu0 %v4779
    %v4937 = vpop.f32.mrb[0].mxu0
    %v4938 = vadd.f32 0.0, %v4937
    %v4939 = vpop.f32.mrb[0].mxu0
    %4940 = vmatprep.mubr.f32.mxu0 %v4787
    %4941 = vmatmul.mubr.f32.gmra.mrb[0].mxu0 %v4785
    %v4942 = vpop.f32.mrb[0].mxu0
    %v4943 = vadd.f32 0.0, %v4942
    %v4944 = vpop.f32.mrb[0].mxu0
    %4945 = vmatprep.mubr.f32.mxu0 %v4793
    %4946 = vmatmul.mubr.f32.gmra.mrb[0].mxu0 %v4791
    %v4947 = vpop.f32.mrb[0].mxu0
    %v4948 = vadd.f32 0.0, %v4947
    %v4949 = vpop.f32.mrb[0].mxu0
    %4950 = vmatprep.mubr.f32.mxu0 %v4799
    %4951 = vmatmul.mubr.f32.gmra.mrb[0].mxu0 %v4797
    %v4952 = vpop.f32.mrb[0].mxu0
    %v4953 = vadd.f32 0.0, %v4952
    %v4954 = vpop.f32.mrb[0].mxu0
    %4955 = vmatprep.mubr.f32.mxu0 %v4805
    %4956 = vmatmul.mubr.f32.gmra.mrb[0].mxu0 %v4803
    %v4957 = vpop.f32.mrb[0].mxu0
    %v4958 = vadd.f32 0.0, %v4957
    %v4959 = vpop.f32.mrb[0].mxu0
    %4960 = vmatprep.mubr.f32.mxu0 %v4811
    %4961 = vmatmul.mubr.f32.gmra.mrb[0].mxu0 %v4809
    %v4962 = vpop.f32.mrb[0].mxu0
    %v4963 = vadd.f32 0.0, %v4962
    %v4964 = vpop.f32.mrb[0].mxu0
    %4965 = vmatprep.mubr.f32.mxu0 %v4817
    %4966 = vmatmul.mubr.f32.gmra.mrb[0].mxu0 %v4815
    %v4967 = vpop.f32.mrb[0].mxu0
    %v4968 = vadd.f32 0.0, %v4967
    %v4969 = vpop.f32.mrb[0].mxu0
    %4970 = vmatprep.mubr.f32.mxu0 %v4823
    %4971 = vmatmul.mubr.f32.gmra.mrb[0].mxu0 %v4821
    %v4972 = vpop.f32.mrb[0].mxu0
    %v4973 = vadd.f32 0.0, %v4972
    %v4974 = vpop.f32.mrb[0].mxu0
    %4975 = vmatprep.mubr.f32.mxu0 %v4829
    %4976 = vmatmul.mubr.f32.gmra.mrb[0].mxu0 %v4827
    %v4977 = vpop.f32.mrb[0].mxu0
    %v4978 = vadd.f32 0.0, %v4977
    %v4979 = vpop.f32.mrb[0].mxu0
    %4980 = vmatprep.mubr.f32.mxu0 %v4835
    %4981 = vmatmul.mubr.f32.gmra.mrb[0].mxu0 %v4833
    %v4982 = vpop.f32.mrb[0].mxu0
    %v4983 = vadd.f32 0.0, %v4982
    %v4984 = vpop.f32.mrb[0].mxu0
    %4985 = vmatprep.mubr.f32.mxu0 %v4841
    %4986 = vmatmul.mubr.f32.gmra.mrb[0].mxu0 %v4839
    %v4987 = vpop.f32.mrb[0].mxu0
    %v4988 = vadd.f32 0.0, %v4987
    %v4989 = vpop.f32.mrb[0].mxu0
    %4990 = vmatprep.mubr.f32.mxu0 %v4847
    %4991 = vmatmul.mubr.f32.gmra.mrb[0].mxu0 %v4845
    %v4992 = vpop.f32.mrb[0].mxu0
    %v4993 = vadd.f32 0.0, %v4992
    %v4994 = vpop.f32.mrb[0].mxu0
    %4995 = vmatprep.mubr.f32.mxu0 %v4853
    %4996 = vmatmul.mubr.f32.gmra.mrb[0].mxu0 %v4851
    %v4997 = vpop.f32.mrb[0].mxu0
    %v4998 = vadd.f32 0.0, %v4997
    %v4999 = vpop.f32.mrb[0].mxu0
    %5000 = vmatprep.mubr.f32.mxu0 %v4859
    %5001 = vmatmul.mubr.f32.gmra.mrb[0].mxu0 %v4857
    %v5002 = vpop.f32.mrb[0].mxu0
    %v5003 = vadd.f32 0.0, %v5002
    %v5004 = vpop.f32.mrb[0].mxu0
    %5005 = vdwg.mxu0
    %v5006 = vmul.f32 %v4767, %v4767
    %v5007 = vmul.f32 %v4769, %v4769
    %v5008 = vmul.f32 %v4773, %v4773
    %v5009 = vmul.f32 %v4775, %v4775
    %v5010 = vmul.f32 %v4779, %v4779
    %v5011 = vmul.f32 %v4781, %v4781
    %v5012 = vmul.f32 %v4785, %v4785
    %v5013 = vmul.f32 %v4787, %v4787
    %v5014 = vmul.f32 %v4791, %v4791
    %v5015 = vmul.f32 %v4793, %v4793
    %v5016 = vmul.f32 %v4797, %v4797
    %v5017 = vmul.f32 %v4799, %v4799
    %v5018 = vmul.f32 %v4803, %v4803
    %v5019 = vmul.f32 %v4805, %v4805
    %v5020 = vmul.f32 %v4809, %v4809
    %v5021 = vmul.f32 %v4811, %v4811
    %v5022 = vmul.f32 %v4815, %v4815
    %v5023 = vmul.f32 %v4817, %v4817
    %v5024 = vmul.f32 %v4821, %v4821
    %v5025 = vmul.f32 %v4823, %v4823
    %v5026 = vmul.f32 %v4827, %v4827
    %v5027 = vmul.f32 %v4829, %v4829
    %v5028 = vmul.f32 %v4833, %v4833
    %v5029 = vmul.f32 %v4835, %v4835
    %v5030 = vmul.f32 %v4839, %v4839
    %v5031 = vmul.f32 %v4841, %v4841
    %v5032 = vmul.f32 %v4845, %v4845
    %v5033 = vmul.f32 %v4847, %v4847
    %v5034 = vmul.f32 %v4851, %v4851
    %v5035 = vmul.f32 %v4853, %v4853
    %v5036 = vmul.f32 %v4857, %v4857
    %v5037 = vmul.f32 %v4859, %v4859
    %5038 = vmatprep.subr.mxu0 0.0
    %5039 = vmatpush1.msra.mxu0 %v391
    %5040 = vmatprep.subr.mxu0 0.0
    %5041 = vmatpush1.msra.mxu0 %v392
    %5042 = vmatprep.subr.mxu0 0.0
    %5043 = vmatpush1.msra.mxu0 %v393
    %5044 = vmatprep.subr.mxu0 0.0
    %5045 = vmatpush1.msra.mxu0 %v394
    %5046 = vmatprep.subr.mxu0 0.0
    %5047 = vmatpush1.msra.mxu0 %v395
    %5048 = vmatprep.subr.mxu0 0.0
    %5049 = vmatpush1.msra.mxu0 %v396
    %5050 = vmatprep.subr.mxu0 0.0
    %5051 = vmatpush1.msra.mxu0 %v397
    %5052 = vmatprep.subr.mxu0 0.0
    %5053 = vmatpush1.msra.mxu0 %v398
    %5054 = vmatprep.subr.mxu0 0.0
    %5055 = vmatpush1.msra.mxu0 %v399
    %5056 = vmatprep.subr.mxu0 0.0
    %5057 = vmatpush1.msra.mxu0 %v400
    %5058 = vmatprep.subr.mxu0 0.0
    %5059 = vmatpush1.msra.mxu0 %v401
    %5060 = vmatprep.subr.mxu0 0.0
    %5061 = vmatpush1.msra.mxu0 %v402
    %5062 = vmatprep.subr.mxu0 0.0
    %5063 = vmatpush1.msra.mxu0 %v403
    %5064 = vmatprep.subr.mxu0 0.0
    %5065 = vmatpush1.msra.mxu0 %v404
    %5066 = vmatprep.subr.mxu0 0.0
    %5067 = vmatpush1.msra.mxu0 %v405
    %5068 = vmatprep.subr.mxu0 0.0
    %5069 = vmatpush1.msra.mxu0 %v406
    %5070 = vmatprep.subr.mxu0 0.0
    %5071 = vmatpush1.msra.mxu0 %v407
    %5072 = vmatprep.subr.mxu0 0.0
    %5073 = vmatpush1.msra.mxu0 %v408
    %5074 = vmatprep.subr.mxu0 0.0
    %5075 = vmatpush1.msra.mxu0 %v409
    %5076 = vmatprep.subr.mxu0 0.0
    %5077 = vmatpush1.msra.mxu0 %v410
    %5078 = vmatprep.subr.mxu0 0.0
    %5079 = vmatpush1.msra.mxu0 %v411
    %5080 = vmatprep.subr.mxu0 0.0
    %5081 = vmatpush1.msra.mxu0 %v412
    %5082 = vmatprep.subr.mxu0 0.0
    %5083 = vmatpush1.msra.mxu0 %v413
    %5084 = vmatprep.subr.mxu0 0.0
    %5085 = vmatpush1.msra.mxu0 %v414
    %5086 = vmatprep.subr.mxu0 0.0
    %5087 = vmatpush1.msra.mxu0 %v415
    %5088 = vmatprep.subr.mxu0 0.0
    %5089 = vmatpush1.msra.mxu0 %v416
    %5090 = vmatprep.subr.mxu0 0.0
    %5091 = vmatpush1.msra.mxu0 %v417
    %5092 = vmatprep.subr.mxu0 0.0
    %5093 = vmatpush1.msra.mxu0 %v418
    %5094 = vmatprep.subr.mxu0 0.0
    %5095 = vmatpush1.msra.mxu0 %v419
    %5096 = vmatprep.subr.mxu0 0.0
    %5097 = vmatpush1.msra.mxu0 %v420
    %5098 = vmatprep.subr.mxu0 0.0
    %5099 = vmatpush1.msra.mxu0 %v421
    %5100 = vmatprep.subr.mxu0 0.0
    %5101 = vmatpush1.msra.mxu0 %v422
    %5102 = vmatprep.mubr.f32.mxu0 %v5007
    %5103 = vmatmul.mubr.f32.gmra.mrb[0].mxu0 %v5006
    %v5104 = vpop.f32.mrb[0].mxu0
    %v5105 = vadd.f32 0.0, %v5104
    %v5106 = vpop.f32.mrb[0].mxu0
    %5107 = vmatprep.mubr.f32.mxu0 %v5009
    %5108 = vmatmul.mubr.f32.gmra.mrb[0].mxu0 %v5008
    %v5109 = vpop.f32.mrb[0].mxu0
    %v5110 = vadd.f32 0.0, %v5109
    %v5111 = vpop.f32.mrb[0].mxu0
    %5112 = vmatprep.mubr.f32.mxu0 %v5011
    %5113 = vmatmul.mubr.f32.gmra.mrb[0].mxu0 %v5010
    %v5114 = vpop.f32.mrb[0].mxu0
    %v5115 = vadd.f32 0.0, %v5114
    %v5116 = vpop.f32.mrb[0].mxu0
    %5117 = vmatprep.mubr.f32.mxu0 %v5013
    %5118 = vmatmul.mubr.f32.gmra.mrb[0].mxu0 %v5012
    %v5119 = vpop.f32.mrb[0].mxu0
    %v5120 = vadd.f32 0.0, %v5119
    %v5121 = vpop.f32.mrb[0].mxu0
    %5122 = vmatprep.mubr.f32.mxu0 %v5015
    %5123 = vmatmul.mubr.f32.gmra.mrb[0].mxu0 %v5014
    %v5124 = vpop.f32.mrb[0].mxu0
    %v5125 = vadd.f32 0.0, %v5124
    %v5126 = vpop.f32.mrb[0].mxu0
    %5127 = vmatprep.mubr.f32.mxu0 %v5017
    %5128 = vmatmul.mubr.f32.gmra.mrb[0].mxu0 %v5016
    %v5129 = vpop.f32.mrb[0].mxu0
    %v5130 = vadd.f32 0.0, %v5129
    %v5131 = vpop.f32.mrb[0].mxu0
    %5132 = vmatprep.mubr.f32.mxu0 %v5019
    %5133 = vmatmul.mubr.f32.gmra.mrb[0].mxu0 %v5018
    %v5134 = vpop.f32.mrb[0].mxu0
    %v5135 = vadd.f32 0.0, %v5134
    %v5136 = vpop.f32.mrb[0].mxu0
    %5137 = vmatprep.mubr.f32.mxu0 %v5021
    %5138 = vmatmul.mubr.f32.gmra.mrb[0].mxu0 %v5020
    %v5139 = vpop.f32.mrb[0].mxu0
    %v5140 = vadd.f32 0.0, %v5139
    %v5141 = vpop.f32.mrb[0].mxu0
    %5142 = vmatprep.mubr.f32.mxu0 %v5023
    %5143 = vmatmul.mubr.f32.gmra.mrb[0].mxu0 %v5022
    %v5144 = vpop.f32.mrb[0].mxu0
    %v5145 = vadd.f32 0.0, %v5144
    %v5146 = vpop.f32.mrb[0].mxu0
    %5147 = vmatprep.mubr.f32.mxu0 %v5025
    %5148 = vmatmul.mubr.f32.gmra.mrb[0].mxu0 %v5024
    %v5149 = vpop.f32.mrb[0].mxu0
    %v5150 = vadd.f32 0.0, %v5149
    %v5151 = vpop.f32.mrb[0].mxu0
    %5152 = vmatprep.mubr.f32.mxu0 %v5027
    %5153 = vmatmul.mubr.f32.gmra.mrb[0].mxu0 %v5026
    %v5154 = vpop.f32.mrb[0].mxu0
    %v5155 = vadd.f32 0.0, %v5154
    %v5156 = vpop.f32.mrb[0].mxu0
    %5157 = vmatprep.mubr.f32.mxu0 %v5029
    %5158 = vmatmul.mubr.f32.gmra.mrb[0].mxu0 %v5028
    %v5159 = vpop.f32.mrb[0].mxu0
    %v5160 = vadd.f32 0.0, %v5159
    %v5161 = vpop.f32.mrb[0].mxu0
    %5162 = vmatprep.mubr.f32.mxu0 %v5031
    %5163 = vmatmul.mubr.f32.gmra.mrb[0].mxu0 %v5030
    %v5164 = vpop.f32.mrb[0].mxu0
    %v5165 = vadd.f32 0.0, %v5164
    %v5166 = vpop.f32.mrb[0].mxu0
    %5167 = vmatprep.mubr.f32.mxu0 %v5033
    %5168 = vmatmul.mubr.f32.gmra.mrb[0].mxu0 %v5032
    %v5169 = vpop.f32.mrb[0].mxu0
    %v5170 = vadd.f32 0.0, %v5169
    %v5171 = vpop.f32.mrb[0].mxu0
    %5172 = vmatprep.mubr.f32.mxu0 %v5035
    %5173 = vmatmul.mubr.f32.gmra.mrb[0].mxu0 %v5034
    %v5174 = vpop.f32.mrb[0].mxu0
    %v5175 = vadd.f32 0.0, %v5174
    %v5176 = vpop.f32.mrb[0].mxu0
    %5177 = vmatprep.mubr.f32.mxu0 %v5037
    %5178 = vmatmul.mubr.f32.gmra.mrb[0].mxu0 %v5036
    %v5179 = vpop.f32.mrb[0].mxu0
    %v5180 = vadd.f32 0.0, %v5179
    %v5181 = vpop.f32.mrb[0].mxu0
    %5182 = vdwg.mxu0
    %v5183 = vmul.f32 %v4928, 0.0078125
    %v5184 = vmul.f32 %v4933, 0.0078125
    %v5185 = vmul.f32 %v4938, 0.0078125
    %v5186 = vmul.f32 %v4943, 0.0078125
    %v5187 = vmul.f32 %v4948, 0.0078125
    %v5188 = vmul.f32 %v4953, 0.0078125
    %v5189 = vmul.f32 %v4958, 0.0078125
    %v5190 = vmul.f32 %v4963, 0.0078125
    %v5191 = vmul.f32 %v4968, 0.0078125
    %v5192 = vmul.f32 %v4973, 0.0078125
    %v5193 = vmul.f32 %v4978, 0.0078125
    %v5194 = vmul.f32 %v4983, 0.0078125
    %v5195 = vmul.f32 %v4988, 0.0078125
    %v5196 = vmul.f32 %v4993, 0.0078125
    %v5197 = vmul.f32 %v4998, 0.0078125
    %v5198 = vmul.f32 %v5003, 0.0078125
    %v5199 = vmul.f32 %v5105, 0.0078125
    %v5200 = vmul.f32 %v5110, 0.0078125
    %v5201 = vmul.f32 %v5115, 0.0078125
    %v5202 = vmul.f32 %v5120, 0.0078125
    %v5203 = vmul.f32 %v5125, 0.0078125
    %v5204 = vmul.f32 %v5130, 0.0078125
    %v5205 = vmul.f32 %v5135, 0.0078125
    %v5206 = vmul.f32 %v5140, 0.0078125
    %v5207 = vmul.f32 %v5145, 0.0078125
    %v5208 = vmul.f32 %v5150, 0.0078125
    %v5209 = vmul.f32 %v5155, 0.0078125
    %v5210 = vmul.f32 %v5160, 0.0078125
    %v5211 = vmul.f32 %v5165, 0.0078125
    %v5212 = vmul.f32 %v5170, 0.0078125
    %v5213 = vmul.f32 %v5175, 0.0078125
    %v5214 = vmul.f32 %v5180, 0.0078125
    %v5215 = vmul.f32 %v5183, %v5183
    %v5216 = vmul.f32 %v5184, %v5184
    %v5217 = vmul.f32 %v5185, %v5185
    %v5218 = vmul.f32 %v5186, %v5186
    %v5219 = vmul.f32 %v5187, %v5187
    %v5220 = vmul.f32 %v5188, %v5188
    %v5221 = vmul.f32 %v5189, %v5189
    %v5222 = vmul.f32 %v5190, %v5190
    %v5223 = vmul.f32 %v5191, %v5191
    %v5224 = vmul.f32 %v5192, %v5192
    %v5225 = vmul.f32 %v5193, %v5193
    %v5226 = vmul.f32 %v5194, %v5194
    %v5227 = vmul.f32 %v5195, %v5195
    %v5228 = vmul.f32 %v5196, %v5196
    %v5229 = vmul.f32 %v5197, %v5197
    %v5230 = vmul.f32 %v5198, %v5198
    %v5231 = vsub.f32 %v5199, %v5215
    %v5232 = vsub.f32 %v5200, %v5216
    %v5233 = vsub.f32 %v5201, %v5217
    %v5234 = vsub.f32 %v5202, %v5218
    %v5235 = vsub.f32 %v5203, %v5219
    %v5236 = vsub.f32 %v5204, %v5220
    %v5237 = vsub.f32 %v5205, %v5221
    %v5238 = vsub.f32 %v5206, %v5222
    %v5239 = vsub.f32 %v5207, %v5223
    %v5240 = vsub.f32 %v5208, %v5224
    %v5241 = vsub.f32 %v5209, %v5225
    %v5242 = vsub.f32 %v5210, %v5226
    %v5243 = vsub.f32 %v5211, %v5227
    %v5244 = vsub.f32 %v5212, %v5228
    %v5245 = vsub.f32 %v5213, %v5229
    %v5246 = vsub.f32 %v5214, %v5230
    %v5247 = vmax.f32 %v5231, 0.0
    %v5248 = vmax.f32 %v5232, 0.0
    %v5249 = vmax.f32 %v5233, 0.0
    %v5250 = vmax.f32 %v5234, 0.0
    %v5251 = vmax.f32 %v5235, 0.0
    %v5252 = vmax.f32 %v5236, 0.0
    %v5253 = vmax.f32 %v5237, 0.0
    %v5254 = vmax.f32 %v5238, 0.0
    %v5255 = vmax.f32 %v5239, 0.0
    %v5256 = vmax.f32 %v5240, 0.0
    %v5257 = vmax.f32 %v5241, 0.0
    %v5258 = vmax.f32 %v5242, 0.0
    %v5259 = vmax.f32 %v5243, 0.0
    %v5260 = vmax.f32 %v5244, 0.0
    %v5261 = vmax.f32 %v5245, 0.0
    %v5262 = vmax.f32 %v5246, 0.0
    %v5263 = vadd.f32 %v5247, 1e-05
    %v5264 = vadd.f32 %v5248, 1e-05
    %v5265 = vadd.f32 %v5249, 1e-05
    %v5266 = vadd.f32 %v5250, 1e-05
    %v5267 = vadd.f32 %v5251, 1e-05
    %v5268 = vadd.f32 %v5252, 1e-05
    %v5269 = vadd.f32 %v5253, 1e-05
    %v5270 = vadd.f32 %v5254, 1e-05
    %v5271 = vadd.f32 %v5255, 1e-05
    %v5272 = vadd.f32 %v5256, 1e-05
    %v5273 = vadd.f32 %v5257, 1e-05
    %v5274 = vadd.f32 %v5258, 1e-05
    %v5275 = vadd.f32 %v5259, 1e-05
    %v5276 = vadd.f32 %v5260, 1e-05
    %v5277 = vadd.f32 %v5261, 1e-05
    %v5278 = vadd.f32 %v5262, 1e-05
    %v5279 = vrsqrt.pop %v5263
    %v5280 = vrsqrt.pop %v5264
    %v5281 = vrsqrt.pop %v5265
    %v5282 = vrsqrt.pop %v5266
    %v5283 = vrsqrt.pop %v5267
    %v5284 = vrsqrt.pop %v5268
    %v5285 = vrsqrt.pop %v5269
    %v5286 = vrsqrt.pop %v5270
    %v5287 = vrsqrt.pop %v5271
    %v5288 = vrsqrt.pop %v5272
    %v5289 = vrsqrt.pop %v5273
    %v5290 = vrsqrt.pop %v5274
    %v5291 = vrsqrt.pop %v5275
    %v5292 = vrsqrt.pop %v5276
    %v5293 = vrsqrt.pop %v5277
    %v5294 = vrsqrt.pop %v5278
    %5295 = vrot.lane.b32.xlu0 %v4604, 123
    %v5296 = vpop.permute.xlu0 %5295
    %5297 = vrot.lane.b32.xlu0 %v4605, 123
    %v5298 = vpop.permute.xlu0 %5297
    %5299 = vrot.lane.b32.xlu0 %v4606, 123
    %v5300 = vpop.permute.xlu0 %5299
    %5301 = vrot.lane.b32.xlu0 %v4607, 123
    %v5302 = vpop.permute.xlu0 %5301
    %5303 = vrot.lane.b32.xlu0 %v4608, 123
    %v5304 = vpop.permute.xlu0 %5303
    %5305 = vrot.lane.b32.xlu0 %v4609, 123
    %v5306 = vpop.permute.xlu0 %5305
    %5307 = vrot.lane.b32.xlu0 %v4610, 123
    %v5308 = vpop.permute.xlu0 %5307
    %5309 = vrot.lane.b32.xlu0 %v4611, 123
    %v5310 = vpop.permute.xlu0 %5309
    %5311 = vrot.lane.b32.xlu0 %v4612, 123
    %v5312 = vpop.permute.xlu0 %5311
    %5313 = vrot.lane.b32.xlu0 %v4613, 123
    %v5314 = vpop.permute.xlu0 %5313
    %5315 = vrot.lane.b32.xlu0 %v4614, 123
    %v5316 = vpop.permute.xlu0 %5315
    %5317 = vrot.lane.b32.xlu0 %v4615, 123
    %v5318 = vpop.permute.xlu0 %5317
    %5319 = vrot.lane.b32.xlu0 %v4616, 123
    %v5320 = vpop.permute.xlu0 %5319
    %5321 = vrot.lane.b32.xlu0 %v4617, 123
    %v5322 = vpop.permute.xlu0 %5321
    %5323 = vrot.lane.b32.xlu0 %v4618, 123
    %v5324 = vpop.permute.xlu0 %5323
    %5325 = vrot.lane.b32.xlu0 %v4619, 123
    %v5326 = vpop.permute.xlu0 %5325
    %v5343 = vsel %vm1835, %v5296, 0.0
    %5344 = vadd.xlane.f32.xlu0 %v5343
    %v5345 = vpop.xlane.xlu0 %5344
    %v5346 = vsel %vm1835, %v5298, 0.0
    %5347 = vadd.xlane.f32.xlu0 %v5346
    %v5348 = vpop.xlane.xlu0 %5347
    %v5349 = vsel %vm1835, %v5300, 0.0
    %5350 = vadd.xlane.f32.xlu0 %v5349
    %v5351 = vpop.xlane.xlu0 %5350
    %v5352 = vsel %vm1835, %v5302, 0.0
    %5353 = vadd.xlane.f32.xlu0 %v5352
    %v5354 = vpop.xlane.xlu0 %5353
    %v5355 = vsel %vm1835, %v5304, 0.0
    %5356 = vadd.xlane.f32.xlu0 %v5355
    %v5357 = vpop.xlane.xlu0 %5356
    %v5358 = vsel %vm1835, %v5306, 0.0
    %5359 = vadd.xlane.f32.xlu0 %v5358
    %v5360 = vpop.xlane.xlu0 %5359
    %v5361 = vsel %vm1835, %v5308, 0.0
    %5362 = vadd.xlane.f32.xlu0 %v5361
    %v5363 = vpop.xlane.xlu0 %5362
    %v5364 = vsel %vm1835, %v5310, 0.0
    %5365 = vadd.xlane.f32.xlu0 %v5364
    %v5366 = vpop.xlane.xlu0 %5365
    %v5367 = vsel %vm1835, %v5312, 0.0
    %5368 = vadd.xlane.f32.xlu0 %v5367
    %v5369 = vpop.xlane.xlu0 %5368
    %v5370 = vsel %vm1835, %v5314, 0.0
    %5371 = vadd.xlane.f32.xlu0 %v5370
    %v5372 = vpop.xlane.xlu0 %5371
    %v5373 = vsel %vm1835, %v5316, 0.0
    %5374 = vadd.xlane.f32.xlu0 %v5373
    %v5375 = vpop.xlane.xlu0 %5374
    %v5376 = vsel %vm1835, %v5318, 0.0
    %5377 = vadd.xlane.f32.xlu0 %v5376
    %v5378 = vpop.xlane.xlu0 %5377
    %v5379 = vsel %vm1835, %v5320, 0.0
    %5380 = vadd.xlane.f32.xlu0 %v5379
    %v5381 = vpop.xlane.xlu0 %5380
    %v5382 = vsel %vm1835, %v5322, 0.0
    %5383 = vadd.xlane.f32.xlu0 %v5382
    %v5384 = vpop.xlane.xlu0 %5383
    %v5385 = vsel %vm1835, %v5324, 0.0
    %5386 = vadd.xlane.f32.xlu0 %v5385
    %v5387 = vpop.xlane.xlu0 %5386
    %v5388 = vsel %vm1835, %v5326, 0.0
    %5389 = vadd.xlane.f32.xlu0 %v5388
    %v5390 = vpop.xlane.xlu0 %5389
    %v5391 = vmul.f32 %v5345, 0.5
    %v5392 = vmul.f32 %v5348, 0.5
    %v5393 = vmul.f32 %v5351, 0.5
    %v5394 = vmul.f32 %v5354, 0.5
    %v5395 = vmul.f32 %v5357, 0.5
    %v5396 = vmul.f32 %v5360, 0.5
    %v5397 = vmul.f32 %v5363, 0.5
    %v5398 = vmul.f32 %v5366, 0.5
    %v5399 = vmul.f32 %v5369, 0.5
    %v5400 = vmul.f32 %v5372, 0.5
    %v5401 = vmul.f32 %v5375, 0.5
    %v5402 = vmul.f32 %v5378, 0.5
    %v5403 = vmul.f32 %v5381, 0.5
    %v5404 = vmul.f32 %v5384, 0.5
    %v5405 = vmul.f32 %v5387, 0.5
    %v5406 = vmul.f32 %v5390, 0.5
    %v5407 = vmul.f32 %v4604, %v4604
    %v5408 = vmul.f32 %v4605, %v4605
    %v5409 = vmul.f32 %v4606, %v4606
    %v5410 = vmul.f32 %v4607, %v4607
    %v5411 = vmul.f32 %v4608, %v4608
    %v5412 = vmul.f32 %v4609, %v4609
    %v5413 = vmul.f32 %v4610, %v4610
    %v5414 = vmul.f32 %v4611, %v4611
    %v5415 = vmul.f32 %v4612, %v4612
    %v5416 = vmul.f32 %v4613, %v4613
    %v5417 = vmul.f32 %v4614, %v4614
    %v5418 = vmul.f32 %v4615, %v4615
    %v5419 = vmul.f32 %v4616, %v4616
    %v5420 = vmul.f32 %v4617, %v4617
    %v5421 = vmul.f32 %v4618, %v4618
    %v5422 = vmul.f32 %v4619, %v4619
    %v5423 = vmul.f32 %v5247, %v5279
    %v5424 = vmul.f32 %v5248, %v5280
    %v5425 = vmul.f32 %v5249, %v5281
    %v5426 = vmul.f32 %v5250, %v5282
    %v5427 = vmul.f32 %v5251, %v5283
    %v5428 = vmul.f32 %v5252, %v5284
    %v5429 = vmul.f32 %v5253, %v5285
    %v5430 = vmul.f32 %v5254, %v5286
    %v5431 = vmul.f32 %v5255, %v5287
    %v5432 = vmul.f32 %v5256, %v5288
    %v5433 = vmul.f32 %v5257, %v5289
    %v5434 = vmul.f32 %v5258, %v5290
    %v5435 = vmul.f32 %v5259, %v5291
    %v5436 = vmul.f32 %v5260, %v5292
    %v5437 = vmul.f32 %v5261, %v5293
    %v5438 = vmul.f32 %v5262, %v5294
    %v5439 = vmul.f32 %v5423, %v5279
    %v5440 = vmul.f32 %v5424, %v5280
    %v5441 = vmul.f32 %v5425, %v5281
    %v5442 = vmul.f32 %v5426, %v5282
    %v5443 = vmul.f32 %v5427, %v5283
    %v5444 = vmul.f32 %v5428, %v5284
    %v5445 = vmul.f32 %v5429, %v5285
    %v5446 = vmul.f32 %v5430, %v5286
    %v5447 = vmul.f32 %v5431, %v5287
    %v5448 = vmul.f32 %v5432, %v5288
    %v5449 = vmul.f32 %v5433, %v5289
    %v5450 = vmul.f32 %v5434, %v5290
    %v5451 = vmul.f32 %v5435, %v5291
    %v5452 = vmul.f32 %v5436, %v5292
    %v5453 = vmul.f32 %v5437, %v5293
    %v5454 = vmul.f32 %v5438, %v5294
    %5471 = vrot.lane.b32.xlu0 %v5439, 3
    %v5472 = vpop.permute.xlu0 %5471
    %5473 = vrot.lane.b32.xlu0 %v5440, 3
    %v5474 = vpop.permute.xlu0 %5473
    %5475 = vrot.lane.b32.xlu0 %v5441, 3
    %v5476 = vpop.permute.xlu0 %5475
    %5477 = vrot.lane.b32.xlu0 %v5442, 3
    %v5478 = vpop.permute.xlu0 %5477
    %5479 = vrot.lane.b32.xlu0 %v5443, 3
    %v5480 = vpop.permute.xlu0 %5479
    %5481 = vrot.lane.b32.xlu0 %v5444, 3
    %v5482 = vpop.permute.xlu0 %5481
    %5483 = vrot.lane.b32.xlu0 %v5445, 3
    %v5484 = vpop.permute.xlu0 %5483
    %5485 = vrot.lane.b32.xlu0 %v5446, 3
    %v5486 = vpop.permute.xlu0 %5485
    %5487 = vrot.lane.b32.xlu0 %v5447, 3
    %v5488 = vpop.permute.xlu0 %5487
    %5489 = vrot.lane.b32.xlu0 %v5448, 3
    %v5490 = vpop.permute.xlu0 %5489
    %5491 = vrot.lane.b32.xlu0 %v5449, 3
    %v5492 = vpop.permute.xlu0 %5491
    %5493 = vrot.lane.b32.xlu0 %v5450, 3
    %v5494 = vpop.permute.xlu0 %5493
    %5495 = vrot.lane.b32.xlu0 %v5451, 3
    %v5496 = vpop.permute.xlu0 %5495
    %5497 = vrot.lane.b32.xlu0 %v5452, 3
    %v5498 = vpop.permute.xlu0 %5497
    %5499 = vrot.lane.b32.xlu0 %v5453, 3
    %v5500 = vpop.permute.xlu0 %5499
    %5501 = vrot.lane.b32.xlu0 %v5454, 3
    %v5502 = vpop.permute.xlu0 %5501
    %v5519 = vmul.f32 %v5407, %v5472
    %v5520 = vmul.f32 %v5408, %v5474
    %v5521 = vmul.f32 %v5409, %v5476
    %v5522 = vmul.f32 %v5410, %v5478
    %v5523 = vmul.f32 %v5411, %v5480
    %v5524 = vmul.f32 %v5412, %v5482
    %v5525 = vmul.f32 %v5413, %v5484
    %v5526 = vmul.f32 %v5414, %v5486
    %v5527 = vmul.f32 %v5415, %v5488
    %v5528 = vmul.f32 %v5416, %v5490
    %v5529 = vmul.f32 %v5417, %v5492
    %v5530 = vmul.f32 %v5418, %v5494
    %v5531 = vmul.f32 %v5419, %v5496
    %v5532 = vmul.f32 %v5420, %v5498
    %v5533 = vmul.f32 %v5421, %v5500
    %v5534 = vmul.f32 %v5422, %v5502
    %5551 = vrot.lane.b32.xlu0 %v5407, 126
    %v5552 = vpop.permute.xlu0 %5551
    %5553 = vrot.lane.b32.xlu0 %v5408, 126
    %v5554 = vpop.permute.xlu0 %5553
    %5555 = vrot.lane.b32.xlu0 %v5409, 126
    %v5556 = vpop.permute.xlu0 %5555
    %5557 = vrot.lane.b32.xlu0 %v5410, 126
    %v5558 = vpop.permute.xlu0 %5557
    %5559 = vrot.lane.b32.xlu0 %v5411, 126
    %v5560 = vpop.permute.xlu0 %5559
    %5561 = vrot.lane.b32.xlu0 %v5412, 126
    %v5562 = vpop.permute.xlu0 %5561
    %5563 = vrot.lane.b32.xlu0 %v5413, 126
    %v5564 = vpop.permute.xlu0 %5563
    %5565 = vrot.lane.b32.xlu0 %v5414, 126
    %v5566 = vpop.permute.xlu0 %5565
    %5567 = vrot.lane.b32.xlu0 %v5415, 126
    %v5568 = vpop.permute.xlu0 %5567
    %5569 = vrot.lane.b32.xlu0 %v5416, 126
    %v5570 = vpop.permute.xlu0 %5569
    %5571 = vrot.lane.b32.xlu0 %v5417, 126
    %v5572 = vpop.permute.xlu0 %5571
    %5573 = vrot.lane.b32.xlu0 %v5418, 126
    %v5574 = vpop.permute.xlu0 %5573
    %5575 = vrot.lane.b32.xlu0 %v5419, 126
    %v5576 = vpop.permute.xlu0 %5575
    %5577 = vrot.lane.b32.xlu0 %v5420, 126
    %v5578 = vpop.permute.xlu0 %5577
    %5579 = vrot.lane.b32.xlu0 %v5421, 126
    %v5580 = vpop.permute.xlu0 %5579
    %5581 = vrot.lane.b32.xlu0 %v5422, 126
    %v5582 = vpop.permute.xlu0 %5581
    %v5599 = vadd.f32 %v5519, %v5552
    %v5600 = vadd.f32 %v5520, %v5554
    %v5601 = vadd.f32 %v5521, %v5556
    %v5602 = vadd.f32 %v5522, %v5558
    %v5603 = vadd.f32 %v5523, %v5560
    %v5604 = vadd.f32 %v5524, %v5562
    %v5605 = vadd.f32 %v5525, %v5564
    %v5606 = vadd.f32 %v5526, %v5566
    %v5607 = vadd.f32 %v5527, %v5568
    %v5608 = vadd.f32 %v5528, %v5570
    %v5609 = vadd.f32 %v5529, %v5572
    %v5610 = vadd.f32 %v5530, %v5574
    %v5611 = vadd.f32 %v5531, %v5576
    %v5612 = vadd.f32 %v5532, %v5578
    %v5613 = vadd.f32 %v5533, %v5580
    %v5614 = vadd.f32 %v5534, %v5582
    %5631 = vrot.lane.b32.xlu0 %v5599, 125
    %v5632 = vpop.permute.xlu0 %5631
    %5633 = vrot.lane.b32.xlu0 %v5600, 125
    %v5634 = vpop.permute.xlu0 %5633
    %5635 = vrot.lane.b32.xlu0 %v5601, 125
    %v5636 = vpop.permute.xlu0 %5635
    %5637 = vrot.lane.b32.xlu0 %v5602, 125
    %v5638 = vpop.permute.xlu0 %5637
    %5639 = vrot.lane.b32.xlu0 %v5603, 125
    %v5640 = vpop.permute.xlu0 %5639
    %5641 = vrot.lane.b32.xlu0 %v5604, 125
    %v5642 = vpop.permute.xlu0 %5641
    %5643 = vrot.lane.b32.xlu0 %v5605, 125
    %v5644 = vpop.permute.xlu0 %5643
    %5645 = vrot.lane.b32.xlu0 %v5606, 125
    %v5646 = vpop.permute.xlu0 %5645
    %5647 = vrot.lane.b32.xlu0 %v5607, 125
    %v5648 = vpop.permute.xlu0 %5647
    %5649 = vrot.lane.b32.xlu0 %v5608, 125
    %v5650 = vpop.permute.xlu0 %5649
    %5651 = vrot.lane.b32.xlu0 %v5609, 125
    %v5652 = vpop.permute.xlu0 %5651
    %5653 = vrot.lane.b32.xlu0 %v5610, 125
    %v5654 = vpop.permute.xlu0 %5653
    %5655 = vrot.lane.b32.xlu0 %v5611, 125
    %v5656 = vpop.permute.xlu0 %5655
    %5657 = vrot.lane.b32.xlu0 %v5612, 125
    %v5658 = vpop.permute.xlu0 %5657
    %5659 = vrot.lane.b32.xlu0 %v5613, 125
    %v5660 = vpop.permute.xlu0 %5659
    %5661 = vrot.lane.b32.xlu0 %v5614, 125
    %v5662 = vpop.permute.xlu0 %5661
    %v5679 = vsel %vm1835, %v5632, 0.0
    %5680 = vadd.xlane.f32.xlu0 %v5679
    %v5681 = vpop.xlane.xlu0 %5680
    %v5682 = vsel %vm1835, %v5634, 0.0
    %5683 = vadd.xlane.f32.xlu0 %v5682
    %v5684 = vpop.xlane.xlu0 %5683
    %v5685 = vsel %vm1835, %v5636, 0.0
    %5686 = vadd.xlane.f32.xlu0 %v5685
    %v5687 = vpop.xlane.xlu0 %5686
    %v5688 = vsel %vm1835, %v5638, 0.0
    %5689 = vadd.xlane.f32.xlu0 %v5688
    %v5690 = vpop.xlane.xlu0 %5689
    %v5691 = vsel %vm1835, %v5640, 0.0
    %5692 = vadd.xlane.f32.xlu0 %v5691
    %v5693 = vpop.xlane.xlu0 %5692
    %v5694 = vsel %vm1835, %v5642, 0.0
    %5695 = vadd.xlane.f32.xlu0 %v5694
    %v5696 = vpop.xlane.xlu0 %5695
    %v5697 = vsel %vm1835, %v5644, 0.0
    %5698 = vadd.xlane.f32.xlu0 %v5697
    %v5699 = vpop.xlane.xlu0 %5698
    %v5700 = vsel %vm1835, %v5646, 0.0
    %5701 = vadd.xlane.f32.xlu0 %v5700
    %v5702 = vpop.xlane.xlu0 %5701
    %v5703 = vsel %vm1835, %v5648, 0.0
    %5704 = vadd.xlane.f32.xlu0 %v5703
    %v5705 = vpop.xlane.xlu0 %5704
    %v5706 = vsel %vm1835, %v5650, 0.0
    %5707 = vadd.xlane.f32.xlu0 %v5706
    %v5708 = vpop.xlane.xlu0 %5707
    %v5709 = vsel %vm1835, %v5652, 0.0
    %5710 = vadd.xlane.f32.xlu0 %v5709
    %v5711 = vpop.xlane.xlu0 %5710
    %v5712 = vsel %vm1835, %v5654, 0.0
    %5713 = vadd.xlane.f32.xlu0 %v5712
    %v5714 = vpop.xlane.xlu0 %5713
    %v5715 = vsel %vm1835, %v5656, 0.0
    %5716 = vadd.xlane.f32.xlu0 %v5715
    %v5717 = vpop.xlane.xlu0 %5716
    %v5718 = vsel %vm1835, %v5658, 0.0
    %5719 = vadd.xlane.f32.xlu0 %v5718
    %v5720 = vpop.xlane.xlu0 %5719
    %v5721 = vsel %vm1835, %v5660, 0.0
    %5722 = vadd.xlane.f32.xlu0 %v5721
    %v5723 = vpop.xlane.xlu0 %5722
    %v5724 = vsel %vm1835, %v5662, 0.0
    %5725 = vadd.xlane.f32.xlu0 %v5724
    %v5726 = vpop.xlane.xlu0 %5725
    %v5727 = vmul.f32 %v5681, 0.5
    %v5728 = vmul.f32 %v5684, 0.5
    %v5729 = vmul.f32 %v5687, 0.5
    %v5730 = vmul.f32 %v5690, 0.5
    %v5731 = vmul.f32 %v5693, 0.5
    %v5732 = vmul.f32 %v5696, 0.5
    %v5733 = vmul.f32 %v5699, 0.5
    %v5734 = vmul.f32 %v5702, 0.5
    %v5735 = vmul.f32 %v5705, 0.5
    %v5736 = vmul.f32 %v5708, 0.5
    %v5737 = vmul.f32 %v5711, 0.5
    %v5738 = vmul.f32 %v5714, 0.5
    %v5739 = vmul.f32 %v5717, 0.5
    %v5740 = vmul.f32 %v5720, 0.5
    %v5741 = vmul.f32 %v5723, 0.5
    %v5742 = vmul.f32 %v5726, 0.5
    %v5743 = vmul.f32 %v5391, %v5391
    %v5744 = vmul.f32 %v5392, %v5392
    %v5745 = vmul.f32 %v5393, %v5393
    %v5746 = vmul.f32 %v5394, %v5394
    %v5747 = vmul.f32 %v5395, %v5395
    %v5748 = vmul.f32 %v5396, %v5396
    %v5749 = vmul.f32 %v5397, %v5397
    %v5750 = vmul.f32 %v5398, %v5398
    %v5751 = vmul.f32 %v5399, %v5399
    %v5752 = vmul.f32 %v5400, %v5400
    %v5753 = vmul.f32 %v5401, %v5401
    %v5754 = vmul.f32 %v5402, %v5402
    %v5755 = vmul.f32 %v5403, %v5403
    %v5756 = vmul.f32 %v5404, %v5404
    %v5757 = vmul.f32 %v5405, %v5405
    %v5758 = vmul.f32 %v5406, %v5406
    %v5759 = vsub.f32 %v5727, %v5743
    %v5760 = vsub.f32 %v5728, %v5744
    %v5761 = vsub.f32 %v5729, %v5745
    %v5762 = vsub.f32 %v5730, %v5746
    %v5763 = vsub.f32 %v5731, %v5747
    %v5764 = vsub.f32 %v5732, %v5748
    %v5765 = vsub.f32 %v5733, %v5749
    %v5766 = vsub.f32 %v5734, %v5750
    %v5767 = vsub.f32 %v5735, %v5751
    %v5768 = vsub.f32 %v5736, %v5752
    %v5769 = vsub.f32 %v5737, %v5753
    %v5770 = vsub.f32 %v5738, %v5754
    %v5771 = vsub.f32 %v5739, %v5755
    %v5772 = vsub.f32 %v5740, %v5756
    %v5773 = vsub.f32 %v5741, %v5757
    %v5774 = vsub.f32 %v5742, %v5758
    %v5775 = vmax.f32 %v5759, 0.0
    %v5776 = vmax.f32 %v5760, 0.0
    %v5777 = vmax.f32 %v5761, 0.0
    %v5778 = vmax.f32 %v5762, 0.0
    %v5779 = vmax.f32 %v5763, 0.0
    %v5780 = vmax.f32 %v5764, 0.0
    %v5781 = vmax.f32 %v5765, 0.0
    %v5782 = vmax.f32 %v5766, 0.0
    %v5783 = vmax.f32 %v5767, 0.0
    %v5784 = vmax.f32 %v5768, 0.0
    %v5785 = vmax.f32 %v5769, 0.0
    %v5786 = vmax.f32 %v5770, 0.0
    %v5787 = vmax.f32 %v5771, 0.0
    %v5788 = vmax.f32 %v5772, 0.0
    %v5789 = vmax.f32 %v5773, 0.0
    %v5790 = vmax.f32 %v5774, 0.0
    %v5791 = vadd.f32 %v5775, 1e-05
    %v5792 = vadd.f32 %v5776, 1e-05
    %v5793 = vadd.f32 %v5777, 1e-05
    %v5794 = vadd.f32 %v5778, 1e-05
    %v5795 = vadd.f32 %v5779, 1e-05
    %v5796 = vadd.f32 %v5780, 1e-05
    %v5797 = vadd.f32 %v5781, 1e-05
    %v5798 = vadd.f32 %v5782, 1e-05
    %v5799 = vadd.f32 %v5783, 1e-05
    %v5800 = vadd.f32 %v5784, 1e-05
    %v5801 = vadd.f32 %v5785, 1e-05
    %v5802 = vadd.f32 %v5786, 1e-05
    %v5803 = vadd.f32 %v5787, 1e-05
    %v5804 = vadd.f32 %v5788, 1e-05
    %v5805 = vadd.f32 %v5789, 1e-05
    %v5806 = vadd.f32 %v5790, 1e-05
    %v5807 = vrsqrt.pop %v5791
    %v5808 = vrsqrt.pop %v5792
    %v5809 = vrsqrt.pop %v5793
    %v5810 = vrsqrt.pop %v5794
    %v5811 = vrsqrt.pop %v5795
    %v5812 = vrsqrt.pop %v5796
    %v5813 = vrsqrt.pop %v5797
    %v5814 = vrsqrt.pop %v5798
    %v5815 = vrsqrt.pop %v5799
    %v5816 = vrsqrt.pop %v5800
    %v5817 = vrsqrt.pop %v5801
    %v5818 = vrsqrt.pop %v5802
    %v5819 = vrsqrt.pop %v5803
    %v5820 = vrsqrt.pop %v5804
    %v5821 = vrsqrt.pop %v5805
    %v5822 = vrsqrt.pop %v5806
    %v5823 = vmul.f32 %v4604, %v5807
    %v5824 = vmul.f32 %v4605, %v5808
    %v5825 = vmul.f32 %v4606, %v5809
    %v5826 = vmul.f32 %v4607, %v5810
    %v5827 = vmul.f32 %v4608, %v5811
    %v5828 = vmul.f32 %v4609, %v5812
    %v5829 = vmul.f32 %v4610, %v5813
    %v5830 = vmul.f32 %v4611, %v5814
    %v5831 = vmul.f32 %v4612, %v5815
    %v5832 = vmul.f32 %v4613, %v5816
    %v5833 = vmul.f32 %v4614, %v5817
    %v5834 = vmul.f32 %v4615, %v5818
    %v5835 = vmul.f32 %v4616, %v5819
    %v5836 = vmul.f32 %v4617, %v5820
    %v5837 = vmul.f32 %v4618, %v5821
    %v5838 = vmul.f32 %v4619, %v5822
    %5839 = vrot.lane.b32.xlu0 %v4604, 125
    %v5840 = vpop.permute.xlu0 %5839
    %5841 = vrot.lane.b32.xlu0 %v4605, 125
    %v5842 = vpop.permute.xlu0 %5841
    %5843 = vrot.lane.b32.xlu0 %v4606, 125
    %v5844 = vpop.permute.xlu0 %5843
    %5845 = vrot.lane.b32.xlu0 %v4607, 125
    %v5846 = vpop.permute.xlu0 %5845
    %5847 = vrot.lane.b32.xlu0 %v4608, 125
    %v5848 = vpop.permute.xlu0 %5847
    %5849 = vrot.lane.b32.xlu0 %v4609, 125
    %v5850 = vpop.permute.xlu0 %5849
    %5851 = vrot.lane.b32.xlu0 %v4610, 125
    %v5852 = vpop.permute.xlu0 %5851
    %5853 = vrot.lane.b32.xlu0 %v4611, 125
    %v5854 = vpop.permute.xlu0 %5853
    %5855 = vrot.lane.b32.xlu0 %v4612, 125
    %v5856 = vpop.permute.xlu0 %5855
    %5857 = vrot.lane.b32.xlu0 %v4613, 125
    %v5858 = vpop.permute.xlu0 %5857
    %5859 = vrot.lane.b32.xlu0 %v4614, 125
    %v5860 = vpop.permute.xlu0 %5859
    %5861 = vrot.lane.b32.xlu0 %v4615, 125
    %v5862 = vpop.permute.xlu0 %5861
    %5863 = vrot.lane.b32.xlu0 %v4616, 125
    %v5864 = vpop.permute.xlu0 %5863
    %5865 = vrot.lane.b32.xlu0 %v4617, 125
    %v5866 = vpop.permute.xlu0 %5865
    %5867 = vrot.lane.b32.xlu0 %v4618, 125
    %v5868 = vpop.permute.xlu0 %5867
    %5869 = vrot.lane.b32.xlu0 %v4619, 125
    %v5870 = vpop.permute.xlu0 %5869
    %v5887 = vmul.f32 %v5279, %v5840
    %v5888 = vmul.f32 %v5280, %v5842
    %v5889 = vmul.f32 %v5281, %v5844
    %v5890 = vmul.f32 %v5282, %v5846
    %v5891 = vmul.f32 %v5283, %v5848
    %v5892 = vmul.f32 %v5284, %v5850
    %v5893 = vmul.f32 %v5285, %v5852
    %v5894 = vmul.f32 %v5286, %v5854
    %v5895 = vmul.f32 %v5287, %v5856
    %v5896 = vmul.f32 %v5288, %v5858
    %v5897 = vmul.f32 %v5289, %v5860
    %v5898 = vmul.f32 %v5290, %v5862
    %v5899 = vmul.f32 %v5291, %v5864
    %v5900 = vmul.f32 %v5292, %v5866
    %v5901 = vmul.f32 %v5293, %v5868
    %v5902 = vmul.f32 %v5294, %v5870
    %5904 = vset.pattern.permute.xlu0 1
    %5905 = vperm.xlu0 %5904, %v5823
    %v5906 = vpop.permute.xlu0 %5905
    %5909 = vset.pattern.permute.xlu0 1
    %5910 = vperm.xlu0 %5909, %v5824
    %v5911 = vpop.permute.xlu0 %5910
    %5914 = vset.pattern.permute.xlu0 1
    %5915 = vperm.xlu0 %5914, %v5825
    %v5916 = vpop.permute.xlu0 %5915
    %5919 = vset.pattern.permute.xlu0 1
    %5920 = vperm.xlu0 %5919, %v5826
    %v5921 = vpop.permute.xlu0 %5920
    %5924 = vset.pattern.permute.xlu0 1
    %5925 = vperm.xlu0 %5924, %v5827
    %v5926 = vpop.permute.xlu0 %5925
    %5929 = vset.pattern.permute.xlu0 1
    %5930 = vperm.xlu0 %5929, %v5828
    %v5931 = vpop.permute.xlu0 %5930
    %5934 = vset.pattern.permute.xlu0 1
    %5935 = vperm.xlu0 %5934, %v5829
    %v5936 = vpop.permute.xlu0 %5935
    %5939 = vset.pattern.permute.xlu0 1
    %5940 = vperm.xlu0 %5939, %v5830
    %v5941 = vpop.permute.xlu0 %5940
    %5944 = vset.pattern.permute.xlu0 1
    %5945 = vperm.xlu0 %5944, %v5831
    %v5946 = vpop.permute.xlu0 %5945
    %5949 = vset.pattern.permute.xlu0 1
    %5950 = vperm.xlu0 %5949, %v5832
    %v5951 = vpop.permute.xlu0 %5950
    %5954 = vset.pattern.permute.xlu0 1
    %5955 = vperm.xlu0 %5954, %v5833
    %v5956 = vpop.permute.xlu0 %5955
    %5959 = vset.pattern.permute.xlu0 1
    %5960 = vperm.xlu0 %5959, %v5834
    %v5961 = vpop.permute.xlu0 %5960
    %5964 = vset.pattern.permute.xlu0 1
    %5965 = vperm.xlu0 %5964, %v5835
    %v5966 = vpop.permute.xlu0 %5965
    %5969 = vset.pattern.permute.xlu0 1
    %5970 = vperm.xlu0 %5969, %v5836
    %v5971 = vpop.permute.xlu0 %5970
    %5974 = vset.pattern.permute.xlu0 1
    %5975 = vperm.xlu0 %5974, %v5837
    %v5976 = vpop.permute.xlu0 %5975
    %5979 = vset.pattern.permute.xlu0 1
    %5980 = vperm.xlu0 %5979, %v5838
    %v5981 = vpop.permute.xlu0 %5980
    %v5983 = vmul.f32 %v5887, %v5906
    %v5984 = vmul.f32 %v5888, %v5911
    %v5985 = vmul.f32 %v5889, %v5916
    %v5986 = vmul.f32 %v5890, %v5921
    %v5987 = vmul.f32 %v5891, %v5926
    %v5988 = vmul.f32 %v5892, %v5931
    %v5989 = vmul.f32 %v5893, %v5936
    %v5990 = vmul.f32 %v5894, %v5941
    %v5991 = vmul.f32 %v5895, %v5946
    %v5992 = vmul.f32 %v5896, %v5951
    %v5993 = vmul.f32 %v5897, %v5956
    %v5994 = vmul.f32 %v5898, %v5961
    %v5995 = vmul.f32 %v5899, %v5966
    %v5996 = vmul.f32 %v5900, %v5971
    %v5997 = vmul.f32 %v5901, %v5976
    %v5998 = vmul.f32 %v5902, %v5981
    %v5999 = vmul.f32 %v5183, %v5279
    %v6000 = vmul.f32 %v5184, %v5280
    %v6001 = vmul.f32 %v5185, %v5281
    %v6002 = vmul.f32 %v5186, %v5282
    %v6003 = vmul.f32 %v5187, %v5283
    %v6004 = vmul.f32 %v5188, %v5284
    %v6005 = vmul.f32 %v5189, %v5285
    %v6006 = vmul.f32 %v5190, %v5286
    %v6007 = vmul.f32 %v5191, %v5287
    %v6008 = vmul.f32 %v5192, %v5288
    %v6009 = vmul.f32 %v5193, %v5289
    %v6010 = vmul.f32 %v5194, %v5290
    %v6011 = vmul.f32 %v5195, %v5291
    %v6012 = vmul.f32 %v5196, %v5292
    %v6013 = vmul.f32 %v5197, %v5293
    %v6014 = vmul.f32 %v5198, %v5294
    %v6015 = vmul.f32 %v5999, %v5840
    %v6016 = vmul.f32 %v6000, %v5842
    %v6017 = vmul.f32 %v6001, %v5844
    %v6018 = vmul.f32 %v6002, %v5846
    %v6019 = vmul.f32 %v6003, %v5848
    %v6020 = vmul.f32 %v6004, %v5850
    %v6021 = vmul.f32 %v6005, %v5852
    %v6022 = vmul.f32 %v6006, %v5854
    %v6023 = vmul.f32 %v6007, %v5856
    %v6024 = vmul.f32 %v6008, %v5858
    %v6025 = vmul.f32 %v6009, %v5860
    %v6026 = vmul.f32 %v6010, %v5862
    %v6027 = vmul.f32 %v6011, %v5864
    %v6028 = vmul.f32 %v6012, %v5866
    %v6029 = vmul.f32 %v6013, %v5868
    %v6030 = vmul.f32 %v6014, %v5870
    %6047 = vrot.lane.b32.xlu0 %v6015, 5
    %v6048 = vpop.permute.xlu0 %6047
    %6049 = vrot.lane.b32.xlu0 %v6016, 5
    %v6050 = vpop.permute.xlu0 %6049
    %6051 = vrot.lane.b32.xlu0 %v6017, 5
    %v6052 = vpop.permute.xlu0 %6051
    %6053 = vrot.lane.b32.xlu0 %v6018, 5
    %v6054 = vpop.permute.xlu0 %6053
    %6055 = vrot.lane.b32.xlu0 %v6019, 5
    %v6056 = vpop.permute.xlu0 %6055
    %6057 = vrot.lane.b32.xlu0 %v6020, 5
    %v6058 = vpop.permute.xlu0 %6057
    %6059 = vrot.lane.b32.xlu0 %v6021, 5
    %v6060 = vpop.permute.xlu0 %6059
    %6061 = vrot.lane.b32.xlu0 %v6022, 5
    %v6062 = vpop.permute.xlu0 %6061
    %6063 = vrot.lane.b32.xlu0 %v6023, 5
    %v6064 = vpop.permute.xlu0 %6063
    %6065 = vrot.lane.b32.xlu0 %v6024, 5
    %v6066 = vpop.permute.xlu0 %6065
    %6067 = vrot.lane.b32.xlu0 %v6025, 5
    %v6068 = vpop.permute.xlu0 %6067
    %6069 = vrot.lane.b32.xlu0 %v6026, 5
    %v6070 = vpop.permute.xlu0 %6069
    %6071 = vrot.lane.b32.xlu0 %v6027, 5
    %v6072 = vpop.permute.xlu0 %6071
    %6073 = vrot.lane.b32.xlu0 %v6028, 5
    %v6074 = vpop.permute.xlu0 %6073
    %6075 = vrot.lane.b32.xlu0 %v6029, 5
    %v6076 = vpop.permute.xlu0 %6075
    %6077 = vrot.lane.b32.xlu0 %v6030, 5
    %v6078 = vpop.permute.xlu0 %6077
    %v6095 = vsub.f32 %v4604, %v6048
    %v6096 = vsub.f32 %v4605, %v6050
    %v6097 = vsub.f32 %v4606, %v6052
    %v6098 = vsub.f32 %v4607, %v6054
    %v6099 = vsub.f32 %v4608, %v6056
    %v6100 = vsub.f32 %v4609, %v6058
    %v6101 = vsub.f32 %v4610, %v6060
    %v6102 = vsub.f32 %v4611, %v6062
    %v6103 = vsub.f32 %v4612, %v6064
    %v6104 = vsub.f32 %v4613, %v6066
    %v6105 = vsub.f32 %v4614, %v6068
    %v6106 = vsub.f32 %v4615, %v6070
    %v6107 = vsub.f32 %v4616, %v6072
    %v6108 = vsub.f32 %v4617, %v6074
    %v6109 = vsub.f32 %v4618, %v6076
    %v6110 = vsub.f32 %v4619, %v6078
    %v6111 = vsub.f32 %v6095, %v5391
    %v6112 = vsub.f32 %v6096, %v5392
    %v6113 = vsub.f32 %v6097, %v5393
    %v6114 = vsub.f32 %v6098, %v5394
    %v6115 = vsub.f32 %v6099, %v5395
    %v6116 = vsub.f32 %v6100, %v5396
    %v6117 = vsub.f32 %v6101, %v5397
    %v6118 = vsub.f32 %v6102, %v5398
    %v6119 = vsub.f32 %v6103, %v5399
    %v6120 = vsub.f32 %v6104, %v5400
    %v6121 = vsub.f32 %v6105, %v5401
    %v6122 = vsub.f32 %v6106, %v5402
    %v6123 = vsub.f32 %v6107, %v5403
    %v6124 = vsub.f32 %v6108, %v5404
    %v6125 = vsub.f32 %v6109, %v5405
    %v6126 = vsub.f32 %v6110, %v5406
    %v6127 = vmul.f32 %v6111, %v5906
    %v6128 = vmul.f32 %v6112, %v5911
    %v6129 = vmul.f32 %v6113, %v5916
    %v6130 = vmul.f32 %v6114, %v5921
    %v6131 = vmul.f32 %v6115, %v5926
    %v6132 = vmul.f32 %v6116, %v5931
    %v6133 = vmul.f32 %v6117, %v5936
    %v6134 = vmul.f32 %v6118, %v5941
    %v6135 = vmul.f32 %v6119, %v5946
    %v6136 = vmul.f32 %v6120, %v5951
    %v6137 = vmul.f32 %v6121, %v5956
    %v6138 = vmul.f32 %v6122, %v5961
    %v6139 = vmul.f32 %v6123, %v5966
    %v6140 = vmul.f32 %v6124, %v5971
    %v6141 = vmul.f32 %v6125, %v5976
    %v6142 = vmul.f32 %v6126, %v5981
    %6143 = vset.pattern.permute.xlu0 2
    %6144 = vperm.xlu0 %6143, %v4604
    %v6145 = vpop.permute.xlu0 %6144
    %6147 = vset.pattern.permute.xlu0 2
    %6148 = vperm.xlu0 %6147, %v4605
    %v6149 = vpop.permute.xlu0 %6148
    %6151 = vset.pattern.permute.xlu0 2
    %6152 = vperm.xlu0 %6151, %v4606
    %v6153 = vpop.permute.xlu0 %6152
    %6155 = vset.pattern.permute.xlu0 2
    %6156 = vperm.xlu0 %6155, %v4607
    %v6157 = vpop.permute.xlu0 %6156
    %6159 = vset.pattern.permute.xlu0 2
    %6160 = vperm.xlu0 %6159, %v4608
    %v6161 = vpop.permute.xlu0 %6160
    %6163 = vset.pattern.permute.xlu0 2
    %6164 = vperm.xlu0 %6163, %v4609
    %v6165 = vpop.permute.xlu0 %6164
    %6167 = vset.pattern.permute.xlu0 2
    %6168 = vperm.xlu0 %6167, %v4610
    %v6169 = vpop.permute.xlu0 %6168
    %6171 = vset.pattern.permute.xlu0 2
    %6172 = vperm.xlu0 %6171, %v4611
    %v6173 = vpop.permute.xlu0 %6172
    %6175 = vset.pattern.permute.xlu0 2
    %6176 = vperm.xlu0 %6175, %v4612
    %v6177 = vpop.permute.xlu0 %6176
    %6179 = vset.pattern.permute.xlu0 2
    %6180 = vperm.xlu0 %6179, %v4613
    %v6181 = vpop.permute.xlu0 %6180
    %6183 = vset.pattern.permute.xlu0 2
    %6184 = vperm.xlu0 %6183, %v4614
    %v6185 = vpop.permute.xlu0 %6184
    %6187 = vset.pattern.permute.xlu0 2
    %6188 = vperm.xlu0 %6187, %v4615
    %v6189 = vpop.permute.xlu0 %6188
    %6191 = vset.pattern.permute.xlu0 2
    %6192 = vperm.xlu0 %6191, %v4616
    %v6193 = vpop.permute.xlu0 %6192
    %6195 = vset.pattern.permute.xlu0 2
    %6196 = vperm.xlu0 %6195, %v4617
    %v6197 = vpop.permute.xlu0 %6196
    %6199 = vset.pattern.permute.xlu0 2
    %6200 = vperm.xlu0 %6199, %v4618
    %v6201 = vpop.permute.xlu0 %6200
    %6203 = vset.pattern.permute.xlu0 2
    %6204 = vperm.xlu0 %6203, %v4619
    %v6205 = vpop.permute.xlu0 %6204
    %v6207 = vadd.f32 %v6127, %v6145
    %v6208 = vadd.f32 %v6128, %v6149
    %v6209 = vadd.f32 %v6129, %v6153
    %v6210 = vadd.f32 %v6130, %v6157
    %v6211 = vadd.f32 %v6131, %v6161
    %v6212 = vadd.f32 %v6132, %v6165
    %v6213 = vadd.f32 %v6133, %v6169
    %v6214 = vadd.f32 %v6134, %v6173
    %v6215 = vadd.f32 %v6135, %v6177
    %v6216 = vadd.f32 %v6136, %v6181
    %v6217 = vadd.f32 %v6137, %v6185
    %v6218 = vadd.f32 %v6138, %v6189
    %v6219 = vadd.f32 %v6139, %v6193
    %v6220 = vadd.f32 %v6140, %v6197
    %v6221 = vadd.f32 %v6141, %v6201
    %v6222 = vadd.f32 %v6142, %v6205
    %v6224 = vsel %vm1835, %v5983, 0
    %v6227 = vsel %vm1835, %v5984, 0
    %v6230 = vsel %vm1835, %v5985, 0
    %v6233 = vsel %vm1835, %v5986, 0
    %v6236 = vsel %vm1835, %v5987, 0
    %v6239 = vsel %vm1835, %v5988, 0
    %v6242 = vsel %vm1835, %v5989, 0
    %v6245 = vsel %vm1835, %v5990, 0
    %v6248 = vsel %vm1835, %v5991, 0
    %v6251 = vsel %vm1835, %v5992, 0
    %v6254 = vsel %vm1835, %v5993, 0
    %v6257 = vsel %vm1835, %v5994, 0
    %v6260 = vsel %vm1835, %v5995, 0
    %v6263 = vsel %vm1835, %v5996, 0
    %v6266 = vsel %vm1835, %v5997, 0
    %v6269 = vsel %vm1835, %v5998, 0
    %6271 = vmatprep.subr.mxu0 %v3704
    %6272 = vmatpush1.msra.mxu0 %v3702
    %6273 = vmatprep.subr.mxu0 0.0
    %6274 = vmatpush1.msra.mxu0 0.0
    %6275 = vmatprep.subr.mxu0 0.0
    %6276 = vmatpush1.msra.mxu0 0.0
    %6277 = vmatprep.subr.mxu0 0.0
    %6278 = vmatpush1.msra.mxu0 0.0
    %6279 = vmatprep.subr.mxu0 0.0
    %6280 = vmatpush1.msra.mxu0 0.0
    %6281 = vmatprep.subr.mxu0 0.0
    %6282 = vmatpush1.msra.mxu0 0.0
    %6283 = vmatprep.subr.mxu0 0.0
    %6284 = vmatpush1.msra.mxu0 0.0
    %6285 = vmatprep.subr.mxu0 0.0
    %6286 = vmatpush1.msra.mxu0 0.0
    %6287 = vmatprep.subr.mxu0 0.0
    %6288 = vmatpush1.msra.mxu0 0.0
    %6289 = vmatprep.subr.mxu0 0.0
    %6290 = vmatpush1.msra.mxu0 0.0
    %6291 = vmatprep.subr.mxu0 0.0
    %6292 = vmatpush1.msra.mxu0 0.0
    %6293 = vmatprep.subr.mxu0 0.0
    %6294 = vmatpush1.msra.mxu0 0.0
    %6295 = vmatprep.subr.mxu0 0.0
    %6296 = vmatpush1.msra.mxu0 0.0
    %6297 = vmatprep.subr.mxu0 0.0
    %6298 = vmatpush1.msra.mxu0 0.0
    %6299 = vmatprep.subr.mxu0 0.0
    %6300 = vmatpush1.msra.mxu0 0.0
    %6301 = vmatprep.subr.mxu0 0.0
    %6302 = vmatpush1.msra.mxu0 0.0
    %6303 = vmatprep.subr.mxu0 0.0
    %6304 = vmatpush1.msra.mxu0 0.0
    %6305 = vmatprep.subr.mxu0 0.0
    %6306 = vmatpush1.msra.mxu0 0.0
    %6307 = vmatprep.subr.mxu0 0.0
    %6308 = vmatpush1.msra.mxu0 0.0
    %6309 = vmatprep.subr.mxu0 0.0
    %6310 = vmatpush1.msra.mxu0 0.0
    %6311 = vmatprep.subr.mxu0 0.0
    %6312 = vmatpush1.msra.mxu0 0.0
    %6313 = vmatprep.subr.mxu0 0.0
    %6314 = vmatpush1.msra.mxu0 0.0
    %6315 = vmatprep.subr.mxu0 0.0
    %6316 = vmatpush1.msra.mxu0 0.0
    %6317 = vmatprep.subr.mxu0 0.0
    %6318 = vmatpush1.msra.mxu0 0.0
    %6319 = vmatprep.subr.mxu0 0.0
    %6320 = vmatpush1.msra.mxu0 0.0
    %6321 = vmatprep.subr.mxu0 0.0
    %6322 = vmatpush1.msra.mxu0 0.0
    %6323 = vmatprep.subr.mxu0 0.0
    %6324 = vmatpush1.msra.mxu0 0.0
    %6325 = vmatprep.subr.mxu0 0.0
    %6326 = vmatpush1.msra.mxu0 0.0
    %6327 = vmatprep.subr.mxu0 0.0
    %6328 = vmatpush1.msra.mxu0 0.0
    %6329 = vmatprep.subr.mxu0 0.0
    %6330 = vmatpush1.msra.mxu0 0.0
    %6331 = vmatprep.subr.mxu0 0.0
    %6332 = vmatpush1.msra.mxu0 0.0
    %6333 = vmatprep.subr.mxu0 0.0
    %6334 = vmatpush1.msra.mxu0 0.0
    %6335 = vmatprep.mubr.f32.mxu0 0.0
    %6336 = vmatmul.mubr.f32.gmra.mrb[0].mxu0 %v6224
    %v6337 = vpop.f32.mrb[0].mxu0
    %v6338 = vadd.f32 0.0, %v6337
    %v6339 = vpop.f32.mrb[0].mxu0
    %v6340 = vadd.f32 0.0, %v6339
    %6341 = vmatprep.mubr.f32.mxu0 0.0
    %6342 = vmatmul.mubr.f32.gmra.mrb[0].mxu0 %v6227
    %v6343 = vpop.f32.mrb[0].mxu0
    %v6344 = vadd.f32 0.0, %v6343
    %v6345 = vpop.f32.mrb[0].mxu0
    %v6346 = vadd.f32 0.0, %v6345
    %6347 = vmatprep.mubr.f32.mxu0 0.0
    %6348 = vmatmul.mubr.f32.gmra.mrb[0].mxu0 %v6230
    %v6349 = vpop.f32.mrb[0].mxu0
    %v6350 = vadd.f32 0.0, %v6349
    %v6351 = vpop.f32.mrb[0].mxu0
    %v6352 = vadd.f32 0.0, %v6351
    %6353 = vmatprep.mubr.f32.mxu0 0.0
    %6354 = vmatmul.mubr.f32.gmra.mrb[0].mxu0 %v6233
    %v6355 = vpop.f32.mrb[0].mxu0
    %v6356 = vadd.f32 0.0, %v6355
    %v6357 = vpop.f32.mrb[0].mxu0
    %v6358 = vadd.f32 0.0, %v6357
    %6359 = vmatprep.mubr.f32.mxu0 0.0
    %6360 = vmatmul.mubr.f32.gmra.mrb[0].mxu0 %v6236
    %v6361 = vpop.f32.mrb[0].mxu0
    %v6362 = vadd.f32 0.0, %v6361
    %v6363 = vpop.f32.mrb[0].mxu0
    %v6364 = vadd.f32 0.0, %v6363
    %6365 = vmatprep.mubr.f32.mxu0 0.0
    %6366 = vmatmul.mubr.f32.gmra.mrb[0].mxu0 %v6239
    %v6367 = vpop.f32.mrb[0].mxu0
    %v6368 = vadd.f32 0.0, %v6367
    %v6369 = vpop.f32.mrb[0].mxu0
    %v6370 = vadd.f32 0.0, %v6369
    %6371 = vmatprep.mubr.f32.mxu0 0.0
    %6372 = vmatmul.mubr.f32.gmra.mrb[0].mxu0 %v6242
    %v6373 = vpop.f32.mrb[0].mxu0
    %v6374 = vadd.f32 0.0, %v6373
    %v6375 = vpop.f32.mrb[0].mxu0
    %v6376 = vadd.f32 0.0, %v6375
    %6377 = vmatprep.mubr.f32.mxu0 0.0
    %6378 = vmatmul.mubr.f32.gmra.mrb[0].mxu0 %v6245
    %v6379 = vpop.f32.mrb[0].mxu0
    %v6380 = vadd.f32 0.0, %v6379
    %v6381 = vpop.f32.mrb[0].mxu0
    %v6382 = vadd.f32 0.0, %v6381
    %6383 = vmatprep.mubr.f32.mxu0 0.0
    %6384 = vmatmul.mubr.f32.gmra.mrb[0].mxu0 %v6248
    %v6385 = vpop.f32.mrb[0].mxu0
    %v6386 = vadd.f32 0.0, %v6385
    %v6387 = vpop.f32.mrb[0].mxu0
    %v6388 = vadd.f32 0.0, %v6387
    %6389 = vmatprep.mubr.f32.mxu0 0.0
    %6390 = vmatmul.mubr.f32.gmra.mrb[0].mxu0 %v6251
    %v6391 = vpop.f32.mrb[0].mxu0
    %v6392 = vadd.f32 0.0, %v6391
    %v6393 = vpop.f32.mrb[0].mxu0
    %v6394 = vadd.f32 0.0, %v6393
    %6395 = vmatprep.mubr.f32.mxu0 0.0
    %6396 = vmatmul.mubr.f32.gmra.mrb[0].mxu0 %v6254
    %v6397 = vpop.f32.mrb[0].mxu0
    %v6398 = vadd.f32 0.0, %v6397
    %v6399 = vpop.f32.mrb[0].mxu0
    %v6400 = vadd.f32 0.0, %v6399
    %6401 = vmatprep.mubr.f32.mxu0 0.0
    %6402 = vmatmul.mubr.f32.gmra.mrb[0].mxu0 %v6257
    %v6403 = vpop.f32.mrb[0].mxu0
    %v6404 = vadd.f32 0.0, %v6403
    %v6405 = vpop.f32.mrb[0].mxu0
    %v6406 = vadd.f32 0.0, %v6405
    %6407 = vmatprep.mubr.f32.mxu0 0.0
    %6408 = vmatmul.mubr.f32.gmra.mrb[0].mxu0 %v6260
    %v6409 = vpop.f32.mrb[0].mxu0
    %v6410 = vadd.f32 0.0, %v6409
    %v6411 = vpop.f32.mrb[0].mxu0
    %v6412 = vadd.f32 0.0, %v6411
    %6413 = vmatprep.mubr.f32.mxu0 0.0
    %6414 = vmatmul.mubr.f32.gmra.mrb[0].mxu0 %v6263
    %v6415 = vpop.f32.mrb[0].mxu0
    %v6416 = vadd.f32 0.0, %v6415
    %v6417 = vpop.f32.mrb[0].mxu0
    %v6418 = vadd.f32 0.0, %v6417
    %6419 = vmatprep.mubr.f32.mxu0 0.0
    %6420 = vmatmul.mubr.f32.gmra.mrb[0].mxu0 %v6266
    %v6421 = vpop.f32.mrb[0].mxu0
    %v6422 = vadd.f32 0.0, %v6421
    %v6423 = vpop.f32.mrb[0].mxu0
    %v6424 = vadd.f32 0.0, %v6423
    %6425 = vmatprep.mubr.f32.mxu0 0.0
    %6426 = vmatmul.mubr.f32.gmra.mrb[0].mxu0 %v6269
    %v6427 = vpop.f32.mrb[0].mxu0
    %v6428 = vadd.f32 0.0, %v6427
    %v6429 = vpop.f32.mrb[0].mxu0
    %v6430 = vadd.f32 0.0, %v6429
    %6431 = vdwg.mxu0
    %6448 = vrot.lane.b32.xlu0 %v6207, 123
    %v6449 = vpop.permute.xlu0 %6448
    %6450 = vrot.lane.b32.xlu0 %v6208, 123
    %v6451 = vpop.permute.xlu0 %6450
    %6452 = vrot.lane.b32.xlu0 %v6209, 123
    %v6453 = vpop.permute.xlu0 %6452
    %6454 = vrot.lane.b32.xlu0 %v6210, 123
    %v6455 = vpop.permute.xlu0 %6454
    %6456 = vrot.lane.b32.xlu0 %v6211, 123
    %v6457 = vpop.permute.xlu0 %6456
    %6458 = vrot.lane.b32.xlu0 %v6212, 123
    %v6459 = vpop.permute.xlu0 %6458
    %6460 = vrot.lane.b32.xlu0 %v6213, 123
    %v6461 = vpop.permute.xlu0 %6460
    %6462 = vrot.lane.b32.xlu0 %v6214, 123
    %v6463 = vpop.permute.xlu0 %6462
    %6464 = vrot.lane.b32.xlu0 %v6215, 123
    %v6465 = vpop.permute.xlu0 %6464
    %6466 = vrot.lane.b32.xlu0 %v6216, 123
    %v6467 = vpop.permute.xlu0 %6466
    %6468 = vrot.lane.b32.xlu0 %v6217, 123
    %v6469 = vpop.permute.xlu0 %6468
    %6470 = vrot.lane.b32.xlu0 %v6218, 123
    %v6471 = vpop.permute.xlu0 %6470
    %6472 = vrot.lane.b32.xlu0 %v6219, 123
    %v6473 = vpop.permute.xlu0 %6472
    %6474 = vrot.lane.b32.xlu0 %v6220, 123
    %v6475 = vpop.permute.xlu0 %6474
    %6476 = vrot.lane.b32.xlu0 %v6221, 123
    %v6477 = vpop.permute.xlu0 %6476
    %6478 = vrot.lane.b32.xlu0 %v6222, 123
    %v6479 = vpop.permute.xlu0 %6478
    %v6480 = vsel %vm1835, %v6449, 0
    %v6482 = vsel %vm1835, %v6451, 0
    %v6484 = vsel %vm1835, %v6453, 0
    %v6486 = vsel %vm1835, %v6455, 0
    %v6488 = vsel %vm1835, %v6457, 0
    %v6490 = vsel %vm1835, %v6459, 0
    %v6492 = vsel %vm1835, %v6461, 0
    %v6494 = vsel %vm1835, %v6463, 0
    %v6496 = vsel %vm1835, %v6465, 0
    %v6498 = vsel %vm1835, %v6467, 0
    %v6500 = vsel %vm1835, %v6469, 0
    %v6502 = vsel %vm1835, %v6471, 0
    %v6504 = vsel %vm1835, %v6473, 0
    %v6506 = vsel %vm1835, %v6475, 0
    %v6508 = vsel %vm1835, %v6477, 0
    %v6510 = vsel %vm1835, %v6479, 0
    %6512 = vmatprep.subr.mxu0 %v3704
    %6513 = vmatpush1.msra.mxu0 %v3702
    %6514 = vmatprep.subr.mxu0 0.0
    %6515 = vmatpush1.msra.mxu0 0.0
    %6516 = vmatprep.subr.mxu0 0.0
    %6517 = vmatpush1.msra.mxu0 0.0
    %6518 = vmatprep.subr.mxu0 0.0
    %6519 = vmatpush1.msra.mxu0 0.0
    %6520 = vmatprep.subr.mxu0 0.0
    %6521 = vmatpush1.msra.mxu0 0.0
    %6522 = vmatprep.subr.mxu0 0.0
    %6523 = vmatpush1.msra.mxu0 0.0
    %6524 = vmatprep.subr.mxu0 0.0
    %6525 = vmatpush1.msra.mxu0 0.0
    %6526 = vmatprep.subr.mxu0 0.0
    %6527 = vmatpush1.msra.mxu0 0.0
    %6528 = vmatprep.subr.mxu0 0.0
    %6529 = vmatpush1.msra.mxu0 0.0
    %6530 = vmatprep.subr.mxu0 0.0
    %6531 = vmatpush1.msra.mxu0 0.0
    %6532 = vmatprep.subr.mxu0 0.0
    %6533 = vmatpush1.msra.mxu0 0.0
    %6534 = vmatprep.subr.mxu0 0.0
    %6535 = vmatpush1.msra.mxu0 0.0
    %6536 = vmatprep.subr.mxu0 0.0
    %6537 = vmatpush1.msra.mxu0 0.0
    %6538 = vmatprep.subr.mxu0 0.0
    %6539 = vmatpush1.msra.mxu0 0.0
    %6540 = vmatprep.subr.mxu0 0.0
    %6541 = vmatpush1.msra.mxu0 0.0
    %6542 = vmatprep.subr.mxu0 0.0
    %6543 = vmatpush1.msra.mxu0 0.0
    %6544 = vmatprep.subr.mxu0 0.0
    %6545 = vmatpush1.msra.mxu0 0.0
    %6546 = vmatprep.subr.mxu0 0.0
    %6547 = vmatpush1.msra.mxu0 0.0
    %6548 = vmatprep.subr.mxu0 0.0
    %6549 = vmatpush1.msra.mxu0 0.0
    %6550 = vmatprep.subr.mxu0 0.0
    %6551 = vmatpush1.msra.mxu0 0.0
    %6552 = vmatprep.subr.mxu0 0.0
    %6553 = vmatpush1.msra.mxu0 0.0
    %6554 = vmatprep.subr.mxu0 0.0
    %6555 = vmatpush1.msra.mxu0 0.0
    %6556 = vmatprep.subr.mxu0 0.0
    %6557 = vmatpush1.msra.mxu0 0.0
    %6558 = vmatprep.subr.mxu0 0.0
    %6559 = vmatpush1.msra.mxu0 0.0
    %6560 = vmatprep.subr.mxu0 0.0
    %6561 = vmatpush1.msra.mxu0 0.0
    %6562 = vmatprep.subr.mxu0 0.0
    %6563 = vmatpush1.msra.mxu0 0.0
    %6564 = vmatprep.subr.mxu0 0.0
    %6565 = vmatpush1.msra.mxu0 0.0
    %6566 = vmatprep.subr.mxu0 0.0
    %6567 = vmatpush1.msra.mxu0 0.0
    %6568 = vmatprep.subr.mxu0 0.0
    %6569 = vmatpush1.msra.mxu0 0.0
    %6570 = vmatprep.subr.mxu0 0.0
    %6571 = vmatpush1.msra.mxu0 0.0
    %6572 = vmatprep.subr.mxu0 0.0
    %6573 = vmatpush1.msra.mxu0 0.0
    %6574 = vmatprep.subr.mxu0 0.0
    %6575 = vmatpush1.msra.mxu0 0.0
    %6576 = vmatprep.mubr.f32.mxu0 0.0
    %6577 = vmatmul.mubr.f32.gmra.mrb[0].mxu0 %v6480
    %v6578 = vpop.f32.mrb[0].mxu0
    %v6579 = vadd.f32 0.0, %v6578
    %v6580 = vpop.f32.mrb[0].mxu0
    %v6581 = vadd.f32 0.0, %v6580
    %6582 = vmatprep.mubr.f32.mxu0 0.0
    %6583 = vmatmul.mubr.f32.gmra.mrb[0].mxu0 %v6482
    %v6584 = vpop.f32.mrb[0].mxu0
    %v6585 = vadd.f32 0.0, %v6584
    %v6586 = vpop.f32.mrb[0].mxu0
    %v6587 = vadd.f32 0.0, %v6586
    %6588 = vmatprep.mubr.f32.mxu0 0.0
    %6589 = vmatmul.mubr.f32.gmra.mrb[0].mxu0 %v6484
    %v6590 = vpop.f32.mrb[0].mxu0
    %v6591 = vadd.f32 0.0, %v6590
    %v6592 = vpop.f32.mrb[0].mxu0
    %v6593 = vadd.f32 0.0, %v6592
    %6594 = vmatprep.mubr.f32.mxu0 0.0
    %6595 = vmatmul.mubr.f32.gmra.mrb[0].mxu0 %v6486
    %v6596 = vpop.f32.mrb[0].mxu0
    %v6597 = vadd.f32 0.0, %v6596
    %v6598 = vpop.f32.mrb[0].mxu0
    %v6599 = vadd.f32 0.0, %v6598
    %6600 = vmatprep.mubr.f32.mxu0 0.0
    %6601 = vmatmul.mubr.f32.gmra.mrb[0].mxu0 %v6488
    %v6602 = vpop.f32.mrb[0].mxu0
    %v6603 = vadd.f32 0.0, %v6602
    %v6604 = vpop.f32.mrb[0].mxu0
    %v6605 = vadd.f32 0.0, %v6604
    %6606 = vmatprep.mubr.f32.mxu0 0.0
    %6607 = vmatmul.mubr.f32.gmra.mrb[0].mxu0 %v6490
    %v6608 = vpop.f32.mrb[0].mxu0
    %v6609 = vadd.f32 0.0, %v6608
    %v6610 = vpop.f32.mrb[0].mxu0
    %v6611 = vadd.f32 0.0, %v6610
    %6612 = vmatprep.mubr.f32.mxu0 0.0
    %6613 = vmatmul.mubr.f32.gmra.mrb[0].mxu0 %v6492
    %v6614 = vpop.f32.mrb[0].mxu0
    %v6615 = vadd.f32 0.0, %v6614
    %v6616 = vpop.f32.mrb[0].mxu0
    %v6617 = vadd.f32 0.0, %v6616
    %6618 = vmatprep.mubr.f32.mxu0 0.0
    %6619 = vmatmul.mubr.f32.gmra.mrb[0].mxu0 %v6494
    %v6620 = vpop.f32.mrb[0].mxu0
    %v6621 = vadd.f32 0.0, %v6620
    %v6622 = vpop.f32.mrb[0].mxu0
    %v6623 = vadd.f32 0.0, %v6622
    %6624 = vmatprep.mubr.f32.mxu0 0.0
    %6625 = vmatmul.mubr.f32.gmra.mrb[0].mxu0 %v6496
    %v6626 = vpop.f32.mrb[0].mxu0
    %v6627 = vadd.f32 0.0, %v6626
    %v6628 = vpop.f32.mrb[0].mxu0
    %v6629 = vadd.f32 0.0, %v6628
    %6630 = vmatprep.mubr.f32.mxu0 0.0
    %6631 = vmatmul.mubr.f32.gmra.mrb[0].mxu0 %v6498
    %v6632 = vpop.f32.mrb[0].mxu0
    %v6633 = vadd.f32 0.0, %v6632
    %v6634 = vpop.f32.mrb[0].mxu0
    %v6635 = vadd.f32 0.0, %v6634
    %6636 = vmatprep.mubr.f32.mxu0 0.0
    %6637 = vmatmul.mubr.f32.gmra.mrb[0].mxu0 %v6500
    %v6638 = vpop.f32.mrb[0].mxu0
    %v6639 = vadd.f32 0.0, %v6638
    %v6640 = vpop.f32.mrb[0].mxu0
    %v6641 = vadd.f32 0.0, %v6640
    %6642 = vmatprep.mubr.f32.mxu0 0.0
    %6643 = vmatmul.mubr.f32.gmra.mrb[0].mxu0 %v6502
    %v6644 = vpop.f32.mrb[0].mxu0
    %v6645 = vadd.f32 0.0, %v6644
    %v6646 = vpop.f32.mrb[0].mxu0
    %v6647 = vadd.f32 0.0, %v6646
    %6648 = vmatprep.mubr.f32.mxu0 0.0
    %6649 = vmatmul.mubr.f32.gmra.mrb[0].mxu0 %v6504
    %v6650 = vpop.f32.mrb[0].mxu0
    %v6651 = vadd.f32 0.0, %v6650
    %v6652 = vpop.f32.mrb[0].mxu0
    %v6653 = vadd.f32 0.0, %v6652
    %6654 = vmatprep.mubr.f32.mxu0 0.0
    %6655 = vmatmul.mubr.f32.gmra.mrb[0].mxu0 %v6506
    %v6656 = vpop.f32.mrb[0].mxu0
    %v6657 = vadd.f32 0.0, %v6656
    %v6658 = vpop.f32.mrb[0].mxu0
    %v6659 = vadd.f32 0.0, %v6658
    %6660 = vmatprep.mubr.f32.mxu0 0.0
    %6661 = vmatmul.mubr.f32.gmra.mrb[0].mxu0 %v6508
    %v6662 = vpop.f32.mrb[0].mxu0
    %v6663 = vadd.f32 0.0, %v6662
    %v6664 = vpop.f32.mrb[0].mxu0
    %v6665 = vadd.f32 0.0, %v6664
    %6666 = vmatprep.mubr.f32.mxu0 0.0
    %6667 = vmatmul.mubr.f32.gmra.mrb[0].mxu0 %v6510
    %v6668 = vpop.f32.mrb[0].mxu0
    %v6669 = vadd.f32 0.0, %v6668
    %v6670 = vpop.f32.mrb[0].mxu0
    %v6671 = vadd.f32 0.0, %v6670
    %6672 = vdwg.mxu0
    %v6673 = vmul.f32 %v4767, %v6338
    %v6674 = vmul.f32 %v4769, %v6340
    %v6675 = vmul.f32 %v4773, %v6344
    %v6676 = vmul.f32 %v4775, %v6346
    %v6677 = vmul.f32 %v4779, %v6350
    %v6678 = vmul.f32 %v4781, %v6352
    %v6679 = vmul.f32 %v4785, %v6356
    %v6680 = vmul.f32 %v4787, %v6358
    %v6681 = vmul.f32 %v4791, %v6362
    %v6682 = vmul.f32 %v4793, %v6364
    %v6683 = vmul.f32 %v4797, %v6368
    %v6684 = vmul.f32 %v4799, %v6370
    %v6685 = vmul.f32 %v4803, %v6374
    %v6686 = vmul.f32 %v4805, %v6376
    %v6687 = vmul.f32 %v4809, %v6380
    %v6688 = vmul.f32 %v4811, %v6382
    %v6689 = vmul.f32 %v4815, %v6386
    %v6690 = vmul.f32 %v4817, %v6388
    %v6691 = vmul.f32 %v4821, %v6392
    %v6692 = vmul.f32 %v4823, %v6394
    %v6693 = vmul.f32 %v4827, %v6398
    %v6694 = vmul.f32 %v4829, %v6400
    %v6695 = vmul.f32 %v4833, %v6404
    %v6696 = vmul.f32 %v4835, %v6406
    %v6697 = vmul.f32 %v4839, %v6410
    %v6698 = vmul.f32 %v4841, %v6412
    %v6699 = vmul.f32 %v4845, %v6416
    %v6700 = vmul.f32 %v4847, %v6418
    %v6701 = vmul.f32 %v4851, %v6422
    %v6702 = vmul.f32 %v4853, %v6424
    %v6703 = vmul.f32 %v4857, %v6428
    %v6704 = vmul.f32 %v4859, %v6430
    %v6705 = vadd.f32 %v6673, %v6579
    %v6706 = vadd.f32 %v6674, %v6581
    %v6707 = vadd.f32 %v6675, %v6585
    %v6708 = vadd.f32 %v6676, %v6587
    %v6709 = vadd.f32 %v6677, %v6591
    %v6710 = vadd.f32 %v6678, %v6593
    %v6711 = vadd.f32 %v6679, %v6597
    %v6712 = vadd.f32 %v6680, %v6599
    %v6713 = vadd.f32 %v6681, %v6603
    %v6714 = vadd.f32 %v6682, %v6605
    %v6715 = vadd.f32 %v6683, %v6609
    %v6716 = vadd.f32 %v6684, %v6611
    %v6717 = vadd.f32 %v6685, %v6615
    %v6718 = vadd.f32 %v6686, %v6617
    %v6719 = vadd.f32 %v6687, %v6621
    %v6720 = vadd.f32 %v6688, %v6623
    %v6721 = vadd.f32 %v6689, %v6627
    %v6722 = vadd.f32 %v6690, %v6629
    %v6723 = vadd.f32 %v6691, %v6633
    %v6724 = vadd.f32 %v6692, %v6635
    %v6725 = vadd.f32 %v6693, %v6639
    %v6726 = vadd.f32 %v6694, %v6641
    %v6727 = vadd.f32 %v6695, %v6645
    %v6728 = vadd.f32 %v6696, %v6647
    %v6729 = vadd.f32 %v6697, %v6651
    %v6730 = vadd.f32 %v6698, %v6653
    %v6731 = vadd.f32 %v6699, %v6657
    %v6732 = vadd.f32 %v6700, %v6659
    %v6733 = vadd.f32 %v6701, %v6663
    %v6734 = vadd.f32 %v6702, %v6665
    %v6735 = vadd.f32 %v6703, %v6669
    %v6736 = vadd.f32 %v6704, %v6671
    %v6737 = vmax.f32 %v6705, 0.0
    %v6738 = vmax.f32 %v6706, 0.0
    %v6739 = vmax.f32 %v6707, 0.0
    %v6740 = vmax.f32 %v6708, 0.0
    %v6741 = vmax.f32 %v6709, 0.0
    %v6742 = vmax.f32 %v6710, 0.0
    %v6743 = vmax.f32 %v6711, 0.0
    %v6744 = vmax.f32 %v6712, 0.0
    %v6745 = vmax.f32 %v6713, 0.0
    %v6746 = vmax.f32 %v6714, 0.0
    %v6747 = vmax.f32 %v6715, 0.0
    %v6748 = vmax.f32 %v6716, 0.0
    %v6749 = vmax.f32 %v6717, 0.0
    %v6750 = vmax.f32 %v6718, 0.0
    %v6751 = vmax.f32 %v6719, 0.0
    %v6752 = vmax.f32 %v6720, 0.0
    %v6753 = vmax.f32 %v6721, 0.0
    %v6754 = vmax.f32 %v6722, 0.0
    %v6755 = vmax.f32 %v6723, 0.0
    %v6756 = vmax.f32 %v6724, 0.0
    %v6757 = vmax.f32 %v6725, 0.0
    %v6758 = vmax.f32 %v6726, 0.0
    %v6759 = vmax.f32 %v6727, 0.0
    %v6760 = vmax.f32 %v6728, 0.0
    %v6761 = vmax.f32 %v6729, 0.0
    %v6762 = vmax.f32 %v6730, 0.0
    %v6763 = vmax.f32 %v6731, 0.0
    %v6764 = vmax.f32 %v6732, 0.0
    %v6765 = vmax.f32 %v6733, 0.0
    %v6766 = vmax.f32 %v6734, 0.0
    %v6767 = vmax.f32 %v6735, 0.0
    %v6768 = vmax.f32 %v6736, 0.0
    %v6769 = vld [vmem:[%s7] sm:$0xff]
    %v6770 = vld [vmem:[%s7 + $0x8] sm:$0xff]
    %v6771 = vld [vmem:[%s7 + $0x10] sm:$0xff]
    %v6772 = vld [vmem:[%s7 + $0x18] sm:$0xff]
    %v6773 = vld [vmem:[%s7 + $0x20] sm:$0xff]
    %v6774 = vld [vmem:[%s7 + $0x28] sm:$0xff]
    %v6775 = vld [vmem:[%s7 + $0x30] sm:$0xff]
    %v6776 = vld [vmem:[%s7 + $0x38] sm:$0xff]
    %v6777 = vld [vmem:[%s8] sm:$0xff]
    %v6778 = vld [vmem:[%s8 + $0x8] sm:$0xff]
    %v6779 = vld [vmem:[%s8 + $0x10] sm:$0xff]
    %v6780 = vld [vmem:[%s8 + $0x18] sm:$0xff]
    %v6781 = vld [vmem:[%s8 + $0x20] sm:$0xff]
    %v6782 = vld [vmem:[%s8 + $0x28] sm:$0xff]
    %v6783 = vld [vmem:[%s8 + $0x30] sm:$0xff]
    %v6784 = vld [vmem:[%s8 + $0x38] sm:$0xff]
    %6786 = vset.pattern.permute.xlu0 0
    %6787 = vperm.xlu0 %6786, %v6777
    %v6788 = vpop.permute.xlu0 %6787
    %6791 = vset.pattern.permute.xlu0 0
    %6792 = vperm.xlu0 %6791, %v6778
    %v6793 = vpop.permute.xlu0 %6792
    %6796 = vset.pattern.permute.xlu0 0
    %6797 = vperm.xlu0 %6796, %v6779
    %v6798 = vpop.permute.xlu0 %6797
    %6801 = vset.pattern.permute.xlu0 0
    %6802 = vperm.xlu0 %6801, %v6780
    %v6803 = vpop.permute.xlu0 %6802
    %6806 = vset.pattern.permute.xlu0 0
    %6807 = vperm.xlu0 %6806, %v6781
    %v6808 = vpop.permute.xlu0 %6807
    %6811 = vset.pattern.permute.xlu0 0
    %6812 = vperm.xlu0 %6811, %v6782
    %v6813 = vpop.permute.xlu0 %6812
    %6816 = vset.pattern.permute.xlu0 0
    %6817 = vperm.xlu0 %6816, %v6783
    %v6818 = vpop.permute.xlu0 %6817
    %6821 = vset.pattern.permute.xlu0 0
    %6822 = vperm.xlu0 %6821, %v6784
    %v6823 = vpop.permute.xlu0 %6822
    %6825 = vmatprep.subr.mxu0 %v6738
    %6826 = vmatpush1.msra.mxu0 %v6737
    %6827 = vmatprep.subr.mxu0 %v6740
    %6828 = vmatpush1.msra.mxu0 %v6739
    %6829 = vmatprep.subr.mxu0 %v6742
    %6830 = vmatpush1.msra.mxu0 %v6741
    %6831 = vmatprep.subr.mxu0 %v6744
    %6832 = vmatpush1.msra.mxu0 %v6743
    %6833 = vmatprep.subr.mxu0 %v6746
    %6834 = vmatpush1.msra.mxu0 %v6745
    %6835 = vmatprep.subr.mxu0 %v6748
    %6836 = vmatpush1.msra.mxu0 %v6747
    %6837 = vmatprep.subr.mxu0 %v6750
    %6838 = vmatpush1.msra.mxu0 %v6749
    %6839 = vmatprep.subr.mxu0 %v6752
    %6840 = vmatpush1.msra.mxu0 %v6751
    %6841 = vmatprep.subr.mxu0 %v6754
    %6842 = vmatpush1.msra.mxu0 %v6753
    %6843 = vmatprep.subr.mxu0 %v6756
    %6844 = vmatpush1.msra.mxu0 %v6755
    %6845 = vmatprep.subr.mxu0 %v6758
    %6846 = vmatpush1.msra.mxu0 %v6757
    %6847 = vmatprep.subr.mxu0 %v6760
    %6848 = vmatpush1.msra.mxu0 %v6759
    %6849 = vmatprep.subr.mxu0 %v6762
    %6850 = vmatpush1.msra.mxu0 %v6761
    %6851 = vmatprep.subr.mxu0 %v6764
    %6852 = vmatpush1.msra.mxu0 %v6763
    %6853 = vmatprep.subr.mxu0 %v6766
    %6854 = vmatpush1.msra.mxu0 %v6765
    %6855 = vmatprep.subr.mxu0 %v6768
    %6856 = vmatpush1.msra.mxu0 %v6767
    %6857 = vmatprep.subr.mxu0 0.0
    %6858 = vmatpush1.msra.mxu0 0.0
    %6859 = vmatprep.subr.mxu0 0.0
    %6860 = vmatpush1.msra.mxu0 0.0
    %6861 = vmatprep.subr.mxu0 0.0
    %6862 = vmatpush1.msra.mxu0 0.0
    %6863 = vmatprep.subr.mxu0 0.0
    %6864 = vmatpush1.msra.mxu0 0.0
    %6865 = vmatprep.subr.mxu0 0.0
    %6866 = vmatpush1.msra.mxu0 0.0
    %6867 = vmatprep.subr.mxu0 0.0
    %6868 = vmatpush1.msra.mxu0 0.0
    %6869 = vmatprep.subr.mxu0 0.0
    %6870 = vmatpush1.msra.mxu0 0.0
    %6871 = vmatprep.subr.mxu0 0.0
    %6872 = vmatpush1.msra.mxu0 0.0
    %6873 = vmatprep.subr.mxu0 0.0
    %6874 = vmatpush1.msra.mxu0 0.0
    %6875 = vmatprep.subr.mxu0 0.0
    %6876 = vmatpush1.msra.mxu0 0.0
    %6877 = vmatprep.subr.mxu0 0.0
    %6878 = vmatpush1.msra.mxu0 0.0
    %6879 = vmatprep.subr.mxu0 0.0
    %6880 = vmatpush1.msra.mxu0 0.0
    %6881 = vmatprep.subr.mxu0 0.0
    %6882 = vmatpush1.msra.mxu0 0.0
    %6883 = vmatprep.subr.mxu0 0.0
    %6884 = vmatpush1.msra.mxu0 0.0
    %6885 = vmatprep.subr.mxu0 0.0
    %6886 = vmatpush1.msra.mxu0 0.0
    %6887 = vmatprep.subr.mxu0 0.0
    %6888 = vmatpush1.msra.mxu0 0.0
    %6889 = vmatprep.mubr.f32.mxu0 0.0
    %6890 = vmatmul.mubr.f32.gmra.mrb[0].mxu0 %v6769
    %v6891 = vpop.f32.mrb[0].mxu0
    %v6892 = vadd.f32 %v6788, %v6891
    %v6893 = vpop.f32.mrb[0].mxu0
    %v6894 = vadd.f32 %v6788, %v6893
    %6895 = vmatprep.mubr.f32.mxu0 0.0
    %6896 = vmatmul.mubr.f32.gmra.mrb[0].mxu0 %v6770
    %v6897 = vpop.f32.mrb[0].mxu0
    %v6898 = vadd.f32 %v6793, %v6897
    %v6899 = vpop.f32.mrb[0].mxu0
    %v6900 = vadd.f32 %v6793, %v6899
    %6901 = vmatprep.mubr.f32.mxu0 0.0
    %6902 = vmatmul.mubr.f32.gmra.mrb[0].mxu0 %v6771
    %v6903 = vpop.f32.mrb[0].mxu0
    %v6904 = vadd.f32 %v6798, %v6903
    %v6905 = vpop.f32.mrb[0].mxu0
    %v6906 = vadd.f32 %v6798, %v6905
    %6907 = vmatprep.mubr.f32.mxu0 0.0
    %6908 = vmatmul.mubr.f32.gmra.mrb[0].mxu0 %v6772
    %v6909 = vpop.f32.mrb[0].mxu0
    %v6910 = vadd.f32 %v6803, %v6909
    %v6911 = vpop.f32.mrb[0].mxu0
    %v6912 = vadd.f32 %v6803, %v6911
    %6913 = vmatprep.mubr.f32.mxu0 0.0
    %6914 = vmatmul.mubr.f32.gmra.mrb[0].mxu0 %v6773
    %v6915 = vpop.f32.mrb[0].mxu0
    %v6916 = vadd.f32 %v6808, %v6915
    %v6917 = vpop.f32.mrb[0].mxu0
    %v6918 = vadd.f32 %v6808, %v6917
    %6919 = vmatprep.mubr.f32.mxu0 0.0
    %6920 = vmatmul.mubr.f32.gmra.mrb[0].mxu0 %v6774
    %v6921 = vpop.f32.mrb[0].mxu0
    %v6922 = vadd.f32 %v6813, %v6921
    %v6923 = vpop.f32.mrb[0].mxu0
    %v6924 = vadd.f32 %v6813, %v6923
    %6925 = vmatprep.mubr.f32.mxu0 0.0
    %6926 = vmatmul.mubr.f32.gmra.mrb[0].mxu0 %v6775
    %v6927 = vpop.f32.mrb[0].mxu0
    %v6928 = vadd.f32 %v6818, %v6927
    %v6929 = vpop.f32.mrb[0].mxu0
    %v6930 = vadd.f32 %v6818, %v6929
    %6931 = vmatprep.mubr.f32.mxu0 0.0
    %6932 = vmatmul.mubr.f32.gmra.mrb[0].mxu0 %v6776
    %v6933 = vpop.f32.mrb[0].mxu0
    %v6934 = vadd.f32 %v6823, %v6933
    %v6935 = vpop.f32.mrb[0].mxu0
    %v6936 = vadd.f32 %v6823, %v6935
    %6937 = vdwg.mxu0
    %6938 = vmatprep.subr.mxu0 0.0
    %6939 = vmatpush1.msra.mxu0 %v391
    %6940 = vmatprep.subr.mxu0 0.0
    %6941 = vmatpush1.msra.mxu0 %v392
    %6942 = vmatprep.subr.mxu0 0.0
    %6943 = vmatpush1.msra.mxu0 %v393
    %6944 = vmatprep.subr.mxu0 0.0
    %6945 = vmatpush1.msra.mxu0 %v394
    %6946 = vmatprep.subr.mxu0 0.0
    %6947 = vmatpush1.msra.mxu0 %v395
    %6948 = vmatprep.subr.mxu0 0.0
    %6949 = vmatpush1.msra.mxu0 %v396
    %6950 = vmatprep.subr.mxu0 0.0
    %6951 = vmatpush1.msra.mxu0 %v397
    %6952 = vmatprep.subr.mxu0 0.0
    %6953 = vmatpush1.msra.mxu0 %v398
    %6954 = vmatprep.subr.mxu0 0.0
    %6955 = vmatpush1.msra.mxu0 %v399
    %6956 = vmatprep.subr.mxu0 0.0
    %6957 = vmatpush1.msra.mxu0 %v400
    %6958 = vmatprep.subr.mxu0 0.0
    %6959 = vmatpush1.msra.mxu0 %v401
    %6960 = vmatprep.subr.mxu0 0.0
    %6961 = vmatpush1.msra.mxu0 %v402
    %6962 = vmatprep.subr.mxu0 0.0
    %6963 = vmatpush1.msra.mxu0 %v403
    %6964 = vmatprep.subr.mxu0 0.0
    %6965 = vmatpush1.msra.mxu0 %v404
    %6966 = vmatprep.subr.mxu0 0.0
    %6967 = vmatpush1.msra.mxu0 %v405
    %6968 = vmatprep.subr.mxu0 0.0
    %6969 = vmatpush1.msra.mxu0 %v406
    %6970 = vmatprep.subr.mxu0 0.0
    %6971 = vmatpush1.msra.mxu0 %v407
    %6972 = vmatprep.subr.mxu0 0.0
    %6973 = vmatpush1.msra.mxu0 %v408
    %6974 = vmatprep.subr.mxu0 0.0
    %6975 = vmatpush1.msra.mxu0 %v409
    %6976 = vmatprep.subr.mxu0 0.0
    %6977 = vmatpush1.msra.mxu0 %v410
    %6978 = vmatprep.subr.mxu0 0.0
    %6979 = vmatpush1.msra.mxu0 %v411
    %6980 = vmatprep.subr.mxu0 0.0
    %6981 = vmatpush1.msra.mxu0 %v412
    %6982 = vmatprep.subr.mxu0 0.0
    %6983 = vmatpush1.msra.mxu0 %v413
    %6984 = vmatprep.subr.mxu0 0.0
    %6985 = vmatpush1.msra.mxu0 %v414
    %6986 = vmatprep.subr.mxu0 0.0
    %6987 = vmatpush1.msra.mxu0 %v415
    %6988 = vmatprep.subr.mxu0 0.0
    %6989 = vmatpush1.msra.mxu0 %v416
    %6990 = vmatprep.subr.mxu0 0.0
    %6991 = vmatpush1.msra.mxu0 %v417
    %6992 = vmatprep.subr.mxu0 0.0
    %6993 = vmatpush1.msra.mxu0 %v418
    %6994 = vmatprep.subr.mxu0 0.0
    %6995 = vmatpush1.msra.mxu0 %v419
    %6996 = vmatprep.subr.mxu0 0.0
    %6997 = vmatpush1.msra.mxu0 %v420
    %6998 = vmatprep.subr.mxu0 0.0
    %6999 = vmatpush1.msra.mxu0 %v421
    %7000 = vmatprep.subr.mxu0 0.0
    %7001 = vmatpush1.msra.mxu0 %v422
    %7002 = vmatprep.mubr.f32.mxu0 %v6894
    %7003 = vmatmul.mubr.f32.gmra.mrb[0].mxu0 %v6892
    %v7004 = vpop.f32.mrb[0].mxu0
    %v7005 = vadd.f32 0.0, %v7004
    %v7006 = vpop.f32.mrb[0].mxu0
    %7007 = vmatprep.mubr.f32.mxu0 %v6900
    %7008 = vmatmul.mubr.f32.gmra.mrb[0].mxu0 %v6898
    %v7009 = vpop.f32.mrb[0].mxu0
    %v7010 = vadd.f32 0.0, %v7009
    %v7011 = vpop.f32.mrb[0].mxu0
    %7012 = vmatprep.mubr.f32.mxu0 %v6906
    %7013 = vmatmul.mubr.f32.gmra.mrb[0].mxu0 %v6904
    %v7014 = vpop.f32.mrb[0].mxu0
    %v7015 = vadd.f32 0.0, %v7014
    %v7016 = vpop.f32.mrb[0].mxu0
    %7017 = vmatprep.mubr.f32.mxu0 %v6912
    %7018 = vmatmul.mubr.f32.gmra.mrb[0].mxu0 %v6910
    %v7019 = vpop.f32.mrb[0].mxu0
    %v7020 = vadd.f32 0.0, %v7019
    %v7021 = vpop.f32.mrb[0].mxu0
    %7022 = vmatprep.mubr.f32.mxu0 %v6918
    %7023 = vmatmul.mubr.f32.gmra.mrb[0].mxu0 %v6916
    %v7024 = vpop.f32.mrb[0].mxu0
    %v7025 = vadd.f32 0.0, %v7024
    %v7026 = vpop.f32.mrb[0].mxu0
    %7027 = vmatprep.mubr.f32.mxu0 %v6924
    %7028 = vmatmul.mubr.f32.gmra.mrb[0].mxu0 %v6922
    %v7029 = vpop.f32.mrb[0].mxu0
    %v7030 = vadd.f32 0.0, %v7029
    %v7031 = vpop.f32.mrb[0].mxu0
    %7032 = vmatprep.mubr.f32.mxu0 %v6930
    %7033 = vmatmul.mubr.f32.gmra.mrb[0].mxu0 %v6928
    %v7034 = vpop.f32.mrb[0].mxu0
    %v7035 = vadd.f32 0.0, %v7034
    %v7036 = vpop.f32.mrb[0].mxu0
    %7037 = vmatprep.mubr.f32.mxu0 %v6936
    %7038 = vmatmul.mubr.f32.gmra.mrb[0].mxu0 %v6934
    %v7039 = vpop.f32.mrb[0].mxu0
    %v7040 = vadd.f32 0.0, %v7039
    %v7041 = vpop.f32.mrb[0].mxu0
    %7042 = vdwg.mxu0
    %v7043 = vmul.f32 %v6892, %v6892
    %v7044 = vmul.f32 %v6894, %v6894
    %v7045 = vmul.f32 %v6898, %v6898
    %v7046 = vmul.f32 %v6900, %v6900
    %v7047 = vmul.f32 %v6904, %v6904
    %v7048 = vmul.f32 %v6906, %v6906
    %v7049 = vmul.f32 %v6910, %v6910
    %v7050 = vmul.f32 %v6912, %v6912
    %v7051 = vmul.f32 %v6916, %v6916
    %v7052 = vmul.f32 %v6918, %v6918
    %v7053 = vmul.f32 %v6922, %v6922
    %v7054 = vmul.f32 %v6924, %v6924
    %v7055 = vmul.f32 %v6928, %v6928
    %v7056 = vmul.f32 %v6930, %v6930
    %v7057 = vmul.f32 %v6934, %v6934
    %v7058 = vmul.f32 %v6936, %v6936
    %7059 = vmatprep.subr.mxu0 0.0
    %7060 = vmatpush1.msra.mxu0 %v391
    %7061 = vmatprep.subr.mxu0 0.0
    %7062 = vmatpush1.msra.mxu0 %v392
    %7063 = vmatprep.subr.mxu0 0.0
    %7064 = vmatpush1.msra.mxu0 %v393
    %7065 = vmatprep.subr.mxu0 0.0
    %7066 = vmatpush1.msra.mxu0 %v394
    %7067 = vmatprep.subr.mxu0 0.0
    %7068 = vmatpush1.msra.mxu0 %v395
    %7069 = vmatprep.subr.mxu0 0.0
    %7070 = vmatpush1.msra.mxu0 %v396
    %7071 = vmatprep.subr.mxu0 0.0
    %7072 = vmatpush1.msra.mxu0 %v397
    %7073 = vmatprep.subr.mxu0 0.0
    %7074 = vmatpush1.msra.mxu0 %v398
    %7075 = vmatprep.subr.mxu0 0.0
    %7076 = vmatpush1.msra.mxu0 %v399
    %7077 = vmatprep.subr.mxu0 0.0
    %7078 = vmatpush1.msra.mxu0 %v400
    %7079 = vmatprep.subr.mxu0 0.0
    %7080 = vmatpush1.msra.mxu0 %v401
    %7081 = vmatprep.subr.mxu0 0.0
    %7082 = vmatpush1.msra.mxu0 %v402
    %7083 = vmatprep.subr.mxu0 0.0
    %7084 = vmatpush1.msra.mxu0 %v403
    %7085 = vmatprep.subr.mxu0 0.0
    %7086 = vmatpush1.msra.mxu0 %v404
    %7087 = vmatprep.subr.mxu0 0.0
    %7088 = vmatpush1.msra.mxu0 %v405
    %7089 = vmatprep.subr.mxu0 0.0
    %7090 = vmatpush1.msra.mxu0 %v406
    %7091 = vmatprep.subr.mxu0 0.0
    %7092 = vmatpush1.msra.mxu0 %v407
    %7093 = vmatprep.subr.mxu0 0.0
    %7094 = vmatpush1.msra.mxu0 %v408
    %7095 = vmatprep.subr.mxu0 0.0
    %7096 = vmatpush1.msra.mxu0 %v409
    %7097 = vmatprep.subr.mxu0 0.0
    %7098 = vmatpush1.msra.mxu0 %v410
    %7099 = vmatprep.subr.mxu0 0.0
    %7100 = vmatpush1.msra.mxu0 %v411
    %7101 = vmatprep.subr.mxu0 0.0
    %7102 = vmatpush1.msra.mxu0 %v412
    %7103 = vmatprep.subr.mxu0 0.0
    %7104 = vmatpush1.msra.mxu0 %v413
    %7105 = vmatprep.subr.mxu0 0.0
    %7106 = vmatpush1.msra.mxu0 %v414
    %7107 = vmatprep.subr.mxu0 0.0
    %7108 = vmatpush1.msra.mxu0 %v415
    %7109 = vmatprep.subr.mxu0 0.0
    %7110 = vmatpush1.msra.mxu0 %v416
    %7111 = vmatprep.subr.mxu0 0.0
    %7112 = vmatpush1.msra.mxu0 %v417
    %7113 = vmatprep.subr.mxu0 0.0
    %7114 = vmatpush1.msra.mxu0 %v418
    %7115 = vmatprep.subr.mxu0 0.0
    %7116 = vmatpush1.msra.mxu0 %v419
    %7117 = vmatprep.subr.mxu0 0.0
    %7118 = vmatpush1.msra.mxu0 %v420
    %7119 = vmatprep.subr.mxu0 0.0
    %7120 = vmatpush1.msra.mxu0 %v421
    %7121 = vmatprep.subr.mxu0 0.0
    %7122 = vmatpush1.msra.mxu0 %v422
    %7123 = vmatprep.mubr.f32.mxu0 %v7044
    %7124 = vmatmul.mubr.f32.gmra.mrb[0].mxu0 %v7043
    %v7125 = vpop.f32.mrb[0].mxu0
    %v7126 = vadd.f32 0.0, %v7125
    %v7127 = vpop.f32.mrb[0].mxu0
    %7128 = vmatprep.mubr.f32.mxu0 %v7046
    %7129 = vmatmul.mubr.f32.gmra.mrb[0].mxu0 %v7045
    %v7130 = vpop.f32.mrb[0].mxu0
    %v7131 = vadd.f32 0.0, %v7130
    %v7132 = vpop.f32.mrb[0].mxu0
    %7133 = vmatprep.mubr.f32.mxu0 %v7048
    %7134 = vmatmul.mubr.f32.gmra.mrb[0].mxu0 %v7047
    %v7135 = vpop.f32.mrb[0].mxu0
    %v7136 = vadd.f32 0.0, %v7135
    %v7137 = vpop.f32.mrb[0].mxu0
    %7138 = vmatprep.mubr.f32.mxu0 %v7050
    %7139 = vmatmul.mubr.f32.gmra.mrb[0].mxu0 %v7049
    %v7140 = vpop.f32.mrb[0].mxu0
    %v7141 = vadd.f32 0.0, %v7140
    %v7142 = vpop.f32.mrb[0].mxu0
    %7143 = vmatprep.mubr.f32.mxu0 %v7052
    %7144 = vmatmul.mubr.f32.gmra.mrb[0].mxu0 %v7051
    %v7145 = vpop.f32.mrb[0].mxu0
    %v7146 = vadd.f32 0.0, %v7145
    %v7147 = vpop.f32.mrb[0].mxu0
    %7148 = vmatprep.mubr.f32.mxu0 %v7054
    %7149 = vmatmul.mubr.f32.gmra.mrb[0].mxu0 %v7053
    %v7150 = vpop.f32.mrb[0].mxu0
    %v7151 = vadd.f32 0.0, %v7150
    %v7152 = vpop.f32.mrb[0].mxu0
    %7153 = vmatprep.mubr.f32.mxu0 %v7056
    %7154 = vmatmul.mubr.f32.gmra.mrb[0].mxu0 %v7055
    %v7155 = vpop.f32.mrb[0].mxu0
    %v7156 = vadd.f32 0.0, %v7155
    %v7157 = vpop.f32.mrb[0].mxu0
    %7158 = vmatprep.mubr.f32.mxu0 %v7058
    %7159 = vmatmul.mubr.f32.gmra.mrb[0].mxu0 %v7057
    %v7160 = vpop.f32.mrb[0].mxu0
    %v7161 = vadd.f32 0.0, %v7160
    %v7162 = vpop.f32.mrb[0].mxu0
    %7163 = vdwg.mxu0
    %v7164 = vmul.f32 %v7005, 0.0078125
    %v7165 = vmul.f32 %v7010, 0.0078125
    %v7166 = vmul.f32 %v7015, 0.0078125
    %v7167 = vmul.f32 %v7020, 0.0078125
    %v7168 = vmul.f32 %v7025, 0.0078125
    %v7169 = vmul.f32 %v7030, 0.0078125
    %v7170 = vmul.f32 %v7035, 0.0078125
    %v7171 = vmul.f32 %v7040, 0.0078125
    %v7172 = vmul.f32 %v7126, 0.0078125
    %v7173 = vmul.f32 %v7131, 0.0078125
    %v7174 = vmul.f32 %v7136, 0.0078125
    %v7175 = vmul.f32 %v7141, 0.0078125
    %v7176 = vmul.f32 %v7146, 0.0078125
    %v7177 = vmul.f32 %v7151, 0.0078125
    %v7178 = vmul.f32 %v7156, 0.0078125
    %v7179 = vmul.f32 %v7161, 0.0078125
    %v7180 = vmul.f32 %v7164, %v7164
    %v7181 = vmul.f32 %v7165, %v7165
    %v7182 = vmul.f32 %v7166, %v7166
    %v7183 = vmul.f32 %v7167, %v7167
    %v7184 = vmul.f32 %v7168, %v7168
    %v7185 = vmul.f32 %v7169, %v7169
    %v7186 = vmul.f32 %v7170, %v7170
    %v7187 = vmul.f32 %v7171, %v7171
    %v7188 = vsub.f32 %v7172, %v7180
    %v7189 = vsub.f32 %v7173, %v7181
    %v7190 = vsub.f32 %v7174, %v7182
    %v7191 = vsub.f32 %v7175, %v7183
    %v7192 = vsub.f32 %v7176, %v7184
    %v7193 = vsub.f32 %v7177, %v7185
    %v7194 = vsub.f32 %v7178, %v7186
    %v7195 = vsub.f32 %v7179, %v7187
    %v7196 = vmax.f32 %v7188, 0.0
    %v7197 = vmax.f32 %v7189, 0.0
    %v7198 = vmax.f32 %v7190, 0.0
    %v7199 = vmax.f32 %v7191, 0.0
    %v7200 = vmax.f32 %v7192, 0.0
    %v7201 = vmax.f32 %v7193, 0.0
    %v7202 = vmax.f32 %v7194, 0.0
    %v7203 = vmax.f32 %v7195, 0.0
    %v7204 = vadd.f32 %v7196, 1e-05
    %v7205 = vadd.f32 %v7197, 1e-05
    %v7206 = vadd.f32 %v7198, 1e-05
    %v7207 = vadd.f32 %v7199, 1e-05
    %v7208 = vadd.f32 %v7200, 1e-05
    %v7209 = vadd.f32 %v7201, 1e-05
    %v7210 = vadd.f32 %v7202, 1e-05
    %v7211 = vadd.f32 %v7203, 1e-05
    %v7212 = vrsqrt.pop %v7204
    %v7213 = vrsqrt.pop %v7205
    %v7214 = vrsqrt.pop %v7206
    %v7215 = vrsqrt.pop %v7207
    %v7216 = vrsqrt.pop %v7208
    %v7217 = vrsqrt.pop %v7209
    %v7218 = vrsqrt.pop %v7210
    %v7219 = vrsqrt.pop %v7211
    %7220 = vrot.lane.b32.xlu0 %v6777, 123
    %v7221 = vpop.permute.xlu0 %7220
    %7222 = vrot.lane.b32.xlu0 %v6778, 123
    %v7223 = vpop.permute.xlu0 %7222
    %7224 = vrot.lane.b32.xlu0 %v6779, 123
    %v7225 = vpop.permute.xlu0 %7224
    %7226 = vrot.lane.b32.xlu0 %v6780, 123
    %v7227 = vpop.permute.xlu0 %7226
    %7228 = vrot.lane.b32.xlu0 %v6781, 123
    %v7229 = vpop.permute.xlu0 %7228
    %7230 = vrot.lane.b32.xlu0 %v6782, 123
    %v7231 = vpop.permute.xlu0 %7230
    %7232 = vrot.lane.b32.xlu0 %v6783, 123
    %v7233 = vpop.permute.xlu0 %7232
    %7234 = vrot.lane.b32.xlu0 %v6784, 123
    %v7235 = vpop.permute.xlu0 %7234
    %v7244 = vsel %vm1835, %v7221, 0.0
    %7245 = vadd.xlane.f32.xlu0 %v7244
    %v7246 = vpop.xlane.xlu0 %7245
    %v7247 = vsel %vm1835, %v7223, 0.0
    %7248 = vadd.xlane.f32.xlu0 %v7247
    %v7249 = vpop.xlane.xlu0 %7248
    %v7250 = vsel %vm1835, %v7225, 0.0
    %7251 = vadd.xlane.f32.xlu0 %v7250
    %v7252 = vpop.xlane.xlu0 %7251
    %v7253 = vsel %vm1835, %v7227, 0.0
    %7254 = vadd.xlane.f32.xlu0 %v7253
    %v7255 = vpop.xlane.xlu0 %7254
    %v7256 = vsel %vm1835, %v7229, 0.0
    %7257 = vadd.xlane.f32.xlu0 %v7256
    %v7258 = vpop.xlane.xlu0 %7257
    %v7259 = vsel %vm1835, %v7231, 0.0
    %7260 = vadd.xlane.f32.xlu0 %v7259
    %v7261 = vpop.xlane.xlu0 %7260
    %v7262 = vsel %vm1835, %v7233, 0.0
    %7263 = vadd.xlane.f32.xlu0 %v7262
    %v7264 = vpop.xlane.xlu0 %7263
    %v7265 = vsel %vm1835, %v7235, 0.0
    %7266 = vadd.xlane.f32.xlu0 %v7265
    %v7267 = vpop.xlane.xlu0 %7266
    %v7268 = vmul.f32 %v7246, 0.5
    %v7269 = vmul.f32 %v7249, 0.5
    %v7270 = vmul.f32 %v7252, 0.5
    %v7271 = vmul.f32 %v7255, 0.5
    %v7272 = vmul.f32 %v7258, 0.5
    %v7273 = vmul.f32 %v7261, 0.5
    %v7274 = vmul.f32 %v7264, 0.5
    %v7275 = vmul.f32 %v7267, 0.5
    %v7276 = vmul.f32 %v6777, %v6777
    %v7277 = vmul.f32 %v6778, %v6778
    %v7278 = vmul.f32 %v6779, %v6779
    %v7279 = vmul.f32 %v6780, %v6780
    %v7280 = vmul.f32 %v6781, %v6781
    %v7281 = vmul.f32 %v6782, %v6782
    %v7282 = vmul.f32 %v6783, %v6783
    %v7283 = vmul.f32 %v6784, %v6784
    %v7284 = vmul.f32 %v7196, %v7212
    %v7285 = vmul.f32 %v7197, %v7213
    %v7286 = vmul.f32 %v7198, %v7214
    %v7287 = vmul.f32 %v7199, %v7215
    %v7288 = vmul.f32 %v7200, %v7216
    %v7289 = vmul.f32 %v7201, %v7217
    %v7290 = vmul.f32 %v7202, %v7218
    %v7291 = vmul.f32 %v7203, %v7219
    %v7292 = vmul.f32 %v7284, %v7212
    %v7293 = vmul.f32 %v7285, %v7213
    %v7294 = vmul.f32 %v7286, %v7214
    %v7295 = vmul.f32 %v7287, %v7215
    %v7296 = vmul.f32 %v7288, %v7216
    %v7297 = vmul.f32 %v7289, %v7217
    %v7298 = vmul.f32 %v7290, %v7218
    %v7299 = vmul.f32 %v7291, %v7219
    %7308 = vrot.lane.b32.xlu0 %v7292, 3
    %v7309 = vpop.permute.xlu0 %7308
    %7310 = vrot.lane.b32.xlu0 %v7293, 3
    %v7311 = vpop.permute.xlu0 %7310
    %7312 = vrot.lane.b32.xlu0 %v7294, 3
    %v7313 = vpop.permute.xlu0 %7312
    %7314 = vrot.lane.b32.xlu0 %v7295, 3
    %v7315 = vpop.permute.xlu0 %7314
    %7316 = vrot.lane.b32.xlu0 %v7296, 3
    %v7317 = vpop.permute.xlu0 %7316
    %7318 = vrot.lane.b32.xlu0 %v7297, 3
    %v7319 = vpop.permute.xlu0 %7318
    %7320 = vrot.lane.b32.xlu0 %v7298, 3
    %v7321 = vpop.permute.xlu0 %7320
    %7322 = vrot.lane.b32.xlu0 %v7299, 3
    %v7323 = vpop.permute.xlu0 %7322
    %v7332 = vmul.f32 %v7276, %v7309
    %v7333 = vmul.f32 %v7277, %v7311
    %v7334 = vmul.f32 %v7278, %v7313
    %v7335 = vmul.f32 %v7279, %v7315
    %v7336 = vmul.f32 %v7280, %v7317
    %v7337 = vmul.f32 %v7281, %v7319
    %v7338 = vmul.f32 %v7282, %v7321
    %v7339 = vmul.f32 %v7283, %v7323
    %7348 = vrot.lane.b32.xlu0 %v7276, 126
    %v7349 = vpop.permute.xlu0 %7348
    %7350 = vrot.lane.b32.xlu0 %v7277, 126
    %v7351 = vpop.permute.xlu0 %7350
    %7352 = vrot.lane.b32.xlu0 %v7278, 126
    %v7353 = vpop.permute.xlu0 %7352
    %7354 = vrot.lane.b32.xlu0 %v7279, 126
    %v7355 = vpop.permute.xlu0 %7354
    %7356 = vrot.lane.b32.xlu0 %v7280, 126
    %v7357 = vpop.permute.xlu0 %7356
    %7358 = vrot.lane.b32.xlu0 %v7281, 126
    %v7359 = vpop.permute.xlu0 %7358
    %7360 = vrot.lane.b32.xlu0 %v7282, 126
    %v7361 = vpop.permute.xlu0 %7360
    %7362 = vrot.lane.b32.xlu0 %v7283, 126
    %v7363 = vpop.permute.xlu0 %7362
    %v7372 = vadd.f32 %v7332, %v7349
    %v7373 = vadd.f32 %v7333, %v7351
    %v7374 = vadd.f32 %v7334, %v7353
    %v7375 = vadd.f32 %v7335, %v7355
    %v7376 = vadd.f32 %v7336, %v7357
    %v7377 = vadd.f32 %v7337, %v7359
    %v7378 = vadd.f32 %v7338, %v7361
    %v7379 = vadd.f32 %v7339, %v7363
    %7388 = vrot.lane.b32.xlu0 %v7372, 125
    %v7389 = vpop.permute.xlu0 %7388
    %7390 = vrot.lane.b32.xlu0 %v7373, 125
    %v7391 = vpop.permute.xlu0 %7390
    %7392 = vrot.lane.b32.xlu0 %v7374, 125
    %v7393 = vpop.permute.xlu0 %7392
    %7394 = vrot.lane.b32.xlu0 %v7375, 125
    %v7395 = vpop.permute.xlu0 %7394
    %7396 = vrot.lane.b32.xlu0 %v7376, 125
    %v7397 = vpop.permute.xlu0 %7396
    %7398 = vrot.lane.b32.xlu0 %v7377, 125
    %v7399 = vpop.permute.xlu0 %7398
    %7400 = vrot.lane.b32.xlu0 %v7378, 125
    %v7401 = vpop.permute.xlu0 %7400
    %7402 = vrot.lane.b32.xlu0 %v7379, 125
    %v7403 = vpop.permute.xlu0 %7402
    %v7412 = vsel %vm1835, %v7389, 0.0
    %7413 = vadd.xlane.f32.xlu0 %v7412
    %v7414 = vpop.xlane.xlu0 %7413
    %v7415 = vsel %vm1835, %v7391, 0.0
    %7416 = vadd.xlane.f32.xlu0 %v7415
    %v7417 = vpop.xlane.xlu0 %7416
    %v7418 = vsel %vm1835, %v7393, 0.0
    %7419 = vadd.xlane.f32.xlu0 %v7418
    %v7420 = vpop.xlane.xlu0 %7419
    %v7421 = vsel %vm1835, %v7395, 0.0
    %7422 = vadd.xlane.f32.xlu0 %v7421
    %v7423 = vpop.xlane.xlu0 %7422
    %v7424 = vsel %vm1835, %v7397, 0.0
    %7425 = vadd.xlane.f32.xlu0 %v7424
    %v7426 = vpop.xlane.xlu0 %7425
    %v7427 = vsel %vm1835, %v7399, 0.0
    %7428 = vadd.xlane.f32.xlu0 %v7427
    %v7429 = vpop.xlane.xlu0 %7428
    %v7430 = vsel %vm1835, %v7401, 0.0
    %7431 = vadd.xlane.f32.xlu0 %v7430
    %v7432 = vpop.xlane.xlu0 %7431
    %v7433 = vsel %vm1835, %v7403, 0.0
    %7434 = vadd.xlane.f32.xlu0 %v7433
    %v7435 = vpop.xlane.xlu0 %7434
    %v7436 = vmul.f32 %v7414, 0.5
    %v7437 = vmul.f32 %v7417, 0.5
    %v7438 = vmul.f32 %v7420, 0.5
    %v7439 = vmul.f32 %v7423, 0.5
    %v7440 = vmul.f32 %v7426, 0.5
    %v7441 = vmul.f32 %v7429, 0.5
    %v7442 = vmul.f32 %v7432, 0.5
    %v7443 = vmul.f32 %v7435, 0.5
    %v7444 = vmul.f32 %v7268, %v7268
    %v7445 = vmul.f32 %v7269, %v7269
    %v7446 = vmul.f32 %v7270, %v7270
    %v7447 = vmul.f32 %v7271, %v7271
    %v7448 = vmul.f32 %v7272, %v7272
    %v7449 = vmul.f32 %v7273, %v7273
    %v7450 = vmul.f32 %v7274, %v7274
    %v7451 = vmul.f32 %v7275, %v7275
    %v7452 = vsub.f32 %v7436, %v7444
    %v7453 = vsub.f32 %v7437, %v7445
    %v7454 = vsub.f32 %v7438, %v7446
    %v7455 = vsub.f32 %v7439, %v7447
    %v7456 = vsub.f32 %v7440, %v7448
    %v7457 = vsub.f32 %v7441, %v7449
    %v7458 = vsub.f32 %v7442, %v7450
    %v7459 = vsub.f32 %v7443, %v7451
    %v7460 = vmax.f32 %v7452, 0.0
    %v7461 = vmax.f32 %v7453, 0.0
    %v7462 = vmax.f32 %v7454, 0.0
    %v7463 = vmax.f32 %v7455, 0.0
    %v7464 = vmax.f32 %v7456, 0.0
    %v7465 = vmax.f32 %v7457, 0.0
    %v7466 = vmax.f32 %v7458, 0.0
    %v7467 = vmax.f32 %v7459, 0.0
    %v7468 = vadd.f32 %v7460, 1e-05
    %v7469 = vadd.f32 %v7461, 1e-05
    %v7470 = vadd.f32 %v7462, 1e-05
    %v7471 = vadd.f32 %v7463, 1e-05
    %v7472 = vadd.f32 %v7464, 1e-05
    %v7473 = vadd.f32 %v7465, 1e-05
    %v7474 = vadd.f32 %v7466, 1e-05
    %v7475 = vadd.f32 %v7467, 1e-05
    %v7476 = vrsqrt.pop %v7468
    %v7477 = vrsqrt.pop %v7469
    %v7478 = vrsqrt.pop %v7470
    %v7479 = vrsqrt.pop %v7471
    %v7480 = vrsqrt.pop %v7472
    %v7481 = vrsqrt.pop %v7473
    %v7482 = vrsqrt.pop %v7474
    %v7483 = vrsqrt.pop %v7475
    %v7484 = vmul.f32 %v6777, %v7476
    %v7485 = vmul.f32 %v6778, %v7477
    %v7486 = vmul.f32 %v6779, %v7478
    %v7487 = vmul.f32 %v6780, %v7479
    %v7488 = vmul.f32 %v6781, %v7480
    %v7489 = vmul.f32 %v6782, %v7481
    %v7490 = vmul.f32 %v6783, %v7482
    %v7491 = vmul.f32 %v6784, %v7483
    %7492 = vrot.lane.b32.xlu0 %v6777, 125
    %v7493 = vpop.permute.xlu0 %7492
    %7494 = vrot.lane.b32.xlu0 %v6778, 125
    %v7495 = vpop.permute.xlu0 %7494
    %7496 = vrot.lane.b32.xlu0 %v6779, 125
    %v7497 = vpop.permute.xlu0 %7496
    %7498 = vrot.lane.b32.xlu0 %v6780, 125
    %v7499 = vpop.permute.xlu0 %7498
    %7500 = vrot.lane.b32.xlu0 %v6781, 125
    %v7501 = vpop.permute.xlu0 %7500
    %7502 = vrot.lane.b32.xlu0 %v6782, 125
    %v7503 = vpop.permute.xlu0 %7502
    %7504 = vrot.lane.b32.xlu0 %v6783, 125
    %v7505 = vpop.permute.xlu0 %7504
    %7506 = vrot.lane.b32.xlu0 %v6784, 125
    %v7507 = vpop.permute.xlu0 %7506
    %v7516 = vmul.f32 %v7212, %v7493
    %v7517 = vmul.f32 %v7213, %v7495
    %v7518 = vmul.f32 %v7214, %v7497
    %v7519 = vmul.f32 %v7215, %v7499
    %v7520 = vmul.f32 %v7216, %v7501
    %v7521 = vmul.f32 %v7217, %v7503
    %v7522 = vmul.f32 %v7218, %v7505
    %v7523 = vmul.f32 %v7219, %v7507
    %7525 = vset.pattern.permute.xlu0 1
    %7526 = vperm.xlu0 %7525, %v7484
    %v7527 = vpop.permute.xlu0 %7526
    %7530 = vset.pattern.permute.xlu0 1
    %7531 = vperm.xlu0 %7530, %v7485
    %v7532 = vpop.permute.xlu0 %7531
    %7535 = vset.pattern.permute.xlu0 1
    %7536 = vperm.xlu0 %7535, %v7486
    %v7537 = vpop.permute.xlu0 %7536
    %7540 = vset.pattern.permute.xlu0 1
    %7541 = vperm.xlu0 %7540, %v7487
    %v7542 = vpop.permute.xlu0 %7541
    %7545 = vset.pattern.permute.xlu0 1
    %7546 = vperm.xlu0 %7545, %v7488
    %v7547 = vpop.permute.xlu0 %7546
    %7550 = vset.pattern.permute.xlu0 1
    %7551 = vperm.xlu0 %7550, %v7489
    %v7552 = vpop.permute.xlu0 %7551
    %7555 = vset.pattern.permute.xlu0 1
    %7556 = vperm.xlu0 %7555, %v7490
    %v7557 = vpop.permute.xlu0 %7556
    %7560 = vset.pattern.permute.xlu0 1
    %7561 = vperm.xlu0 %7560, %v7491
    %v7562 = vpop.permute.xlu0 %7561
    %v7564 = vmul.f32 %v7516, %v7527
    %v7565 = vmul.f32 %v7517, %v7532
    %v7566 = vmul.f32 %v7518, %v7537
    %v7567 = vmul.f32 %v7519, %v7542
    %v7568 = vmul.f32 %v7520, %v7547
    %v7569 = vmul.f32 %v7521, %v7552
    %v7570 = vmul.f32 %v7522, %v7557
    %v7571 = vmul.f32 %v7523, %v7562
    %v7572 = vmul.f32 %v7164, %v7212
    %v7573 = vmul.f32 %v7165, %v7213
    %v7574 = vmul.f32 %v7166, %v7214
    %v7575 = vmul.f32 %v7167, %v7215
    %v7576 = vmul.f32 %v7168, %v7216
    %v7577 = vmul.f32 %v7169, %v7217
    %v7578 = vmul.f32 %v7170, %v7218
    %v7579 = vmul.f32 %v7171, %v7219
    %v7580 = vmul.f32 %v7572, %v7493
    %v7581 = vmul.f32 %v7573, %v7495
    %v7582 = vmul.f32 %v7574, %v7497
    %v7583 = vmul.f32 %v7575, %v7499
    %v7584 = vmul.f32 %v7576, %v7501
    %v7585 = vmul.f32 %v7577, %v7503
    %v7586 = vmul.f32 %v7578, %v7505
    %v7587 = vmul.f32 %v7579, %v7507
    %7596 = vrot.lane.b32.xlu0 %v7580, 5
    %v7597 = vpop.permute.xlu0 %7596
    %7598 = vrot.lane.b32.xlu0 %v7581, 5
    %v7599 = vpop.permute.xlu0 %7598
    %7600 = vrot.lane.b32.xlu0 %v7582, 5
    %v7601 = vpop.permute.xlu0 %7600
    %7602 = vrot.lane.b32.xlu0 %v7583, 5
    %v7603 = vpop.permute.xlu0 %7602
    %7604 = vrot.lane.b32.xlu0 %v7584, 5
    %v7605 = vpop.permute.xlu0 %7604
    %7606 = vrot.lane.b32.xlu0 %v7585, 5
    %v7607 = vpop.permute.xlu0 %7606
    %7608 = vrot.lane.b32.xlu0 %v7586, 5
    %v7609 = vpop.permute.xlu0 %7608
    %7610 = vrot.lane.b32.xlu0 %v7587, 5
    %v7611 = vpop.permute.xlu0 %7610
    %v7620 = vsub.f32 %v6777, %v7597
    %v7621 = vsub.f32 %v6778, %v7599
    %v7622 = vsub.f32 %v6779, %v7601
    %v7623 = vsub.f32 %v6780, %v7603
    %v7624 = vsub.f32 %v6781, %v7605
    %v7625 = vsub.f32 %v6782, %v7607
    %v7626 = vsub.f32 %v6783, %v7609
    %v7627 = vsub.f32 %v6784, %v7611
    %v7628 = vsub.f32 %v7620, %v7268
    %v7629 = vsub.f32 %v7621, %v7269
    %v7630 = vsub.f32 %v7622, %v7270
    %v7631 = vsub.f32 %v7623, %v7271
    %v7632 = vsub.f32 %v7624, %v7272
    %v7633 = vsub.f32 %v7625, %v7273
    %v7634 = vsub.f32 %v7626, %v7274
    %v7635 = vsub.f32 %v7627, %v7275
    %v7636 = vmul.f32 %v7628, %v7527
    %v7637 = vmul.f32 %v7629, %v7532
    %v7638 = vmul.f32 %v7630, %v7537
    %v7639 = vmul.f32 %v7631, %v7542
    %v7640 = vmul.f32 %v7632, %v7547
    %v7641 = vmul.f32 %v7633, %v7552
    %v7642 = vmul.f32 %v7634, %v7557
    %v7643 = vmul.f32 %v7635, %v7562
    %7644 = vset.pattern.permute.xlu0 2
    %7645 = vperm.xlu0 %7644, %v6777
    %v7646 = vpop.permute.xlu0 %7645
    %7648 = vset.pattern.permute.xlu0 2
    %7649 = vperm.xlu0 %7648, %v6778
    %v7650 = vpop.permute.xlu0 %7649
    %7652 = vset.pattern.permute.xlu0 2
    %7653 = vperm.xlu0 %7652, %v6779
    %v7654 = vpop.permute.xlu0 %7653
    %7656 = vset.pattern.permute.xlu0 2
    %7657 = vperm.xlu0 %7656, %v6780
    %v7658 = vpop.permute.xlu0 %7657
    %7660 = vset.pattern.permute.xlu0 2
    %7661 = vperm.xlu0 %7660, %v6781
    %v7662 = vpop.permute.xlu0 %7661
    %7664 = vset.pattern.permute.xlu0 2
    %7665 = vperm.xlu0 %7664, %v6782
    %v7666 = vpop.permute.xlu0 %7665
    %7668 = vset.pattern.permute.xlu0 2
    %7669 = vperm.xlu0 %7668, %v6783
    %v7670 = vpop.permute.xlu0 %7669
    %7672 = vset.pattern.permute.xlu0 2
    %7673 = vperm.xlu0 %7672, %v6784
    %v7674 = vpop.permute.xlu0 %7673
    %v7676 = vadd.f32 %v7636, %v7646
    %v7677 = vadd.f32 %v7637, %v7650
    %v7678 = vadd.f32 %v7638, %v7654
    %v7679 = vadd.f32 %v7639, %v7658
    %v7680 = vadd.f32 %v7640, %v7662
    %v7681 = vadd.f32 %v7641, %v7666
    %v7682 = vadd.f32 %v7642, %v7670
    %v7683 = vadd.f32 %v7643, %v7674
    %v7685 = vsel %vm1835, %v7564, 0
    %v7688 = vsel %vm1835, %v7565, 0
    %v7691 = vsel %vm1835, %v7566, 0
    %v7694 = vsel %vm1835, %v7567, 0
    %v7697 = vsel %vm1835, %v7568, 0
    %v7700 = vsel %vm1835, %v7569, 0
    %v7703 = vsel %vm1835, %v7570, 0
    %v7706 = vsel %vm1835, %v7571, 0
    %7708 = vmatprep.subr.mxu0 %v3704
    %7709 = vmatpush1.msra.mxu0 %v3702
    %7710 = vmatprep.subr.mxu0 0.0
    %7711 = vmatpush1.msra.mxu0 0.0
    %7712 = vmatprep.subr.mxu0 0.0
    %7713 = vmatpush1.msra.mxu0 0.0
    %7714 = vmatprep.subr.mxu0 0.0
    %7715 = vmatpush1.msra.mxu0 0.0
    %7716 = vmatprep.subr.mxu0 0.0
    %7717 = vmatpush1.msra.mxu0 0.0
    %7718 = vmatprep.subr.mxu0 0.0
    %7719 = vmatpush1.msra.mxu0 0.0
    %7720 = vmatprep.subr.mxu0 0.0
    %7721 = vmatpush1.msra.mxu0 0.0
    %7722 = vmatprep.subr.mxu0 0.0
    %7723 = vmatpush1.msra.mxu0 0.0
    %7724 = vmatprep.subr.mxu0 0.0
    %7725 = vmatpush1.msra.mxu0 0.0
    %7726 = vmatprep.subr.mxu0 0.0
    %7727 = vmatpush1.msra.mxu0 0.0
    %7728 = vmatprep.subr.mxu0 0.0
    %7729 = vmatpush1.msra.mxu0 0.0
    %7730 = vmatprep.subr.mxu0 0.0
    %7731 = vmatpush1.msra.mxu0 0.0
    %7732 = vmatprep.subr.mxu0 0.0
    %7733 = vmatpush1.msra.mxu0 0.0
    %7734 = vmatprep.subr.mxu0 0.0
    %7735 = vmatpush1.msra.mxu0 0.0
    %7736 = vmatprep.subr.mxu0 0.0
    %7737 = vmatpush1.msra.mxu0 0.0
    %7738 = vmatprep.subr.mxu0 0.0
    %7739 = vmatpush1.msra.mxu0 0.0
    %7740 = vmatprep.subr.mxu0 0.0
    %7741 = vmatpush1.msra.mxu0 0.0
    %7742 = vmatprep.subr.mxu0 0.0
    %7743 = vmatpush1.msra.mxu0 0.0
    %7744 = vmatprep.subr.mxu0 0.0
    %7745 = vmatpush1.msra.mxu0 0.0
    %7746 = vmatprep.subr.mxu0 0.0
    %7747 = vmatpush1.msra.mxu0 0.0
    %7748 = vmatprep.subr.mxu0 0.0
    %7749 = vmatpush1.msra.mxu0 0.0
    %7750 = vmatprep.subr.mxu0 0.0
    %7751 = vmatpush1.msra.mxu0 0.0
    %7752 = vmatprep.subr.mxu0 0.0
    %7753 = vmatpush1.msra.mxu0 0.0
    %7754 = vmatprep.subr.mxu0 0.0
    %7755 = vmatpush1.msra.mxu0 0.0
    %7756 = vmatprep.subr.mxu0 0.0
    %7757 = vmatpush1.msra.mxu0 0.0
    %7758 = vmatprep.subr.mxu0 0.0
    %7759 = vmatpush1.msra.mxu0 0.0
    %7760 = vmatprep.subr.mxu0 0.0
    %7761 = vmatpush1.msra.mxu0 0.0
    %7762 = vmatprep.subr.mxu0 0.0
    %7763 = vmatpush1.msra.mxu0 0.0
    %7764 = vmatprep.subr.mxu0 0.0
    %7765 = vmatpush1.msra.mxu0 0.0
    %7766 = vmatprep.subr.mxu0 0.0
    %7767 = vmatpush1.msra.mxu0 0.0
    %7768 = vmatprep.subr.mxu0 0.0
    %7769 = vmatpush1.msra.mxu0 0.0
    %7770 = vmatprep.subr.mxu0 0.0
    %7771 = vmatpush1.msra.mxu0 0.0
    %7772 = vmatprep.mubr.f32.mxu0 0.0
    %7773 = vmatmul.mubr.f32.gmra.mrb[0].mxu0 %v7685
    %v7774 = vpop.f32.mrb[0].mxu0
    %v7775 = vadd.f32 0.0, %v7774
    %v7776 = vpop.f32.mrb[0].mxu0
    %v7777 = vadd.f32 0.0, %v7776
    %7778 = vmatprep.mubr.f32.mxu0 0.0
    %7779 = vmatmul.mubr.f32.gmra.mrb[0].mxu0 %v7688
    %v7780 = vpop.f32.mrb[0].mxu0
    %v7781 = vadd.f32 0.0, %v7780
    %v7782 = vpop.f32.mrb[0].mxu0
    %v7783 = vadd.f32 0.0, %v7782
    %7784 = vmatprep.mubr.f32.mxu0 0.0
    %7785 = vmatmul.mubr.f32.gmra.mrb[0].mxu0 %v7691
    %v7786 = vpop.f32.mrb[0].mxu0
    %v7787 = vadd.f32 0.0, %v7786
    %v7788 = vpop.f32.mrb[0].mxu0
    %v7789 = vadd.f32 0.0, %v7788
    %7790 = vmatprep.mubr.f32.mxu0 0.0
    %7791 = vmatmul.mubr.f32.gmra.mrb[0].mxu0 %v7694
    %v7792 = vpop.f32.mrb[0].mxu0
    %v7793 = vadd.f32 0.0, %v7792
    %v7794 = vpop.f32.mrb[0].mxu0
    %v7795 = vadd.f32 0.0, %v7794
    %7796 = vmatprep.mubr.f32.mxu0 0.0
    %7797 = vmatmul.mubr.f32.gmra.mrb[0].mxu0 %v7697
    %v7798 = vpop.f32.mrb[0].mxu0
    %v7799 = vadd.f32 0.0, %v7798
    %v7800 = vpop.f32.mrb[0].mxu0
    %v7801 = vadd.f32 0.0, %v7800
    %7802 = vmatprep.mubr.f32.mxu0 0.0
    %7803 = vmatmul.mubr.f32.gmra.mrb[0].mxu0 %v7700
    %v7804 = vpop.f32.mrb[0].mxu0
    %v7805 = vadd.f32 0.0, %v7804
    %v7806 = vpop.f32.mrb[0].mxu0
    %v7807 = vadd.f32 0.0, %v7806
    %7808 = vmatprep.mubr.f32.mxu0 0.0
    %7809 = vmatmul.mubr.f32.gmra.mrb[0].mxu0 %v7703
    %v7810 = vpop.f32.mrb[0].mxu0
    %v7811 = vadd.f32 0.0, %v7810
    %v7812 = vpop.f32.mrb[0].mxu0
    %v7813 = vadd.f32 0.0, %v7812
    %7814 = vmatprep.mubr.f32.mxu0 0.0
    %7815 = vmatmul.mubr.f32.gmra.mrb[0].mxu0 %v7706
    %v7816 = vpop.f32.mrb[0].mxu0
    %v7817 = vadd.f32 0.0, %v7816
    %v7818 = vpop.f32.mrb[0].mxu0
    %v7819 = vadd.f32 0.0, %v7818
    %7820 = vdwg.mxu0
    %7829 = vrot.lane.b32.xlu0 %v7676, 123
    %v7830 = vpop.permute.xlu0 %7829
    %7831 = vrot.lane.b32.xlu0 %v7677, 123
    %v7832 = vpop.permute.xlu0 %7831
    %7833 = vrot.lane.b32.xlu0 %v7678, 123
    %v7834 = vpop.permute.xlu0 %7833
    %7835 = vrot.lane.b32.xlu0 %v7679, 123
    %v7836 = vpop.permute.xlu0 %7835
    %7837 = vrot.lane.b32.xlu0 %v7680, 123
    %v7838 = vpop.permute.xlu0 %7837
    %7839 = vrot.lane.b32.xlu0 %v7681, 123
    %v7840 = vpop.permute.xlu0 %7839
    %7841 = vrot.lane.b32.xlu0 %v7682, 123
    %v7842 = vpop.permute.xlu0 %7841
    %7843 = vrot.lane.b32.xlu0 %v7683, 123
    %v7844 = vpop.permute.xlu0 %7843
    %v7845 = vsel %vm1835, %v7830, 0
    %v7847 = vsel %vm1835, %v7832, 0
    %v7849 = vsel %vm1835, %v7834, 0
    %v7851 = vsel %vm1835, %v7836, 0
    %v7853 = vsel %vm1835, %v7838, 0
    %v7855 = vsel %vm1835, %v7840, 0
    %v7857 = vsel %vm1835, %v7842, 0
    %v7859 = vsel %vm1835, %v7844, 0
    %7861 = vmatprep.subr.mxu0 %v3704
    %7862 = vmatpush1.msra.mxu0 %v3702
    %7863 = vmatprep.subr.mxu0 0.0
    %7864 = vmatpush1.msra.mxu0 0.0
    %7865 = vmatprep.subr.mxu0 0.0
    %7866 = vmatpush1.msra.mxu0 0.0
    %7867 = vmatprep.subr.mxu0 0.0
    %7868 = vmatpush1.msra.mxu0 0.0
    %7869 = vmatprep.subr.mxu0 0.0
    %7870 = vmatpush1.msra.mxu0 0.0
    %7871 = vmatprep.subr.mxu0 0.0
    %7872 = vmatpush1.msra.mxu0 0.0
    %7873 = vmatprep.subr.mxu0 0.0
    %7874 = vmatpush1.msra.mxu0 0.0
    %7875 = vmatprep.subr.mxu0 0.0
    %7876 = vmatpush1.msra.mxu0 0.0
    %7877 = vmatprep.subr.mxu0 0.0
    %7878 = vmatpush1.msra.mxu0 0.0
    %7879 = vmatprep.subr.mxu0 0.0
    %7880 = vmatpush1.msra.mxu0 0.0
    %7881 = vmatprep.subr.mxu0 0.0
    %7882 = vmatpush1.msra.mxu0 0.0
    %7883 = vmatprep.subr.mxu0 0.0
    %7884 = vmatpush1.msra.mxu0 0.0
    %7885 = vmatprep.subr.mxu0 0.0
    %7886 = vmatpush1.msra.mxu0 0.0
    %7887 = vmatprep.subr.mxu0 0.0
    %7888 = vmatpush1.msra.mxu0 0.0
    %7889 = vmatprep.subr.mxu0 0.0
    %7890 = vmatpush1.msra.mxu0 0.0
    %7891 = vmatprep.subr.mxu0 0.0
    %7892 = vmatpush1.msra.mxu0 0.0
    %7893 = vmatprep.subr.mxu0 0.0
    %7894 = vmatpush1.msra.mxu0 0.0
    %7895 = vmatprep.subr.mxu0 0.0
    %7896 = vmatpush1.msra.mxu0 0.0
    %7897 = vmatprep.subr.mxu0 0.0
    %7898 = vmatpush1.msra.mxu0 0.0
    %7899 = vmatprep.subr.mxu0 0.0
    %7900 = vmatpush1.msra.mxu0 0.0
    %7901 = vmatprep.subr.mxu0 0.0
    %7902 = vmatpush1.msra.mxu0 0.0
    %7903 = vmatprep.subr.mxu0 0.0
    %7904 = vmatpush1.msra.mxu0 0.0
    %7905 = vmatprep.subr.mxu0 0.0
    %7906 = vmatpush1.msra.mxu0 0.0
    %7907 = vmatprep.subr.mxu0 0.0
    %7908 = vmatpush1.msra.mxu0 0.0
    %7909 = vmatprep.subr.mxu0 0.0
    %7910 = vmatpush1.msra.mxu0 0.0
    %7911 = vmatprep.subr.mxu0 0.0
    %7912 = vmatpush1.msra.mxu0 0.0
    %7913 = vmatprep.subr.mxu0 0.0
    %7914 = vmatpush1.msra.mxu0 0.0
    %7915 = vmatprep.subr.mxu0 0.0
    %7916 = vmatpush1.msra.mxu0 0.0
    %7917 = vmatprep.subr.mxu0 0.0
    %7918 = vmatpush1.msra.mxu0 0.0
    %7919 = vmatprep.subr.mxu0 0.0
    %7920 = vmatpush1.msra.mxu0 0.0
    %7921 = vmatprep.subr.mxu0 0.0
    %7922 = vmatpush1.msra.mxu0 0.0
    %7923 = vmatprep.subr.mxu0 0.0
    %7924 = vmatpush1.msra.mxu0 0.0
    %7925 = vmatprep.mubr.f32.mxu0 0.0
    %7926 = vmatmul.mubr.f32.gmra.mrb[0].mxu0 %v7845
    %v7927 = vpop.f32.mrb[0].mxu0
    %v7928 = vadd.f32 0.0, %v7927
    %v7929 = vpop.f32.mrb[0].mxu0
    %v7930 = vadd.f32 0.0, %v7929
    %7931 = vmatprep.mubr.f32.mxu0 0.0
    %7932 = vmatmul.mubr.f32.gmra.mrb[0].mxu0 %v7847
    %v7933 = vpop.f32.mrb[0].mxu0
    %v7934 = vadd.f32 0.0, %v7933
    %v7935 = vpop.f32.mrb[0].mxu0
    %v7936 = vadd.f32 0.0, %v7935
    %7937 = vmatprep.mubr.f32.mxu0 0.0
    %7938 = vmatmul.mubr.f32.gmra.mrb[0].mxu0 %v7849
    %v7939 = vpop.f32.mrb[0].mxu0
    %v7940 = vadd.f32 0.0, %v7939
    %v7941 = vpop.f32.mrb[0].mxu0
    %v7942 = vadd.f32 0.0, %v7941
    %7943 = vmatprep.mubr.f32.mxu0 0.0
    %7944 = vmatmul.mubr.f32.gmra.mrb[0].mxu0 %v7851
    %v7945 = vpop.f32.mrb[0].mxu0
    %v7946 = vadd.f32 0.0, %v7945
    %v7947 = vpop.f32.mrb[0].mxu0
    %v7948 = vadd.f32 0.0, %v7947
    %7949 = vmatprep.mubr.f32.mxu0 0.0
    %7950 = vmatmul.mubr.f32.gmra.mrb[0].mxu0 %v7853
    %v7951 = vpop.f32.mrb[0].mxu0
    %v7952 = vadd.f32 0.0, %v7951
    %v7953 = vpop.f32.mrb[0].mxu0
    %v7954 = vadd.f32 0.0, %v7953
    %7955 = vmatprep.mubr.f32.mxu0 0.0
    %7956 = vmatmul.mubr.f32.gmra.mrb[0].mxu0 %v7855
    %v7957 = vpop.f32.mrb[0].mxu0
    %v7958 = vadd.f32 0.0, %v7957
    %v7959 = vpop.f32.mrb[0].mxu0
    %v7960 = vadd.f32 0.0, %v7959
    %7961 = vmatprep.mubr.f32.mxu0 0.0
    %7962 = vmatmul.mubr.f32.gmra.mrb[0].mxu0 %v7857
    %v7963 = vpop.f32.mrb[0].mxu0
    %v7964 = vadd.f32 0.0, %v7963
    %v7965 = vpop.f32.mrb[0].mxu0
    %v7966 = vadd.f32 0.0, %v7965
    %7967 = vmatprep.mubr.f32.mxu0 0.0
    %7968 = vmatmul.mubr.f32.gmra.mrb[0].mxu0 %v7859
    %v7969 = vpop.f32.mrb[0].mxu0
    %v7970 = vadd.f32 0.0, %v7969
    %v7971 = vpop.f32.mrb[0].mxu0
    %v7972 = vadd.f32 0.0, %v7971
    %7973 = vdwg.mxu0
    %v7974 = vmul.f32 %v6892, %v7775
    %v7975 = vmul.f32 %v6894, %v7777
    %v7976 = vmul.f32 %v6898, %v7781
    %v7977 = vmul.f32 %v6900, %v7783
    %v7978 = vmul.f32 %v6904, %v7787
    %v7979 = vmul.f32 %v6906, %v7789
    %v7980 = vmul.f32 %v6910, %v7793
    %v7981 = vmul.f32 %v6912, %v7795
    %v7982 = vmul.f32 %v6916, %v7799
    %v7983 = vmul.f32 %v6918, %v7801
    %v7984 = vmul.f32 %v6922, %v7805
    %v7985 = vmul.f32 %v6924, %v7807
    %v7986 = vmul.f32 %v6928, %v7811
    %v7987 = vmul.f32 %v6930, %v7813
    %v7988 = vmul.f32 %v6934, %v7817
    %v7989 = vmul.f32 %v6936, %v7819
    %v7990 = vadd.f32 %v7974, %v7928
    %v7991 = vadd.f32 %v7975, %v7930
    %v7992 = vadd.f32 %v7976, %v7934
    %v7993 = vadd.f32 %v7977, %v7936
    %v7994 = vadd.f32 %v7978, %v7940
    %v7995 = vadd.f32 %v7979, %v7942
    %v7996 = vadd.f32 %v7980, %v7946
    %v7997 = vadd.f32 %v7981, %v7948
    %v7998 = vadd.f32 %v7982, %v7952
    %v7999 = vadd.f32 %v7983, %v7954
    %v8000 = vadd.f32 %v7984, %v7958
    %v8001 = vadd.f32 %v7985, %v7960
    %v8002 = vadd.f32 %v7986, %v7964
    %v8003 = vadd.f32 %v7987, %v7966
    %v8004 = vadd.f32 %v7988, %v7970
    %v8005 = vadd.f32 %v7989, %v7972
    %v8006 = vmax.f32 %v7990, 0.0
    %v8007 = vmax.f32 %v7991, 0.0
    %v8008 = vmax.f32 %v7992, 0.0
    %v8009 = vmax.f32 %v7993, 0.0
    %v8010 = vmax.f32 %v7994, 0.0
    %v8011 = vmax.f32 %v7995, 0.0
    %v8012 = vmax.f32 %v7996, 0.0
    %v8013 = vmax.f32 %v7997, 0.0
    %v8014 = vmax.f32 %v7998, 0.0
    %v8015 = vmax.f32 %v7999, 0.0
    %v8016 = vmax.f32 %v8000, 0.0
    %v8017 = vmax.f32 %v8001, 0.0
    %v8018 = vmax.f32 %v8002, 0.0
    %v8019 = vmax.f32 %v8003, 0.0
    %v8020 = vmax.f32 %v8004, 0.0
    %v8021 = vmax.f32 %v8005, 0.0
    %v8022 = vld [vmem:[%s9] sm:$0xff]
    %v8023 = vld [vmem:[%s10] sm:$0xff]
    %8025 = vset.pattern.permute.xlu0 0
    %8026 = vperm.xlu0 %8025, %v8023
    %v8027 = vpop.permute.xlu0 %8026
    %vm8029 = vcmask 523264
    %v8031 = vsel %vm8029, %v8022, 0
    %8033 = vmatprep.subr.mxu0 %v8007
    %8034 = vmatpush1.msra.mxu0 %v8006
    %8035 = vmatprep.subr.mxu0 %v8009
    %8036 = vmatpush1.msra.mxu0 %v8008
    %8037 = vmatprep.subr.mxu0 %v8011
    %8038 = vmatpush1.msra.mxu0 %v8010
    %8039 = vmatprep.subr.mxu0 %v8013
    %8040 = vmatpush1.msra.mxu0 %v8012
    %8041 = vmatprep.subr.mxu0 %v8015
    %8042 = vmatpush1.msra.mxu0 %v8014
    %8043 = vmatprep.subr.mxu0 %v8017
    %8044 = vmatpush1.msra.mxu0 %v8016
    %8045 = vmatprep.subr.mxu0 %v8019
    %8046 = vmatpush1.msra.mxu0 %v8018
    %8047 = vmatprep.subr.mxu0 %v8021
    %8048 = vmatpush1.msra.mxu0 %v8020
    %8049 = vmatprep.subr.mxu0 0.0
    %8050 = vmatpush1.msra.mxu0 0.0
    %8051 = vmatprep.subr.mxu0 0.0
    %8052 = vmatpush1.msra.mxu0 0.0
    %8053 = vmatprep.subr.mxu0 0.0
    %8054 = vmatpush1.msra.mxu0 0.0
    %8055 = vmatprep.subr.mxu0 0.0
    %8056 = vmatpush1.msra.mxu0 0.0
    %8057 = vmatprep.subr.mxu0 0.0
    %8058 = vmatpush1.msra.mxu0 0.0
    %8059 = vmatprep.subr.mxu0 0.0
    %8060 = vmatpush1.msra.mxu0 0.0
    %8061 = vmatprep.subr.mxu0 0.0
    %8062 = vmatpush1.msra.mxu0 0.0
    %8063 = vmatprep.subr.mxu0 0.0
    %8064 = vmatpush1.msra.mxu0 0.0
    %8065 = vmatprep.subr.mxu0 0.0
    %8066 = vmatpush1.msra.mxu0 0.0
    %8067 = vmatprep.subr.mxu0 0.0
    %8068 = vmatpush1.msra.mxu0 0.0
    %8069 = vmatprep.subr.mxu0 0.0
    %8070 = vmatpush1.msra.mxu0 0.0
    %8071 = vmatprep.subr.mxu0 0.0
    %8072 = vmatpush1.msra.mxu0 0.0
    %8073 = vmatprep.subr.mxu0 0.0
    %8074 = vmatpush1.msra.mxu0 0.0
    %8075 = vmatprep.subr.mxu0 0.0
    %8076 = vmatpush1.msra.mxu0 0.0
    %8077 = vmatprep.subr.mxu0 0.0
    %8078 = vmatpush1.msra.mxu0 0.0
    %8079 = vmatprep.subr.mxu0 0.0
    %8080 = vmatpush1.msra.mxu0 0.0
    %8081 = vmatprep.subr.mxu0 0.0
    %8082 = vmatpush1.msra.mxu0 0.0
    %8083 = vmatprep.subr.mxu0 0.0
    %8084 = vmatpush1.msra.mxu0 0.0
    %8085 = vmatprep.subr.mxu0 0.0
    %8086 = vmatpush1.msra.mxu0 0.0
    %8087 = vmatprep.subr.mxu0 0.0
    %8088 = vmatpush1.msra.mxu0 0.0
    %8089 = vmatprep.subr.mxu0 0.0
    %8090 = vmatpush1.msra.mxu0 0.0
    %8091 = vmatprep.subr.mxu0 0.0
    %8092 = vmatpush1.msra.mxu0 0.0
    %8093 = vmatprep.subr.mxu0 0.0
    %8094 = vmatpush1.msra.mxu0 0.0
    %8095 = vmatprep.subr.mxu0 0.0
    %8096 = vmatpush1.msra.mxu0 0.0
    %8097 = vmatprep.mubr.f32.mxu0 0.0
    %8098 = vmatmul.mubr.f32.gmra.mrb[0].mxu0 %v8031
    %v8099 = vpop.f32.mrb[0].mxu0
    %v8100 = vadd.f32 %v8027, %v8099
    %v8101 = vpop.f32.mrb[0].mxu0
    %v8102 = vadd.f32 %v8027, %v8101
    %8103 = vdwg.mxu0
    %v8104 = vtanh.pop %v8100
    %v8105 = vtanh.pop %v8102
    %8106 = vst [vmem:[%s11] sm:$0xff] %v8104
    %s8107 = scalar_lea.vmem %s11, 8
    %8108 = vst [vmem:[%s8107] sm:$0xff] %v8105
    // Predicated region
    $region114: #{pointgencon_forward.1} parent=1 // pred_check
      _
    $region115: #{pointgencon_forward.1} parent=1 // pred_check_branch
      %8110 = sbr.rel (0) target = $region117
    $region116: #{pointgencon_forward.1} parent=1 // pred_region
      _
    $region117: #{pointgencon_forward.1} parent=1 // pred_fallthru
      _
    // Predicated region
    $region118: #{pointgencon_forward.1} parent=1 // pred_check
      _
    $region119: #{pointgencon_forward.1} parent=1 // pred_check_branch
      %8112 = sbr.rel (0) target = $region121
    $region120: #{pointgencon_forward.1} parent=1 // pred_region
      _
    $region121: #{pointgencon_forward.1} parent=1 // pred_fallthru
      _
    %8113 = vsyncpa [#allocation5], 1
  %8114 = vsyncmov [#allocation3]
  %s8115 = vpop.sfrf %8114
  %p8116 = scmp.eq.s32.totalorder %s8115, 0
  %p8117 = pneg %p8116
  %8119 = shalt.err (%p8117)
  %s8120 = scalar_lea.sflag [#allocation3], 1
  %8121 = vsyncmov %s8120
  %s8122 = vpop.sfrf %8121
  %p8123 = scmp.eq.s32.totalorder %s8122, 0
  %p8124 = pneg %p8123
  %8126 = shalt.err (%p8124)

</llo_original>
